<compile_context>
chip_gen: v7x
topology: tpu7x:2x2x1
jax: 0.10.0
libtpu: 0.0.40
codegen_flags: <defaults>
</compile_context>

<pallas_src>
import functools

import numpy as np
import jax
import jax.numpy as jnp
from jax.experimental import pallas as pl
from jax.experimental.pallas import tpu as pltpu


# --------------------------------------------------------------------------------------
# config (small synthetic TRBA)
# --------------------------------------------------------------------------------------
class CFG:
    input_channels = 1
    input_size = (16, 32)      # (H, W)
    n_fiducial = 20
    hidden_size = 32
    seq_input_size = 64        # C_out * H_out of the feature extractor (32 * 2)
    n_class = 12               # [GO], [s], 10 synthetic characters
    max_length = 8


def _round_up(x, m):
    return ((x + m - 1) // m) * m


def _pad_axis(x, target, axis):
    pad = target - x.shape[axis]
    if pad == 0:
        return x
    cfg = [(0, 0)] * x.ndim
    cfg[axis] = (0, pad)
    return jnp.pad(x, cfg)


# --------------------------------------------------------------------------------------
# fused Pallas matmul + bias + optional ReLU (used by conv-im2col, linears, LSTM proj)
# K and N are NOT padded to 128: they are passed as full-extent blocks (K rounded to 8),
# so there is no K grid loop and no accumulator scratch.
# --------------------------------------------------------------------------------------
def _mm_bias_act_kernel(a_ref, b_ref, bias_ref, o_ref, *, act):
    y = jnp.dot(a_ref[...], b_ref[...], preferred_element_type=jnp.float32)
    y = y + bias_ref[...]
    if act == "relu":
        y = jnp.maximum(y, 0.0)
    o_ref[...] = y


def pallas_matmul_fused(a, b, bias=None, act=None):
    """a: [M, K], b: [K, N] -> relu?(a @ b + bias), f32."""
    M, K = a.shape
    K2, N = b.shape
    assert K == K2
    a = a.astype(jnp.float32)
    b = b.astype(jnp.float32)

    Kp = _round_up(K, 8)              # zero-pad contraction to sublane multiple (exact math)
    a = _pad_axis(a, Kp, 1)
    b = _pad_axis(b, Kp, 0)

    if M > 128:
        Mp = _round_up(M, 128)
        tm = 128
    else:
        Mp = _round_up(M, 8)
        tm = Mp
    a = _pad_axis(a, Mp, 0)

    bias2 = (jnp.zeros((1, N), jnp.float32) if bias is None
             else bias.astype(jnp.float32).reshape(1, N))

    out = pl.pallas_call(
        functools.partial(_mm_bias_act_kernel, act=act),
        out_shape=jax.ShapeDtypeStruct((Mp, N), jnp.float32),
        grid_spec=pltpu.PrefetchScalarGridSpec(
            num_scalar_prefetch=0,
            grid=(Mp // tm,),
            in_specs=[pl.BlockSpec((tm, Kp), lambda i: (i, 0)),
                      pl.BlockSpec((Kp, N), lambda i: (0, 0)),
                      pl.BlockSpec((1, N), lambda i: (0, 0))],
            out_specs=pl.BlockSpec((tm, N), lambda i: (i, 0))),
        compiler_params=pltpu.CompilerParams(dimension_semantics=("parallel",)),
    )(a, b, bias2)
    return out[:M]


def linear(x, w, b=None, act=None):
    """PyTorch nn.Linear semantics: y = act(x @ w.T + b); w: [out, in]."""
    x2 = x.reshape(-1, x.shape[-1])
    y = pallas_matmul_fused(x2, w.T, b, act)
    return y.reshape(x.shape[:-1] + (w.shape[0],))


# --------------------------------------------------------------------------------------
# conv2d via im2col + fused Pallas matmul (bias + ReLU in the epilogue), pooling glue
# --------------------------------------------------------------------------------------
def conv2d(x, w, b=None, stride=(1, 1), padding=(1, 1), act=None):
    """x: [B, Cin, H, W] (NCHW), w: [Cout, Cin, kh, kw] (PyTorch layout)."""
    B, C, H, W = x.shape
    Cout, Cin, kh, kw = w.shape
    ph, pw = padding
    sh, sw = stride
    xp = jnp.pad(x, ((0, 0), (0, 0), (ph, ph), (pw, pw)))
    Ho = (H + 2 * ph - kh) // sh + 1
    Wo = (W + 2 * pw - kw) // sw + 1
    cols = []
    for i in range(kh):
        for j in range(kw):
            cols.append(xp[:, :, i:i + sh * (Ho - 1) + 1:sh, j:j + sw * (Wo - 1) + 1:sw])
    patches = jnp.stack(cols, axis=2)                              # [B, Cin, kh*kw, Ho, Wo]
    patches = patches.transpose(0, 3, 4, 1, 2).reshape(B * Ho * Wo, Cin * kh * kw)
    w_mat = w.reshape(Cout, Cin * kh * kw).T                       # [Cin*kh*kw, Cout]
    out = pallas_matmul_fused(patches, w_mat, b, act)
    return out.reshape(B, Ho, Wo, Cout).transpose(0, 3, 1, 2)


def maxpool2d(x, kh=2, kw=2):
    B, C, H, W = x.shape
    return x.reshape(B, C, H // kh, kh, W // kw, kw).max(axis=(3, 5))


def avgpool2d(x, kh=2, kw=2):
    B, C, H, W = x.shape
    return x.reshape(B, C, H // kh, kh, W // kw, kw).mean(axis=(3, 5))


# --------------------------------------------------------------------------------------
# fused bidirectional LSTM kernel: both directions in one pallas_call.
# Time is the grid axis; (h, c) for both directions live in VMEM scratch.
# The reverse direction is handled purely by reversed index_maps (no [::-1] copies).
# --------------------------------------------------------------------------------------
def _bilstm_kernel(xpf_ref, xpr_ref, whh_ref, outf_ref, outr_ref, h_sc, c_sc):
    t = pl.program_id(0)

    @pl.when(t == 0)
    def _():
        h_sc[...] = jnp.zeros_like(h_sc)
        c_sc[...] = jnp.zeros_like(c_sc)

    H = h_sc.shape[2]
    for d, (xp_ref, out_ref) in enumerate(((xpf_ref, outf_ref), (xpr_ref, outr_ref))):
        h = h_sc[d]
        c = c_sc[d]
        x_part = xp_ref[0][:, d * 4 * H:(d + 1) * 4 * H]            # this direction's i2h proj
        gates = x_part + jnp.dot(h, whh_ref[d], preferred_element_type=jnp.float32)
        i_g = jax.nn.sigmoid(gates[:, 0 * H:1 * H])
        f_g = jax.nn.sigmoid(gates[:, 1 * H:2 * H])
        g_g = jnp.tanh(gates[:, 2 * H:3 * H])
        o_g = jax.nn.sigmoid(gates[:, 3 * H:4 * H])
        c_new = f_g * c + i_g * g_g
        h_new = o_g * jnp.tanh(c_new)
        h_sc[d] = h_new
        c_sc[d] = c_new
        out_ref[0] = h_new


def bidirectional_lstm(x, p):
    """BidirectionalLSTM: nn.LSTM(bidirectional=True) + Linear(2H -> out). x: [B, T, D]."""
    B, T, D = x.shape
    H = p['W_hh_f'].shape[1]

    # one fused input projection for both directions: [B*T, D] @ [D, 8H]
    Wcat = jnp.concatenate([p['W_ih_f'].T, p['W_ih_r'].T], axis=1)                 # [D, 8H]
    bcat = jnp.concatenate([p['b_ih_f'] + p['b_hh_f'], p['b_ih_r'] + p['b_hh_r']])  # [8H]
    xp = pallas_matmul_fused(x.reshape(B * T, D), Wcat, bcat)
    xp = xp.reshape(B, T, 8 * H).transpose(1, 0, 2)                                 # [T, B, 8H]

    whh = jnp.stack([p['W_hh_f'].T, p['W_hh_r'].T], axis=0)                         # [2, H, 4H]

    hf, hr = pl.pallas_call(
        _bilstm_kernel,
        out_shape=(jax.ShapeDtypeStruct((T, B, H), jnp.float32),
                   jax.ShapeDtypeStruct((T, B, H), jnp.float32)),
        grid_spec=pltpu.PrefetchScalarGridSpec(
            num_scalar_prefetch=0, grid=(T,),
            in_specs=[pl.BlockSpec((1, B, 8 * H), lambda t: (t, 0, 0)),
                      pl.BlockSpec((1, B, 8 * H), lambda t, T=T: (T - 1 - t, 0, 0)),
                      pl.BlockSpec((2, H, 4 * H), lambda t: (0, 0, 0))],
            out_specs=[pl.BlockSpec((1, B, H), lambda t: (t, 0, 0)),
                       pl.BlockSpec((1, B, H), lambda t, T=T: (T - 1 - t, 0, 0))],
            scratch_shapes=[pltpu.VMEM((2, B, H), jnp.float32),
                            pltpu.VMEM((2, B, H), jnp.float32)]),
        compiler_params=pltpu.CompilerParams(dimension_semantics=("arbitrary",)),
    )(xp, xp, whh)

    h = jnp.concatenate([hf, hr], axis=-1).transpose(1, 0, 2)                       # [B, T, 2H]
    return linear(h, p['lin_W'], p['lin_b'])


# --------------------------------------------------------------------------------------
# fused attention decoder kernel (greedy decoding; grid axis = decode step).
# Gate matmuls fused into a single dot; class dim padded to 128 for lane-dense stores.
# --------------------------------------------------------------------------------------
def _attn_decode_kernel(bH_ref, bHp_ref, h2hW_ref, h2hb_ref, scoreW_ref,
                        Wcat_ref, rnnb_ref, genW_ref, genb_ref,
                        probs_ref, h_sc, c_sc, oh_sc):
    step = pl.program_id(0)

    @pl.when(step == 0)
    def _():
        h_sc[...] = jnp.zeros_like(h_sc)
        c_sc[...] = jnp.zeros_like(c_sc)
        # previous token starts as [GO] (index 0)
        oh_sc[...] = (jax.lax.broadcasted_iota(jnp.int32, oh_sc.shape, 1) == 0
                      ).astype(jnp.float32)

    h = h_sc[...]
    c = c_sc[...]
    H = h.shape[1]
    nCp = oh_sc.shape[1]

    bH = bH_ref[...]        # [B, T, I]
    bHp = bHp_ref[...]      # [B, T, H]  (precomputed i2h(batch_H))

    # attention scores
    hp = jnp.dot(h, h2hW_ref[...], preferred_element_type=jnp.float32) + h2hb_ref[...]
    e = jnp.tanh(bHp + hp[:, None, :])                            # [B, T, H]
    scores = jnp.sum(e * scoreW_ref[...], axis=2)                 # [B, T]
    alpha = jax.nn.softmax(scores, axis=1)                        # [B, T]
    context = jnp.sum(alpha[:, :, None] * bH, axis=1)             # [B, I]

    # LSTMCell on [context, one_hot(prev_char)] : single fused gate matmul
    xcat = jnp.concatenate([context, oh_sc[...], h], axis=1)      # [B, I + nCp + H]
    gates = (jnp.dot(xcat, Wcat_ref[...], preferred_element_type=jnp.float32)
             + rnnb_ref[...])
    i_g = jax.nn.sigmoid(gates[:, 0 * H:1 * H])
    f_g = jax.nn.sigmoid(gates[:, 1 * H:2 * H])
    g_g = jnp.tanh(gates[:, 2 * H:3 * H])
    o_g = jax.nn.sigmoid(gates[:, 3 * H:4 * H])
    c_new = f_g * c + i_g * g_g
    h_new = o_g * jnp.tanh(c_new)

    # generator (class dim padded to nCp=128; padded columns hold -1e9 so they never win)
    logits = jnp.dot(h_new, genW_ref[...], preferred_element_type=jnp.float32) + genb_ref[...]
    probs_ref[0] = logits

    # greedy argmax -> one-hot for next step (first max index, like torch argmax)
    m = jnp.max(logits, axis=1, keepdims=True)
    iota = jax.lax.broadcasted_iota(jnp.int32, logits.shape, 1)
    nxt = jnp.min(jnp.where(logits == m, iota, nCp), axis=1)      # [B] int32
    oh_sc[...] = (jax.lax.broadcasted_iota(jnp.int32, oh_sc.shape, 1)
                  == nxt[:, None]).astype(jnp.float32)
    h_sc[...] = h_new
    c_sc[...] = c_new


def attention_decode(batch_H, p, num_steps, n_class):
    B, T, I = batch_H.shape
    H = p['h2h_W'].shape[0]
    nCp = max(128, _round_up(n_class, 128))                # lane-dense class dim

    bHp = linear(batch_H, p['i2h_W'])                      # i2h has no bias

    # pre-concatenate the LSTMCell weights: [I | nCp | H] x 4H
    W_ih = p['rnn_W_ih']                                   # [4H, I + n_class]
    Wih_ctx = W_ih[:, :I].T                                # [I, 4H]
    Wih_emb = jnp.zeros((nCp, 4 * H), jnp.float32).at[:n_class].set(W_ih[:, I:].T)
    Wcat = jnp.concatenate([Wih_ctx, Wih_emb, p['rnn_W_hh'].T], axis=0)   # [I+nCp+H, 4H]
    rnnb = (p['rnn_b_ih'] + p['rnn_b_hh'])[None, :]

    genW = jnp.zeros((H, nCp), jnp.float32).at[:, :n_class].set(p['gen_W'].T)
    genb = jnp.full((1, nCp), -1e9, jnp.float32).at[0, :n_class].set(p['gen_b'])

    probs = pl.pallas_call(
        _attn_decode_kernel,
        out_shape=jax.ShapeDtypeStruct((num_steps, B, nCp), jnp.float32),
        grid_spec=pltpu.PrefetchScalarGridSpec(
            num_scalar_prefetch=0, grid=(num_steps,),
            in_specs=[pl.BlockSpec((B, T, I), lambda s: (0, 0, 0)),
                      pl.BlockSpec((B, T, H), lambda s: (0, 0, 0)),
                      pl.BlockSpec((H, H), lambda s: (0, 0)),
                      pl.BlockSpec((1, H), lambda s: (0, 0)),
                      pl.BlockSpec((1, H), lambda s: (0, 0)),
                      pl.BlockSpec((I + nCp + H, 4 * H), lambda s: (0, 0)),
                      pl.BlockSpec((1, 4 * H), lambda s: (0, 0)),
                      pl.BlockSpec((H, nCp), lambda s: (0, 0)),
                      pl.BlockSpec((1, nCp), lambda s: (0, 0))],
            out_specs=pl.BlockSpec((1, B, nCp), lambda s: (s, 0, 0)),
            scratch_shapes=[pltpu.VMEM((B, H), jnp.float32),
                            pltpu.VMEM((B, H), jnp.float32),
                            pltpu.VMEM((B, nCp), jnp.float32)]),
        compiler_params=pltpu.CompilerParams(dimension_semantics=("arbitrary",)),
    )(batch_H, bHp, p['h2h_W'].T, p['h2h_b'][None, :], p['score_W'],
      Wcat, rnnb, genW, genb)
    return probs[:, :, :n_class].transpose(1, 0, 2)        # [B, num_steps, n_class]


# --------------------------------------------------------------------------------------
# TPS spatial transformer (localization convs in Pallas; tiny FCs / grid-gen in XLA)
# --------------------------------------------------------------------------------------
def _build_C(F):
    ctrl_x = np.linspace(-1.0, 1.0, F // 2)
    top = np.stack([ctrl_x, -1.0 * np.ones(F // 2)], axis=1)
    bot = np.stack([ctrl_x, np.ones(F // 2)], axis=1)
    return np.concatenate([top, bot], axis=0)              # [F, 2]


def _build_inv_delta_C(F, C):
    hat_C = np.zeros((F, F), dtype=np.float64)
    for i in range(F):
        for j in range(i, F):
            r = np.linalg.norm(C[i] - C[j])
            hat_C[i, j] = r
            hat_C[j, i] = r
    np.fill_diagonal(hat_C, 1.0)
    hat_C = (hat_C ** 2) * np.log(hat_C)
    delta_C = np.concatenate([
        np.concatenate([np.ones((F, 1)), C, hat_C], axis=1),
        np.concatenate([np.zeros((2, 3)), np.transpose(C)], axis=1),
        np.concatenate([np.zeros((1, 3)), np.ones((1, F))], axis=1)], axis=0)
    return np.linalg.inv(delta_C)                           # [F+3, F+3]


def _build_P(W, H):
    gx = (np.arange(-W, W, 2) + 1.0) / W
    gy = (np.arange(-H, H, 2) + 1.0) / H
    P = np.stack(np.meshgrid(gx, gy), axis=2)               # [H, W, 2] (x, y)
    return P.reshape(-1, 2)


def _build_P_hat(F, C, P, eps=1e-6):
    n = P.shape[0]
    diff = np.tile(P[:, None, :], (1, F, 1)) - C[None, :, :]
    rbf_norm = np.linalg.norm(diff, ord=2, axis=2)
    rbf = np.square(rbf_norm) * np.log(rbf_norm + eps)
    return np.concatenate([np.ones((n, 1)), P, rbf], axis=1)   # [n, F+3]


def grid_sample_border(img, grid):
    """Bilinear grid_sample, padding_mode='border', align_corners=False.
    TODO(synk): data-dependent gather kept in plain JAX (no clean Pallas TPU equivalent)."""
    B, C, H, W = img.shape
    gx, gy = grid[..., 0], grid[..., 1]
    x = jnp.clip(((gx + 1.0) * W - 1.0) / 2.0, 0.0, W - 1.0)
    y = jnp.clip(((gy + 1.0) * H - 1.0) / 2.0, 0.0, H - 1.0)
    x0 = jnp.floor(x)
    y0 = jnp.floor(y)
    x1 = jnp.minimum(x0 + 1.0, W - 1.0)
    y1 = jnp.minimum(y0 + 1.0, H - 1.0)
    wx = (x - x0)[..., None]
    wy = (y - y0)[..., None]
    x0i, x1i = x0.astype(jnp.int32), x1.astype(jnp.int32)
    y0i, y1i = y0.astype(jnp.int32), y1.astype(jnp.int32)
    bidx = jnp.arange(B)[:, None, None]
    v00 = img[bidx, :, y0i, x0i]
    v01 = img[bidx, :, y0i, x1i]
    v10 = img[bidx, :, y1i, x0i]
    v11 = img[bidx, :, y1i, x1i]
    out = (v00 * (1 - wy) * (1 - wx) + v01 * (1 - wy) * wx
           + v10 * wy * (1 - wx) + v11 * wy * wx)
    return out.transpose(0, 3, 1, 2)


def tps_transform(imgs, params, cfg):
    B = imgs.shape[0]
    F = cfg.n_fiducial
    Ih, Iw = cfg.input_size
    p = params['tps']
    # localization network (convs in Pallas with fused bias+relu)
    x = conv2d(imgs, p['lconv1_W'], p['lconv1_b'], act='relu')
    x = maxpool2d(x)
    x = conv2d(x, p['lconv2_W'], p['lconv2_b'], act='relu')
    x = maxpool2d(x)
    x = x.mean(axis=(2, 3))                                # adaptive avg pool -> [B, C]
    # tiny FCs + grid generator: sub-tile matmuls, XLA fuses these for free
    x = jax.nn.relu(x @ p['lfc1_W'].T + p['lfc1_b'])
    C_prime = (x @ p['lfc2_W'].T + p['lfc2_b']).reshape(B, F, 2)
    Cz = jnp.concatenate([C_prime, jnp.zeros((B, 3, 2), jnp.float32)], axis=1)
    Cz_2d = Cz.transpose(1, 0, 2).reshape(F + 3, B * 2)
    T_2d = p['inv_delta_C'] @ Cz_2d                        # [F+3, B*2]
    Pp_2d = p['P_hat'] @ T_2d                              # [Ih*Iw, B*2]
    P_prime = Pp_2d.reshape(Ih * Iw, B, 2).transpose(1, 0, 2).reshape(B, Ih, Iw, 2)
    return grid_sample_border(imgs, P_prime)


# --------------------------------------------------------------------------------------
# DenseNet-lite feature extractor (BN folded away for synthetic inference)
# --------------------------------------------------------------------------------------
def densenet_lite(x, p):
    feats = []
    x = conv2d(x, p['conv0_W'], p['conv0_b'], act='relu')
    x = maxpool2d(x)                                       # [B, 16, 8, 16]
    feats.append(x)
    y = conv2d(x, p['dense1_W'], p['dense1_b'], act='relu')
    x = jnp.concatenate([x, y], axis=1)                    # [B, 24, 8, 16]
    y = conv2d(x, p['dense2_W'], p['dense2_b'], act='relu')
    x = jnp.concatenate([x, y], axis=1)                    # [B, 32, 8, 16]
    feats.append(x)
    x = conv2d(x, p['trans_W'], p['trans_b'], padding=(0, 0), act='relu')
    x = avgpool2d(x)                                       # [B, 32, 4, 8]
    x = conv2d(x, p['last_W'], p['last_b'], act='relu')
    x = maxpool2d(x, 2, 1)                                 # [B, 32, 2, 8]
    feats.append(x)
    return feats


# --------------------------------------------------------------------------------------
# parameter init (deterministic, PRNGKey-driven)
# --------------------------------------------------------------------------------------
def _init_linear(key, out_f, in_f):
    s = 1.0 / np.sqrt(in_f)
    k1, k2 = jax.random.split(key)
    W = jax.random.uniform(k1, (out_f, in_f), jnp.float32, -s, s)
    b = jax.random.uniform(k2, (out_f,), jnp.float32, -s, s)
    return W, b


def _init_conv(key, cout, cin, kh, kw):
    s = 1.0 / np.sqrt(cin * kh * kw)
    k1, k2 = jax.random.split(key)
    W = jax.random.uniform(k1, (cout, cin, kh, kw), jnp.float32, -s, s)
    b = jax.random.uniform(k2, (cout,), jnp.float32, -s, s)
    return W, b


def init_params(key, cfg):
    H = cfg.hidden_size
    F = cfg.n_fiducial
    nC = cfg.n_class
    Ih, Iw = cfg.input_size
    keys = iter(jax.random.split(key, 64))
    nk = lambda: next(keys)
    params = {}

    # TPS localization + grid generator constants
    tps = {}
    tps['lconv1_W'], tps['lconv1_b'] = _init_conv(nk(), 8, cfg.input_channels, 3, 3)
    tps['lconv2_W'], tps['lconv2_b'] = _init_conv(nk(), 16, 8, 3, 3)
    tps['lfc1_W'], tps['lfc1_b'] = _init_linear(nk(), 32, 16)
    C_np = _build_C(F)
    tps['lfc2_W'] = jnp.zeros((2 * F, 32), jnp.float32)     # reference init: zero weights
    tps['lfc2_b'] = jnp.asarray(C_np.reshape(-1), jnp.float32)  # bias = initial fiducials
    tps['inv_delta_C'] = jnp.asarray(_build_inv_delta_C(F, C_np), jnp.float32)
    tps['P_hat'] = jnp.asarray(_build_P_hat(F, C_np, _build_P(Iw, Ih)), jnp.float32)
    params['tps'] = tps

    # feature extractor
    feat = {}
    feat['conv0_W'], feat['conv0_b'] = _init_conv(nk(), 16, cfg.input_channels, 3, 3)
    feat['dense1_W'], feat['dense1_b'] = _init_conv(nk(), 8, 16, 3, 3)
    feat['dense2_W'], feat['dense2_b'] = _init_conv(nk(), 8, 24, 3, 3)
    feat['trans_W'], feat['trans_b'] = _init_conv(nk(), 32, 32, 1, 1)
    feat['last_W'], feat['last_b'] = _init_conv(nk(), 32, 32, 3, 3)
    params['feat'] = feat

    # sequence model: 2 x BidirectionalLSTM
    def lstm_layer(key_, in_size, hid, out_size):
        ks = jax.random.split(key_, 9)
        s = 1.0 / np.sqrt(hid)
        d = {}
        for tag, k0 in (('f', 0), ('r', 4)):
            d[f'W_ih_{tag}'] = jax.random.uniform(ks[k0 + 0], (4 * hid, in_size), jnp.float32, -s, s)
            d[f'W_hh_{tag}'] = jax.random.uniform(ks[k0 + 1], (4 * hid, hid), jnp.float32, -s, s)
            d[f'b_ih_{tag}'] = jax.random.uniform(ks[k0 + 2], (4 * hid,), jnp.float32, -s, s)
            d[f'b_hh_{tag}'] = jax.random.uniform(ks[k0 + 3], (4 * hid,), jnp.float32, -s, s)
        d['lin_W'], d['lin_b'] = _init_linear(ks[8], out_size, 2 * hid)
        return d

    params['seq1'] = lstm_layer(nk(), cfg.seq_input_size, H, H)
    params['seq2'] = lstm_layer(nk(), H, H, H)

    # attention prediction head
    pred = {}
    pred['i2h_W'] = _init_linear(nk(), H, H)[0]
    pred['h2h_W'], pred['h2h_b'] = _init_linear(nk(), H, H)
    pred['score_W'] = _init_linear(nk(), 1, H)[0]
    s = 1.0 / np.sqrt(H)
    ks = jax.random.split(nk(), 4)
    pred['rnn_W_ih'] = jax.random.uniform(ks[0], (4 * H, H + nC), jnp.float32, -s, s)
    pred['rnn_W_hh'] = jax.random.uniform(ks[1], (4 * H, H), jnp.float32, -s, s)
    pred['rnn_b_ih'] = jax.random.uniform(ks[2], (4 * H,), jnp.float32, -s, s)
    pred['rnn_b_hh'] = jax.random.uniform(ks[3], (4 * H,), jnp.float32, -s, s)
    pred['gen_W'], pred['gen_b'] = _init_linear(nk(), nC, H)
    params['pred'] = pred
    return params


# --------------------------------------------------------------------------------------
# full TRBA forward (inference / eval path)
# --------------------------------------------------------------------------------------
def trba_forward(params, imgs, cfg):
    x = tps_transform(imgs, params, cfg)                   # TPS rectification
    latent = densenet_lite(x, params['feat'])[-1]          # [B, C, H, W]
    B, C, H, W = latent.shape
    latent = latent.transpose(0, 3, 1, 2).reshape(B, W, C * H)   # permute(0,3,1,2).reshape(B,W,-1)
    latent = bidirectional_lstm(latent, params['seq1'])
    latent = bidirectional_lstm(latent, params['seq2'])
    out = attention_decode(latent, params['pred'], cfg.max_length + 1, cfg.n_class)
    return out                                             # [B, max_length + 1, n_class]


if __name__ == "__main__":
    cfg = CFG()
    key = jax.random.PRNGKey(0)
    kp, kx = jax.random.split(key)
    params = init_params(kp, cfg)
    imgs = jax.random.normal(kx, (2, cfg.input_channels, *cfg.input_size), jnp.float32)

    trba_fn = jax.jit(lambda p, x: trba_forward(p, x, cfg))
    out = trba_fn(params, imgs)
    out = jax.block_until_ready(out)

    assert out.shape == (2, cfg.max_length + 1, cfg.n_class), out.shape
    assert bool(jnp.all(jnp.isfinite(out)))
    print("KERNEL_OK")
</pallas_src>

<mosaic_0001>
module attributes {stable_mosaic.version = 11 : i64} {
  func.func @_mm_bias_act_kernel(%arg0: i32, %arg1: memref<128x16xf32, #tpu.memory_space<vmem>>, %arg2: memref<16x8xf32, #tpu.memory_space<vmem>>, %arg3: memref<1x8xf32, #tpu.memory_space<vmem>>, %arg4: memref<128x8xf32, #tpu.memory_space<vmem>>) attributes {dimension_semantics = [#tpu.dimension_semantics<parallel>], iteration_bounds = array<i64: 8>, scalar_prefetch = 0 : i64, scratch_operands = 0 : i64, tpu.core_type = #tpu.core_type<tc>, window_params = [{transform_indices = @transform_0, window_bounds = array<i64: 128, 16>}, {pipeline_mode = #tpu.pipeline_mode<synchronous>, transform_indices = @transform_1, window_bounds = array<i64: 16, 8>}, {pipeline_mode = #tpu.pipeline_mode<synchronous>, transform_indices = @transform_2, window_bounds = array<i64: 1, 8>}, {transform_indices = @transform_3, window_bounds = array<i64: 128, 8>}]} {
    %c0 = arith.constant 0 : index
    %c0_0 = arith.constant 0 : index
    %0 = vector.load %arg1[%c0, %c0_0] : memref<128x16xf32, #tpu.memory_space<vmem>>, vector<128x16xf32>
    %c0_1 = arith.constant 0 : index
    %c0_2 = arith.constant 0 : index
    %1 = vector.load %arg2[%c0_1, %c0_2] : memref<16x8xf32, #tpu.memory_space<vmem>>, vector<16x8xf32>
    %cst = arith.constant dense<0.000000e+00> : vector<128x8xf32>
    %2 = tpu.matmul %0, %1, %cst {dimension_numbers = #tpu.dot_dimension_numbers<[1], [0], [0], [1], [0, 0, 1, 1], [], []>} : vector<128x16xf32>, vector<16x8xf32>, vector<128x8xf32> -> vector<128x8xf32>
    %c0_3 = arith.constant 0 : index
    %c0_4 = arith.constant 0 : index
    %3 = vector.load %arg3[%c0_3, %c0_4] : memref<1x8xf32, #tpu.memory_space<vmem>>, vector<1x8xf32>
    %4 = vector.broadcast %3 : vector<1x8xf32> to vector<128x8xf32>
    %5 = arith.addf %2, %4 : vector<128x8xf32>
    %cst_5 = arith.constant 0.000000e+00 : f32
    %6 = vector.broadcast %cst_5 : f32 to vector<128x8xf32>
    %7 = arith.maximumf %5, %6 : vector<128x8xf32>
    %c0_6 = arith.constant 0 : index
    %c0_7 = arith.constant 0 : index
    %8 = vector.load %arg4[%c0_6, %c0_7] : memref<128x8xf32, #tpu.memory_space<vmem>>, vector<128x8xf32>
    tpu.vector_store %arg4[%c0_6, %c0_7], %7 {strides = array<i32>} : memref<128x8xf32, #tpu.memory_space<vmem>>, vector<128x8xf32>,
    return
  }
  func.func @transform_0(%arg0: i32) -> (i32, i32) {
    %c0_i32 = arith.constant 0 : i32
    %c0_i32_0 = arith.constant 0 : i32
    return %arg0, %c0_i32 : i32, i32
  }
  func.func @transform_1(%arg0: i32) -> (i32, i32) {
    %c0_i32 = arith.constant 0 : i32
    %c0_i32_0 = arith.constant 0 : i32
    %c0_i32_1 = arith.constant 0 : i32
    return %c0_i32, %c0_i32_0 : i32, i32
  }
  func.func @transform_2(%arg0: i32) -> (i32, i32) {
    %c0_i32 = arith.constant 0 : i32
    %c0_i32_0 = arith.constant 0 : i32
    %c0_i32_1 = arith.constant 0 : i32
    return %c0_i32, %c0_i32_0 : i32, i32
  }
  func.func @transform_3(%arg0: i32) -> (i32, i32) {
    %c0_i32 = arith.constant 0 : i32
    %c0_i32_0 = arith.constant 0 : i32
    return %arg0, %c0_i32 : i32, i32
  }
}

module attributes {stable_mosaic.version = 11 : i64} {
  func.func @_mm_bias_act_kernel(%arg0: i32, %arg1: memref<128x72xf32, #tpu.memory_space<vmem>>, %arg2: memref<72x16xf32, #tpu.memory_space<vmem>>, %arg3: memref<1x16xf32, #tpu.memory_space<vmem>>, %arg4: memref<128x16xf32, #tpu.memory_space<vmem>>) attributes {dimension_semantics = [#tpu.dimension_semantics<parallel>], iteration_bounds = array<i64: 2>, scalar_prefetch = 0 : i64, scratch_operands = 0 : i64, tpu.core_type = #tpu.core_type<tc>, window_params = [{transform_indices = @transform_0, window_bounds = array<i64: 128, 72>}, {pipeline_mode = #tpu.pipeline_mode<synchronous>, transform_indices = @transform_1, window_bounds = array<i64: 72, 16>}, {pipeline_mode = #tpu.pipeline_mode<synchronous>, transform_indices = @transform_2, window_bounds = array<i64: 1, 16>}, {transform_indices = @transform_3, window_bounds = array<i64: 128, 16>}]} {
    %c0 = arith.constant 0 : index
    %c0_0 = arith.constant 0 : index
    %0 = vector.load %arg1[%c0, %c0_0] : memref<128x72xf32, #tpu.memory_space<vmem>>, vector<128x72xf32>
    %c0_1 = arith.constant 0 : index
    %c0_2 = arith.constant 0 : index
    %1 = vector.load %arg2[%c0_1, %c0_2] : memref<72x16xf32, #tpu.memory_space<vmem>>, vector<72x16xf32>
    %cst = arith.constant dense<0.000000e+00> : vector<128x16xf32>
    %2 = tpu.matmul %0, %1, %cst {dimension_numbers = #tpu.dot_dimension_numbers<[1], [0], [0], [1], [0, 0, 1, 1], [], []>} : vector<128x72xf32>, vector<72x16xf32>, vector<128x16xf32> -> vector<128x16xf32>
    %c0_3 = arith.constant 0 : index
    %c0_4 = arith.constant 0 : index
    %3 = vector.load %arg3[%c0_3, %c0_4] : memref<1x16xf32, #tpu.memory_space<vmem>>, vector<1x16xf32>
    %4 = vector.broadcast %3 : vector<1x16xf32> to vector<128x16xf32>
    %5 = arith.addf %2, %4 : vector<128x16xf32>
    %cst_5 = arith.constant 0.000000e+00 : f32
    %6 = vector.broadcast %cst_5 : f32 to vector<128x16xf32>
    %7 = arith.maximumf %5, %6 : vector<128x16xf32>
    %c0_6 = arith.constant 0 : index
    %c0_7 = arith.constant 0 : index
    %8 = vector.load %arg4[%c0_6, %c0_7] : memref<128x16xf32, #tpu.memory_space<vmem>>, vector<128x16xf32>
    tpu.vector_store %arg4[%c0_6, %c0_7], %7 {strides = array<i32>} : memref<128x16xf32, #tpu.memory_space<vmem>>, vector<128x16xf32>,
    return
  }
  func.func @transform_0(%arg0: i32) -> (i32, i32) {
    %c0_i32 = arith.constant 0 : i32
    %c0_i32_0 = arith.constant 0 : i32
    return %arg0, %c0_i32 : i32, i32
  }
  func.func @transform_1(%arg0: i32) -> (i32, i32) {
    %c0_i32 = arith.constant 0 : i32
    %c0_i32_0 = arith.constant 0 : i32
    %c0_i32_1 = arith.constant 0 : i32
    return %c0_i32, %c0_i32_0 : i32, i32
  }
  func.func @transform_2(%arg0: i32) -> (i32, i32) {
    %c0_i32 = arith.constant 0 : i32
    %c0_i32_0 = arith.constant 0 : i32
    %c0_i32_1 = arith.constant 0 : i32
    return %c0_i32, %c0_i32_0 : i32, i32
  }
  func.func @transform_3(%arg0: i32) -> (i32, i32) {
    %c0_i32 = arith.constant 0 : i32
    %c0_i32_0 = arith.constant 0 : i32
    return %arg0, %c0_i32 : i32, i32
  }
}

module attributes {stable_mosaic.version = 11 : i64} {
  func.func @_mm_bias_act_kernel(%arg0: i32, %arg1: memref<128x16xf32, #tpu.memory_space<vmem>>, %arg2: memref<16x16xf32, #tpu.memory_space<vmem>>, %arg3: memref<1x16xf32, #tpu.memory_space<vmem>>, %arg4: memref<128x16xf32, #tpu.memory_space<vmem>>) attributes {dimension_semantics = [#tpu.dimension_semantics<parallel>], iteration_bounds = array<i64: 8>, scalar_prefetch = 0 : i64, scratch_operands = 0 : i64, tpu.core_type = #tpu.core_type<tc>, window_params = [{transform_indices = @transform_0, window_bounds = array<i64: 128, 16>}, {pipeline_mode = #tpu.pipeline_mode<synchronous>, transform_indices = @transform_1, window_bounds = array<i64: 16, 16>}, {pipeline_mode = #tpu.pipeline_mode<synchronous>, transform_indices = @transform_2, window_bounds = array<i64: 1, 16>}, {transform_indices = @transform_3, window_bounds = array<i64: 128, 16>}]} {
    %c0 = arith.constant 0 : index
    %c0_0 = arith.constant 0 : index
    %0 = vector.load %arg1[%c0, %c0_0] : memref<128x16xf32, #tpu.memory_space<vmem>>, vector<128x16xf32>
    %c0_1 = arith.constant 0 : index
    %c0_2 = arith.constant 0 : index
    %1 = vector.load %arg2[%c0_1, %c0_2] : memref<16x16xf32, #tpu.memory_space<vmem>>, vector<16x16xf32>
    %cst = arith.constant dense<0.000000e+00> : vector<128x16xf32>
    %2 = tpu.matmul %0, %1, %cst {dimension_numbers = #tpu.dot_dimension_numbers<[1], [0], [0], [1], [0, 0, 1, 1], [], []>} : vector<128x16xf32>, vector<16x16xf32>, vector<128x16xf32> -> vector<128x16xf32>
    %c0_3 = arith.constant 0 : index
    %c0_4 = arith.constant 0 : index
    %3 = vector.load %arg3[%c0_3, %c0_4] : memref<1x16xf32, #tpu.memory_space<vmem>>, vector<1x16xf32>
    %4 = vector.broadcast %3 : vector<1x16xf32> to vector<128x16xf32>
    %5 = arith.addf %2, %4 : vector<128x16xf32>
    %cst_5 = arith.constant 0.000000e+00 : f32
    %6 = vector.broadcast %cst_5 : f32 to vector<128x16xf32>
    %7 = arith.maximumf %5, %6 : vector<128x16xf32>
    %c0_6 = arith.constant 0 : index
    %c0_7 = arith.constant 0 : index
    %8 = vector.load %arg4[%c0_6, %c0_7] : memref<128x16xf32, #tpu.memory_space<vmem>>, vector<128x16xf32>
    tpu.vector_store %arg4[%c0_6, %c0_7], %7 {strides = array<i32>} : memref<128x16xf32, #tpu.memory_space<vmem>>, vector<128x16xf32>,
    return
  }
  func.func @transform_0(%arg0: i32) -> (i32, i32) {
    %c0_i32 = arith.constant 0 : i32
    %c0_i32_0 = arith.constant 0 : i32
    return %arg0, %c0_i32 : i32, i32
  }
  func.func @transform_1(%arg0: i32) -> (i32, i32) {
    %c0_i32 = arith.constant 0 : i32
    %c0_i32_0 = arith.constant 0 : i32
    %c0_i32_1 = arith.constant 0 : i32
    return %c0_i32, %c0_i32_0 : i32, i32
  }
  func.func @transform_2(%arg0: i32) -> (i32, i32) {
    %c0_i32 = arith.constant 0 : i32
    %c0_i32_0 = arith.constant 0 : i32
    %c0_i32_1 = arith.constant 0 : i32
    return %c0_i32, %c0_i32_0 : i32, i32
  }
  func.func @transform_3(%arg0: i32) -> (i32, i32) {
    %c0_i32 = arith.constant 0 : i32
    %c0_i32_0 = arith.constant 0 : i32
    return %arg0, %c0_i32 : i32, i32
  }
}

module attributes {stable_mosaic.version = 11 : i64} {
  func.func @_mm_bias_act_kernel(%arg0: i32, %arg1: memref<128x144xf32, #tpu.memory_space<vmem>>, %arg2: memref<144x8xf32, #tpu.memory_space<vmem>>, %arg3: memref<1x8xf32, #tpu.memory_space<vmem>>, %arg4: memref<128x8xf32, #tpu.memory_space<vmem>>) attributes {dimension_semantics = [#tpu.dimension_semantics<parallel>], iteration_bounds = array<i64: 2>, scalar_prefetch = 0 : i64, scratch_operands = 0 : i64, tpu.core_type = #tpu.core_type<tc>, window_params = [{transform_indices = @transform_0, window_bounds = array<i64: 128, 144>}, {pipeline_mode = #tpu.pipeline_mode<synchronous>, transform_indices = @transform_1, window_bounds = array<i64: 144, 8>}, {pipeline_mode = #tpu.pipeline_mode<synchronous>, transform_indices = @transform_2, window_bounds = array<i64: 1, 8>}, {transform_indices = @transform_3, window_bounds = array<i64: 128, 8>}]} {
    %c0 = arith.constant 0 : index
    %c0_0 = arith.constant 0 : index
    %0 = vector.load %arg1[%c0, %c0_0] : memref<128x144xf32, #tpu.memory_space<vmem>>, vector<128x144xf32>
    %c0_1 = arith.constant 0 : index
    %c0_2 = arith.constant 0 : index
    %1 = vector.load %arg2[%c0_1, %c0_2] : memref<144x8xf32, #tpu.memory_space<vmem>>, vector<144x8xf32>
    %cst = arith.constant dense<0.000000e+00> : vector<128x8xf32>
    %2 = tpu.matmul %0, %1, %cst {dimension_numbers = #tpu.dot_dimension_numbers<[1], [0], [0], [1], [0, 0, 1, 1], [], []>} : vector<128x144xf32>, vector<144x8xf32>, vector<128x8xf32> -> vector<128x8xf32>
    %c0_3 = arith.constant 0 : index
    %c0_4 = arith.constant 0 : index
    %3 = vector.load %arg3[%c0_3, %c0_4] : memref<1x8xf32, #tpu.memory_space<vmem>>, vector<1x8xf32>
    %4 = vector.broadcast %3 : vector<1x8xf32> to vector<128x8xf32>
    %5 = arith.addf %2, %4 : vector<128x8xf32>
    %cst_5 = arith.constant 0.000000e+00 : f32
    %6 = vector.broadcast %cst_5 : f32 to vector<128x8xf32>
    %7 = arith.maximumf %5, %6 : vector<128x8xf32>
    %c0_6 = arith.constant 0 : index
    %c0_7 = arith.constant 0 : index
    %8 = vector.load %arg4[%c0_6, %c0_7] : memref<128x8xf32, #tpu.memory_space<vmem>>, vector<128x8xf32>
    tpu.vector_store %arg4[%c0_6, %c0_7], %7 {strides = array<i32>} : memref<128x8xf32, #tpu.memory_space<vmem>>, vector<128x8xf32>,
    return
  }
  func.func @transform_0(%arg0: i32) -> (i32, i32) {
    %c0_i32 = arith.constant 0 : i32
    %c0_i32_0 = arith.constant 0 : i32
    return %arg0, %c0_i32 : i32, i32
  }
  func.func @transform_1(%arg0: i32) -> (i32, i32) {
    %c0_i32 = arith.constant 0 : i32
    %c0_i32_0 = arith.constant 0 : i32
    %c0_i32_1 = arith.constant 0 : i32
    return %c0_i32, %c0_i32_0 : i32, i32
  }
  func.func @transform_2(%arg0: i32) -> (i32, i32) {
    %c0_i32 = arith.constant 0 : i32
    %c0_i32_0 = arith.constant 0 : i32
    %c0_i32_1 = arith.constant 0 : i32
    return %c0_i32, %c0_i32_0 : i32, i32
  }
  func.func @transform_3(%arg0: i32) -> (i32, i32) {
    %c0_i32 = arith.constant 0 : i32
    %c0_i32_0 = arith.constant 0 : i32
    return %arg0, %c0_i32 : i32, i32
  }
}

module attributes {stable_mosaic.version = 11 : i64} {
  func.func @_mm_bias_act_kernel(%arg0: i32, %arg1: memref<128x216xf32, #tpu.memory_space<vmem>>, %arg2: memref<216x8xf32, #tpu.memory_space<vmem>>, %arg3: memref<1x8xf32, #tpu.memory_space<vmem>>, %arg4: memref<128x8xf32, #tpu.memory_space<vmem>>) attributes {dimension_semantics = [#tpu.dimension_semantics<parallel>], iteration_bounds = array<i64: 2>, scalar_prefetch = 0 : i64, scratch_operands = 0 : i64, tpu.core_type = #tpu.core_type<tc>, window_params = [{transform_indices = @transform_0, window_bounds = array<i64: 128, 216>}, {pipeline_mode = #tpu.pipeline_mode<synchronous>, transform_indices = @transform_1, window_bounds = array<i64: 216, 8>}, {pipeline_mode = #tpu.pipeline_mode<synchronous>, transform_indices = @transform_2, window_bounds = array<i64: 1, 8>}, {transform_indices = @transform_3, window_bounds = array<i64: 128, 8>}]} {
    %c0 = arith.constant 0 : index
    %c0_0 = arith.constant 0 : index
    %0 = vector.load %arg1[%c0, %c0_0] : memref<128x216xf32, #tpu.memory_space<vmem>>, vector<128x216xf32>
    %c0_1 = arith.constant 0 : index
    %c0_2 = arith.constant 0 : index
    %1 = vector.load %arg2[%c0_1, %c0_2] : memref<216x8xf32, #tpu.memory_space<vmem>>, vector<216x8xf32>
    %cst = arith.constant dense<0.000000e+00> : vector<128x8xf32>
    %2 = tpu.matmul %0, %1, %cst {dimension_numbers = #tpu.dot_dimension_numbers<[1], [0], [0], [1], [0, 0, 1, 1], [], []>} : vector<128x216xf32>, vector<216x8xf32>, vector<128x8xf32> -> vector<128x8xf32>
    %c0_3 = arith.constant 0 : index
    %c0_4 = arith.constant 0 : index
    %3 = vector.load %arg3[%c0_3, %c0_4] : memref<1x8xf32, #tpu.memory_space<vmem>>, vector<1x8xf32>
    %4 = vector.broadcast %3 : vector<1x8xf32> to vector<128x8xf32>
    %5 = arith.addf %2, %4 : vector<128x8xf32>
    %cst_5 = arith.constant 0.000000e+00 : f32
    %6 = vector.broadcast %cst_5 : f32 to vector<128x8xf32>
    %7 = arith.maximumf %5, %6 : vector<128x8xf32>
    %c0_6 = arith.constant 0 : index
    %c0_7 = arith.constant 0 : index
    %8 = vector.load %arg4[%c0_6, %c0_7] : memref<128x8xf32, #tpu.memory_space<vmem>>, vector<128x8xf32>
    tpu.vector_store %arg4[%c0_6, %c0_7], %7 {strides = array<i32>} : memref<128x8xf32, #tpu.memory_space<vmem>>, vector<128x8xf32>,
    return
  }
  func.func @transform_0(%arg0: i32) -> (i32, i32) {
    %c0_i32 = arith.constant 0 : i32
    %c0_i32_0 = arith.constant 0 : i32
    return %arg0, %c0_i32 : i32, i32
  }
  func.func @transform_1(%arg0: i32) -> (i32, i32) {
    %c0_i32 = arith.constant 0 : i32
    %c0_i32_0 = arith.constant 0 : i32
    %c0_i32_1 = arith.constant 0 : i32
    return %c0_i32, %c0_i32_0 : i32, i32
  }
  func.func @transform_2(%arg0: i32) -> (i32, i32) {
    %c0_i32 = arith.constant 0 : i32
    %c0_i32_0 = arith.constant 0 : i32
    %c0_i32_1 = arith.constant 0 : i32
    return %c0_i32, %c0_i32_0 : i32, i32
  }
  func.func @transform_3(%arg0: i32) -> (i32, i32) {
    %c0_i32 = arith.constant 0 : i32
    %c0_i32_0 = arith.constant 0 : i32
    return %arg0, %c0_i32 : i32, i32
  }
}

module attributes {stable_mosaic.version = 11 : i64} {
  func.func @_mm_bias_act_kernel(%arg0: i32, %arg1: memref<128x32xf32, #tpu.memory_space<vmem>>, %arg2: memref<32x32xf32, #tpu.memory_space<vmem>>, %arg3: memref<1x32xf32, #tpu.memory_space<vmem>>, %arg4: memref<128x32xf32, #tpu.memory_space<vmem>>) attributes {dimension_semantics = [#tpu.dimension_semantics<parallel>], iteration_bounds = array<i64: 2>, scalar_prefetch = 0 : i64, scratch_operands = 0 : i64, tpu.core_type = #tpu.core_type<tc>, window_params = [{transform_indices = @transform_0, window_bounds = array<i64: 128, 32>}, {pipeline_mode = #tpu.pipeline_mode<synchronous>, transform_indices = @transform_1, window_bounds = array<i64: 32, 32>}, {pipeline_mode = #tpu.pipeline_mode<synchronous>, transform_indices = @transform_2, window_bounds = array<i64: 1, 32>}, {transform_indices = @transform_3, window_bounds = array<i64: 128, 32>}]} {
    %c0 = arith.constant 0 : index
    %c0_0 = arith.constant 0 : index
    %0 = vector.load %arg1[%c0, %c0_0] : memref<128x32xf32, #tpu.memory_space<vmem>>, vector<128x32xf32>
    %c0_1 = arith.constant 0 : index
    %c0_2 = arith.constant 0 : index
    %1 = vector.load %arg2[%c0_1, %c0_2] : memref<32x32xf32, #tpu.memory_space<vmem>>, vector<32x32xf32>
    %cst = arith.constant dense<0.000000e+00> : vector<128x32xf32>
    %2 = tpu.matmul %0, %1, %cst {dimension_numbers = #tpu.dot_dimension_numbers<[1], [0], [0], [1], [0, 0, 1, 1], [], []>} : vector<128x32xf32>, vector<32x32xf32>, vector<128x32xf32> -> vector<128x32xf32>
    %c0_3 = arith.constant 0 : index
    %c0_4 = arith.constant 0 : index
    %3 = vector.load %arg3[%c0_3, %c0_4] : memref<1x32xf32, #tpu.memory_space<vmem>>, vector<1x32xf32>
    %4 = vector.broadcast %3 : vector<1x32xf32> to vector<128x32xf32>
    %5 = arith.addf %2, %4 : vector<128x32xf32>
    %cst_5 = arith.constant 0.000000e+00 : f32
    %6 = vector.broadcast %cst_5 : f32 to vector<128x32xf32>
    %7 = arith.maximumf %5, %6 : vector<128x32xf32>
    %c0_6 = arith.constant 0 : index
    %c0_7 = arith.constant 0 : index
    %8 = vector.load %arg4[%c0_6, %c0_7] : memref<128x32xf32, #tpu.memory_space<vmem>>, vector<128x32xf32>
    tpu.vector_store %arg4[%c0_6, %c0_7], %7 {strides = array<i32>} : memref<128x32xf32, #tpu.memory_space<vmem>>, vector<128x32xf32>,
    return
  }
  func.func @transform_0(%arg0: i32) -> (i32, i32) {
    %c0_i32 = arith.constant 0 : i32
    %c0_i32_0 = arith.constant 0 : i32
    return %arg0, %c0_i32 : i32, i32
  }
  func.func @transform_1(%arg0: i32) -> (i32, i32) {
    %c0_i32 = arith.constant 0 : i32
    %c0_i32_0 = arith.constant 0 : i32
    %c0_i32_1 = arith.constant 0 : i32
    return %c0_i32, %c0_i32_0 : i32, i32
  }
  func.func @transform_2(%arg0: i32) -> (i32, i32) {
    %c0_i32 = arith.constant 0 : i32
    %c0_i32_0 = arith.constant 0 : i32
    %c0_i32_1 = arith.constant 0 : i32
    return %c0_i32, %c0_i32_0 : i32, i32
  }
  func.func @transform_3(%arg0: i32) -> (i32, i32) {
    %c0_i32 = arith.constant 0 : i32
    %c0_i32_0 = arith.constant 0 : i32
    return %arg0, %c0_i32 : i32, i32
  }
}

module attributes {stable_mosaic.version = 11 : i64} {
  func.func @_mm_bias_act_kernel(%arg0: i32, %arg1: memref<64x288xf32, #tpu.memory_space<vmem>>, %arg2: memref<288x32xf32, #tpu.memory_space<vmem>>, %arg3: memref<1x32xf32, #tpu.memory_space<vmem>>, %arg4: memref<64x32xf32, #tpu.memory_space<vmem>>) attributes {dimension_semantics = [#tpu.dimension_semantics<parallel>], iteration_bounds = array<i64: 1>, scalar_prefetch = 0 : i64, scratch_operands = 0 : i64, tpu.core_type = #tpu.core_type<tc>, window_params = [{transform_indices = @transform_0, window_bounds = array<i64: 64, 288>}, {pipeline_mode = #tpu.pipeline_mode<synchronous>, transform_indices = @transform_1, window_bounds = array<i64: 288, 32>}, {pipeline_mode = #tpu.pipeline_mode<synchronous>, transform_indices = @transform_2, window_bounds = array<i64: 1, 32>}, {transform_indices = @transform_3, window_bounds = array<i64: 64, 32>}]} {
    %c0 = arith.constant 0 : index
    %c0_0 = arith.constant 0 : index
    %0 = vector.load %arg1[%c0, %c0_0] : memref<64x288xf32, #tpu.memory_space<vmem>>, vector<64x288xf32>
    %c0_1 = arith.constant 0 : index
    %c0_2 = arith.constant 0 : index
    %1 = vector.load %arg2[%c0_1, %c0_2] : memref<288x32xf32, #tpu.memory_space<vmem>>, vector<288x32xf32>
    %cst = arith.constant dense<0.000000e+00> : vector<64x32xf32>
    %2 = tpu.matmul %0, %1, %cst {dimension_numbers = #tpu.dot_dimension_numbers<[1], [0], [0], [1], [0, 0, 1, 1], [], []>} : vector<64x288xf32>, vector<288x32xf32>, vector<64x32xf32> -> vector<64x32xf32>
    %c0_3 = arith.constant 0 : index
    %c0_4 = arith.constant 0 : index
    %3 = vector.load %arg3[%c0_3, %c0_4] : memref<1x32xf32, #tpu.memory_space<vmem>>, vector<1x32xf32>
    %4 = vector.broadcast %3 : vector<1x32xf32> to vector<64x32xf32>
    %5 = arith.addf %2, %4 : vector<64x32xf32>
    %cst_5 = arith.constant 0.000000e+00 : f32
    %6 = vector.broadcast %cst_5 : f32 to vector<64x32xf32>
    %7 = arith.maximumf %5, %6 : vector<64x32xf32>
    %c0_6 = arith.constant 0 : index
    %c0_7 = arith.constant 0 : index
    %8 = vector.load %arg4[%c0_6, %c0_7] : memref<64x32xf32, #tpu.memory_space<vmem>>, vector<64x32xf32>
    tpu.vector_store %arg4[%c0_6, %c0_7], %7 {strides = array<i32>} : memref<64x32xf32, #tpu.memory_space<vmem>>, vector<64x32xf32>,
    return
  }
  func.func @transform_0(%arg0: i32) -> (i32, i32) {
    %c0_i32 = arith.constant 0 : i32
    %c0_i32_0 = arith.constant 0 : i32
    return %arg0, %c0_i32 : i32, i32
  }
  func.func @transform_1(%arg0: i32) -> (i32, i32) {
    %c0_i32 = arith.constant 0 : i32
    %c0_i32_0 = arith.constant 0 : i32
    %c0_i32_1 = arith.constant 0 : i32
    return %c0_i32, %c0_i32_0 : i32, i32
  }
  func.func @transform_2(%arg0: i32) -> (i32, i32) {
    %c0_i32 = arith.constant 0 : i32
    %c0_i32_0 = arith.constant 0 : i32
    %c0_i32_1 = arith.constant 0 : i32
    return %c0_i32, %c0_i32_0 : i32, i32
  }
  func.func @transform_3(%arg0: i32) -> (i32, i32) {
    %c0_i32 = arith.constant 0 : i32
    %c0_i32_0 = arith.constant 0 : i32
    return %arg0, %c0_i32 : i32, i32
  }
}

module attributes {stable_mosaic.version = 11 : i64} {
  func.func @_mm_bias_act_kernel(%arg0: i32, %arg1: memref<16x64xf32, #tpu.memory_space<vmem>>, %arg2: memref<64x256xf32, #tpu.memory_space<vmem>>, %arg3: memref<1x256xf32, #tpu.memory_space<vmem>>, %arg4: memref<16x256xf32, #tpu.memory_space<vmem>>) attributes {dimension_semantics = [#tpu.dimension_semantics<parallel>], iteration_bounds = array<i64: 1>, scalar_prefetch = 0 : i64, scratch_operands = 0 : i64, tpu.core_type = #tpu.core_type<tc>, window_params = [{transform_indices = @transform_0, window_bounds = array<i64: 16, 64>}, {pipeline_mode = #tpu.pipeline_mode<synchronous>, transform_indices = @transform_1, window_bounds = array<i64: 64, 256>}, {pipeline_mode = #tpu.pipeline_mode<synchronous>, transform_indices = @transform_2, window_bounds = array<i64: 1, 256>}, {transform_indices = @transform_3, window_bounds = array<i64: 16, 256>}]} {
    %c0 = arith.constant 0 : index
    %c0_0 = arith.constant 0 : index
    %0 = vector.load %arg1[%c0, %c0_0] : memref<16x64xf32, #tpu.memory_space<vmem>>, vector<16x64xf32>
    %c0_1 = arith.constant 0 : index
    %c0_2 = arith.constant 0 : index
    %1 = vector.load %arg2[%c0_1, %c0_2] : memref<64x256xf32, #tpu.memory_space<vmem>>, vector<64x256xf32>
    %cst = arith.constant dense<0.000000e+00> : vector<16x256xf32>
    %2 = tpu.matmul %0, %1, %cst {dimension_numbers = #tpu.dot_dimension_numbers<[1], [0], [0], [1], [0, 0, 1, 1], [], []>} : vector<16x64xf32>, vector<64x256xf32>, vector<16x256xf32> -> vector<16x256xf32>
    %c0_3 = arith.constant 0 : index
    %c0_4 = arith.constant 0 : index
    %3 = vector.load %arg3[%c0_3, %c0_4] : memref<1x256xf32, #tpu.memory_space<vmem>>, vector<1x256xf32>
    %4 = vector.broadcast %3 : vector<1x256xf32> to vector<16x256xf32>
    %5 = arith.addf %2, %4 : vector<16x256xf32>
    %c0_5 = arith.constant 0 : index
    %c0_6 = arith.constant 0 : index
    %6 = vector.load %arg4[%c0_5, %c0_6] : memref<16x256xf32, #tpu.memory_space<vmem>>, vector<16x256xf32>
    tpu.vector_store %arg4[%c0_5, %c0_6], %5 {strides = array<i32>} : memref<16x256xf32, #tpu.memory_space<vmem>>, vector<16x256xf32>,
    return
  }
  func.func @transform_0(%arg0: i32) -> (i32, i32) {
    %c0_i32 = arith.constant 0 : i32
    %c0_i32_0 = arith.constant 0 : i32
    return %arg0, %c0_i32 : i32, i32
  }
  func.func @transform_1(%arg0: i32) -> (i32, i32) {
    %c0_i32 = arith.constant 0 : i32
    %c0_i32_0 = arith.constant 0 : i32
    %c0_i32_1 = arith.constant 0 : i32
    return %c0_i32, %c0_i32_0 : i32, i32
  }
  func.func @transform_2(%arg0: i32) -> (i32, i32) {
    %c0_i32 = arith.constant 0 : i32
    %c0_i32_0 = arith.constant 0 : i32
    %c0_i32_1 = arith.constant 0 : i32
    return %c0_i32, %c0_i32_0 : i32, i32
  }
  func.func @transform_3(%arg0: i32) -> (i32, i32) {
    %c0_i32 = arith.constant 0 : i32
    %c0_i32_0 = arith.constant 0 : i32
    return %arg0, %c0_i32 : i32, i32
  }
}

module attributes {stable_mosaic.version = 11 : i64} {
  func.func @_bilstm_kernel(%arg0: i32, %arg1: memref<1x2x256xf32, #tpu.memory_space<vmem>>, %arg2: memref<1x2x256xf32, #tpu.memory_space<vmem>>, %arg3: memref<2x32x128xf32, #tpu.memory_space<vmem>>, %arg4: memref<1x2x32xf32, #tpu.memory_space<vmem>>, %arg5: memref<1x2x32xf32, #tpu.memory_space<vmem>>, %arg6: memref<2x2x32xf32, #tpu.memory_space<vmem>>, %arg7: memref<2x2x32xf32, #tpu.memory_space<vmem>>) attributes {dimension_semantics = [#tpu.dimension_semantics<arbitrary>], iteration_bounds = array<i64: 8>, scalar_prefetch = 0 : i64, scratch_operands = 2 : i64, tpu.core_type = #tpu.core_type<tc>, window_params = [{transform_indices = @transform_0, window_bounds = array<i64: 1, 2, 256>}, {transform_indices = @transform_1, window_bounds = array<i64: 1, 2, 256>}, {pipeline_mode = #tpu.pipeline_mode<synchronous>, transform_indices = @transform_2, window_bounds = array<i64: 2, 32, 128>}, {transform_indices = @transform_3, window_bounds = array<i64: 1, 2, 32>}, {transform_indices = @transform_4, window_bounds = array<i64: 1, 2, 32>}]} {
    %c0_i32 = arith.constant 0 : i32
    %0 = arith.cmpi eq, %arg0, %c0_i32 : i32
    %1 = arith.extui %0 : i1 to i32
    %c0_i32_0 = arith.constant 0 : i32
    %2 = arith.cmpi ne, %1, %c0_i32_0 : i32
    scf.if %2 {
      %cst_48 = arith.constant 0.000000e+00 : f32
      %93 = vector.broadcast %cst_48 : f32 to vector<2x2x32xf32>
      %c0_49 = arith.constant 0 : index
      %c0_50 = arith.constant 0 : index
      %c0_51 = arith.constant 0 : index
      %94 = vector.load %arg6[%c0_49, %c0_50, %c0_51] : memref<2x2x32xf32, #tpu.memory_space<vmem>>, vector<2x2x32xf32>
      tpu.vector_store %arg6[%c0_49, %c0_50, %c0_51], %93 {strides = array<i32>} : memref<2x2x32xf32, #tpu.memory_space<vmem>>, vector<2x2x32xf32>,
      %cst_52 = arith.constant 0.000000e+00 : f32
      %95 = vector.broadcast %cst_52 : f32 to vector<2x2x32xf32>
      %c0_53 = arith.constant 0 : index
      %c0_54 = arith.constant 0 : index
      %c0_55 = arith.constant 0 : index
      %96 = vector.load %arg7[%c0_53, %c0_54, %c0_55] : memref<2x2x32xf32, #tpu.memory_space<vmem>>, vector<2x2x32xf32>
      tpu.vector_store %arg7[%c0_53, %c0_54, %c0_55], %95 {strides = array<i32>} : memref<2x2x32xf32, #tpu.memory_space<vmem>>, vector<2x2x32xf32>,
    } else {
    }
    %c0 = arith.constant 0 : index
    %c0_1 = arith.constant 0 : index
    %c0_2 = arith.constant 0 : index
    %3 = vector.load %arg6[%c0, %c0_1, %c0_2] : memref<2x2x32xf32, #tpu.memory_space<vmem>>, vector<1x2x32xf32>
    %4 = vector.shape_cast %3 : vector<1x2x32xf32> to vector<2x32xf32>
    %c0_3 = arith.constant 0 : index
    %c0_4 = arith.constant 0 : index
    %c0_5 = arith.constant 0 : index
    %5 = vector.load %arg7[%c0_3, %c0_4, %c0_5] : memref<2x2x32xf32, #tpu.memory_space<vmem>>, vector<1x2x32xf32>
    %6 = vector.shape_cast %5 : vector<1x2x32xf32> to vector<2x32xf32>
    %c0_6 = arith.constant 0 : index
    %c0_7 = arith.constant 0 : index
    %c0_8 = arith.constant 0 : index
    %7 = vector.load %arg1[%c0_6, %c0_7, %c0_8] : memref<1x2x256xf32, #tpu.memory_space<vmem>>, vector<1x2x256xf32>
    %8 = vector.shape_cast %7 : vector<1x2x256xf32> to vector<2x256xf32>
    %9 = vector.extract_strided_slice %8 {offsets = [0, 0], sizes = [2, 128], strides = [1, 1]} : vector<2x256xf32> to vector<2x128xf32>
    %c0_9 = arith.constant 0 : index
    %c0_10 = arith.constant 0 : index
    %c0_11 = arith.constant 0 : index
    %10 = vector.load %arg3[%c0_9, %c0_10, %c0_11] : memref<2x32x128xf32, #tpu.memory_space<vmem>>, vector<1x32x128xf32>
    %11 = vector.shape_cast %10 : vector<1x32x128xf32> to vector<32x128xf32>
    %cst = arith.constant dense<0.000000e+00> : vector<2x128xf32>
    %12 = tpu.matmul %4, %11, %cst {dimension_numbers = #tpu.dot_dimension_numbers<[1], [0], [0], [1], [0, 0, 1, 1], [], []>} : vector<2x32xf32>, vector<32x128xf32>, vector<2x128xf32> -> vector<2x128xf32>
    %13 = arith.addf %9, %12 : vector<2x128xf32>
    %14 = vector.extract_strided_slice %13 {offsets = [0, 0], sizes = [2, 32], strides = [1, 1]} : vector<2x128xf32> to vector<2x32xf32>
    %15 = arith.negf %14 : vector<2x32xf32>
    %16 = math.exp %15 : vector<2x32xf32>
    %cst_12 = arith.constant 1.000000e+00 : f32
    %17 = vector.broadcast %cst_12 : f32 to vector<2x32xf32>
    %18 = arith.addf %17, %16 : vector<2x32xf32>
    %19 = arith.divf %17, %18 : vector<2x32xf32>
    %20 = vector.extract_strided_slice %13 {offsets = [0, 32], sizes = [2, 32], strides = [1, 1]} : vector<2x128xf32> to vector<2x32xf32>
    %21 = arith.negf %20 : vector<2x32xf32>
    %22 = math.exp %21 : vector<2x32xf32>
    %cst_13 = arith.constant 1.000000e+00 : f32
    %23 = vector.broadcast %cst_13 : f32 to vector<2x32xf32>
    %24 = arith.addf %23, %22 : vector<2x32xf32>
    %25 = arith.divf %23, %24 : vector<2x32xf32>
    %26 = vector.extract_strided_slice %13 {offsets = [0, 64], sizes = [2, 32], strides = [1, 1]} : vector<2x128xf32> to vector<2x32xf32>
    %27 = math.tanh %26 : vector<2x32xf32>
    %28 = vector.extract_strided_slice %13 {offsets = [0, 96], sizes = [2, 32], strides = [1, 1]} : vector<2x128xf32> to vector<2x32xf32>
    %29 = arith.negf %28 : vector<2x32xf32>
    %30 = math.exp %29 : vector<2x32xf32>
    %cst_14 = arith.constant 1.000000e+00 : f32
    %31 = vector.broadcast %cst_14 : f32 to vector<2x32xf32>
    %32 = arith.addf %31, %30 : vector<2x32xf32>
    %33 = arith.divf %31, %32 : vector<2x32xf32>
    %34 = arith.mulf %25, %6 : vector<2x32xf32>
    %35 = arith.mulf %19, %27 : vector<2x32xf32>
    %36 = arith.addf %34, %35 : vector<2x32xf32>
    %37 = math.tanh %36 : vector<2x32xf32>
    %38 = arith.mulf %33, %37 : vector<2x32xf32>
    %c0_15 = arith.constant 0 : index
    %c0_16 = arith.constant 0 : index
    %c0_17 = arith.constant 0 : index
    %39 = vector.load %arg6[%c0_15, %c0_16, %c0_17] : memref<2x2x32xf32, #tpu.memory_space<vmem>>, vector<1x2x32xf32>
    %40 = vector.shape_cast %39 : vector<1x2x32xf32> to vector<2x32xf32>
    %41 = vector.shape_cast %38 : vector<2x32xf32> to vector<1x2x32xf32>
    tpu.vector_store %arg6[%c0_15, %c0_16, %c0_17], %41 {strides = array<i32>} : memref<2x2x32xf32, #tpu.memory_space<vmem>>, vector<1x2x32xf32>,
    %c0_18 = arith.constant 0 : index
    %c0_19 = arith.constant 0 : index
    %c0_20 = arith.constant 0 : index
    %42 = vector.load %arg7[%c0_18, %c0_19, %c0_20] : memref<2x2x32xf32, #tpu.memory_space<vmem>>, vector<1x2x32xf32>
    %43 = vector.shape_cast %42 : vector<1x2x32xf32> to vector<2x32xf32>
    %44 = vector.shape_cast %36 : vector<2x32xf32> to vector<1x2x32xf32>
    tpu.vector_store %arg7[%c0_18, %c0_19, %c0_20], %44 {strides = array<i32>} : memref<2x2x32xf32, #tpu.memory_space<vmem>>, vector<1x2x32xf32>,
    %c0_21 = arith.constant 0 : index
    %c0_22 = arith.constant 0 : index
    %c0_23 = arith.constant 0 : index
    %45 = vector.load %arg4[%c0_21, %c0_22, %c0_23] : memref<1x2x32xf32, #tpu.memory_space<vmem>>, vector<1x2x32xf32>
    %46 = vector.shape_cast %45 : vector<1x2x32xf32> to vector<2x32xf32>
    %47 = vector.shape_cast %38 : vector<2x32xf32> to vector<1x2x32xf32>
    tpu.vector_store %arg4[%c0_21, %c0_22, %c0_23], %47 {strides = array<i32>} : memref<1x2x32xf32, #tpu.memory_space<vmem>>, vector<1x2x32xf32>,
    %c1 = arith.constant 1 : index
    %c0_24 = arith.constant 0 : index
    %c0_25 = arith.constant 0 : index
    %48 = vector.load %arg6[%c1, %c0_24, %c0_25] : memref<2x2x32xf32, #tpu.memory_space<vmem>>, vector<1x2x32xf32>
    %49 = vector.shape_cast %48 : vector<1x2x32xf32> to vector<2x32xf32>
    %c1_26 = arith.constant 1 : index
    %c0_27 = arith.constant 0 : index
    %c0_28 = arith.constant 0 : index
    %50 = vector.load %arg7[%c1_26, %c0_27, %c0_28] : memref<2x2x32xf32, #tpu.memory_space<vmem>>, vector<1x2x32xf32>
    %51 = vector.shape_cast %50 : vector<1x2x32xf32> to vector<2x32xf32>
    %c0_29 = arith.constant 0 : index
    %c0_30 = arith.constant 0 : index
    %c0_31 = arith.constant 0 : index
    %52 = vector.load %arg2[%c0_29, %c0_30, %c0_31] : memref<1x2x256xf32, #tpu.memory_space<vmem>>, vector<1x2x256xf32>
    %53 = vector.shape_cast %52 : vector<1x2x256xf32> to vector<2x256xf32>
    %54 = vector.extract_strided_slice %53 {offsets = [0, 128], sizes = [2, 128], strides = [1, 1]} : vector<2x256xf32> to vector<2x128xf32>
    %c1_32 = arith.constant 1 : index
    %c0_33 = arith.constant 0 : index
    %c0_34 = arith.constant 0 : index
    %55 = vector.load %arg3[%c1_32, %c0_33, %c0_34] : memref<2x32x128xf32, #tpu.memory_space<vmem>>, vector<1x32x128xf32>
    %56 = vector.shape_cast %55 : vector<1x32x128xf32> to vector<32x128xf32>
    %cst_35 = arith.constant dense<0.000000e+00> : vector<2x128xf32>
    %57 = tpu.matmul %49, %56, %cst_35 {dimension_numbers = #tpu.dot_dimension_numbers<[1], [0], [0], [1], [0, 0, 1, 1], [], []>} : vector<2x32xf32>, vector<32x128xf32>, vector<2x128xf32> -> vector<2x128xf32>
    %58 = arith.addf %54, %57 : vector<2x128xf32>
    %59 = vector.extract_strided_slice %58 {offsets = [0, 0], sizes = [2, 32], strides = [1, 1]} : vector<2x128xf32> to vector<2x32xf32>
    %60 = arith.negf %59 : vector<2x32xf32>
    %61 = math.exp %60 : vector<2x32xf32>
    %cst_36 = arith.constant 1.000000e+00 : f32
    %62 = vector.broadcast %cst_36 : f32 to vector<2x32xf32>
    %63 = arith.addf %62, %61 : vector<2x32xf32>
    %64 = arith.divf %62, %63 : vector<2x32xf32>
    %65 = vector.extract_strided_slice %58 {offsets = [0, 32], sizes = [2, 32], strides = [1, 1]} : vector<2x128xf32> to vector<2x32xf32>
    %66 = arith.negf %65 : vector<2x32xf32>
    %67 = math.exp %66 : vector<2x32xf32>
    %cst_37 = arith.constant 1.000000e+00 : f32
    %68 = vector.broadcast %cst_37 : f32 to vector<2x32xf32>
    %69 = arith.addf %68, %67 : vector<2x32xf32>
    %70 = arith.divf %68, %69 : vector<2x32xf32>
    %71 = vector.extract_strided_slice %58 {offsets = [0, 64], sizes = [2, 32], strides = [1, 1]} : vector<2x128xf32> to vector<2x32xf32>
    %72 = math.tanh %71 : vector<2x32xf32>
    %73 = vector.extract_strided_slice %58 {offsets = [0, 96], sizes = [2, 32], strides = [1, 1]} : vector<2x128xf32> to vector<2x32xf32>
    %74 = arith.negf %73 : vector<2x32xf32>
    %75 = math.exp %74 : vector<2x32xf32>
    %cst_38 = arith.constant 1.000000e+00 : f32
    %76 = vector.broadcast %cst_38 : f32 to vector<2x32xf32>
    %77 = arith.addf %76, %75 : vector<2x32xf32>
    %78 = arith.divf %76, %77 : vector<2x32xf32>
    %79 = arith.mulf %70, %51 : vector<2x32xf32>
    %80 = arith.mulf %64, %72 : vector<2x32xf32>
    %81 = arith.addf %79, %80 : vector<2x32xf32>
    %82 = math.tanh %81 : vector<2x32xf32>
    %83 = arith.mulf %78, %82 : vector<2x32xf32>
    %c1_39 = arith.constant 1 : index
    %c0_40 = arith.constant 0 : index
    %c0_41 = arith.constant 0 : index
    %84 = vector.load %arg6[%c1_39, %c0_40, %c0_41] : memref<2x2x32xf32, #tpu.memory_space<vmem>>, vector<1x2x32xf32>
    %85 = vector.shape_cast %84 : vector<1x2x32xf32> to vector<2x32xf32>
    %86 = vector.shape_cast %83 : vector<2x32xf32> to vector<1x2x32xf32>
    tpu.vector_store %arg6[%c1_39, %c0_40, %c0_41], %86 {strides = array<i32>} : memref<2x2x32xf32, #tpu.memory_space<vmem>>, vector<1x2x32xf32>,
    %c1_42 = arith.constant 1 : index
    %c0_43 = arith.constant 0 : index
    %c0_44 = arith.constant 0 : index
    %87 = vector.load %arg7[%c1_42, %c0_43, %c0_44] : memref<2x2x32xf32, #tpu.memory_space<vmem>>, vector<1x2x32xf32>
    %88 = vector.shape_cast %87 : vector<1x2x32xf32> to vector<2x32xf32>
    %89 = vector.shape_cast %81 : vector<2x32xf32> to vector<1x2x32xf32>
    tpu.vector_store %arg7[%c1_42, %c0_43, %c0_44], %89 {strides = array<i32>} : memref<2x2x32xf32, #tpu.memory_space<vmem>>, vector<1x2x32xf32>,
    %c0_45 = arith.constant 0 : index
    %c0_46 = arith.constant 0 : index
    %c0_47 = arith.constant 0 : index
    %90 = vector.load %arg5[%c0_45, %c0_46, %c0_47] : memref<1x2x32xf32, #tpu.memory_space<vmem>>, vector<1x2x32xf32>
    %91 = vector.shape_cast %90 : vector<1x2x32xf32> to vector<2x32xf32>
    %92 = vector.shape_cast %83 : vector<2x32xf32> to vector<1x2x32xf32>
    tpu.vector_store %arg5[%c0_45, %c0_46, %c0_47], %92 {strides = array<i32>} : memref<1x2x32xf32, #tpu.memory_space<vmem>>, vector<1x2x32xf32>,
    return
  }
  func.func @transform_0(%arg0: i32) -> (i32, i32, i32) {
    %c0_i32 = arith.constant 0 : i32
    %c0_i32_0 = arith.constant 0 : i32
    %c0_i32_1 = arith.constant 0 : i32
    return %arg0, %c0_i32, %c0_i32_0 : i32, i32, i32
  }
  func.func @transform_1(%arg0: i32) -> (i32, i32, i32) {
    %c7_i32 = arith.constant 7 : i32
    %0 = arith.subi %c7_i32, %arg0 : i32
    %c0_i32 = arith.constant 0 : i32
    %c0_i32_0 = arith.constant 0 : i32
    %c0_i32_1 = arith.constant 0 : i32
    return %0, %c0_i32, %c0_i32_0 : i32, i32, i32
  }
  func.func @transform_2(%arg0: i32) -> (i32, i32, i32) {
    %c0_i32 = arith.constant 0 : i32
    %c0_i32_0 = arith.constant 0 : i32
    %c0_i32_1 = arith.constant 0 : i32
    %c0_i32_2 = arith.constant 0 : i32
    return %c0_i32, %c0_i32_0, %c0_i32_1 : i32, i32, i32
  }
  func.func @transform_3(%arg0: i32) -> (i32, i32, i32) {
    %c0_i32 = arith.constant 0 : i32
    %c0_i32_0 = arith.constant 0 : i32
    %c0_i32_1 = arith.constant 0 : i32
    return %arg0, %c0_i32, %c0_i32_0 : i32, i32, i32
  }
  func.func @transform_4(%arg0: i32) -> (i32, i32, i32) {
    %c7_i32 = arith.constant 7 : i32
    %0 = arith.subi %c7_i32, %arg0 : i32
    %c0_i32 = arith.constant 0 : i32
    %c0_i32_0 = arith.constant 0 : i32
    %c0_i32_1 = arith.constant 0 : i32
    return %0, %c0_i32, %c0_i32_0 : i32, i32, i32
  }
}

module attributes {stable_mosaic.version = 11 : i64} {
  func.func @_mm_bias_act_kernel(%arg0: i32, %arg1: memref<16x64xf32, #tpu.memory_space<vmem>>, %arg2: memref<64x32xf32, #tpu.memory_space<vmem>>, %arg3: memref<1x32xf32, #tpu.memory_space<vmem>>, %arg4: memref<16x32xf32, #tpu.memory_space<vmem>>) attributes {dimension_semantics = [#tpu.dimension_semantics<parallel>], iteration_bounds = array<i64: 1>, scalar_prefetch = 0 : i64, scratch_operands = 0 : i64, tpu.core_type = #tpu.core_type<tc>, window_params = [{transform_indices = @transform_0, window_bounds = array<i64: 16, 64>}, {pipeline_mode = #tpu.pipeline_mode<synchronous>, transform_indices = @transform_1, window_bounds = array<i64: 64, 32>}, {pipeline_mode = #tpu.pipeline_mode<synchronous>, transform_indices = @transform_2, window_bounds = array<i64: 1, 32>}, {transform_indices = @transform_3, window_bounds = array<i64: 16, 32>}]} {
    %c0 = arith.constant 0 : index
    %c0_0 = arith.constant 0 : index
    %0 = vector.load %arg1[%c0, %c0_0] : memref<16x64xf32, #tpu.memory_space<vmem>>, vector<16x64xf32>
    %c0_1 = arith.constant 0 : index
    %c0_2 = arith.constant 0 : index
    %1 = vector.load %arg2[%c0_1, %c0_2] : memref<64x32xf32, #tpu.memory_space<vmem>>, vector<64x32xf32>
    %cst = arith.constant dense<0.000000e+00> : vector<16x32xf32>
    %2 = tpu.matmul %0, %1, %cst {dimension_numbers = #tpu.dot_dimension_numbers<[1], [0], [0], [1], [0, 0, 1, 1], [], []>} : vector<16x64xf32>, vector<64x32xf32>, vector<16x32xf32> -> vector<16x32xf32>
    %c0_3 = arith.constant 0 : index
    %c0_4 = arith.constant 0 : index
    %3 = vector.load %arg3[%c0_3, %c0_4] : memref<1x32xf32, #tpu.memory_space<vmem>>, vector<1x32xf32>
    %4 = vector.broadcast %3 : vector<1x32xf32> to vector<16x32xf32>
    %5 = arith.addf %2, %4 : vector<16x32xf32>
    %c0_5 = arith.constant 0 : index
    %c0_6 = arith.constant 0 : index
    %6 = vector.load %arg4[%c0_5, %c0_6] : memref<16x32xf32, #tpu.memory_space<vmem>>, vector<16x32xf32>
    tpu.vector_store %arg4[%c0_5, %c0_6], %5 {strides = array<i32>} : memref<16x32xf32, #tpu.memory_space<vmem>>, vector<16x32xf32>,
    return
  }
  func.func @transform_0(%arg0: i32) -> (i32, i32) {
    %c0_i32 = arith.constant 0 : i32
    %c0_i32_0 = arith.constant 0 : i32
    return %arg0, %c0_i32 : i32, i32
  }
  func.func @transform_1(%arg0: i32) -> (i32, i32) {
    %c0_i32 = arith.constant 0 : i32
    %c0_i32_0 = arith.constant 0 : i32
    %c0_i32_1 = arith.constant 0 : i32
    return %c0_i32, %c0_i32_0 : i32, i32
  }
  func.func @transform_2(%arg0: i32) -> (i32, i32) {
    %c0_i32 = arith.constant 0 : i32
    %c0_i32_0 = arith.constant 0 : i32
    %c0_i32_1 = arith.constant 0 : i32
    return %c0_i32, %c0_i32_0 : i32, i32
  }
  func.func @transform_3(%arg0: i32) -> (i32, i32) {
    %c0_i32 = arith.constant 0 : i32
    %c0_i32_0 = arith.constant 0 : i32
    return %arg0, %c0_i32 : i32, i32
  }
}

module attributes {stable_mosaic.version = 11 : i64} {
  func.func @_mm_bias_act_kernel(%arg0: i32, %arg1: memref<16x32xf32, #tpu.memory_space<vmem>>, %arg2: memref<32x256xf32, #tpu.memory_space<vmem>>, %arg3: memref<1x256xf32, #tpu.memory_space<vmem>>, %arg4: memref<16x256xf32, #tpu.memory_space<vmem>>) attributes {dimension_semantics = [#tpu.dimension_semantics<parallel>], iteration_bounds = array<i64: 1>, scalar_prefetch = 0 : i64, scratch_operands = 0 : i64, tpu.core_type = #tpu.core_type<tc>, window_params = [{transform_indices = @transform_0, window_bounds = array<i64: 16, 32>}, {pipeline_mode = #tpu.pipeline_mode<synchronous>, transform_indices = @transform_1, window_bounds = array<i64: 32, 256>}, {pipeline_mode = #tpu.pipeline_mode<synchronous>, transform_indices = @transform_2, window_bounds = array<i64: 1, 256>}, {transform_indices = @transform_3, window_bounds = array<i64: 16, 256>}]} {
    %c0 = arith.constant 0 : index
    %c0_0 = arith.constant 0 : index
    %0 = vector.load %arg1[%c0, %c0_0] : memref<16x32xf32, #tpu.memory_space<vmem>>, vector<16x32xf32>
    %c0_1 = arith.constant 0 : index
    %c0_2 = arith.constant 0 : index
    %1 = vector.load %arg2[%c0_1, %c0_2] : memref<32x256xf32, #tpu.memory_space<vmem>>, vector<32x256xf32>
    %cst = arith.constant dense<0.000000e+00> : vector<16x256xf32>
    %2 = tpu.matmul %0, %1, %cst {dimension_numbers = #tpu.dot_dimension_numbers<[1], [0], [0], [1], [0, 0, 1, 1], [], []>} : vector<16x32xf32>, vector<32x256xf32>, vector<16x256xf32> -> vector<16x256xf32>
    %c0_3 = arith.constant 0 : index
    %c0_4 = arith.constant 0 : index
    %3 = vector.load %arg3[%c0_3, %c0_4] : memref<1x256xf32, #tpu.memory_space<vmem>>, vector<1x256xf32>
    %4 = vector.broadcast %3 : vector<1x256xf32> to vector<16x256xf32>
    %5 = arith.addf %2, %4 : vector<16x256xf32>
    %c0_5 = arith.constant 0 : index
    %c0_6 = arith.constant 0 : index
    %6 = vector.load %arg4[%c0_5, %c0_6] : memref<16x256xf32, #tpu.memory_space<vmem>>, vector<16x256xf32>
    tpu.vector_store %arg4[%c0_5, %c0_6], %5 {strides = array<i32>} : memref<16x256xf32, #tpu.memory_space<vmem>>, vector<16x256xf32>,
    return
  }
  func.func @transform_0(%arg0: i32) -> (i32, i32) {
    %c0_i32 = arith.constant 0 : i32
    %c0_i32_0 = arith.constant 0 : i32
    return %arg0, %c0_i32 : i32, i32
  }
  func.func @transform_1(%arg0: i32) -> (i32, i32) {
    %c0_i32 = arith.constant 0 : i32
    %c0_i32_0 = arith.constant 0 : i32
    %c0_i32_1 = arith.constant 0 : i32
    return %c0_i32, %c0_i32_0 : i32, i32
  }
  func.func @transform_2(%arg0: i32) -> (i32, i32) {
    %c0_i32 = arith.constant 0 : i32
    %c0_i32_0 = arith.constant 0 : i32
    %c0_i32_1 = arith.constant 0 : i32
    return %c0_i32, %c0_i32_0 : i32, i32
  }
  func.func @transform_3(%arg0: i32) -> (i32, i32) {
    %c0_i32 = arith.constant 0 : i32
    %c0_i32_0 = arith.constant 0 : i32
    return %arg0, %c0_i32 : i32, i32
  }
}

module attributes {stable_mosaic.version = 11 : i64} {
  func.func @_mm_bias_act_kernel(%arg0: i32, %arg1: memref<16x32xf32, #tpu.memory_space<vmem>>, %arg2: memref<32x32xf32, #tpu.memory_space<vmem>>, %arg3: memref<1x32xf32, #tpu.memory_space<vmem>>, %arg4: memref<16x32xf32, #tpu.memory_space<vmem>>) attributes {dimension_semantics = [#tpu.dimension_semantics<parallel>], iteration_bounds = array<i64: 1>, scalar_prefetch = 0 : i64, scratch_operands = 0 : i64, tpu.core_type = #tpu.core_type<tc>, window_params = [{transform_indices = @transform_0, window_bounds = array<i64: 16, 32>}, {pipeline_mode = #tpu.pipeline_mode<synchronous>, transform_indices = @transform_1, window_bounds = array<i64: 32, 32>}, {pipeline_mode = #tpu.pipeline_mode<synchronous>, transform_indices = @transform_2, window_bounds = array<i64: 1, 32>}, {transform_indices = @transform_3, window_bounds = array<i64: 16, 32>}]} {
    %c0 = arith.constant 0 : index
    %c0_0 = arith.constant 0 : index
    %0 = vector.load %arg1[%c0, %c0_0] : memref<16x32xf32, #tpu.memory_space<vmem>>, vector<16x32xf32>
    %c0_1 = arith.constant 0 : index
    %c0_2 = arith.constant 0 : index
    %1 = vector.load %arg2[%c0_1, %c0_2] : memref<32x32xf32, #tpu.memory_space<vmem>>, vector<32x32xf32>
    %cst = arith.constant dense<0.000000e+00> : vector<16x32xf32>
    %2 = tpu.matmul %0, %1, %cst {dimension_numbers = #tpu.dot_dimension_numbers<[1], [0], [0], [1], [0, 0, 1, 1], [], []>} : vector<16x32xf32>, vector<32x32xf32>, vector<16x32xf32> -> vector<16x32xf32>
    %c0_3 = arith.constant 0 : index
    %c0_4 = arith.constant 0 : index
    %3 = vector.load %arg3[%c0_3, %c0_4] : memref<1x32xf32, #tpu.memory_space<vmem>>, vector<1x32xf32>
    %4 = vector.broadcast %3 : vector<1x32xf32> to vector<16x32xf32>
    %5 = arith.addf %2, %4 : vector<16x32xf32>
    %c0_5 = arith.constant 0 : index
    %c0_6 = arith.constant 0 : index
    %6 = vector.load %arg4[%c0_5, %c0_6] : memref<16x32xf32, #tpu.memory_space<vmem>>, vector<16x32xf32>
    tpu.vector_store %arg4[%c0_5, %c0_6], %5 {strides = array<i32>} : memref<16x32xf32, #tpu.memory_space<vmem>>, vector<16x32xf32>,
    return
  }
  func.func @transform_0(%arg0: i32) -> (i32, i32) {
    %c0_i32 = arith.constant 0 : i32
    %c0_i32_0 = arith.constant 0 : i32
    return %arg0, %c0_i32 : i32, i32
  }
  func.func @transform_1(%arg0: i32) -> (i32, i32) {
    %c0_i32 = arith.constant 0 : i32
    %c0_i32_0 = arith.constant 0 : i32
    %c0_i32_1 = arith.constant 0 : i32
    return %c0_i32, %c0_i32_0 : i32, i32
  }
  func.func @transform_2(%arg0: i32) -> (i32, i32) {
    %c0_i32 = arith.constant 0 : i32
    %c0_i32_0 = arith.constant 0 : i32
    %c0_i32_1 = arith.constant 0 : i32
    return %c0_i32, %c0_i32_0 : i32, i32
  }
  func.func @transform_3(%arg0: i32) -> (i32, i32) {
    %c0_i32 = arith.constant 0 : i32
    %c0_i32_0 = arith.constant 0 : i32
    return %arg0, %c0_i32 : i32, i32
  }
}

module attributes {stable_mosaic.version = 11 : i64} {
  func.func @_attn_decode_kernel(%arg0: i32, %arg1: memref<2x8x32xf32, #tpu.memory_space<vmem>>, %arg2: memref<2x8x32xf32, #tpu.memory_space<vmem>>, %arg3: memref<32x32xf32, #tpu.memory_space<vmem>>, %arg4: memref<1x32xf32, #tpu.memory_space<vmem>>, %arg5: memref<1x32xf32, #tpu.memory_space<vmem>>, %arg6: memref<192x128xf32, #tpu.memory_space<vmem>>, %arg7: memref<1x128xf32, #tpu.memory_space<vmem>>, %arg8: memref<32x128xf32, #tpu.memory_space<vmem>>, %arg9: memref<1x128xf32, #tpu.memory_space<vmem>>, %arg10: memref<1x2x128xf32, #tpu.memory_space<vmem>>, %arg11: memref<2x32xf32, #tpu.memory_space<vmem>>, %arg12: memref<2x32xf32, #tpu.memory_space<vmem>>, %arg13: memref<2x128xf32, #tpu.memory_space<vmem>>) attributes {dimension_semantics = [#tpu.dimension_semantics<arbitrary>], iteration_bounds = array<i64: 9>, scalar_prefetch = 0 : i64, scratch_operands = 3 : i64, tpu.core_type = #tpu.core_type<tc>, window_params = [{pipeline_mode = #tpu.pipeline_mode<synchronous>, transform_indices = @transform_0, window_bounds = array<i64: 2, 8, 32>}, {pipeline_mode = #tpu.pipeline_mode<synchronous>, transform_indices = @transform_1, window_bounds = array<i64: 2, 8, 32>}, {pipeline_mode = #tpu.pipeline_mode<synchronous>, transform_indices = @transform_2, window_bounds = array<i64: 32, 32>}, {pipeline_mode = #tpu.pipeline_mode<synchronous>, transform_indices = @transform_3, window_bounds = array<i64: 1, 32>}, {pipeline_mode = #tpu.pipeline_mode<synchronous>, transform_indices = @transform_4, window_bounds = array<i64: 1, 32>}, {pipeline_mode = #tpu.pipeline_mode<synchronous>, transform_indices = @transform_5, window_bounds = array<i64: 192, 128>}, {pipeline_mode = #tpu.pipeline_mode<synchronous>, transform_indices = @transform_6, window_bounds = array<i64: 1, 128>}, {pipeline_mode = #tpu.pipeline_mode<synchronous>, transform_indices = @transform_7, window_bounds = array<i64: 32, 128>}, {pipeline_mode = #tpu.pipeline_mode<synchronous>, transform_indices = @transform_8, window_bounds = array<i64: 1, 128>}, {transform_indices = @transform_9, window_bounds = array<i64: 1, 2, 128>}]} {
    %c0_i32 = arith.constant 0 : i32
    %0 = arith.cmpi eq, %arg0, %c0_i32 : i32
    %1 = arith.extui %0 : i1 to i32
    %c0_i32_0 = arith.constant 0 : i32
    %2 = arith.cmpi ne, %1, %c0_i32_0 : i32
    scf.if %2 {
      %cst_47 = arith.constant 0.000000e+00 : f32
      %93 = vector.broadcast %cst_47 : f32 to vector<2x32xf32>
      %c0_48 = arith.constant 0 : index
      %c0_49 = arith.constant 0 : index
      %94 = vector.load %arg11[%c0_48, %c0_49] : memref<2x32xf32, #tpu.memory_space<vmem>>, vector<2x32xf32>
      tpu.vector_store %arg11[%c0_48, %c0_49], %93 {strides = array<i32>} : memref<2x32xf32, #tpu.memory_space<vmem>>, vector<2x32xf32>,
      %cst_50 = arith.constant 0.000000e+00 : f32
      %95 = vector.broadcast %cst_50 : f32 to vector<2x32xf32>
      %c0_51 = arith.constant 0 : index
      %c0_52 = arith.constant 0 : index
      %96 = vector.load %arg12[%c0_51, %c0_52] : memref<2x32xf32, #tpu.memory_space<vmem>>, vector<2x32xf32>
      tpu.vector_store %arg12[%c0_51, %c0_52], %95 {strides = array<i32>} : memref<2x32xf32, #tpu.memory_space<vmem>>, vector<2x32xf32>,
      %97 = tpu.iota {dimensions = array<i32: 1>} : vector<2x128xi32>
      %c0_i32_53 = arith.constant 0 : i32
      %98 = vector.broadcast %c0_i32_53 : i32 to vector<2x128xi32>
      %99 = arith.cmpi eq, %97, %98 : vector<2x128xi32>
      %100 = arith.extui %99 : vector<2x128xi1> to vector<2x128xi32>
      %101 = arith.sitofp %100 : vector<2x128xi32> to vector<2x128xf32>
      %c0_54 = arith.constant 0 : index
      %c0_55 = arith.constant 0 : index
      %102 = vector.load %arg13[%c0_54, %c0_55] : memref<2x128xf32, #tpu.memory_space<vmem>>, vector<2x128xf32>
      tpu.vector_store %arg13[%c0_54, %c0_55], %101 {strides = array<i32>} : memref<2x128xf32, #tpu.memory_space<vmem>>, vector<2x128xf32>,
    } else {
    }
    %c0 = arith.constant 0 : index
    %c0_1 = arith.constant 0 : index
    %3 = vector.load %arg11[%c0, %c0_1] : memref<2x32xf32, #tpu.memory_space<vmem>>, vector<2x32xf32>
    %c0_2 = arith.constant 0 : index
    %c0_3 = arith.constant 0 : index
    %4 = vector.load %arg12[%c0_2, %c0_3] : memref<2x32xf32, #tpu.memory_space<vmem>>, vector<2x32xf32>
    %c0_4 = arith.constant 0 : index
    %c0_5 = arith.constant 0 : index
    %c0_6 = arith.constant 0 : index
    %5 = vector.load %arg1[%c0_4, %c0_5, %c0_6] : memref<2x8x32xf32, #tpu.memory_space<vmem>>, vector<2x8x32xf32>
    %c0_7 = arith.constant 0 : index
    %c0_8 = arith.constant 0 : index
    %c0_9 = arith.constant 0 : index
    %6 = vector.load %arg2[%c0_7, %c0_8, %c0_9] : memref<2x8x32xf32, #tpu.memory_space<vmem>>, vector<2x8x32xf32>
    %c0_10 = arith.constant 0 : index
    %c0_11 = arith.constant 0 : index
    %7 = vector.load %arg3[%c0_10, %c0_11] : memref<32x32xf32, #tpu.memory_space<vmem>>, vector<32x32xf32>
    %cst = arith.constant dense<0.000000e+00> : vector<2x32xf32>
    %8 = tpu.matmul %3, %7, %cst {dimension_numbers = #tpu.dot_dimension_numbers<[1], [0], [0], [1], [0, 0, 1, 1], [], []>} : vector<2x32xf32>, vector<32x32xf32>, vector<2x32xf32> -> vector<2x32xf32>
    %c0_12 = arith.constant 0 : index
    %c0_13 = arith.constant 0 : index
    %9 = vector.load %arg4[%c0_12, %c0_13] : memref<1x32xf32, #tpu.memory_space<vmem>>, vector<1x32xf32>
    %10 = vector.broadcast %9 : vector<1x32xf32> to vector<2x32xf32>
    %11 = arith.addf %8, %10 : vector<2x32xf32>
    %12 = vector.shape_cast %11 : vector<2x32xf32> to vector<2x1x32xf32>
    %13 = vector.broadcast %12 : vector<2x1x32xf32> to vector<2x8x32xf32>
    %14 = arith.addf %6, %13 : vector<2x8x32xf32>
    %15 = math.tanh %14 : vector<2x8x32xf32>
    %c0_14 = arith.constant 0 : index
    %c0_15 = arith.constant 0 : index
    %16 = vector.load %arg5[%c0_14, %c0_15] : memref<1x32xf32, #tpu.memory_space<vmem>>, vector<1x32xf32>
    %17 = vector.shape_cast %16 : vector<1x32xf32> to vector<1x1x32xf32>
    %18 = vector.broadcast %17 : vector<1x1x32xf32> to vector<2x8x32xf32>
    %19 = arith.mulf %15, %18 : vector<2x8x32xf32>
    %cst_16 = arith.constant dense<0.000000e+00> : vector<2x8xf32>
    %20 = vector.multi_reduction <add>, %19, %cst_16 [2] : vector<2x8x32xf32> to vector<2x8xf32>
    %cst_17 = arith.constant dense<0xFF800000> : vector<2xf32>
    %21 = vector.multi_reduction <maximumf>, %20, %cst_17 [1] : vector<2x8xf32> to vector<2xf32>
    %cst_18 = arith.constant 0xFF800000 : f32
    %22 = vector.broadcast %cst_18 : f32 to vector<2xf32>
    %23 = arith.maximumf %22, %21 : vector<2xf32>
    %24 = vector.shape_cast %23 : vector<2xf32> to vector<2x1xf32>
    %25 = vector.broadcast %24 : vector<2x1xf32> to vector<2x8xf32>
    %26 = arith.subf %20, %25 : vector<2x8xf32>
    %27 = math.exp %26 : vector<2x8xf32>
    %cst_19 = arith.constant dense<0.000000e+00> : vector<2xf32>
    %28 = vector.multi_reduction <add>, %27, %cst_19 [1] : vector<2x8xf32> to vector<2xf32>
    %29 = vector.shape_cast %28 : vector<2xf32> to vector<2x1xf32>
    %30 = vector.broadcast %29 : vector<2x1xf32> to vector<2x8xf32>
    %31 = arith.divf %27, %30 : vector<2x8xf32>
    %32 = vector.shape_cast %31 : vector<2x8xf32> to vector<2x8x1xf32>
    %33 = vector.broadcast %32 : vector<2x8x1xf32> to vector<2x8x32xf32>
    %34 = arith.mulf %33, %5 : vector<2x8x32xf32>
    %cst_20 = arith.constant dense<0.000000e+00> : vector<2x32xf32>
    %35 = vector.multi_reduction <add>, %34, %cst_20 [1] : vector<2x8x32xf32> to vector<2x32xf32>
    %c0_21 = arith.constant 0 : index
    %c0_22 = arith.constant 0 : index
    %36 = vector.load %arg13[%c0_21, %c0_22] : memref<2x128xf32, #tpu.memory_space<vmem>>, vector<2x128xf32>
    %37 = tpu.concatenate %35, %36, %3 in 1 : vector<2x32xf32>, vector<2x128xf32>, vector<2x32xf32> -> vector<2x192xf32>
    %c0_23 = arith.constant 0 : index
    %c0_24 = arith.constant 0 : index
    %38 = vector.load %arg6[%c0_23, %c0_24] : memref<192x128xf32, #tpu.memory_space<vmem>>, vector<192x128xf32>
    %cst_25 = arith.constant dense<0.000000e+00> : vector<2x128xf32>
    %39 = tpu.matmul %37, %38, %cst_25 {dimension_numbers = #tpu.dot_dimension_numbers<[1], [0], [0], [1], [0, 0, 1, 1], [], []>} : vector<2x192xf32>, vector<192x128xf32>, vector<2x128xf32> -> vector<2x128xf32>
    %c0_26 = arith.constant 0 : index
    %c0_27 = arith.constant 0 : index
    %40 = vector.load %arg7[%c0_26, %c0_27] : memref<1x128xf32, #tpu.memory_space<vmem>>, vector<1x128xf32>
    %41 = vector.broadcast %40 : vector<1x128xf32> to vector<2x128xf32>
    %42 = arith.addf %39, %41 : vector<2x128xf32>
    %43 = vector.extract_strided_slice %42 {offsets = [0, 0], sizes = [2, 32], strides = [1, 1]} : vector<2x128xf32> to vector<2x32xf32>
    %44 = arith.negf %43 : vector<2x32xf32>
    %45 = math.exp %44 : vector<2x32xf32>
    %cst_28 = arith.constant 1.000000e+00 : f32
    %46 = vector.broadcast %cst_28 : f32 to vector<2x32xf32>
    %47 = arith.addf %46, %45 : vector<2x32xf32>
    %48 = arith.divf %46, %47 : vector<2x32xf32>
    %49 = vector.extract_strided_slice %42 {offsets = [0, 32], sizes = [2, 32], strides = [1, 1]} : vector<2x128xf32> to vector<2x32xf32>
    %50 = arith.negf %49 : vector<2x32xf32>
    %51 = math.exp %50 : vector<2x32xf32>
    %cst_29 = arith.constant 1.000000e+00 : f32
    %52 = vector.broadcast %cst_29 : f32 to vector<2x32xf32>
    %53 = arith.addf %52, %51 : vector<2x32xf32>
    %54 = arith.divf %52, %53 : vector<2x32xf32>
    %55 = vector.extract_strided_slice %42 {offsets = [0, 64], sizes = [2, 32], strides = [1, 1]} : vector<2x128xf32> to vector<2x32xf32>
    %56 = math.tanh %55 : vector<2x32xf32>
    %57 = vector.extract_strided_slice %42 {offsets = [0, 96], sizes = [2, 32], strides = [1, 1]} : vector<2x128xf32> to vector<2x32xf32>
    %58 = arith.negf %57 : vector<2x32xf32>
    %59 = math.exp %58 : vector<2x32xf32>
    %cst_30 = arith.constant 1.000000e+00 : f32
    %60 = vector.broadcast %cst_30 : f32 to vector<2x32xf32>
    %61 = arith.addf %60, %59 : vector<2x32xf32>
    %62 = arith.divf %60, %61 : vector<2x32xf32>
    %63 = arith.mulf %54, %4 : vector<2x32xf32>
    %64 = arith.mulf %48, %56 : vector<2x32xf32>
    %65 = arith.addf %63, %64 : vector<2x32xf32>
    %66 = math.tanh %65 : vector<2x32xf32>
    %67 = arith.mulf %62, %66 : vector<2x32xf32>
    %c0_31 = arith.constant 0 : index
    %c0_32 = arith.constant 0 : index
    %68 = vector.load %arg8[%c0_31, %c0_32] : memref<32x128xf32, #tpu.memory_space<vmem>>, vector<32x128xf32>
    %cst_33 = arith.constant dense<0.000000e+00> : vector<2x128xf32>
    %69 = tpu.matmul %67, %68, %cst_33 {dimension_numbers = #tpu.dot_dimension_numbers<[1], [0], [0], [1], [0, 0, 1, 1], [], []>} : vector<2x32xf32>, vector<32x128xf32>, vector<2x128xf32> -> vector<2x128xf32>
    %c0_34 = arith.constant 0 : index
    %c0_35 = arith.constant 0 : index
    %70 = vector.load %arg9[%c0_34, %c0_35] : memref<1x128xf32, #tpu.memory_space<vmem>>, vector<1x128xf32>
    %71 = vector.broadcast %70 : vector<1x128xf32> to vector<2x128xf32>
    %72 = arith.addf %69, %71 : vector<2x128xf32>
    %c0_36 = arith.constant 0 : index
    %c0_37 = arith.constant 0 : index
    %c0_38 = arith.constant 0 : index
    %73 = vector.load %arg10[%c0_36, %c0_37, %c0_38] : memref<1x2x128xf32, #tpu.memory_space<vmem>>, vector<1x2x128xf32>
    %74 = vector.shape_cast %73 : vector<1x2x128xf32> to vector<2x128xf32>
    %75 = vector.shape_cast %72 : vector<2x128xf32> to vector<1x2x128xf32>
    tpu.vector_store %arg10[%c0_36, %c0_37, %c0_38], %75 {strides = array<i32>} : memref<1x2x128xf32, #tpu.memory_space<vmem>>, vector<1x2x128xf32>,
    %cst_39 = arith.constant dense<0xFF800000> : vector<2xf32>
    %76 = vector.multi_reduction <maximumf>, %72, %cst_39 [1] : vector<2x128xf32> to vector<2xf32>
    %77 = vector.shape_cast %76 : vector<2xf32> to vector<2x1xf32>
    %78 = tpu.iota {dimensions = array<i32: 1>} : vector<2x128xi32>
    %79 = vector.broadcast %77 : vector<2x1xf32> to vector<2x128xf32>
    %80 = arith.cmpf oeq, %72, %79 : vector<2x128xf32>
    %c128_i32 = arith.constant 128 : i32
    %81 = vector.broadcast %c128_i32 : i32 to vector<2x128xi32>
    %82 = arith.select %80, %78, %81 : vector<2x128xi1>, vector<2x128xi32>
    %cst_40 = arith.constant dense<2147483647> : vector<2xi32>
    %83 = vector.multi_reduction <minsi>, %82, %cst_40 [1] : vector<2x128xi32> to vector<2xi32>
    %84 = tpu.iota {dimensions = array<i32: 1>} : vector<2x128xi32>
    %85 = vector.shape_cast %83 : vector<2xi32> to vector<2x1xi32>
    %86 = vector.broadcast %85 : vector<2x1xi32> to vector<2x128xi32>
    %87 = arith.cmpi eq, %84, %86 : vector<2x128xi32>
    %88 = arith.extui %87 : vector<2x128xi1> to vector<2x128xi32>
    %89 = arith.sitofp %88 : vector<2x128xi32> to vector<2x128xf32>
    %c0_41 = arith.constant 0 : index
    %c0_42 = arith.constant 0 : index
    %90 = vector.load %arg13[%c0_41, %c0_42] : memref<2x128xf32, #tpu.memory_space<vmem>>, vector<2x128xf32>
    tpu.vector_store %arg13[%c0_41, %c0_42], %89 {strides = array<i32>} : memref<2x128xf32, #tpu.memory_space<vmem>>, vector<2x128xf32>,
    %c0_43 = arith.constant 0 : index
    %c0_44 = arith.constant 0 : index
    %91 = vector.load %arg11[%c0_43, %c0_44] : memref<2x32xf32, #tpu.memory_space<vmem>>, vector<2x32xf32>
    tpu.vector_store %arg11[%c0_43, %c0_44], %67 {strides = array<i32>} : memref<2x32xf32, #tpu.memory_space<vmem>>, vector<2x32xf32>,
    %c0_45 = arith.constant 0 : index
    %c0_46 = arith.constant 0 : index
    %92 = vector.load %arg12[%c0_45, %c0_46] : memref<2x32xf32, #tpu.memory_space<vmem>>, vector<2x32xf32>
    tpu.vector_store %arg12[%c0_45, %c0_46], %65 {strides = array<i32>} : memref<2x32xf32, #tpu.memory_space<vmem>>, vector<2x32xf32>,
    return
  }
  func.func @transform_0(%arg0: i32) -> (i32, i32, i32) {
    %c0_i32 = arith.constant 0 : i32
    %c0_i32_0 = arith.constant 0 : i32
    %c0_i32_1 = arith.constant 0 : i32
    %c0_i32_2 = arith.constant 0 : i32
    return %c0_i32, %c0_i32_0, %c0_i32_1 : i32, i32, i32
  }
  func.func @transform_1(%arg0: i32) -> (i32, i32, i32) {
    %c0_i32 = arith.constant 0 : i32
    %c0_i32_0 = arith.constant 0 : i32
    %c0_i32_1 = arith.constant 0 : i32
    %c0_i32_2 = arith.constant 0 : i32
    return %c0_i32, %c0_i32_0, %c0_i32_1 : i32, i32, i32
  }
  func.func @transform_2(%arg0: i32) -> (i32, i32) {
    %c0_i32 = arith.constant 0 : i32
    %c0_i32_0 = arith.constant 0 : i32
    %c0_i32_1 = arith.constant 0 : i32
    return %c0_i32, %c0_i32_0 : i32, i32
  }
  func.func @transform_3(%arg0: i32) -> (i32, i32) {
    %c0_i32 = arith.constant 0 : i32
    %c0_i32_0 = arith.constant 0 : i32
    %c0_i32_1 = arith.constant 0 : i32
    return %c0_i32, %c0_i32_0 : i32, i32
  }
  func.func @transform_4(%arg0: i32) -> (i32, i32) {
    %c0_i32 = arith.constant 0 : i32
    %c0_i32_0 = arith.constant 0 : i32
    %c0_i32_1 = arith.constant 0 : i32
    return %c0_i32, %c0_i32_0 : i32, i32
  }
  func.func @transform_5(%arg0: i32) -> (i32, i32) {
    %c0_i32 = arith.constant 0 : i32
    %c0_i32_0 = arith.constant 0 : i32
    %c0_i32_1 = arith.constant 0 : i32
    return %c0_i32, %c0_i32_0 : i32, i32
  }
  func.func @transform_6(%arg0: i32) -> (i32, i32) {
    %c0_i32 = arith.constant 0 : i32
    %c0_i32_0 = arith.constant 0 : i32
    %c0_i32_1 = arith.constant 0 : i32
    return %c0_i32, %c0_i32_0 : i32, i32
  }
  func.func @transform_7(%arg0: i32) -> (i32, i32) {
    %c0_i32 = arith.constant 0 : i32
    %c0_i32_0 = arith.constant 0 : i32
    %c0_i32_1 = arith.constant 0 : i32
    return %c0_i32, %c0_i32_0 : i32, i32
  }
  func.func @transform_8(%arg0: i32) -> (i32, i32) {
    %c0_i32 = arith.constant 0 : i32
    %c0_i32_0 = arith.constant 0 : i32
    %c0_i32_1 = arith.constant 0 : i32
    return %c0_i32, %c0_i32_0 : i32, i32
  }
  func.func @transform_9(%arg0: i32) -> (i32, i32, i32) {
    %c0_i32 = arith.constant 0 : i32
    %c0_i32_0 = arith.constant 0 : i32
    %c0_i32_1 = arith.constant 0 : i32
    return %arg0, %c0_i32, %c0_i32_0 : i32, i32, i32
  }
}

</mosaic_0001>

<llo_original>
// kernel: _lambda_.15
$region0: #{_lambda_.15}
  #allocation0 [shape = 'u32[]', space=smem, size = 0x4, offset = 0x4, fixed_abs, tag = 'smem constant byte address 0x4 - core index']
  #allocation1 [shape = 'u32[144,128]{1,0:T(1,128)}', space=vmem, size = 0x12000, scoped, tag = 'internal scratch']
  %s0 = inlined_call_operand.vmem [shape: f32[1024,16], index: 0, kind: input, shape index: {}]
  %s1 = inlined_call_operand.vmem [shape: f32[16,8], index: 1, kind: input, shape index: {}]
  %s2 = inlined_call_operand.vmem [shape: f32[1,8], index: 2, kind: input, shape index: {}]
  %s3 = inlined_call_operand.vmem [shape: f32[1024,8], index: 3, kind: output, shape index: {}]
  %s4 = sld [smem:[#allocation0]]
  $region45: #{_lambda_.15} parent=0
    _
  %s6 = ssub.s32 1, %s4
  %s7 = scalar_select 0, %s6, %s4
  loop: start=0, step=1, limit=10
  $region2: #{_lambda_.15} parent=0 // loop_pre_header
    _
  $region3: #{_lambda_.15} parent=0 // loop_header
    %s9 = sphi 0, %s13
    %p10 = scmp.ge.s32.totalorder %s9, 10
    %s19 = sphi 0, %s21
    %s22 = sphi 0, %s19
    %s23 = sphi 0, %s22
    %s39 = sphi 0, %s23
    %s43 = sphi 0, %s43
    %s45 = sphi 0, %s43
    %s46 = sphi 0, %s45
    %s60 = sphi 0, %s46
    %s64 = sphi 0, %s64
    %s66 = sphi 0, %s64
    %s67 = sphi 0, %s66
    %s81 = sphi 0, %s67
    %s87 = sphi 0, %s89
    %s90 = sphi 0, %s87
    %s91 = sphi 0, %s90
    %s107 = sphi 0, %s91
  $region4: #{_lambda_.15} parent=0 // loop_header_branch
    %12 = sbr.rel (%p10) target = $region8
  $region5: #{_lambda_.15} parent=0 // loop_body
    %s14 = ssub.s32 %s9, 1
    %s15 = ssub.s32 %s9, 2
    %s16 = sadd.s32 %s9, 1
    %s17 = ssub.s32 %s9, %s16
    %p18 = scmp.eq.s32.totalorder %s17, 0
    %s20 = sadd.s32 %s19, 1
    %s21 = scalar_select %p18, %s19, %s20
    %p24 = pneg %p18
    %p25 = scmp.eq.s32.totalorder %s9, 7
    %p26 = por %p24, %p25
    %p27 = scmp.ne.s32.totalorder %s19, %s22
    %p28 = scmp.eq.s32.totalorder %s9, 0
    %p29 = por %p27, %p28
    %p30 = scmp.ne.s32.totalorder %s19, %s22
    %p31 = scmp.eq.s32.totalorder %s14, 7
    %p32 = por %p30, %p31
    %p33 = scmp.ne.s32.totalorder %s22, %s23
    %p34 = scmp.eq.s32.totalorder %s14, 0
    %p35 = por %p33, %p34
    %p36 = scmp.ne.s32.totalorder %s22, %s23
    %p37 = scmp.eq.s32.totalorder %s15, 7
    %p38 = por %p36, %p37
    %p40 = scmp.ne.s32.totalorder %s23, %s39
    %p41 = scmp.eq.s32.totalorder %s15, 0
    %p42 = por %p40, %p41
    %s44 = sadd.s32 %s43, 1
    %p47 = scmp.eq.s32.totalorder %s9, 7
    %p48 = scmp.ne.s32.totalorder %s43, %s45
    %p49 = scmp.eq.s32.totalorder %s9, 0
    %p50 = por %p48, %p49
    %p51 = scmp.ne.s32.totalorder %s43, %s45
    %p52 = scmp.eq.s32.totalorder %s14, 7
    %p53 = por %p51, %p52
    %p54 = scmp.ne.s32.totalorder %s45, %s46
    %p55 = scmp.eq.s32.totalorder %s14, 0
    %p56 = por %p54, %p55
    %p57 = scmp.ne.s32.totalorder %s45, %s46
    %p58 = scmp.eq.s32.totalorder %s15, 7
    %p59 = por %p57, %p58
    %p61 = scmp.ne.s32.totalorder %s46, %s60
    %p62 = scmp.eq.s32.totalorder %s15, 0
    %p63 = por %p61, %p62
    %s65 = sadd.s32 %s64, 1
    %p68 = scmp.eq.s32.totalorder %s9, 7
    %p69 = scmp.ne.s32.totalorder %s64, %s66
    %p70 = scmp.eq.s32.totalorder %s9, 0
    %p71 = por %p69, %p70
    %p72 = scmp.ne.s32.totalorder %s64, %s66
    %p73 = scmp.eq.s32.totalorder %s14, 7
    %p74 = por %p72, %p73
    %p75 = scmp.ne.s32.totalorder %s66, %s67
    %p76 = scmp.eq.s32.totalorder %s14, 0
    %p77 = por %p75, %p76
    %p78 = scmp.ne.s32.totalorder %s66, %s67
    %p79 = scmp.eq.s32.totalorder %s15, 7
    %p80 = por %p78, %p79
    %p82 = scmp.ne.s32.totalorder %s67, %s81
    %p83 = scmp.eq.s32.totalorder %s15, 0
    %p84 = por %p82, %p83
    %s85 = ssub.s32 %s9, %s16
    %p86 = scmp.eq.s32.totalorder %s85, 0
    %s88 = sadd.s32 %s87, 1
    %s89 = scalar_select %p86, %s87, %s88
    %p92 = pneg %p86
    %p93 = scmp.eq.s32.totalorder %s9, 7
    %p94 = por %p92, %p93
    %p95 = scmp.ne.s32.totalorder %s87, %s90
    %p96 = scmp.eq.s32.totalorder %s9, 0
    %p97 = por %p95, %p96
    %p98 = scmp.ne.s32.totalorder %s87, %s90
    %p99 = scmp.eq.s32.totalorder %s14, 7
    %p100 = por %p98, %p99
    %p101 = scmp.ne.s32.totalorder %s90, %s91
    %p102 = scmp.eq.s32.totalorder %s14, 0
    %p103 = por %p101, %p102
    %p104 = scmp.ne.s32.totalorder %s90, %s91
    %p105 = scmp.eq.s32.totalorder %s15, 7
    %p106 = por %p104, %p105
    %p108 = scmp.ne.s32.totalorder %s91, %s107
    %p109 = scmp.eq.s32.totalorder %s15, 0
    %p110 = por %p108, %p109
    %p111 = scmp.le.s32.totalorder 1, %s9
    %p112 = scmp.lt.s32.totalorder %s9, 9
    %p113 = pnand %p111, %p112
    %p114 = pneg %p113
    // Predicated region
    $region9: #{_lambda_.15} parent=5 // pred_check
      _
    $region10: #{_lambda_.15} parent=5 // pred_check_branch
      %116 = sbr.rel (%p113) target = $region12
    $region11: #{_lambda_.15} parent=5 // pred_region
      %s117 = ssub.s32 %s9, 1
      // Predicated region
      $region13: #{_lambda_.15} parent=11 // pred_check
        %p118 = pneg %p56
      $region14: #{_lambda_.15} parent=11 // pred_check_branch
        %120 = sbr.rel (%p118) target = $region16
      $region15: #{_lambda_.15} parent=11 // pred_region
        _
      $region16: #{_lambda_.15} parent=11 // pred_fallthru
        _
      // Predicated region
      $region17: #{_lambda_.15} parent=11 // pred_check
        %p121 = pneg %p77
      $region18: #{_lambda_.15} parent=11 // pred_check_branch
        %123 = sbr.rel (%p121) target = $region20
      $region19: #{_lambda_.15} parent=11 // pred_region
        _
      $region20: #{_lambda_.15} parent=11 // pred_fallthru
        _
    $region12: #{_lambda_.15} parent=5 // pred_fallthru
      _
    %p124 = scmp.lt.s32.totalorder %s9, 8
    // Predicated region
    $region21: #{_lambda_.15} parent=5 // pred_check
      %p125 = pneg %p124
    $region22: #{_lambda_.15} parent=5 // pred_check_branch
      %127 = sbr.rel (%p125) target = $region24
    $region23: #{_lambda_.15} parent=5 // pred_region
      // Predicated region
      $region25: #{_lambda_.15} parent=23 // pred_check
        %p128 = pneg %p29
      $region26: #{_lambda_.15} parent=23 // pred_check_branch
        %130 = sbr.rel (%p128) target = $region28
      $region27: #{_lambda_.15} parent=23 // pred_region
        %s131 = smul.u32 16, %s9
        %p132 = scmp.lt.s32.totalorder %s131, 127
        %s133 = scalar_select %p132, %s131, 127
        %s134 = smul.addr %s133, 8
        %s135 = scalar_lea.vmem %s0, %s134
        %s136 = smul.u32 16, %s9
      $region28: #{_lambda_.15} parent=23 // pred_fallthru
        _
    $region24: #{_lambda_.15} parent=5 // pred_fallthru
      _
    %p137 = scmp.le.s32.totalorder 1, %s9
    %p138 = scmp.lt.s32.totalorder %s9, 9
    %p139 = pnand %p137, %p138
    %p140 = pneg %p139
    // Predicated region
    $region29: #{_lambda_.15} parent=5 // pred_check
      _
    $region30: #{_lambda_.15} parent=5 // pred_check_branch
      %142 = sbr.rel (%p139) target = $region32
    $region31: #{_lambda_.15} parent=5 // pred_region
      %s143 = ssub.s32 %s9, 1
      %s144 = smul.u32 16, %s14
      %p145 = scmp.lt.s32.totalorder %s144, 127
      %s146 = scalar_select %p145, %s144, 127
      %s147 = smul.addr %s146, 8
      %s148 = scalar_lea.vmem %s0, %s147
      %p149 = pneg %p35
      %p150 = pneg %p32
      %p151 = pneg %p56
      %p152 = pneg %p53
      %p153 = pneg %p77
      %p154 = pneg %p74
      %p155 = pneg %p103
      %p156 = pneg %p100
      %s157 = smul.u32 16, %s14
      %p158 = scmp.lt.s32.totalorder %s157, 127
      %s159 = scalar_select %p158, %s157, 127
      %s160 = smul.addr %s159, 8
      %s161 = scalar_lea.vmem %s3, %s160
      %s162 = smul.u32 16, %s14
      %p163 = scmp.lt.s32.totalorder %s162, 127
      %s164 = scalar_select %p163, %s162, 127
      %s165 = smul.addr %s164, 8
      %s166 = scalar_lea.vmem %s0, %s165
      %s167 = smul.u32 16, %s14
      %s168 = smul.u32 16, %s14
      %p169 = scmp.lt.s32.totalorder %s168, 127
      %s170 = scalar_select %p169, %s168, 127
      %s171 = smul.addr %s170, 8
      %s172 = scalar_lea.vmem %s3, %s171
      %s173 = smul.u32 16, %s14
      %v174 = vld [vmem:[%s166] sm:$0xff]
      %v175 = vld [vmem:[%s166 + $0x8] sm:$0xff]
      %v176 = vld [vmem:[%s166 + $0x10] sm:$0xff]
      %v177 = vld [vmem:[%s166 + $0x18] sm:$0xff]
      %v178 = vld [vmem:[%s166 + $0x20] sm:$0xff]
      %v179 = vld [vmem:[%s166 + $0x28] sm:$0xff]
      %v180 = vld [vmem:[%s166 + $0x30] sm:$0xff]
      %v181 = vld [vmem:[%s166 + $0x38] sm:$0xff]
      %v182 = vld [vmem:[%s166 + $0x40] sm:$0xff]
      %v183 = vld [vmem:[%s166 + $0x48] sm:$0xff]
      %v184 = vld [vmem:[%s166 + $0x50] sm:$0xff]
      %v185 = vld [vmem:[%s166 + $0x58] sm:$0xff]
      %v186 = vld [vmem:[%s166 + $0x60] sm:$0xff]
      %v187 = vld [vmem:[%s166 + $0x68] sm:$0xff]
      %v188 = vld [vmem:[%s166 + $0x70] sm:$0xff]
      %v189 = vld [vmem:[%s166 + $0x78] sm:$0xff]
      %v190 = vld [vmem:[%s1] sm:$0xff]
      %v191 = vld [vmem:[%s1 + $0x8] sm:$0xff]
      %v192 = vld [vmem:[%s2] sm:$0x1]
      %v194 = vlaneseq
      %v195 = vshrl.u32 %v194, 7
      %v196 = vsub.s32 0, %v195
      %v197 = vrot.slane %v192, %v196
      %vm199 = vcmask 130048
      %v201 = vsel %vm199, %v174, 0
      %v204 = vsel %vm199, %v175, 0
      %v207 = vsel %vm199, %v176, 0
      %v210 = vsel %vm199, %v177, 0
      %v213 = vsel %vm199, %v178, 0
      %v216 = vsel %vm199, %v179, 0
      %v219 = vsel %vm199, %v180, 0
      %v222 = vsel %vm199, %v181, 0
      %v225 = vsel %vm199, %v182, 0
      %v228 = vsel %vm199, %v183, 0
      %v231 = vsel %vm199, %v184, 0
      %v234 = vsel %vm199, %v185, 0
      %v237 = vsel %vm199, %v186, 0
      %v240 = vsel %vm199, %v187, 0
      %v243 = vsel %vm199, %v188, 0
      %v246 = vsel %vm199, %v189, 0
      %248 = vmatprep.subr.mxu0 0.0
      %249 = vmatpush1.msra.mxu0 %v190
      %250 = vmatprep.subr.mxu0 0.0
      %251 = vmatpush1.msra.mxu0 %v191
      %252 = vmatprep.subr.mxu0 0.0
      %253 = vmatpush1.msra.mxu0 0.0
      %254 = vmatprep.subr.mxu0 0.0
      %255 = vmatpush1.msra.mxu0 0.0
      %256 = vmatprep.subr.mxu0 0.0
      %257 = vmatpush1.msra.mxu0 0.0
      %258 = vmatprep.subr.mxu0 0.0
      %259 = vmatpush1.msra.mxu0 0.0
      %260 = vmatprep.subr.mxu0 0.0
      %261 = vmatpush1.msra.mxu0 0.0
      %262 = vmatprep.subr.mxu0 0.0
      %263 = vmatpush1.msra.mxu0 0.0
      %264 = vmatprep.subr.mxu0 0.0
      %265 = vmatpush1.msra.mxu0 0.0
      %266 = vmatprep.subr.mxu0 0.0
      %267 = vmatpush1.msra.mxu0 0.0
      %268 = vmatprep.subr.mxu0 0.0
      %269 = vmatpush1.msra.mxu0 0.0
      %270 = vmatprep.subr.mxu0 0.0
      %271 = vmatpush1.msra.mxu0 0.0
      %272 = vmatprep.subr.mxu0 0.0
      %273 = vmatpush1.msra.mxu0 0.0
      %274 = vmatprep.subr.mxu0 0.0
      %275 = vmatpush1.msra.mxu0 0.0
      %276 = vmatprep.subr.mxu0 0.0
      %277 = vmatpush1.msra.mxu0 0.0
      %278 = vmatprep.subr.mxu0 0.0
      %279 = vmatpush1.msra.mxu0 0.0
      %280 = vmatprep.subr.mxu0 0.0
      %281 = vmatpush1.msra.mxu0 0.0
      %282 = vmatprep.subr.mxu0 0.0
      %283 = vmatpush1.msra.mxu0 0.0
      %284 = vmatprep.subr.mxu0 0.0
      %285 = vmatpush1.msra.mxu0 0.0
      %286 = vmatprep.subr.mxu0 0.0
      %287 = vmatpush1.msra.mxu0 0.0
      %288 = vmatprep.subr.mxu0 0.0
      %289 = vmatpush1.msra.mxu0 0.0
      %290 = vmatprep.subr.mxu0 0.0
      %291 = vmatpush1.msra.mxu0 0.0
      %292 = vmatprep.subr.mxu0 0.0
      %293 = vmatpush1.msra.mxu0 0.0
      %294 = vmatprep.subr.mxu0 0.0
      %295 = vmatpush1.msra.mxu0 0.0
      %296 = vmatprep.subr.mxu0 0.0
      %297 = vmatpush1.msra.mxu0 0.0
      %298 = vmatprep.subr.mxu0 0.0
      %299 = vmatpush1.msra.mxu0 0.0
      %300 = vmatprep.subr.mxu0 0.0
      %301 = vmatpush1.msra.mxu0 0.0
      %302 = vmatprep.subr.mxu0 0.0
      %303 = vmatpush1.msra.mxu0 0.0
      %304 = vmatprep.subr.mxu0 0.0
      %305 = vmatpush1.msra.mxu0 0.0
      %306 = vmatprep.subr.mxu0 0.0
      %307 = vmatpush1.msra.mxu0 0.0
      %308 = vmatprep.subr.mxu0 0.0
      %309 = vmatpush1.msra.mxu0 0.0
      %310 = vmatprep.subr.mxu0 0.0
      %311 = vmatpush1.msra.mxu0 0.0
      %312 = vmatprep.mubr.f32.mxu0 0.0
      %313 = vmatmul.mubr.f32.gmra.mrb[0].mxu0 %v201
      %v314 = vpop.f32.mrb[0].mxu0
      %v315 = vadd.f32 %v197, %v314
      %v316 = vpop.f32.mrb[0].mxu0
      %317 = vmatprep.mubr.f32.mxu0 0.0
      %318 = vmatmul.mubr.f32.gmra.mrb[0].mxu0 %v204
      %v319 = vpop.f32.mrb[0].mxu0
      %v320 = vadd.f32 %v197, %v319
      %v321 = vpop.f32.mrb[0].mxu0
      %322 = vmatprep.mubr.f32.mxu0 0.0
      %323 = vmatmul.mubr.f32.gmra.mrb[0].mxu0 %v207
      %v324 = vpop.f32.mrb[0].mxu0
      %v325 = vadd.f32 %v197, %v324
      %v326 = vpop.f32.mrb[0].mxu0
      %327 = vmatprep.mubr.f32.mxu0 0.0
      %328 = vmatmul.mubr.f32.gmra.mrb[0].mxu0 %v210
      %v329 = vpop.f32.mrb[0].mxu0
      %v330 = vadd.f32 %v197, %v329
      %v331 = vpop.f32.mrb[0].mxu0
      %332 = vmatprep.mubr.f32.mxu0 0.0
      %333 = vmatmul.mubr.f32.gmra.mrb[0].mxu0 %v213
      %v334 = vpop.f32.mrb[0].mxu0
      %v335 = vadd.f32 %v197, %v334
      %v336 = vpop.f32.mrb[0].mxu0
      %337 = vmatprep.mubr.f32.mxu0 0.0
      %338 = vmatmul.mubr.f32.gmra.mrb[0].mxu0 %v216
      %v339 = vpop.f32.mrb[0].mxu0
      %v340 = vadd.f32 %v197, %v339
      %v341 = vpop.f32.mrb[0].mxu0
      %342 = vmatprep.mubr.f32.mxu0 0.0
      %343 = vmatmul.mubr.f32.gmra.mrb[0].mxu0 %v219
      %v344 = vpop.f32.mrb[0].mxu0
      %v345 = vadd.f32 %v197, %v344
      %v346 = vpop.f32.mrb[0].mxu0
      %347 = vmatprep.mubr.f32.mxu0 0.0
      %348 = vmatmul.mubr.f32.gmra.mrb[0].mxu0 %v222
      %v349 = vpop.f32.mrb[0].mxu0
      %v350 = vadd.f32 %v197, %v349
      %v351 = vpop.f32.mrb[0].mxu0
      %352 = vmatprep.mubr.f32.mxu0 0.0
      %353 = vmatmul.mubr.f32.gmra.mrb[0].mxu0 %v225
      %v354 = vpop.f32.mrb[0].mxu0
      %v355 = vadd.f32 %v197, %v354
      %v356 = vpop.f32.mrb[0].mxu0
      %357 = vmatprep.mubr.f32.mxu0 0.0
      %358 = vmatmul.mubr.f32.gmra.mrb[0].mxu0 %v228
      %v359 = vpop.f32.mrb[0].mxu0
      %v360 = vadd.f32 %v197, %v359
      %v361 = vpop.f32.mrb[0].mxu0
      %362 = vmatprep.mubr.f32.mxu0 0.0
      %363 = vmatmul.mubr.f32.gmra.mrb[0].mxu0 %v231
      %v364 = vpop.f32.mrb[0].mxu0
      %v365 = vadd.f32 %v197, %v364
      %v366 = vpop.f32.mrb[0].mxu0
      %367 = vmatprep.mubr.f32.mxu0 0.0
      %368 = vmatmul.mubr.f32.gmra.mrb[0].mxu0 %v234
      %v369 = vpop.f32.mrb[0].mxu0
      %v370 = vadd.f32 %v197, %v369
      %v371 = vpop.f32.mrb[0].mxu0
      %372 = vmatprep.mubr.f32.mxu0 0.0
      %373 = vmatmul.mubr.f32.gmra.mrb[0].mxu0 %v237
      %v374 = vpop.f32.mrb[0].mxu0
      %v375 = vadd.f32 %v197, %v374
      %v376 = vpop.f32.mrb[0].mxu0
      %377 = vmatprep.mubr.f32.mxu0 0.0
      %378 = vmatmul.mubr.f32.gmra.mrb[0].mxu0 %v240
      %v379 = vpop.f32.mrb[0].mxu0
      %v380 = vadd.f32 %v197, %v379
      %v381 = vpop.f32.mrb[0].mxu0
      %382 = vmatprep.mubr.f32.mxu0 0.0
      %383 = vmatmul.mubr.f32.gmra.mrb[0].mxu0 %v243
      %v384 = vpop.f32.mrb[0].mxu0
      %v385 = vadd.f32 %v197, %v384
      %v386 = vpop.f32.mrb[0].mxu0
      %387 = vmatprep.mubr.f32.mxu0 0.0
      %388 = vmatmul.mubr.f32.gmra.mrb[0].mxu0 %v246
      %v389 = vpop.f32.mrb[0].mxu0
      %v390 = vadd.f32 %v197, %v389
      %v391 = vpop.f32.mrb[0].mxu0
      %392 = vdwg.mxu0
      %v393 = vmax.f32 %v315, 0.0
      %v394 = vmax.f32 %v320, 0.0
      %v395 = vmax.f32 %v325, 0.0
      %v396 = vmax.f32 %v330, 0.0
      %v397 = vmax.f32 %v335, 0.0
      %v398 = vmax.f32 %v340, 0.0
      %v399 = vmax.f32 %v345, 0.0
      %v400 = vmax.f32 %v350, 0.0
      %v401 = vmax.f32 %v355, 0.0
      %v402 = vmax.f32 %v360, 0.0
      %v403 = vmax.f32 %v365, 0.0
      %v404 = vmax.f32 %v370, 0.0
      %v405 = vmax.f32 %v375, 0.0
      %v406 = vmax.f32 %v380, 0.0
      %v407 = vmax.f32 %v385, 0.0
      %v408 = vmax.f32 %v390, 0.0
      %vm409 = vcmask 64512
      %410 = vst.msk [vmem:[%s172] sm:$0xff] %vm409, %v393
      %411 = vst.msk [vmem:[%s172 + $0x8] sm:$0xff] %vm409, %v394
      %412 = vst.msk [vmem:[%s172 + $0x10] sm:$0xff] %vm409, %v395
      %413 = vst.msk [vmem:[%s172 + $0x18] sm:$0xff] %vm409, %v396
      %414 = vst.msk [vmem:[%s172 + $0x20] sm:$0xff] %vm409, %v397
      %415 = vst.msk [vmem:[%s172 + $0x28] sm:$0xff] %vm409, %v398
      %416 = vst.msk [vmem:[%s172 + $0x30] sm:$0xff] %vm409, %v399
      %417 = vst.msk [vmem:[%s172 + $0x38] sm:$0xff] %vm409, %v400
      %418 = vst.msk [vmem:[%s172 + $0x40] sm:$0xff] %vm409, %v401
      %419 = vst.msk [vmem:[%s172 + $0x48] sm:$0xff] %vm409, %v402
      %420 = vst.msk [vmem:[%s172 + $0x50] sm:$0xff] %vm409, %v403
      %421 = vst.msk [vmem:[%s172 + $0x58] sm:$0xff] %vm409, %v404
      %422 = vst.msk [vmem:[%s172 + $0x60] sm:$0xff] %vm409, %v405
      %423 = vst.msk [vmem:[%s172 + $0x68] sm:$0xff] %vm409, %v406
      %424 = vst.msk [vmem:[%s172 + $0x70] sm:$0xff] %vm409, %v407
      %425 = vst.msk [vmem:[%s172 + $0x78] sm:$0xff] %vm409, %v408
      %s426 = smul.u32 16, %s14
      %p427 = scmp.lt.s32.totalorder %s426, 127
      %s428 = scalar_select %p427, %s426, 127
      %s429 = smul.addr %s428, 8
      %s430 = scalar_lea.vmem %s3, %s429
      // Predicated region
      $region33: #{_lambda_.15} parent=31 // pred_check
        %p431 = pneg %p100
      $region34: #{_lambda_.15} parent=31 // pred_check_branch
        %433 = sbr.rel (%p431) target = $region36
      $region35: #{_lambda_.15} parent=31 // pred_region
        %s434 = smul.u32 16, %s14
      $region36: #{_lambda_.15} parent=31 // pred_fallthru
        _
    $region32: #{_lambda_.15} parent=5 // pred_fallthru
      _
    %p435 = scmp.le.s32.totalorder 2, %s9
    // Predicated region
    $region37: #{_lambda_.15} parent=5 // pred_check
      %p436 = pneg %p435
    $region38: #{_lambda_.15} parent=5 // pred_check_branch
      %438 = sbr.rel (%p436) target = $region40
    $region39: #{_lambda_.15} parent=5 // pred_region
      %s439 = ssub.s32 %s9, 2
      // Predicated region
      $region41: #{_lambda_.15} parent=39 // pred_check
        %p440 = pneg %p106
      $region42: #{_lambda_.15} parent=39 // pred_check_branch
        %442 = sbr.rel (%p440) target = $region44
      $region43: #{_lambda_.15} parent=39 // pred_region
        %s443 = smul.u32 16, %s15
        %p444 = scmp.lt.s32.totalorder %s443, 127
        %s445 = scalar_select %p444, %s443, 127
        %s446 = smul.addr %s445, 8
        %s447 = scalar_lea.vmem %s3, %s446
      $region44: #{_lambda_.15} parent=39 // pred_fallthru
        _
    $region40: #{_lambda_.15} parent=5 // pred_fallthru
      _
  $region6: #{_lambda_.15} parent=0 // loop_footer
    %s13 = sadd.s32 1, %s9
  $region7: #{_lambda_.15} parent=0 // loop_footer_branch
    %8 = sbr.rel target = $region3
  $region8: #{_lambda_.15} parent=0 // loop_exit
    _

// kernel: _lambda_.16
$region0: #{_lambda_.16}
  #allocation0 [shape = 'u32[]', space=smem, size = 0x4, offset = 0x4, fixed_abs, tag = 'smem constant byte address 0x4 - core index']
  #allocation1 [shape = 'u32[144,128]{1,0:T(1,128)}', space=vmem, size = 0x12000, scoped, tag = 'internal scratch']
  %s0 = inlined_call_operand.vmem [shape: f32[256,72], index: 0, kind: input, shape index: {}]
  %s1 = inlined_call_operand.vmem [shape: f32[72,16], index: 1, kind: input, shape index: {}]
  %s2 = inlined_call_operand.vmem [shape: f32[1,16], index: 2, kind: input, shape index: {}]
  %s3 = inlined_call_operand.vmem [shape: f32[256,16], index: 3, kind: output, shape index: {}]
  %s4 = sld [smem:[#allocation0]]
  $region45: #{_lambda_.16} parent=0
    _
  %s6 = ssub.s32 1, %s4
  %s7 = scalar_select 0, %s6, %s4
  loop: start=0, step=1, limit=4
  $region2: #{_lambda_.16} parent=0 // loop_pre_header
    _
  $region3: #{_lambda_.16} parent=0 // loop_header
    %s9 = sphi 0, %s13
    %p10 = scmp.ge.s32.totalorder %s9, 4
    %s19 = sphi 0, %s21
    %s22 = sphi 0, %s19
    %s23 = sphi 0, %s22
    %s39 = sphi 0, %s23
    %s43 = sphi 0, %s43
    %s45 = sphi 0, %s43
    %s46 = sphi 0, %s45
    %s60 = sphi 0, %s46
    %s64 = sphi 0, %s64
    %s66 = sphi 0, %s64
    %s67 = sphi 0, %s66
    %s81 = sphi 0, %s67
    %s87 = sphi 0, %s89
    %s90 = sphi 0, %s87
    %s91 = sphi 0, %s90
    %s107 = sphi 0, %s91
  $region4: #{_lambda_.16} parent=0 // loop_header_branch
    %12 = sbr.rel (%p10) target = $region8
  $region5: #{_lambda_.16} parent=0 // loop_body
    %s14 = ssub.s32 %s9, 1
    %s15 = ssub.s32 %s9, 2
    %s16 = sadd.s32 %s9, 1
    %s17 = ssub.s32 %s9, %s16
    %p18 = scmp.eq.s32.totalorder %s17, 0
    %s20 = sadd.s32 %s19, 1
    %s21 = scalar_select %p18, %s19, %s20
    %p24 = pneg %p18
    %p25 = scmp.eq.s32.totalorder %s9, 1
    %p26 = por %p24, %p25
    %p27 = scmp.ne.s32.totalorder %s19, %s22
    %p28 = scmp.eq.s32.totalorder %s9, 0
    %p29 = por %p27, %p28
    %p30 = scmp.ne.s32.totalorder %s19, %s22
    %p31 = scmp.eq.s32.totalorder %s14, 1
    %p32 = por %p30, %p31
    %p33 = scmp.ne.s32.totalorder %s22, %s23
    %p34 = scmp.eq.s32.totalorder %s14, 0
    %p35 = por %p33, %p34
    %p36 = scmp.ne.s32.totalorder %s22, %s23
    %p37 = scmp.eq.s32.totalorder %s15, 1
    %p38 = por %p36, %p37
    %p40 = scmp.ne.s32.totalorder %s23, %s39
    %p41 = scmp.eq.s32.totalorder %s15, 0
    %p42 = por %p40, %p41
    %s44 = sadd.s32 %s43, 1
    %p47 = scmp.eq.s32.totalorder %s9, 1
    %p48 = scmp.ne.s32.totalorder %s43, %s45
    %p49 = scmp.eq.s32.totalorder %s9, 0
    %p50 = por %p48, %p49
    %p51 = scmp.ne.s32.totalorder %s43, %s45
    %p52 = scmp.eq.s32.totalorder %s14, 1
    %p53 = por %p51, %p52
    %p54 = scmp.ne.s32.totalorder %s45, %s46
    %p55 = scmp.eq.s32.totalorder %s14, 0
    %p56 = por %p54, %p55
    %p57 = scmp.ne.s32.totalorder %s45, %s46
    %p58 = scmp.eq.s32.totalorder %s15, 1
    %p59 = por %p57, %p58
    %p61 = scmp.ne.s32.totalorder %s46, %s60
    %p62 = scmp.eq.s32.totalorder %s15, 0
    %p63 = por %p61, %p62
    %s65 = sadd.s32 %s64, 1
    %p68 = scmp.eq.s32.totalorder %s9, 1
    %p69 = scmp.ne.s32.totalorder %s64, %s66
    %p70 = scmp.eq.s32.totalorder %s9, 0
    %p71 = por %p69, %p70
    %p72 = scmp.ne.s32.totalorder %s64, %s66
    %p73 = scmp.eq.s32.totalorder %s14, 1
    %p74 = por %p72, %p73
    %p75 = scmp.ne.s32.totalorder %s66, %s67
    %p76 = scmp.eq.s32.totalorder %s14, 0
    %p77 = por %p75, %p76
    %p78 = scmp.ne.s32.totalorder %s66, %s67
    %p79 = scmp.eq.s32.totalorder %s15, 1
    %p80 = por %p78, %p79
    %p82 = scmp.ne.s32.totalorder %s67, %s81
    %p83 = scmp.eq.s32.totalorder %s15, 0
    %p84 = por %p82, %p83
    %s85 = ssub.s32 %s9, %s16
    %p86 = scmp.eq.s32.totalorder %s85, 0
    %s88 = sadd.s32 %s87, 1
    %s89 = scalar_select %p86, %s87, %s88
    %p92 = pneg %p86
    %p93 = scmp.eq.s32.totalorder %s9, 1
    %p94 = por %p92, %p93
    %p95 = scmp.ne.s32.totalorder %s87, %s90
    %p96 = scmp.eq.s32.totalorder %s9, 0
    %p97 = por %p95, %p96
    %p98 = scmp.ne.s32.totalorder %s87, %s90
    %p99 = scmp.eq.s32.totalorder %s14, 1
    %p100 = por %p98, %p99
    %p101 = scmp.ne.s32.totalorder %s90, %s91
    %p102 = scmp.eq.s32.totalorder %s14, 0
    %p103 = por %p101, %p102
    %p104 = scmp.ne.s32.totalorder %s90, %s91
    %p105 = scmp.eq.s32.totalorder %s15, 1
    %p106 = por %p104, %p105
    %p108 = scmp.ne.s32.totalorder %s91, %s107
    %p109 = scmp.eq.s32.totalorder %s15, 0
    %p110 = por %p108, %p109
    %p111 = scmp.le.s32.totalorder 1, %s9
    %p112 = scmp.lt.s32.totalorder %s9, 3
    %p113 = pnand %p111, %p112
    %p114 = pneg %p113
    // Predicated region
    $region9: #{_lambda_.16} parent=5 // pred_check
      _
    $region10: #{_lambda_.16} parent=5 // pred_check_branch
      %116 = sbr.rel (%p113) target = $region12
    $region11: #{_lambda_.16} parent=5 // pred_region
      %s117 = ssub.s32 %s9, 1
      // Predicated region
      $region13: #{_lambda_.16} parent=11 // pred_check
        %p118 = pneg %p56
      $region14: #{_lambda_.16} parent=11 // pred_check_branch
        %120 = sbr.rel (%p118) target = $region16
      $region15: #{_lambda_.16} parent=11 // pred_region
        _
      $region16: #{_lambda_.16} parent=11 // pred_fallthru
        _
      // Predicated region
      $region17: #{_lambda_.16} parent=11 // pred_check
        %p121 = pneg %p77
      $region18: #{_lambda_.16} parent=11 // pred_check_branch
        %123 = sbr.rel (%p121) target = $region20
      $region19: #{_lambda_.16} parent=11 // pred_region
        _
      $region20: #{_lambda_.16} parent=11 // pred_fallthru
        _
    $region12: #{_lambda_.16} parent=5 // pred_fallthru
      _
    %p124 = scmp.lt.s32.totalorder %s9, 2
    // Predicated region
    $region21: #{_lambda_.16} parent=5 // pred_check
      %p125 = pneg %p124
    $region22: #{_lambda_.16} parent=5 // pred_check_branch
      %127 = sbr.rel (%p125) target = $region24
    $region23: #{_lambda_.16} parent=5 // pred_region
      // Predicated region
      $region25: #{_lambda_.16} parent=23 // pred_check
        %p128 = pneg %p29
      $region26: #{_lambda_.16} parent=23 // pred_check_branch
        %130 = sbr.rel (%p128) target = $region28
      $region27: #{_lambda_.16} parent=23 // pred_region
        %s131 = smul.u32 16, %s9
        %p132 = scmp.lt.s32.totalorder %s131, 31
        %s133 = scalar_select %p132, %s131, 31
        %s134 = smul.addr %s133, 8
        %s135 = scalar_lea.vmem %s0, %s134
        %s136 = smul.u32 16, %s9
      $region28: #{_lambda_.16} parent=23 // pred_fallthru
        _
    $region24: #{_lambda_.16} parent=5 // pred_fallthru
      _
    %p137 = scmp.le.s32.totalorder 1, %s9
    %p138 = scmp.lt.s32.totalorder %s9, 3
    %p139 = pnand %p137, %p138
    %p140 = pneg %p139
    // Predicated region
    $region29: #{_lambda_.16} parent=5 // pred_check
      _
    $region30: #{_lambda_.16} parent=5 // pred_check_branch
      %142 = sbr.rel (%p139) target = $region32
    $region31: #{_lambda_.16} parent=5 // pred_region
      %s143 = ssub.s32 %s9, 1
      %s144 = smul.u32 16, %s14
      %p145 = scmp.lt.s32.totalorder %s144, 31
      %s146 = scalar_select %p145, %s144, 31
      %s147 = smul.addr %s146, 8
      %s148 = scalar_lea.vmem %s0, %s147
      %p149 = pneg %p35
      %p150 = pneg %p32
      %p151 = pneg %p56
      %p152 = pneg %p53
      %p153 = pneg %p77
      %p154 = pneg %p74
      %p155 = pneg %p103
      %p156 = pneg %p100
      %s157 = smul.u32 16, %s14
      %p158 = scmp.lt.s32.totalorder %s157, 31
      %s159 = scalar_select %p158, %s157, 31
      %s160 = smul.addr %s159, 8
      %s161 = scalar_lea.vmem %s3, %s160
      %s162 = smul.u32 16, %s14
      %p163 = scmp.lt.s32.totalorder %s162, 31
      %s164 = scalar_select %p163, %s162, 31
      %s165 = smul.addr %s164, 8
      %s166 = scalar_lea.vmem %s0, %s165
      %s167 = smul.u32 16, %s14
      %s168 = smul.u32 16, %s14
      %p169 = scmp.lt.s32.totalorder %s168, 31
      %s170 = scalar_select %p169, %s168, 31
      %s171 = smul.addr %s170, 8
      %s172 = scalar_lea.vmem %s3, %s171
      %s173 = smul.u32 16, %s14
      %v174 = vld [vmem:[%s166] sm:$0xff]
      %v175 = vld [vmem:[%s166 + $0x8] sm:$0xff]
      %v176 = vld [vmem:[%s166 + $0x10] sm:$0xff]
      %v177 = vld [vmem:[%s166 + $0x18] sm:$0xff]
      %v178 = vld [vmem:[%s166 + $0x20] sm:$0xff]
      %v179 = vld [vmem:[%s166 + $0x28] sm:$0xff]
      %v180 = vld [vmem:[%s166 + $0x30] sm:$0xff]
      %v181 = vld [vmem:[%s166 + $0x38] sm:$0xff]
      %v182 = vld [vmem:[%s166 + $0x40] sm:$0xff]
      %v183 = vld [vmem:[%s166 + $0x48] sm:$0xff]
      %v184 = vld [vmem:[%s166 + $0x50] sm:$0xff]
      %v185 = vld [vmem:[%s166 + $0x58] sm:$0xff]
      %v186 = vld [vmem:[%s166 + $0x60] sm:$0xff]
      %v187 = vld [vmem:[%s166 + $0x68] sm:$0xff]
      %v188 = vld [vmem:[%s166 + $0x70] sm:$0xff]
      %v189 = vld [vmem:[%s166 + $0x78] sm:$0xff]
      %v190 = vld [vmem:[%s1] sm:$0xff]
      %v191 = vld [vmem:[%s1 + $0x8] sm:$0xff]
      %v192 = vld [vmem:[%s1 + $0x10] sm:$0xff]
      %v193 = vld [vmem:[%s1 + $0x18] sm:$0xff]
      %v194 = vld [vmem:[%s1 + $0x20] sm:$0xff]
      %v195 = vld [vmem:[%s1 + $0x28] sm:$0xff]
      %v196 = vld [vmem:[%s1 + $0x30] sm:$0xff]
      %v197 = vld [vmem:[%s1 + $0x38] sm:$0xff]
      %v198 = vld [vmem:[%s1 + $0x40] sm:$0xff]
      %v199 = vld [vmem:[%s2] sm:$0x1]
      %v201 = vlaneseq
      %v202 = vshrl.u32 %v201, 7
      %v203 = vsub.s32 0, %v202
      %v204 = vrot.slane %v199, %v203
      %vm206 = vcmask 588800
      %v208 = vsel %vm206, %v174, 0
      %v211 = vsel %vm206, %v175, 0
      %v214 = vsel %vm206, %v176, 0
      %v217 = vsel %vm206, %v177, 0
      %v220 = vsel %vm206, %v178, 0
      %v223 = vsel %vm206, %v179, 0
      %v226 = vsel %vm206, %v180, 0
      %v229 = vsel %vm206, %v181, 0
      %v232 = vsel %vm206, %v182, 0
      %v235 = vsel %vm206, %v183, 0
      %v238 = vsel %vm206, %v184, 0
      %v241 = vsel %vm206, %v185, 0
      %v244 = vsel %vm206, %v186, 0
      %v247 = vsel %vm206, %v187, 0
      %v250 = vsel %vm206, %v188, 0
      %v253 = vsel %vm206, %v189, 0
      %255 = vmatprep.subr.mxu0 0.0
      %256 = vmatpush1.msra.mxu0 %v190
      %257 = vmatprep.subr.mxu0 0.0
      %258 = vmatpush1.msra.mxu0 %v191
      %259 = vmatprep.subr.mxu0 0.0
      %260 = vmatpush1.msra.mxu0 %v192
      %261 = vmatprep.subr.mxu0 0.0
      %262 = vmatpush1.msra.mxu0 %v193
      %263 = vmatprep.subr.mxu0 0.0
      %264 = vmatpush1.msra.mxu0 %v194
      %265 = vmatprep.subr.mxu0 0.0
      %266 = vmatpush1.msra.mxu0 %v195
      %267 = vmatprep.subr.mxu0 0.0
      %268 = vmatpush1.msra.mxu0 %v196
      %269 = vmatprep.subr.mxu0 0.0
      %270 = vmatpush1.msra.mxu0 %v197
      %271 = vmatprep.subr.mxu0 0.0
      %272 = vmatpush1.msra.mxu0 %v198
      %273 = vmatprep.subr.mxu0 0.0
      %274 = vmatpush1.msra.mxu0 0.0
      %275 = vmatprep.subr.mxu0 0.0
      %276 = vmatpush1.msra.mxu0 0.0
      %277 = vmatprep.subr.mxu0 0.0
      %278 = vmatpush1.msra.mxu0 0.0
      %279 = vmatprep.subr.mxu0 0.0
      %280 = vmatpush1.msra.mxu0 0.0
      %281 = vmatprep.subr.mxu0 0.0
      %282 = vmatpush1.msra.mxu0 0.0
      %283 = vmatprep.subr.mxu0 0.0
      %284 = vmatpush1.msra.mxu0 0.0
      %285 = vmatprep.subr.mxu0 0.0
      %286 = vmatpush1.msra.mxu0 0.0
      %287 = vmatprep.subr.mxu0 0.0
      %288 = vmatpush1.msra.mxu0 0.0
      %289 = vmatprep.subr.mxu0 0.0
      %290 = vmatpush1.msra.mxu0 0.0
      %291 = vmatprep.subr.mxu0 0.0
      %292 = vmatpush1.msra.mxu0 0.0
      %293 = vmatprep.subr.mxu0 0.0
      %294 = vmatpush1.msra.mxu0 0.0
      %295 = vmatprep.subr.mxu0 0.0
      %296 = vmatpush1.msra.mxu0 0.0
      %297 = vmatprep.subr.mxu0 0.0
      %298 = vmatpush1.msra.mxu0 0.0
      %299 = vmatprep.subr.mxu0 0.0
      %300 = vmatpush1.msra.mxu0 0.0
      %301 = vmatprep.subr.mxu0 0.0
      %302 = vmatpush1.msra.mxu0 0.0
      %303 = vmatprep.subr.mxu0 0.0
      %304 = vmatpush1.msra.mxu0 0.0
      %305 = vmatprep.subr.mxu0 0.0
      %306 = vmatpush1.msra.mxu0 0.0
      %307 = vmatprep.subr.mxu0 0.0
      %308 = vmatpush1.msra.mxu0 0.0
      %309 = vmatprep.subr.mxu0 0.0
      %310 = vmatpush1.msra.mxu0 0.0
      %311 = vmatprep.subr.mxu0 0.0
      %312 = vmatpush1.msra.mxu0 0.0
      %313 = vmatprep.subr.mxu0 0.0
      %314 = vmatpush1.msra.mxu0 0.0
      %315 = vmatprep.subr.mxu0 0.0
      %316 = vmatpush1.msra.mxu0 0.0
      %317 = vmatprep.subr.mxu0 0.0
      %318 = vmatpush1.msra.mxu0 0.0
      %319 = vmatprep.mubr.f32.mxu0 0.0
      %320 = vmatmul.mubr.f32.gmra.mrb[0].mxu0 %v208
      %v321 = vpop.f32.mrb[0].mxu0
      %v322 = vadd.f32 %v204, %v321
      %v323 = vpop.f32.mrb[0].mxu0
      %324 = vmatprep.mubr.f32.mxu0 0.0
      %325 = vmatmul.mubr.f32.gmra.mrb[0].mxu0 %v211
      %v326 = vpop.f32.mrb[0].mxu0
      %v327 = vadd.f32 %v204, %v326
      %v328 = vpop.f32.mrb[0].mxu0
      %329 = vmatprep.mubr.f32.mxu0 0.0
      %330 = vmatmul.mubr.f32.gmra.mrb[0].mxu0 %v214
      %v331 = vpop.f32.mrb[0].mxu0
      %v332 = vadd.f32 %v204, %v331
      %v333 = vpop.f32.mrb[0].mxu0
      %334 = vmatprep.mubr.f32.mxu0 0.0
      %335 = vmatmul.mubr.f32.gmra.mrb[0].mxu0 %v217
      %v336 = vpop.f32.mrb[0].mxu0
      %v337 = vadd.f32 %v204, %v336
      %v338 = vpop.f32.mrb[0].mxu0
      %339 = vmatprep.mubr.f32.mxu0 0.0
      %340 = vmatmul.mubr.f32.gmra.mrb[0].mxu0 %v220
      %v341 = vpop.f32.mrb[0].mxu0
      %v342 = vadd.f32 %v204, %v341
      %v343 = vpop.f32.mrb[0].mxu0
      %344 = vmatprep.mubr.f32.mxu0 0.0
      %345 = vmatmul.mubr.f32.gmra.mrb[0].mxu0 %v223
      %v346 = vpop.f32.mrb[0].mxu0
      %v347 = vadd.f32 %v204, %v346
      %v348 = vpop.f32.mrb[0].mxu0
      %349 = vmatprep.mubr.f32.mxu0 0.0
      %350 = vmatmul.mubr.f32.gmra.mrb[0].mxu0 %v226
      %v351 = vpop.f32.mrb[0].mxu0
      %v352 = vadd.f32 %v204, %v351
      %v353 = vpop.f32.mrb[0].mxu0
      %354 = vmatprep.mubr.f32.mxu0 0.0
      %355 = vmatmul.mubr.f32.gmra.mrb[0].mxu0 %v229
      %v356 = vpop.f32.mrb[0].mxu0
      %v357 = vadd.f32 %v204, %v356
      %v358 = vpop.f32.mrb[0].mxu0
      %359 = vmatprep.mubr.f32.mxu0 0.0
      %360 = vmatmul.mubr.f32.gmra.mrb[0].mxu0 %v232
      %v361 = vpop.f32.mrb[0].mxu0
      %v362 = vadd.f32 %v204, %v361
      %v363 = vpop.f32.mrb[0].mxu0
      %364 = vmatprep.mubr.f32.mxu0 0.0
      %365 = vmatmul.mubr.f32.gmra.mrb[0].mxu0 %v235
      %v366 = vpop.f32.mrb[0].mxu0
      %v367 = vadd.f32 %v204, %v366
      %v368 = vpop.f32.mrb[0].mxu0
      %369 = vmatprep.mubr.f32.mxu0 0.0
      %370 = vmatmul.mubr.f32.gmra.mrb[0].mxu0 %v238
      %v371 = vpop.f32.mrb[0].mxu0
      %v372 = vadd.f32 %v204, %v371
      %v373 = vpop.f32.mrb[0].mxu0
      %374 = vmatprep.mubr.f32.mxu0 0.0
      %375 = vmatmul.mubr.f32.gmra.mrb[0].mxu0 %v241
      %v376 = vpop.f32.mrb[0].mxu0
      %v377 = vadd.f32 %v204, %v376
      %v378 = vpop.f32.mrb[0].mxu0
      %379 = vmatprep.mubr.f32.mxu0 0.0
      %380 = vmatmul.mubr.f32.gmra.mrb[0].mxu0 %v244
      %v381 = vpop.f32.mrb[0].mxu0
      %v382 = vadd.f32 %v204, %v381
      %v383 = vpop.f32.mrb[0].mxu0
      %384 = vmatprep.mubr.f32.mxu0 0.0
      %385 = vmatmul.mubr.f32.gmra.mrb[0].mxu0 %v247
      %v386 = vpop.f32.mrb[0].mxu0
      %v387 = vadd.f32 %v204, %v386
      %v388 = vpop.f32.mrb[0].mxu0
      %389 = vmatprep.mubr.f32.mxu0 0.0
      %390 = vmatmul.mubr.f32.gmra.mrb[0].mxu0 %v250
      %v391 = vpop.f32.mrb[0].mxu0
      %v392 = vadd.f32 %v204, %v391
      %v393 = vpop.f32.mrb[0].mxu0
      %394 = vmatprep.mubr.f32.mxu0 0.0
      %395 = vmatmul.mubr.f32.gmra.mrb[0].mxu0 %v253
      %v396 = vpop.f32.mrb[0].mxu0
      %v397 = vadd.f32 %v204, %v396
      %v398 = vpop.f32.mrb[0].mxu0
      %399 = vdwg.mxu0
      %v400 = vmax.f32 %v322, 0.0
      %v401 = vmax.f32 %v327, 0.0
      %v402 = vmax.f32 %v332, 0.0
      %v403 = vmax.f32 %v337, 0.0
      %v404 = vmax.f32 %v342, 0.0
      %v405 = vmax.f32 %v347, 0.0
      %v406 = vmax.f32 %v352, 0.0
      %v407 = vmax.f32 %v357, 0.0
      %v408 = vmax.f32 %v362, 0.0
      %v409 = vmax.f32 %v367, 0.0
      %v410 = vmax.f32 %v372, 0.0
      %v411 = vmax.f32 %v377, 0.0
      %v412 = vmax.f32 %v382, 0.0
      %v413 = vmax.f32 %v387, 0.0
      %v414 = vmax.f32 %v392, 0.0
      %v415 = vmax.f32 %v397, 0.0
      %vm416 = vcmask 130048
      %417 = vst.msk [vmem:[%s172] sm:$0xff] %vm416, %v400
      %418 = vst.msk [vmem:[%s172 + $0x8] sm:$0xff] %vm416, %v401
      %419 = vst.msk [vmem:[%s172 + $0x10] sm:$0xff] %vm416, %v402
      %420 = vst.msk [vmem:[%s172 + $0x18] sm:$0xff] %vm416, %v403
      %421 = vst.msk [vmem:[%s172 + $0x20] sm:$0xff] %vm416, %v404
      %422 = vst.msk [vmem:[%s172 + $0x28] sm:$0xff] %vm416, %v405
      %423 = vst.msk [vmem:[%s172 + $0x30] sm:$0xff] %vm416, %v406
      %424 = vst.msk [vmem:[%s172 + $0x38] sm:$0xff] %vm416, %v407
      %425 = vst.msk [vmem:[%s172 + $0x40] sm:$0xff] %vm416, %v408
      %426 = vst.msk [vmem:[%s172 + $0x48] sm:$0xff] %vm416, %v409
      %427 = vst.msk [vmem:[%s172 + $0x50] sm:$0xff] %vm416, %v410
      %428 = vst.msk [vmem:[%s172 + $0x58] sm:$0xff] %vm416, %v411
      %429 = vst.msk [vmem:[%s172 + $0x60] sm:$0xff] %vm416, %v412
      %430 = vst.msk [vmem:[%s172 + $0x68] sm:$0xff] %vm416, %v413
      %431 = vst.msk [vmem:[%s172 + $0x70] sm:$0xff] %vm416, %v414
      %432 = vst.msk [vmem:[%s172 + $0x78] sm:$0xff] %vm416, %v415
      %s433 = smul.u32 16, %s14
      %p434 = scmp.lt.s32.totalorder %s433, 31
      %s435 = scalar_select %p434, %s433, 31
      %s436 = smul.addr %s435, 8
      %s437 = scalar_lea.vmem %s3, %s436
      // Predicated region
      $region33: #{_lambda_.16} parent=31 // pred_check
        %p438 = pneg %p100
      $region34: #{_lambda_.16} parent=31 // pred_check_branch
        %440 = sbr.rel (%p438) target = $region36
      $region35: #{_lambda_.16} parent=31 // pred_region
        %s441 = smul.u32 16, %s14
      $region36: #{_lambda_.16} parent=31 // pred_fallthru
        _
    $region32: #{_lambda_.16} parent=5 // pred_fallthru
      _
    %p442 = scmp.le.s32.totalorder 2, %s9
    // Predicated region
    $region37: #{_lambda_.16} parent=5 // pred_check
      %p443 = pneg %p442
    $region38: #{_lambda_.16} parent=5 // pred_check_branch
      %445 = sbr.rel (%p443) target = $region40
    $region39: #{_lambda_.16} parent=5 // pred_region
      %s446 = ssub.s32 %s9, 2
      // Predicated region
      $region41: #{_lambda_.16} parent=39 // pred_check
        %p447 = pneg %p106
      $region42: #{_lambda_.16} parent=39 // pred_check_branch
        %449 = sbr.rel (%p447) target = $region44
      $region43: #{_lambda_.16} parent=39 // pred_region
        %s450 = smul.u32 16, %s15
        %p451 = scmp.lt.s32.totalorder %s450, 31
        %s452 = scalar_select %p451, %s450, 31
        %s453 = smul.addr %s452, 8
        %s454 = scalar_lea.vmem %s3, %s453
      $region44: #{_lambda_.16} parent=39 // pred_fallthru
        _
    $region40: #{_lambda_.16} parent=5 // pred_fallthru
      _
  $region6: #{_lambda_.16} parent=0 // loop_footer
    %s13 = sadd.s32 1, %s9
  $region7: #{_lambda_.16} parent=0 // loop_footer_branch
    %8 = sbr.rel target = $region3
  $region8: #{_lambda_.16} parent=0 // loop_exit
    _

// kernel: _lambda_.17
$region0: #{_lambda_.17}
  #allocation0 [shape = 'u32[]', space=smem, size = 0x4, offset = 0x4, fixed_abs, tag = 'smem constant byte address 0x4 - core index']
  #allocation1 [shape = 'u32[144,128]{1,0:T(1,128)}', space=vmem, size = 0x12000, scoped, tag = 'internal scratch']
  %s0 = inlined_call_operand.vmem [shape: f32[1024,16], index: 0, kind: input, shape index: {}]
  %s1 = inlined_call_operand.vmem [shape: f32[16,16], index: 1, kind: input, shape index: {}]
  %s2 = inlined_call_operand.vmem [shape: f32[1,16], index: 2, kind: input, shape index: {}]
  %s3 = inlined_call_operand.vmem [shape: f32[1024,16], index: 3, kind: output, shape index: {}]
  %s4 = sld [smem:[#allocation0]]
  $region45: #{_lambda_.17} parent=0
    _
  %s6 = ssub.s32 1, %s4
  %s7 = scalar_select 0, %s6, %s4
  loop: start=0, step=1, limit=10
  $region2: #{_lambda_.17} parent=0 // loop_pre_header
    _
  $region3: #{_lambda_.17} parent=0 // loop_header
    %s9 = sphi 0, %s13
    %p10 = scmp.ge.s32.totalorder %s9, 10
    %s19 = sphi 0, %s21
    %s22 = sphi 0, %s19
    %s23 = sphi 0, %s22
    %s39 = sphi 0, %s23
    %s43 = sphi 0, %s43
    %s45 = sphi 0, %s43
    %s46 = sphi 0, %s45
    %s60 = sphi 0, %s46
    %s64 = sphi 0, %s64
    %s66 = sphi 0, %s64
    %s67 = sphi 0, %s66
    %s81 = sphi 0, %s67
    %s87 = sphi 0, %s89
    %s90 = sphi 0, %s87
    %s91 = sphi 0, %s90
    %s107 = sphi 0, %s91
  $region4: #{_lambda_.17} parent=0 // loop_header_branch
    %12 = sbr.rel (%p10) target = $region8
  $region5: #{_lambda_.17} parent=0 // loop_body
    %s14 = ssub.s32 %s9, 1
    %s15 = ssub.s32 %s9, 2
    %s16 = sadd.s32 %s9, 1
    %s17 = ssub.s32 %s9, %s16
    %p18 = scmp.eq.s32.totalorder %s17, 0
    %s20 = sadd.s32 %s19, 1
    %s21 = scalar_select %p18, %s19, %s20
    %p24 = pneg %p18
    %p25 = scmp.eq.s32.totalorder %s9, 7
    %p26 = por %p24, %p25
    %p27 = scmp.ne.s32.totalorder %s19, %s22
    %p28 = scmp.eq.s32.totalorder %s9, 0
    %p29 = por %p27, %p28
    %p30 = scmp.ne.s32.totalorder %s19, %s22
    %p31 = scmp.eq.s32.totalorder %s14, 7
    %p32 = por %p30, %p31
    %p33 = scmp.ne.s32.totalorder %s22, %s23
    %p34 = scmp.eq.s32.totalorder %s14, 0
    %p35 = por %p33, %p34
    %p36 = scmp.ne.s32.totalorder %s22, %s23
    %p37 = scmp.eq.s32.totalorder %s15, 7
    %p38 = por %p36, %p37
    %p40 = scmp.ne.s32.totalorder %s23, %s39
    %p41 = scmp.eq.s32.totalorder %s15, 0
    %p42 = por %p40, %p41
    %s44 = sadd.s32 %s43, 1
    %p47 = scmp.eq.s32.totalorder %s9, 7
    %p48 = scmp.ne.s32.totalorder %s43, %s45
    %p49 = scmp.eq.s32.totalorder %s9, 0
    %p50 = por %p48, %p49
    %p51 = scmp.ne.s32.totalorder %s43, %s45
    %p52 = scmp.eq.s32.totalorder %s14, 7
    %p53 = por %p51, %p52
    %p54 = scmp.ne.s32.totalorder %s45, %s46
    %p55 = scmp.eq.s32.totalorder %s14, 0
    %p56 = por %p54, %p55
    %p57 = scmp.ne.s32.totalorder %s45, %s46
    %p58 = scmp.eq.s32.totalorder %s15, 7
    %p59 = por %p57, %p58
    %p61 = scmp.ne.s32.totalorder %s46, %s60
    %p62 = scmp.eq.s32.totalorder %s15, 0
    %p63 = por %p61, %p62
    %s65 = sadd.s32 %s64, 1
    %p68 = scmp.eq.s32.totalorder %s9, 7
    %p69 = scmp.ne.s32.totalorder %s64, %s66
    %p70 = scmp.eq.s32.totalorder %s9, 0
    %p71 = por %p69, %p70
    %p72 = scmp.ne.s32.totalorder %s64, %s66
    %p73 = scmp.eq.s32.totalorder %s14, 7
    %p74 = por %p72, %p73
    %p75 = scmp.ne.s32.totalorder %s66, %s67
    %p76 = scmp.eq.s32.totalorder %s14, 0
    %p77 = por %p75, %p76
    %p78 = scmp.ne.s32.totalorder %s66, %s67
    %p79 = scmp.eq.s32.totalorder %s15, 7
    %p80 = por %p78, %p79
    %p82 = scmp.ne.s32.totalorder %s67, %s81
    %p83 = scmp.eq.s32.totalorder %s15, 0
    %p84 = por %p82, %p83
    %s85 = ssub.s32 %s9, %s16
    %p86 = scmp.eq.s32.totalorder %s85, 0
    %s88 = sadd.s32 %s87, 1
    %s89 = scalar_select %p86, %s87, %s88
    %p92 = pneg %p86
    %p93 = scmp.eq.s32.totalorder %s9, 7
    %p94 = por %p92, %p93
    %p95 = scmp.ne.s32.totalorder %s87, %s90
    %p96 = scmp.eq.s32.totalorder %s9, 0
    %p97 = por %p95, %p96
    %p98 = scmp.ne.s32.totalorder %s87, %s90
    %p99 = scmp.eq.s32.totalorder %s14, 7
    %p100 = por %p98, %p99
    %p101 = scmp.ne.s32.totalorder %s90, %s91
    %p102 = scmp.eq.s32.totalorder %s14, 0
    %p103 = por %p101, %p102
    %p104 = scmp.ne.s32.totalorder %s90, %s91
    %p105 = scmp.eq.s32.totalorder %s15, 7
    %p106 = por %p104, %p105
    %p108 = scmp.ne.s32.totalorder %s91, %s107
    %p109 = scmp.eq.s32.totalorder %s15, 0
    %p110 = por %p108, %p109
    %p111 = scmp.le.s32.totalorder 1, %s9
    %p112 = scmp.lt.s32.totalorder %s9, 9
    %p113 = pnand %p111, %p112
    %p114 = pneg %p113
    // Predicated region
    $region9: #{_lambda_.17} parent=5 // pred_check
      _
    $region10: #{_lambda_.17} parent=5 // pred_check_branch
      %116 = sbr.rel (%p113) target = $region12
    $region11: #{_lambda_.17} parent=5 // pred_region
      %s117 = ssub.s32 %s9, 1
      // Predicated region
      $region13: #{_lambda_.17} parent=11 // pred_check
        %p118 = pneg %p56
      $region14: #{_lambda_.17} parent=11 // pred_check_branch
        %120 = sbr.rel (%p118) target = $region16
      $region15: #{_lambda_.17} parent=11 // pred_region
        _
      $region16: #{_lambda_.17} parent=11 // pred_fallthru
        _
      // Predicated region
      $region17: #{_lambda_.17} parent=11 // pred_check
        %p121 = pneg %p77
      $region18: #{_lambda_.17} parent=11 // pred_check_branch
        %123 = sbr.rel (%p121) target = $region20
      $region19: #{_lambda_.17} parent=11 // pred_region
        _
      $region20: #{_lambda_.17} parent=11 // pred_fallthru
        _
    $region12: #{_lambda_.17} parent=5 // pred_fallthru
      _
    %p124 = scmp.lt.s32.totalorder %s9, 8
    // Predicated region
    $region21: #{_lambda_.17} parent=5 // pred_check
      %p125 = pneg %p124
    $region22: #{_lambda_.17} parent=5 // pred_check_branch
      %127 = sbr.rel (%p125) target = $region24
    $region23: #{_lambda_.17} parent=5 // pred_region
      // Predicated region
      $region25: #{_lambda_.17} parent=23 // pred_check
        %p128 = pneg %p29
      $region26: #{_lambda_.17} parent=23 // pred_check_branch
        %130 = sbr.rel (%p128) target = $region28
      $region27: #{_lambda_.17} parent=23 // pred_region
        %s131 = smul.u32 16, %s9
        %p132 = scmp.lt.s32.totalorder %s131, 127
        %s133 = scalar_select %p132, %s131, 127
        %s134 = smul.addr %s133, 8
        %s135 = scalar_lea.vmem %s0, %s134
        %s136 = smul.u32 16, %s9
      $region28: #{_lambda_.17} parent=23 // pred_fallthru
        _
    $region24: #{_lambda_.17} parent=5 // pred_fallthru
      _
    %p137 = scmp.le.s32.totalorder 1, %s9
    %p138 = scmp.lt.s32.totalorder %s9, 9
    %p139 = pnand %p137, %p138
    %p140 = pneg %p139
    // Predicated region
    $region29: #{_lambda_.17} parent=5 // pred_check
      _
    $region30: #{_lambda_.17} parent=5 // pred_check_branch
      %142 = sbr.rel (%p139) target = $region32
    $region31: #{_lambda_.17} parent=5 // pred_region
      %s143 = ssub.s32 %s9, 1
      %s144 = smul.u32 16, %s14
      %p145 = scmp.lt.s32.totalorder %s144, 127
      %s146 = scalar_select %p145, %s144, 127
      %s147 = smul.addr %s146, 8
      %s148 = scalar_lea.vmem %s0, %s147
      %p149 = pneg %p35
      %p150 = pneg %p32
      %p151 = pneg %p56
      %p152 = pneg %p53
      %p153 = pneg %p77
      %p154 = pneg %p74
      %p155 = pneg %p103
      %p156 = pneg %p100
      %s157 = smul.u32 16, %s14
      %p158 = scmp.lt.s32.totalorder %s157, 127
      %s159 = scalar_select %p158, %s157, 127
      %s160 = smul.addr %s159, 8
      %s161 = scalar_lea.vmem %s3, %s160
      %s162 = smul.u32 16, %s14
      %p163 = scmp.lt.s32.totalorder %s162, 127
      %s164 = scalar_select %p163, %s162, 127
      %s165 = smul.addr %s164, 8
      %s166 = scalar_lea.vmem %s0, %s165
      %s167 = smul.u32 16, %s14
      %s168 = smul.u32 16, %s14
      %p169 = scmp.lt.s32.totalorder %s168, 127
      %s170 = scalar_select %p169, %s168, 127
      %s171 = smul.addr %s170, 8
      %s172 = scalar_lea.vmem %s3, %s171
      %s173 = smul.u32 16, %s14
      %v174 = vld [vmem:[%s166] sm:$0xff]
      %v175 = vld [vmem:[%s166 + $0x8] sm:$0xff]
      %v176 = vld [vmem:[%s166 + $0x10] sm:$0xff]
      %v177 = vld [vmem:[%s166 + $0x18] sm:$0xff]
      %v178 = vld [vmem:[%s166 + $0x20] sm:$0xff]
      %v179 = vld [vmem:[%s166 + $0x28] sm:$0xff]
      %v180 = vld [vmem:[%s166 + $0x30] sm:$0xff]
      %v181 = vld [vmem:[%s166 + $0x38] sm:$0xff]
      %v182 = vld [vmem:[%s166 + $0x40] sm:$0xff]
      %v183 = vld [vmem:[%s166 + $0x48] sm:$0xff]
      %v184 = vld [vmem:[%s166 + $0x50] sm:$0xff]
      %v185 = vld [vmem:[%s166 + $0x58] sm:$0xff]
      %v186 = vld [vmem:[%s166 + $0x60] sm:$0xff]
      %v187 = vld [vmem:[%s166 + $0x68] sm:$0xff]
      %v188 = vld [vmem:[%s166 + $0x70] sm:$0xff]
      %v189 = vld [vmem:[%s166 + $0x78] sm:$0xff]
      %v190 = vld [vmem:[%s1] sm:$0xff]
      %v191 = vld [vmem:[%s1 + $0x8] sm:$0xff]
      %v192 = vld [vmem:[%s2] sm:$0x1]
      %v194 = vlaneseq
      %v195 = vshrl.u32 %v194, 7
      %v196 = vsub.s32 0, %v195
      %v197 = vrot.slane %v192, %v196
      %vm199 = vcmask 130048
      %v201 = vsel %vm199, %v174, 0
      %v204 = vsel %vm199, %v175, 0
      %v207 = vsel %vm199, %v176, 0
      %v210 = vsel %vm199, %v177, 0
      %v213 = vsel %vm199, %v178, 0
      %v216 = vsel %vm199, %v179, 0
      %v219 = vsel %vm199, %v180, 0
      %v222 = vsel %vm199, %v181, 0
      %v225 = vsel %vm199, %v182, 0
      %v228 = vsel %vm199, %v183, 0
      %v231 = vsel %vm199, %v184, 0
      %v234 = vsel %vm199, %v185, 0
      %v237 = vsel %vm199, %v186, 0
      %v240 = vsel %vm199, %v187, 0
      %v243 = vsel %vm199, %v188, 0
      %v246 = vsel %vm199, %v189, 0
      %248 = vmatprep.subr.mxu0 0.0
      %249 = vmatpush1.msra.mxu0 %v190
      %250 = vmatprep.subr.mxu0 0.0
      %251 = vmatpush1.msra.mxu0 %v191
      %252 = vmatprep.subr.mxu0 0.0
      %253 = vmatpush1.msra.mxu0 0.0
      %254 = vmatprep.subr.mxu0 0.0
      %255 = vmatpush1.msra.mxu0 0.0
      %256 = vmatprep.subr.mxu0 0.0
      %257 = vmatpush1.msra.mxu0 0.0
      %258 = vmatprep.subr.mxu0 0.0
      %259 = vmatpush1.msra.mxu0 0.0
      %260 = vmatprep.subr.mxu0 0.0
      %261 = vmatpush1.msra.mxu0 0.0
      %262 = vmatprep.subr.mxu0 0.0
      %263 = vmatpush1.msra.mxu0 0.0
      %264 = vmatprep.subr.mxu0 0.0
      %265 = vmatpush1.msra.mxu0 0.0
      %266 = vmatprep.subr.mxu0 0.0
      %267 = vmatpush1.msra.mxu0 0.0
      %268 = vmatprep.subr.mxu0 0.0
      %269 = vmatpush1.msra.mxu0 0.0
      %270 = vmatprep.subr.mxu0 0.0
      %271 = vmatpush1.msra.mxu0 0.0
      %272 = vmatprep.subr.mxu0 0.0
      %273 = vmatpush1.msra.mxu0 0.0
      %274 = vmatprep.subr.mxu0 0.0
      %275 = vmatpush1.msra.mxu0 0.0
      %276 = vmatprep.subr.mxu0 0.0
      %277 = vmatpush1.msra.mxu0 0.0
      %278 = vmatprep.subr.mxu0 0.0
      %279 = vmatpush1.msra.mxu0 0.0
      %280 = vmatprep.subr.mxu0 0.0
      %281 = vmatpush1.msra.mxu0 0.0
      %282 = vmatprep.subr.mxu0 0.0
      %283 = vmatpush1.msra.mxu0 0.0
      %284 = vmatprep.subr.mxu0 0.0
      %285 = vmatpush1.msra.mxu0 0.0
      %286 = vmatprep.subr.mxu0 0.0
      %287 = vmatpush1.msra.mxu0 0.0
      %288 = vmatprep.subr.mxu0 0.0
      %289 = vmatpush1.msra.mxu0 0.0
      %290 = vmatprep.subr.mxu0 0.0
      %291 = vmatpush1.msra.mxu0 0.0
      %292 = vmatprep.subr.mxu0 0.0
      %293 = vmatpush1.msra.mxu0 0.0
      %294 = vmatprep.subr.mxu0 0.0
      %295 = vmatpush1.msra.mxu0 0.0
      %296 = vmatprep.subr.mxu0 0.0
      %297 = vmatpush1.msra.mxu0 0.0
      %298 = vmatprep.subr.mxu0 0.0
      %299 = vmatpush1.msra.mxu0 0.0
      %300 = vmatprep.subr.mxu0 0.0
      %301 = vmatpush1.msra.mxu0 0.0
      %302 = vmatprep.subr.mxu0 0.0
      %303 = vmatpush1.msra.mxu0 0.0
      %304 = vmatprep.subr.mxu0 0.0
      %305 = vmatpush1.msra.mxu0 0.0
      %306 = vmatprep.subr.mxu0 0.0
      %307 = vmatpush1.msra.mxu0 0.0
      %308 = vmatprep.subr.mxu0 0.0
      %309 = vmatpush1.msra.mxu0 0.0
      %310 = vmatprep.subr.mxu0 0.0
      %311 = vmatpush1.msra.mxu0 0.0
      %312 = vmatprep.mubr.f32.mxu0 0.0
      %313 = vmatmul.mubr.f32.gmra.mrb[0].mxu0 %v201
      %v314 = vpop.f32.mrb[0].mxu0
      %v315 = vadd.f32 %v197, %v314
      %v316 = vpop.f32.mrb[0].mxu0
      %317 = vmatprep.mubr.f32.mxu0 0.0
      %318 = vmatmul.mubr.f32.gmra.mrb[0].mxu0 %v204
      %v319 = vpop.f32.mrb[0].mxu0
      %v320 = vadd.f32 %v197, %v319
      %v321 = vpop.f32.mrb[0].mxu0
      %322 = vmatprep.mubr.f32.mxu0 0.0
      %323 = vmatmul.mubr.f32.gmra.mrb[0].mxu0 %v207
      %v324 = vpop.f32.mrb[0].mxu0
      %v325 = vadd.f32 %v197, %v324
      %v326 = vpop.f32.mrb[0].mxu0
      %327 = vmatprep.mubr.f32.mxu0 0.0
      %328 = vmatmul.mubr.f32.gmra.mrb[0].mxu0 %v210
      %v329 = vpop.f32.mrb[0].mxu0
      %v330 = vadd.f32 %v197, %v329
      %v331 = vpop.f32.mrb[0].mxu0
      %332 = vmatprep.mubr.f32.mxu0 0.0
      %333 = vmatmul.mubr.f32.gmra.mrb[0].mxu0 %v213
      %v334 = vpop.f32.mrb[0].mxu0
      %v335 = vadd.f32 %v197, %v334
      %v336 = vpop.f32.mrb[0].mxu0
      %337 = vmatprep.mubr.f32.mxu0 0.0
      %338 = vmatmul.mubr.f32.gmra.mrb[0].mxu0 %v216
      %v339 = vpop.f32.mrb[0].mxu0
      %v340 = vadd.f32 %v197, %v339
      %v341 = vpop.f32.mrb[0].mxu0
      %342 = vmatprep.mubr.f32.mxu0 0.0
      %343 = vmatmul.mubr.f32.gmra.mrb[0].mxu0 %v219
      %v344 = vpop.f32.mrb[0].mxu0
      %v345 = vadd.f32 %v197, %v344
      %v346 = vpop.f32.mrb[0].mxu0
      %347 = vmatprep.mubr.f32.mxu0 0.0
      %348 = vmatmul.mubr.f32.gmra.mrb[0].mxu0 %v222
      %v349 = vpop.f32.mrb[0].mxu0
      %v350 = vadd.f32 %v197, %v349
      %v351 = vpop.f32.mrb[0].mxu0
      %352 = vmatprep.mubr.f32.mxu0 0.0
      %353 = vmatmul.mubr.f32.gmra.mrb[0].mxu0 %v225
      %v354 = vpop.f32.mrb[0].mxu0
      %v355 = vadd.f32 %v197, %v354
      %v356 = vpop.f32.mrb[0].mxu0
      %357 = vmatprep.mubr.f32.mxu0 0.0
      %358 = vmatmul.mubr.f32.gmra.mrb[0].mxu0 %v228
      %v359 = vpop.f32.mrb[0].mxu0
      %v360 = vadd.f32 %v197, %v359
      %v361 = vpop.f32.mrb[0].mxu0
      %362 = vmatprep.mubr.f32.mxu0 0.0
      %363 = vmatmul.mubr.f32.gmra.mrb[0].mxu0 %v231
      %v364 = vpop.f32.mrb[0].mxu0
      %v365 = vadd.f32 %v197, %v364
      %v366 = vpop.f32.mrb[0].mxu0
      %367 = vmatprep.mubr.f32.mxu0 0.0
      %368 = vmatmul.mubr.f32.gmra.mrb[0].mxu0 %v234
      %v369 = vpop.f32.mrb[0].mxu0
      %v370 = vadd.f32 %v197, %v369
      %v371 = vpop.f32.mrb[0].mxu0
      %372 = vmatprep.mubr.f32.mxu0 0.0
      %373 = vmatmul.mubr.f32.gmra.mrb[0].mxu0 %v237
      %v374 = vpop.f32.mrb[0].mxu0
      %v375 = vadd.f32 %v197, %v374
      %v376 = vpop.f32.mrb[0].mxu0
      %377 = vmatprep.mubr.f32.mxu0 0.0
      %378 = vmatmul.mubr.f32.gmra.mrb[0].mxu0 %v240
      %v379 = vpop.f32.mrb[0].mxu0
      %v380 = vadd.f32 %v197, %v379
      %v381 = vpop.f32.mrb[0].mxu0
      %382 = vmatprep.mubr.f32.mxu0 0.0
      %383 = vmatmul.mubr.f32.gmra.mrb[0].mxu0 %v243
      %v384 = vpop.f32.mrb[0].mxu0
      %v385 = vadd.f32 %v197, %v384
      %v386 = vpop.f32.mrb[0].mxu0
      %387 = vmatprep.mubr.f32.mxu0 0.0
      %388 = vmatmul.mubr.f32.gmra.mrb[0].mxu0 %v246
      %v389 = vpop.f32.mrb[0].mxu0
      %v390 = vadd.f32 %v197, %v389
      %v391 = vpop.f32.mrb[0].mxu0
      %392 = vdwg.mxu0
      %v393 = vmax.f32 %v315, 0.0
      %v394 = vmax.f32 %v320, 0.0
      %v395 = vmax.f32 %v325, 0.0
      %v396 = vmax.f32 %v330, 0.0
      %v397 = vmax.f32 %v335, 0.0
      %v398 = vmax.f32 %v340, 0.0
      %v399 = vmax.f32 %v345, 0.0
      %v400 = vmax.f32 %v350, 0.0
      %v401 = vmax.f32 %v355, 0.0
      %v402 = vmax.f32 %v360, 0.0
      %v403 = vmax.f32 %v365, 0.0
      %v404 = vmax.f32 %v370, 0.0
      %v405 = vmax.f32 %v375, 0.0
      %v406 = vmax.f32 %v380, 0.0
      %v407 = vmax.f32 %v385, 0.0
      %v408 = vmax.f32 %v390, 0.0
      %409 = vst.msk [vmem:[%s172] sm:$0xff] %vm199, %v393
      %410 = vst.msk [vmem:[%s172 + $0x8] sm:$0xff] %vm199, %v394
      %411 = vst.msk [vmem:[%s172 + $0x10] sm:$0xff] %vm199, %v395
      %412 = vst.msk [vmem:[%s172 + $0x18] sm:$0xff] %vm199, %v396
      %413 = vst.msk [vmem:[%s172 + $0x20] sm:$0xff] %vm199, %v397
      %414 = vst.msk [vmem:[%s172 + $0x28] sm:$0xff] %vm199, %v398
      %415 = vst.msk [vmem:[%s172 + $0x30] sm:$0xff] %vm199, %v399
      %416 = vst.msk [vmem:[%s172 + $0x38] sm:$0xff] %vm199, %v400
      %417 = vst.msk [vmem:[%s172 + $0x40] sm:$0xff] %vm199, %v401
      %418 = vst.msk [vmem:[%s172 + $0x48] sm:$0xff] %vm199, %v402
      %419 = vst.msk [vmem:[%s172 + $0x50] sm:$0xff] %vm199, %v403
      %420 = vst.msk [vmem:[%s172 + $0x58] sm:$0xff] %vm199, %v404
      %421 = vst.msk [vmem:[%s172 + $0x60] sm:$0xff] %vm199, %v405
      %422 = vst.msk [vmem:[%s172 + $0x68] sm:$0xff] %vm199, %v406
      %423 = vst.msk [vmem:[%s172 + $0x70] sm:$0xff] %vm199, %v407
      %424 = vst.msk [vmem:[%s172 + $0x78] sm:$0xff] %vm199, %v408
      %s425 = smul.u32 16, %s14
      %p426 = scmp.lt.s32.totalorder %s425, 127
      %s427 = scalar_select %p426, %s425, 127
      %s428 = smul.addr %s427, 8
      %s429 = scalar_lea.vmem %s3, %s428
      // Predicated region
      $region33: #{_lambda_.17} parent=31 // pred_check
        %p430 = pneg %p100
      $region34: #{_lambda_.17} parent=31 // pred_check_branch
        %432 = sbr.rel (%p430) target = $region36
      $region35: #{_lambda_.17} parent=31 // pred_region
        %s433 = smul.u32 16, %s14
      $region36: #{_lambda_.17} parent=31 // pred_fallthru
        _
    $region32: #{_lambda_.17} parent=5 // pred_fallthru
      _
    %p434 = scmp.le.s32.totalorder 2, %s9
    // Predicated region
    $region37: #{_lambda_.17} parent=5 // pred_check
      %p435 = pneg %p434
    $region38: #{_lambda_.17} parent=5 // pred_check_branch
      %437 = sbr.rel (%p435) target = $region40
    $region39: #{_lambda_.17} parent=5 // pred_region
      %s438 = ssub.s32 %s9, 2
      // Predicated region
      $region41: #{_lambda_.17} parent=39 // pred_check
        %p439 = pneg %p106
      $region42: #{_lambda_.17} parent=39 // pred_check_branch
        %441 = sbr.rel (%p439) target = $region44
      $region43: #{_lambda_.17} parent=39 // pred_region
        %s442 = smul.u32 16, %s15
        %p443 = scmp.lt.s32.totalorder %s442, 127
        %s444 = scalar_select %p443, %s442, 127
        %s445 = smul.addr %s444, 8
        %s446 = scalar_lea.vmem %s3, %s445
      $region44: #{_lambda_.17} parent=39 // pred_fallthru
        _
    $region40: #{_lambda_.17} parent=5 // pred_fallthru
      _
  $region6: #{_lambda_.17} parent=0 // loop_footer
    %s13 = sadd.s32 1, %s9
  $region7: #{_lambda_.17} parent=0 // loop_footer_branch
    %8 = sbr.rel target = $region3
  $region8: #{_lambda_.17} parent=0 // loop_exit
    _

// kernel: _lambda_.18
$region0: #{_lambda_.18}
  #allocation0 [shape = 'u32[]', space=smem, size = 0x4, offset = 0x4, fixed_abs, tag = 'smem constant byte address 0x4 - core index']
  #allocation1 [shape = 'u32[144,128]{1,0:T(1,128)}', space=vmem, size = 0x12000, scoped, tag = 'internal scratch']
  %s0 = inlined_call_operand.vmem [shape: f32[256,144], index: 0, kind: input, shape index: {}]
  %s1 = inlined_call_operand.vmem [shape: f32[144,8], index: 1, kind: input, shape index: {}]
  %s2 = inlined_call_operand.vmem [shape: f32[1,8], index: 2, kind: input, shape index: {}]
  %s3 = inlined_call_operand.vmem [shape: f32[256,8], index: 3, kind: output, shape index: {}]
  %s4 = sld [smem:[#allocation0]]
  $region45: #{_lambda_.18} parent=0
    _
  %s6 = ssub.s32 1, %s4
  %s7 = scalar_select 0, %s6, %s4
  loop: start=0, step=1, limit=4
  $region2: #{_lambda_.18} parent=0 // loop_pre_header
    _
  $region3: #{_lambda_.18} parent=0 // loop_header
    %s9 = sphi 0, %s13
    %p10 = scmp.ge.s32.totalorder %s9, 4
    %s19 = sphi 0, %s21
    %s22 = sphi 0, %s19
    %s23 = sphi 0, %s22
    %s39 = sphi 0, %s23
    %s43 = sphi 0, %s43
    %s45 = sphi 0, %s43
    %s46 = sphi 0, %s45
    %s60 = sphi 0, %s46
    %s64 = sphi 0, %s64
    %s66 = sphi 0, %s64
    %s67 = sphi 0, %s66
    %s81 = sphi 0, %s67
    %s87 = sphi 0, %s89
    %s90 = sphi 0, %s87
    %s91 = sphi 0, %s90
    %s107 = sphi 0, %s91
  $region4: #{_lambda_.18} parent=0 // loop_header_branch
    %12 = sbr.rel (%p10) target = $region8
  $region5: #{_lambda_.18} parent=0 // loop_body
    %s14 = ssub.s32 %s9, 1
    %s15 = ssub.s32 %s9, 2
    %s16 = sadd.s32 %s9, 1
    %s17 = ssub.s32 %s9, %s16
    %p18 = scmp.eq.s32.totalorder %s17, 0
    %s20 = sadd.s32 %s19, 1
    %s21 = scalar_select %p18, %s19, %s20
    %p24 = pneg %p18
    %p25 = scmp.eq.s32.totalorder %s9, 1
    %p26 = por %p24, %p25
    %p27 = scmp.ne.s32.totalorder %s19, %s22
    %p28 = scmp.eq.s32.totalorder %s9, 0
    %p29 = por %p27, %p28
    %p30 = scmp.ne.s32.totalorder %s19, %s22
    %p31 = scmp.eq.s32.totalorder %s14, 1
    %p32 = por %p30, %p31
    %p33 = scmp.ne.s32.totalorder %s22, %s23
    %p34 = scmp.eq.s32.totalorder %s14, 0
    %p35 = por %p33, %p34
    %p36 = scmp.ne.s32.totalorder %s22, %s23
    %p37 = scmp.eq.s32.totalorder %s15, 1
    %p38 = por %p36, %p37
    %p40 = scmp.ne.s32.totalorder %s23, %s39
    %p41 = scmp.eq.s32.totalorder %s15, 0
    %p42 = por %p40, %p41
    %s44 = sadd.s32 %s43, 1
    %p47 = scmp.eq.s32.totalorder %s9, 1
    %p48 = scmp.ne.s32.totalorder %s43, %s45
    %p49 = scmp.eq.s32.totalorder %s9, 0
    %p50 = por %p48, %p49
    %p51 = scmp.ne.s32.totalorder %s43, %s45
    %p52 = scmp.eq.s32.totalorder %s14, 1
    %p53 = por %p51, %p52
    %p54 = scmp.ne.s32.totalorder %s45, %s46
    %p55 = scmp.eq.s32.totalorder %s14, 0
    %p56 = por %p54, %p55
    %p57 = scmp.ne.s32.totalorder %s45, %s46
    %p58 = scmp.eq.s32.totalorder %s15, 1
    %p59 = por %p57, %p58
    %p61 = scmp.ne.s32.totalorder %s46, %s60
    %p62 = scmp.eq.s32.totalorder %s15, 0
    %p63 = por %p61, %p62
    %s65 = sadd.s32 %s64, 1
    %p68 = scmp.eq.s32.totalorder %s9, 1
    %p69 = scmp.ne.s32.totalorder %s64, %s66
    %p70 = scmp.eq.s32.totalorder %s9, 0
    %p71 = por %p69, %p70
    %p72 = scmp.ne.s32.totalorder %s64, %s66
    %p73 = scmp.eq.s32.totalorder %s14, 1
    %p74 = por %p72, %p73
    %p75 = scmp.ne.s32.totalorder %s66, %s67
    %p76 = scmp.eq.s32.totalorder %s14, 0
    %p77 = por %p75, %p76
    %p78 = scmp.ne.s32.totalorder %s66, %s67
    %p79 = scmp.eq.s32.totalorder %s15, 1
    %p80 = por %p78, %p79
    %p82 = scmp.ne.s32.totalorder %s67, %s81
    %p83 = scmp.eq.s32.totalorder %s15, 0
    %p84 = por %p82, %p83
    %s85 = ssub.s32 %s9, %s16
    %p86 = scmp.eq.s32.totalorder %s85, 0
    %s88 = sadd.s32 %s87, 1
    %s89 = scalar_select %p86, %s87, %s88
    %p92 = pneg %p86
    %p93 = scmp.eq.s32.totalorder %s9, 1
    %p94 = por %p92, %p93
    %p95 = scmp.ne.s32.totalorder %s87, %s90
    %p96 = scmp.eq.s32.totalorder %s9, 0
    %p97 = por %p95, %p96
    %p98 = scmp.ne.s32.totalorder %s87, %s90
    %p99 = scmp.eq.s32.totalorder %s14, 1
    %p100 = por %p98, %p99
    %p101 = scmp.ne.s32.totalorder %s90, %s91
    %p102 = scmp.eq.s32.totalorder %s14, 0
    %p103 = por %p101, %p102
    %p104 = scmp.ne.s32.totalorder %s90, %s91
    %p105 = scmp.eq.s32.totalorder %s15, 1
    %p106 = por %p104, %p105
    %p108 = scmp.ne.s32.totalorder %s91, %s107
    %p109 = scmp.eq.s32.totalorder %s15, 0
    %p110 = por %p108, %p109
    %p111 = scmp.le.s32.totalorder 1, %s9
    %p112 = scmp.lt.s32.totalorder %s9, 3
    %p113 = pnand %p111, %p112
    %p114 = pneg %p113
    // Predicated region
    $region9: #{_lambda_.18} parent=5 // pred_check
      _
    $region10: #{_lambda_.18} parent=5 // pred_check_branch
      %116 = sbr.rel (%p113) target = $region12
    $region11: #{_lambda_.18} parent=5 // pred_region
      %s117 = ssub.s32 %s9, 1
      // Predicated region
      $region13: #{_lambda_.18} parent=11 // pred_check
        %p118 = pneg %p56
      $region14: #{_lambda_.18} parent=11 // pred_check_branch
        %120 = sbr.rel (%p118) target = $region16
      $region15: #{_lambda_.18} parent=11 // pred_region
        _
      $region16: #{_lambda_.18} parent=11 // pred_fallthru
        _
      // Predicated region
      $region17: #{_lambda_.18} parent=11 // pred_check
        %p121 = pneg %p77
      $region18: #{_lambda_.18} parent=11 // pred_check_branch
        %123 = sbr.rel (%p121) target = $region20
      $region19: #{_lambda_.18} parent=11 // pred_region
        _
      $region20: #{_lambda_.18} parent=11 // pred_fallthru
        _
    $region12: #{_lambda_.18} parent=5 // pred_fallthru
      _
    %p124 = scmp.lt.s32.totalorder %s9, 2
    // Predicated region
    $region21: #{_lambda_.18} parent=5 // pred_check
      %p125 = pneg %p124
    $region22: #{_lambda_.18} parent=5 // pred_check_branch
      %127 = sbr.rel (%p125) target = $region24
    $region23: #{_lambda_.18} parent=5 // pred_region
      // Predicated region
      $region25: #{_lambda_.18} parent=23 // pred_check
        %p128 = pneg %p29
      $region26: #{_lambda_.18} parent=23 // pred_check_branch
        %130 = sbr.rel (%p128) target = $region28
      $region27: #{_lambda_.18} parent=23 // pred_region
        %s131 = smul.u32 16, %s9
        %p132 = scmp.lt.s32.totalorder %s131, 31
        %s133 = scalar_select %p132, %s131, 31
        %s134 = smul.addr %s133, 2
        %s135 = smul.addr %s134, 8
        %s136 = scalar_lea.vmem %s0, %s135
        %s137 = smul.u32 16, %s9
      $region28: #{_lambda_.18} parent=23 // pred_fallthru
        _
    $region24: #{_lambda_.18} parent=5 // pred_fallthru
      _
    %p138 = scmp.le.s32.totalorder 1, %s9
    %p139 = scmp.lt.s32.totalorder %s9, 3
    %p140 = pnand %p138, %p139
    %p141 = pneg %p140
    // Predicated region
    $region29: #{_lambda_.18} parent=5 // pred_check
      _
    $region30: #{_lambda_.18} parent=5 // pred_check_branch
      %143 = sbr.rel (%p140) target = $region32
    $region31: #{_lambda_.18} parent=5 // pred_region
      %s144 = ssub.s32 %s9, 1
      %s145 = smul.u32 16, %s14
      %p146 = scmp.lt.s32.totalorder %s145, 31
      %s147 = scalar_select %p146, %s145, 31
      %s148 = smul.addr %s147, 2
      %s149 = smul.addr %s148, 8
      %s150 = scalar_lea.vmem %s0, %s149
      %p151 = pneg %p35
      %p152 = pneg %p32
      %p153 = pneg %p56
      %p154 = pneg %p53
      %p155 = pneg %p77
      %p156 = pneg %p74
      %p157 = pneg %p103
      %p158 = pneg %p100
      %s159 = smul.u32 16, %s14
      %p160 = scmp.lt.s32.totalorder %s159, 31
      %s161 = scalar_select %p160, %s159, 31
      %s162 = smul.addr %s161, 8
      %s163 = scalar_lea.vmem %s3, %s162
      %s164 = smul.u32 16, %s14
      %p165 = scmp.lt.s32.totalorder %s164, 31
      %s166 = scalar_select %p165, %s164, 31
      %s167 = smul.addr %s166, 2
      %s168 = smul.addr %s167, 8
      %s169 = scalar_lea.vmem %s0, %s168
      %s170 = smul.u32 16, %s14
      %s171 = smul.u32 16, %s14
      %p172 = scmp.lt.s32.totalorder %s171, 31
      %s173 = scalar_select %p172, %s171, 31
      %s174 = smul.addr %s173, 8
      %s175 = scalar_lea.vmem %s3, %s174
      %s176 = smul.u32 16, %s14
      %v177 = vld [vmem:[%s169] sm:$0xff]
      %v178 = vld [vmem:[%s169 + $0x8] sm:$0xff]
      %v179 = vld [vmem:[%s169 + $0x10] sm:$0xff]
      %v180 = vld [vmem:[%s169 + $0x18] sm:$0xff]
      %v181 = vld [vmem:[%s169 + $0x20] sm:$0xff]
      %v182 = vld [vmem:[%s169 + $0x28] sm:$0xff]
      %v183 = vld [vmem:[%s169 + $0x30] sm:$0xff]
      %v184 = vld [vmem:[%s169 + $0x38] sm:$0xff]
      %v185 = vld [vmem:[%s169 + $0x40] sm:$0xff]
      %v186 = vld [vmem:[%s169 + $0x48] sm:$0xff]
      %v187 = vld [vmem:[%s169 + $0x50] sm:$0xff]
      %v188 = vld [vmem:[%s169 + $0x58] sm:$0xff]
      %v189 = vld [vmem:[%s169 + $0x60] sm:$0xff]
      %v190 = vld [vmem:[%s169 + $0x68] sm:$0xff]
      %v191 = vld [vmem:[%s169 + $0x70] sm:$0xff]
      %v192 = vld [vmem:[%s169 + $0x78] sm:$0xff]
      %v193 = vld [vmem:[%s169 + $0x80] sm:$0xff]
      %v194 = vld [vmem:[%s169 + $0x88] sm:$0xff]
      %v195 = vld [vmem:[%s169 + $0x90] sm:$0xff]
      %v196 = vld [vmem:[%s169 + $0x98] sm:$0xff]
      %v197 = vld [vmem:[%s169 + $0xa0] sm:$0xff]
      %v198 = vld [vmem:[%s169 + $0xa8] sm:$0xff]
      %v199 = vld [vmem:[%s169 + $0xb0] sm:$0xff]
      %v200 = vld [vmem:[%s169 + $0xb8] sm:$0xff]
      %v201 = vld [vmem:[%s169 + $0xc0] sm:$0xff]
      %v202 = vld [vmem:[%s169 + $0xc8] sm:$0xff]
      %v203 = vld [vmem:[%s169 + $0xd0] sm:$0xff]
      %v204 = vld [vmem:[%s169 + $0xd8] sm:$0xff]
      %v205 = vld [vmem:[%s169 + $0xe0] sm:$0xff]
      %v206 = vld [vmem:[%s169 + $0xe8] sm:$0xff]
      %v207 = vld [vmem:[%s169 + $0xf0] sm:$0xff]
      %v208 = vld [vmem:[%s169 + $0xf8] sm:$0xff]
      %v209 = vld [vmem:[%s1] sm:$0xff]
      %v210 = vld [vmem:[%s1 + $0x8] sm:$0xff]
      %v211 = vld [vmem:[%s1 + $0x10] sm:$0xff]
      %v212 = vld [vmem:[%s1 + $0x18] sm:$0xff]
      %v213 = vld [vmem:[%s1 + $0x20] sm:$0xff]
      %v214 = vld [vmem:[%s1 + $0x28] sm:$0xff]
      %v215 = vld [vmem:[%s1 + $0x30] sm:$0xff]
      %v216 = vld [vmem:[%s1 + $0x38] sm:$0xff]
      %v217 = vld [vmem:[%s1 + $0x40] sm:$0xff]
      %v218 = vld [vmem:[%s1 + $0x48] sm:$0xff]
      %v219 = vld [vmem:[%s1 + $0x50] sm:$0xff]
      %v220 = vld [vmem:[%s1 + $0x58] sm:$0xff]
      %v221 = vld [vmem:[%s1 + $0x60] sm:$0xff]
      %v222 = vld [vmem:[%s1 + $0x68] sm:$0xff]
      %v223 = vld [vmem:[%s1 + $0x70] sm:$0xff]
      %v224 = vld [vmem:[%s1 + $0x78] sm:$0xff]
      %v225 = vld [vmem:[%s1 + $0x80] sm:$0xff]
      %v226 = vld [vmem:[%s1 + $0x88] sm:$0xff]
      %v227 = vld [vmem:[%s2] sm:$0x1]
      %v229 = vlaneseq
      %v230 = vshrl.u32 %v229, 7
      %v231 = vsub.s32 0, %v230
      %v232 = vrot.slane %v227, %v231
      %vm234 = vcmask 130048
      %v236 = vsel %vm234, %v178, 0
      %v239 = vsel %vm234, %v180, 0
      %v242 = vsel %vm234, %v182, 0
      %v245 = vsel %vm234, %v184, 0
      %v248 = vsel %vm234, %v186, 0
      %v251 = vsel %vm234, %v188, 0
      %v254 = vsel %vm234, %v190, 0
      %v257 = vsel %vm234, %v192, 0
      %v260 = vsel %vm234, %v194, 0
      %v263 = vsel %vm234, %v196, 0
      %v266 = vsel %vm234, %v198, 0
      %v269 = vsel %vm234, %v200, 0
      %v272 = vsel %vm234, %v202, 0
      %v275 = vsel %vm234, %v204, 0
      %v278 = vsel %vm234, %v206, 0
      %v281 = vsel %vm234, %v208, 0
      %283 = vmatprep.subr.mxu0 0.0
      %284 = vmatpush1.msra.mxu0 %v209
      %285 = vmatprep.subr.mxu0 0.0
      %286 = vmatpush1.msra.mxu0 %v210
      %287 = vmatprep.subr.mxu0 0.0
      %288 = vmatpush1.msra.mxu0 %v211
      %289 = vmatprep.subr.mxu0 0.0
      %290 = vmatpush1.msra.mxu0 %v212
      %291 = vmatprep.subr.mxu0 0.0
      %292 = vmatpush1.msra.mxu0 %v213
      %293 = vmatprep.subr.mxu0 0.0
      %294 = vmatpush1.msra.mxu0 %v214
      %295 = vmatprep.subr.mxu0 0.0
      %296 = vmatpush1.msra.mxu0 %v215
      %297 = vmatprep.subr.mxu0 0.0
      %298 = vmatpush1.msra.mxu0 %v216
      %299 = vmatprep.subr.mxu0 0.0
      %300 = vmatpush1.msra.mxu0 %v217
      %301 = vmatprep.subr.mxu0 0.0
      %302 = vmatpush1.msra.mxu0 %v218
      %303 = vmatprep.subr.mxu0 0.0
      %304 = vmatpush1.msra.mxu0 %v219
      %305 = vmatprep.subr.mxu0 0.0
      %306 = vmatpush1.msra.mxu0 %v220
      %307 = vmatprep.subr.mxu0 0.0
      %308 = vmatpush1.msra.mxu0 %v221
      %309 = vmatprep.subr.mxu0 0.0
      %310 = vmatpush1.msra.mxu0 %v222
      %311 = vmatprep.subr.mxu0 0.0
      %312 = vmatpush1.msra.mxu0 %v223
      %313 = vmatprep.subr.mxu0 0.0
      %314 = vmatpush1.msra.mxu0 %v224
      %315 = vmatprep.subr.mxu0 0.0
      %316 = vmatpush1.msra.mxu0 %v225
      %317 = vmatprep.subr.mxu0 0.0
      %318 = vmatpush1.msra.mxu0 %v226
      %319 = vmatprep.subr.mxu0 0.0
      %320 = vmatpush1.msra.mxu0 0.0
      %321 = vmatprep.subr.mxu0 0.0
      %322 = vmatpush1.msra.mxu0 0.0
      %323 = vmatprep.subr.mxu0 0.0
      %324 = vmatpush1.msra.mxu0 0.0
      %325 = vmatprep.subr.mxu0 0.0
      %326 = vmatpush1.msra.mxu0 0.0
      %327 = vmatprep.subr.mxu0 0.0
      %328 = vmatpush1.msra.mxu0 0.0
      %329 = vmatprep.subr.mxu0 0.0
      %330 = vmatpush1.msra.mxu0 0.0
      %331 = vmatprep.subr.mxu0 0.0
      %332 = vmatpush1.msra.mxu0 0.0
      %333 = vmatprep.subr.mxu0 0.0
      %334 = vmatpush1.msra.mxu0 0.0
      %335 = vmatprep.subr.mxu0 0.0
      %336 = vmatpush1.msra.mxu0 0.0
      %337 = vmatprep.subr.mxu0 0.0
      %338 = vmatpush1.msra.mxu0 0.0
      %339 = vmatprep.subr.mxu0 0.0
      %340 = vmatpush1.msra.mxu0 0.0
      %341 = vmatprep.subr.mxu0 0.0
      %342 = vmatpush1.msra.mxu0 0.0
      %343 = vmatprep.subr.mxu0 0.0
      %344 = vmatpush1.msra.mxu0 0.0
      %345 = vmatprep.subr.mxu0 0.0
      %346 = vmatpush1.msra.mxu0 0.0
      %347 = vmatprep.mubr.f32.mxu0 %v236
      %348 = vmatmul.mubr.f32.gmra.mrb[0].mxu0 %v177
      %v349 = vpop.f32.mrb[0].mxu0
      %v350 = vadd.f32 %v232, %v349
      %v351 = vpop.f32.mrb[0].mxu0
      %352 = vmatprep.mubr.f32.mxu0 %v239
      %353 = vmatmul.mubr.f32.gmra.mrb[0].mxu0 %v179
      %v354 = vpop.f32.mrb[0].mxu0
      %v355 = vadd.f32 %v232, %v354
      %v356 = vpop.f32.mrb[0].mxu0
      %357 = vmatprep.mubr.f32.mxu0 %v242
      %358 = vmatmul.mubr.f32.gmra.mrb[0].mxu0 %v181
      %v359 = vpop.f32.mrb[0].mxu0
      %v360 = vadd.f32 %v232, %v359
      %v361 = vpop.f32.mrb[0].mxu0
      %362 = vmatprep.mubr.f32.mxu0 %v245
      %363 = vmatmul.mubr.f32.gmra.mrb[0].mxu0 %v183
      %v364 = vpop.f32.mrb[0].mxu0
      %v365 = vadd.f32 %v232, %v364
      %v366 = vpop.f32.mrb[0].mxu0
      %367 = vmatprep.mubr.f32.mxu0 %v248
      %368 = vmatmul.mubr.f32.gmra.mrb[0].mxu0 %v185
      %v369 = vpop.f32.mrb[0].mxu0
      %v370 = vadd.f32 %v232, %v369
      %v371 = vpop.f32.mrb[0].mxu0
      %372 = vmatprep.mubr.f32.mxu0 %v251
      %373 = vmatmul.mubr.f32.gmra.mrb[0].mxu0 %v187
      %v374 = vpop.f32.mrb[0].mxu0
      %v375 = vadd.f32 %v232, %v374
      %v376 = vpop.f32.mrb[0].mxu0
      %377 = vmatprep.mubr.f32.mxu0 %v254
      %378 = vmatmul.mubr.f32.gmra.mrb[0].mxu0 %v189
      %v379 = vpop.f32.mrb[0].mxu0
      %v380 = vadd.f32 %v232, %v379
      %v381 = vpop.f32.mrb[0].mxu0
      %382 = vmatprep.mubr.f32.mxu0 %v257
      %383 = vmatmul.mubr.f32.gmra.mrb[0].mxu0 %v191
      %v384 = vpop.f32.mrb[0].mxu0
      %v385 = vadd.f32 %v232, %v384
      %v386 = vpop.f32.mrb[0].mxu0
      %387 = vmatprep.mubr.f32.mxu0 %v260
      %388 = vmatmul.mubr.f32.gmra.mrb[0].mxu0 %v193
      %v389 = vpop.f32.mrb[0].mxu0
      %v390 = vadd.f32 %v232, %v389
      %v391 = vpop.f32.mrb[0].mxu0
      %392 = vmatprep.mubr.f32.mxu0 %v263
      %393 = vmatmul.mubr.f32.gmra.mrb[0].mxu0 %v195
      %v394 = vpop.f32.mrb[0].mxu0
      %v395 = vadd.f32 %v232, %v394
      %v396 = vpop.f32.mrb[0].mxu0
      %397 = vmatprep.mubr.f32.mxu0 %v266
      %398 = vmatmul.mubr.f32.gmra.mrb[0].mxu0 %v197
      %v399 = vpop.f32.mrb[0].mxu0
      %v400 = vadd.f32 %v232, %v399
      %v401 = vpop.f32.mrb[0].mxu0
      %402 = vmatprep.mubr.f32.mxu0 %v269
      %403 = vmatmul.mubr.f32.gmra.mrb[0].mxu0 %v199
      %v404 = vpop.f32.mrb[0].mxu0
      %v405 = vadd.f32 %v232, %v404
      %v406 = vpop.f32.mrb[0].mxu0
      %407 = vmatprep.mubr.f32.mxu0 %v272
      %408 = vmatmul.mubr.f32.gmra.mrb[0].mxu0 %v201
      %v409 = vpop.f32.mrb[0].mxu0
      %v410 = vadd.f32 %v232, %v409
      %v411 = vpop.f32.mrb[0].mxu0
      %412 = vmatprep.mubr.f32.mxu0 %v275
      %413 = vmatmul.mubr.f32.gmra.mrb[0].mxu0 %v203
      %v414 = vpop.f32.mrb[0].mxu0
      %v415 = vadd.f32 %v232, %v414
      %v416 = vpop.f32.mrb[0].mxu0
      %417 = vmatprep.mubr.f32.mxu0 %v278
      %418 = vmatmul.mubr.f32.gmra.mrb[0].mxu0 %v205
      %v419 = vpop.f32.mrb[0].mxu0
      %v420 = vadd.f32 %v232, %v419
      %v421 = vpop.f32.mrb[0].mxu0
      %422 = vmatprep.mubr.f32.mxu0 %v281
      %423 = vmatmul.mubr.f32.gmra.mrb[0].mxu0 %v207
      %v424 = vpop.f32.mrb[0].mxu0
      %v425 = vadd.f32 %v232, %v424
      %v426 = vpop.f32.mrb[0].mxu0
      %427 = vdwg.mxu0
      %v428 = vmax.f32 %v350, 0.0
      %v429 = vmax.f32 %v355, 0.0
      %v430 = vmax.f32 %v360, 0.0
      %v431 = vmax.f32 %v365, 0.0
      %v432 = vmax.f32 %v370, 0.0
      %v433 = vmax.f32 %v375, 0.0
      %v434 = vmax.f32 %v380, 0.0
      %v435 = vmax.f32 %v385, 0.0
      %v436 = vmax.f32 %v390, 0.0
      %v437 = vmax.f32 %v395, 0.0
      %v438 = vmax.f32 %v400, 0.0
      %v439 = vmax.f32 %v405, 0.0
      %v440 = vmax.f32 %v410, 0.0
      %v441 = vmax.f32 %v415, 0.0
      %v442 = vmax.f32 %v420, 0.0
      %v443 = vmax.f32 %v425, 0.0
      %vm444 = vcmask 64512
      %445 = vst.msk [vmem:[%s175] sm:$0xff] %vm444, %v428
      %446 = vst.msk [vmem:[%s175 + $0x8] sm:$0xff] %vm444, %v429
      %447 = vst.msk [vmem:[%s175 + $0x10] sm:$0xff] %vm444, %v430
      %448 = vst.msk [vmem:[%s175 + $0x18] sm:$0xff] %vm444, %v431
      %449 = vst.msk [vmem:[%s175 + $0x20] sm:$0xff] %vm444, %v432
      %450 = vst.msk [vmem:[%s175 + $0x28] sm:$0xff] %vm444, %v433
      %451 = vst.msk [vmem:[%s175 + $0x30] sm:$0xff] %vm444, %v434
      %452 = vst.msk [vmem:[%s175 + $0x38] sm:$0xff] %vm444, %v435
      %453 = vst.msk [vmem:[%s175 + $0x40] sm:$0xff] %vm444, %v436
      %454 = vst.msk [vmem:[%s175 + $0x48] sm:$0xff] %vm444, %v437
      %455 = vst.msk [vmem:[%s175 + $0x50] sm:$0xff] %vm444, %v438
      %456 = vst.msk [vmem:[%s175 + $0x58] sm:$0xff] %vm444, %v439
      %457 = vst.msk [vmem:[%s175 + $0x60] sm:$0xff] %vm444, %v440
      %458 = vst.msk [vmem:[%s175 + $0x68] sm:$0xff] %vm444, %v441
      %459 = vst.msk [vmem:[%s175 + $0x70] sm:$0xff] %vm444, %v442
      %460 = vst.msk [vmem:[%s175 + $0x78] sm:$0xff] %vm444, %v443
      %s461 = smul.u32 16, %s14
      %p462 = scmp.lt.s32.totalorder %s461, 31
      %s463 = scalar_select %p462, %s461, 31
      %s464 = smul.addr %s463, 8
      %s465 = scalar_lea.vmem %s3, %s464
      // Predicated region
      $region33: #{_lambda_.18} parent=31 // pred_check
        %p466 = pneg %p100
      $region34: #{_lambda_.18} parent=31 // pred_check_branch
        %468 = sbr.rel (%p466) target = $region36
      $region35: #{_lambda_.18} parent=31 // pred_region
        %s469 = smul.u32 16, %s14
      $region36: #{_lambda_.18} parent=31 // pred_fallthru
        _
    $region32: #{_lambda_.18} parent=5 // pred_fallthru
      _
    %p470 = scmp.le.s32.totalorder 2, %s9
    // Predicated region
    $region37: #{_lambda_.18} parent=5 // pred_check
      %p471 = pneg %p470
    $region38: #{_lambda_.18} parent=5 // pred_check_branch
      %473 = sbr.rel (%p471) target = $region40
    $region39: #{_lambda_.18} parent=5 // pred_region
      %s474 = ssub.s32 %s9, 2
      // Predicated region
      $region41: #{_lambda_.18} parent=39 // pred_check
        %p475 = pneg %p106
      $region42: #{_lambda_.18} parent=39 // pred_check_branch
        %477 = sbr.rel (%p475) target = $region44
      $region43: #{_lambda_.18} parent=39 // pred_region
        %s478 = smul.u32 16, %s15
        %p479 = scmp.lt.s32.totalorder %s478, 31
        %s480 = scalar_select %p479, %s478, 31
        %s481 = smul.addr %s480, 8
        %s482 = scalar_lea.vmem %s3, %s481
      $region44: #{_lambda_.18} parent=39 // pred_fallthru
        _
    $region40: #{_lambda_.18} parent=5 // pred_fallthru
      _
  $region6: #{_lambda_.18} parent=0 // loop_footer
    %s13 = sadd.s32 1, %s9
  $region7: #{_lambda_.18} parent=0 // loop_footer_branch
    %8 = sbr.rel target = $region3
  $region8: #{_lambda_.18} parent=0 // loop_exit
    _

// kernel: _lambda_.20
$region0: #{_lambda_.20}
  #allocation0 [shape = 'u32[]', space=smem, size = 0x4, offset = 0x4, fixed_abs, tag = 'smem constant byte address 0x4 - core index']
  #allocation1 [shape = 'u32[144,128]{1,0:T(1,128)}', space=vmem, size = 0x12000, scoped, tag = 'internal scratch']
  %s0 = inlined_call_operand.vmem [shape: f32[256,32], index: 0, kind: input, shape index: {}]
  %s1 = inlined_call_operand.vmem [shape: f32[32,32], index: 1, kind: input, shape index: {}]
  %s2 = inlined_call_operand.vmem [shape: f32[1,32], index: 2, kind: input, shape index: {}]
  %s3 = inlined_call_operand.vmem [shape: f32[256,32], index: 3, kind: output, shape index: {}]
  %s4 = sld [smem:[#allocation0]]
  $region45: #{_lambda_.20} parent=0
    _
  %s6 = ssub.s32 1, %s4
  %s7 = scalar_select 0, %s6, %s4
  loop: start=0, step=1, limit=4
  $region2: #{_lambda_.20} parent=0 // loop_pre_header
    _
  $region3: #{_lambda_.20} parent=0 // loop_header
    %s9 = sphi 0, %s13
    %p10 = scmp.ge.s32.totalorder %s9, 4
    %s19 = sphi 0, %s21
    %s22 = sphi 0, %s19
    %s23 = sphi 0, %s22
    %s39 = sphi 0, %s23
    %s43 = sphi 0, %s43
    %s45 = sphi 0, %s43
    %s46 = sphi 0, %s45
    %s60 = sphi 0, %s46
    %s64 = sphi 0, %s64
    %s66 = sphi 0, %s64
    %s67 = sphi 0, %s66
    %s81 = sphi 0, %s67
    %s87 = sphi 0, %s89
    %s90 = sphi 0, %s87
    %s91 = sphi 0, %s90
    %s107 = sphi 0, %s91
  $region4: #{_lambda_.20} parent=0 // loop_header_branch
    %12 = sbr.rel (%p10) target = $region8
  $region5: #{_lambda_.20} parent=0 // loop_body
    %s14 = ssub.s32 %s9, 1
    %s15 = ssub.s32 %s9, 2
    %s16 = sadd.s32 %s9, 1
    %s17 = ssub.s32 %s9, %s16
    %p18 = scmp.eq.s32.totalorder %s17, 0
    %s20 = sadd.s32 %s19, 1
    %s21 = scalar_select %p18, %s19, %s20
    %p24 = pneg %p18
    %p25 = scmp.eq.s32.totalorder %s9, 1
    %p26 = por %p24, %p25
    %p27 = scmp.ne.s32.totalorder %s19, %s22
    %p28 = scmp.eq.s32.totalorder %s9, 0
    %p29 = por %p27, %p28
    %p30 = scmp.ne.s32.totalorder %s19, %s22
    %p31 = scmp.eq.s32.totalorder %s14, 1
    %p32 = por %p30, %p31
    %p33 = scmp.ne.s32.totalorder %s22, %s23
    %p34 = scmp.eq.s32.totalorder %s14, 0
    %p35 = por %p33, %p34
    %p36 = scmp.ne.s32.totalorder %s22, %s23
    %p37 = scmp.eq.s32.totalorder %s15, 1
    %p38 = por %p36, %p37
    %p40 = scmp.ne.s32.totalorder %s23, %s39
    %p41 = scmp.eq.s32.totalorder %s15, 0
    %p42 = por %p40, %p41
    %s44 = sadd.s32 %s43, 1
    %p47 = scmp.eq.s32.totalorder %s9, 1
    %p48 = scmp.ne.s32.totalorder %s43, %s45
    %p49 = scmp.eq.s32.totalorder %s9, 0
    %p50 = por %p48, %p49
    %p51 = scmp.ne.s32.totalorder %s43, %s45
    %p52 = scmp.eq.s32.totalorder %s14, 1
    %p53 = por %p51, %p52
    %p54 = scmp.ne.s32.totalorder %s45, %s46
    %p55 = scmp.eq.s32.totalorder %s14, 0
    %p56 = por %p54, %p55
    %p57 = scmp.ne.s32.totalorder %s45, %s46
    %p58 = scmp.eq.s32.totalorder %s15, 1
    %p59 = por %p57, %p58
    %p61 = scmp.ne.s32.totalorder %s46, %s60
    %p62 = scmp.eq.s32.totalorder %s15, 0
    %p63 = por %p61, %p62
    %s65 = sadd.s32 %s64, 1
    %p68 = scmp.eq.s32.totalorder %s9, 1
    %p69 = scmp.ne.s32.totalorder %s64, %s66
    %p70 = scmp.eq.s32.totalorder %s9, 0
    %p71 = por %p69, %p70
    %p72 = scmp.ne.s32.totalorder %s64, %s66
    %p73 = scmp.eq.s32.totalorder %s14, 1
    %p74 = por %p72, %p73
    %p75 = scmp.ne.s32.totalorder %s66, %s67
    %p76 = scmp.eq.s32.totalorder %s14, 0
    %p77 = por %p75, %p76
    %p78 = scmp.ne.s32.totalorder %s66, %s67
    %p79 = scmp.eq.s32.totalorder %s15, 1
    %p80 = por %p78, %p79
    %p82 = scmp.ne.s32.totalorder %s67, %s81
    %p83 = scmp.eq.s32.totalorder %s15, 0
    %p84 = por %p82, %p83
    %s85 = ssub.s32 %s9, %s16
    %p86 = scmp.eq.s32.totalorder %s85, 0
    %s88 = sadd.s32 %s87, 1
    %s89 = scalar_select %p86, %s87, %s88
    %p92 = pneg %p86
    %p93 = scmp.eq.s32.totalorder %s9, 1
    %p94 = por %p92, %p93
    %p95 = scmp.ne.s32.totalorder %s87, %s90
    %p96 = scmp.eq.s32.totalorder %s9, 0
    %p97 = por %p95, %p96
    %p98 = scmp.ne.s32.totalorder %s87, %s90
    %p99 = scmp.eq.s32.totalorder %s14, 1
    %p100 = por %p98, %p99
    %p101 = scmp.ne.s32.totalorder %s90, %s91
    %p102 = scmp.eq.s32.totalorder %s14, 0
    %p103 = por %p101, %p102
    %p104 = scmp.ne.s32.totalorder %s90, %s91
    %p105 = scmp.eq.s32.totalorder %s15, 1
    %p106 = por %p104, %p105
    %p108 = scmp.ne.s32.totalorder %s91, %s107
    %p109 = scmp.eq.s32.totalorder %s15, 0
    %p110 = por %p108, %p109
    %p111 = scmp.le.s32.totalorder 1, %s9
    %p112 = scmp.lt.s32.totalorder %s9, 3
    %p113 = pnand %p111, %p112
    %p114 = pneg %p113
    // Predicated region
    $region9: #{_lambda_.20} parent=5 // pred_check
      _
    $region10: #{_lambda_.20} parent=5 // pred_check_branch
      %116 = sbr.rel (%p113) target = $region12
    $region11: #{_lambda_.20} parent=5 // pred_region
      %s117 = ssub.s32 %s9, 1
      // Predicated region
      $region13: #{_lambda_.20} parent=11 // pred_check
        %p118 = pneg %p56
      $region14: #{_lambda_.20} parent=11 // pred_check_branch
        %120 = sbr.rel (%p118) target = $region16
      $region15: #{_lambda_.20} parent=11 // pred_region
        _
      $region16: #{_lambda_.20} parent=11 // pred_fallthru
        _
      // Predicated region
      $region17: #{_lambda_.20} parent=11 // pred_check
        %p121 = pneg %p77
      $region18: #{_lambda_.20} parent=11 // pred_check_branch
        %123 = sbr.rel (%p121) target = $region20
      $region19: #{_lambda_.20} parent=11 // pred_region
        _
      $region20: #{_lambda_.20} parent=11 // pred_fallthru
        _
    $region12: #{_lambda_.20} parent=5 // pred_fallthru
      _
    %p124 = scmp.lt.s32.totalorder %s9, 2
    // Predicated region
    $region21: #{_lambda_.20} parent=5 // pred_check
      %p125 = pneg %p124
    $region22: #{_lambda_.20} parent=5 // pred_check_branch
      %127 = sbr.rel (%p125) target = $region24
    $region23: #{_lambda_.20} parent=5 // pred_region
      // Predicated region
      $region25: #{_lambda_.20} parent=23 // pred_check
        %p128 = pneg %p29
      $region26: #{_lambda_.20} parent=23 // pred_check_branch
        %130 = sbr.rel (%p128) target = $region28
      $region27: #{_lambda_.20} parent=23 // pred_region
        %s131 = smul.u32 16, %s9
        %p132 = scmp.lt.s32.totalorder %s131, 31
        %s133 = scalar_select %p132, %s131, 31
        %s134 = smul.addr %s133, 8
        %s135 = scalar_lea.vmem %s0, %s134
        %s136 = smul.u32 16, %s9
      $region28: #{_lambda_.20} parent=23 // pred_fallthru
        _
    $region24: #{_lambda_.20} parent=5 // pred_fallthru
      _
    %p137 = scmp.le.s32.totalorder 1, %s9
    %p138 = scmp.lt.s32.totalorder %s9, 3
    %p139 = pnand %p137, %p138
    %p140 = pneg %p139
    // Predicated region
    $region29: #{_lambda_.20} parent=5 // pred_check
      _
    $region30: #{_lambda_.20} parent=5 // pred_check_branch
      %142 = sbr.rel (%p139) target = $region32
    $region31: #{_lambda_.20} parent=5 // pred_region
      %s143 = ssub.s32 %s9, 1
      %s144 = smul.u32 16, %s14
      %p145 = scmp.lt.s32.totalorder %s144, 31
      %s146 = scalar_select %p145, %s144, 31
      %s147 = smul.addr %s146, 8
      %s148 = scalar_lea.vmem %s0, %s147
      %p149 = pneg %p35
      %p150 = pneg %p32
      %p151 = pneg %p56
      %p152 = pneg %p53
      %p153 = pneg %p77
      %p154 = pneg %p74
      %p155 = pneg %p103
      %p156 = pneg %p100
      %s157 = smul.u32 16, %s14
      %p158 = scmp.lt.s32.totalorder %s157, 31
      %s159 = scalar_select %p158, %s157, 31
      %s160 = smul.addr %s159, 8
      %s161 = scalar_lea.vmem %s3, %s160
      %s162 = smul.u32 16, %s14
      %p163 = scmp.lt.s32.totalorder %s162, 31
      %s164 = scalar_select %p163, %s162, 31
      %s165 = smul.addr %s164, 8
      %s166 = scalar_lea.vmem %s0, %s165
      %s167 = smul.u32 16, %s14
      %s168 = smul.u32 16, %s14
      %p169 = scmp.lt.s32.totalorder %s168, 31
      %s170 = scalar_select %p169, %s168, 31
      %s171 = smul.addr %s170, 8
      %s172 = scalar_lea.vmem %s3, %s171
      %s173 = smul.u32 16, %s14
      %v174 = vld [vmem:[%s166] sm:$0xff]
      %v175 = vld [vmem:[%s166 + $0x8] sm:$0xff]
      %v176 = vld [vmem:[%s166 + $0x10] sm:$0xff]
      %v177 = vld [vmem:[%s166 + $0x18] sm:$0xff]
      %v178 = vld [vmem:[%s166 + $0x20] sm:$0xff]
      %v179 = vld [vmem:[%s166 + $0x28] sm:$0xff]
      %v180 = vld [vmem:[%s166 + $0x30] sm:$0xff]
      %v181 = vld [vmem:[%s166 + $0x38] sm:$0xff]
      %v182 = vld [vmem:[%s166 + $0x40] sm:$0xff]
      %v183 = vld [vmem:[%s166 + $0x48] sm:$0xff]
      %v184 = vld [vmem:[%s166 + $0x50] sm:$0xff]
      %v185 = vld [vmem:[%s166 + $0x58] sm:$0xff]
      %v186 = vld [vmem:[%s166 + $0x60] sm:$0xff]
      %v187 = vld [vmem:[%s166 + $0x68] sm:$0xff]
      %v188 = vld [vmem:[%s166 + $0x70] sm:$0xff]
      %v189 = vld [vmem:[%s166 + $0x78] sm:$0xff]
      %v190 = vld [vmem:[%s1] sm:$0xff]
      %v191 = vld [vmem:[%s1 + $0x8] sm:$0xff]
      %v192 = vld [vmem:[%s1 + $0x10] sm:$0xff]
      %v193 = vld [vmem:[%s1 + $0x18] sm:$0xff]
      %v194 = vld [vmem:[%s2] sm:$0x1]
      %v196 = vlaneseq
      %v197 = vshrl.u32 %v196, 7
      %v198 = vsub.s32 0, %v197
      %v199 = vrot.slane %v194, %v198
      %vm201 = vcmask 261120
      %v203 = vsel %vm201, %v174, 0
      %v206 = vsel %vm201, %v175, 0
      %v209 = vsel %vm201, %v176, 0
      %v212 = vsel %vm201, %v177, 0
      %v215 = vsel %vm201, %v178, 0
      %v218 = vsel %vm201, %v179, 0
      %v221 = vsel %vm201, %v180, 0
      %v224 = vsel %vm201, %v181, 0
      %v227 = vsel %vm201, %v182, 0
      %v230 = vsel %vm201, %v183, 0
      %v233 = vsel %vm201, %v184, 0
      %v236 = vsel %vm201, %v185, 0
      %v239 = vsel %vm201, %v186, 0
      %v242 = vsel %vm201, %v187, 0
      %v245 = vsel %vm201, %v188, 0
      %v248 = vsel %vm201, %v189, 0
      %250 = vmatprep.subr.mxu0 0.0
      %251 = vmatpush1.msra.mxu0 %v190
      %252 = vmatprep.subr.mxu0 0.0
      %253 = vmatpush1.msra.mxu0 %v191
      %254 = vmatprep.subr.mxu0 0.0
      %255 = vmatpush1.msra.mxu0 %v192
      %256 = vmatprep.subr.mxu0 0.0
      %257 = vmatpush1.msra.mxu0 %v193
      %258 = vmatprep.subr.mxu0 0.0
      %259 = vmatpush1.msra.mxu0 0.0
      %260 = vmatprep.subr.mxu0 0.0
      %261 = vmatpush1.msra.mxu0 0.0
      %262 = vmatprep.subr.mxu0 0.0
      %263 = vmatpush1.msra.mxu0 0.0
      %264 = vmatprep.subr.mxu0 0.0
      %265 = vmatpush1.msra.mxu0 0.0
      %266 = vmatprep.subr.mxu0 0.0
      %267 = vmatpush1.msra.mxu0 0.0
      %268 = vmatprep.subr.mxu0 0.0
      %269 = vmatpush1.msra.mxu0 0.0
      %270 = vmatprep.subr.mxu0 0.0
      %271 = vmatpush1.msra.mxu0 0.0
      %272 = vmatprep.subr.mxu0 0.0
      %273 = vmatpush1.msra.mxu0 0.0
      %274 = vmatprep.subr.mxu0 0.0
      %275 = vmatpush1.msra.mxu0 0.0
      %276 = vmatprep.subr.mxu0 0.0
      %277 = vmatpush1.msra.mxu0 0.0
      %278 = vmatprep.subr.mxu0 0.0
      %279 = vmatpush1.msra.mxu0 0.0
      %280 = vmatprep.subr.mxu0 0.0
      %281 = vmatpush1.msra.mxu0 0.0
      %282 = vmatprep.subr.mxu0 0.0
      %283 = vmatpush1.msra.mxu0 0.0
      %284 = vmatprep.subr.mxu0 0.0
      %285 = vmatpush1.msra.mxu0 0.0
      %286 = vmatprep.subr.mxu0 0.0
      %287 = vmatpush1.msra.mxu0 0.0
      %288 = vmatprep.subr.mxu0 0.0
      %289 = vmatpush1.msra.mxu0 0.0
      %290 = vmatprep.subr.mxu0 0.0
      %291 = vmatpush1.msra.mxu0 0.0
      %292 = vmatprep.subr.mxu0 0.0
      %293 = vmatpush1.msra.mxu0 0.0
      %294 = vmatprep.subr.mxu0 0.0
      %295 = vmatpush1.msra.mxu0 0.0
      %296 = vmatprep.subr.mxu0 0.0
      %297 = vmatpush1.msra.mxu0 0.0
      %298 = vmatprep.subr.mxu0 0.0
      %299 = vmatpush1.msra.mxu0 0.0
      %300 = vmatprep.subr.mxu0 0.0
      %301 = vmatpush1.msra.mxu0 0.0
      %302 = vmatprep.subr.mxu0 0.0
      %303 = vmatpush1.msra.mxu0 0.0
      %304 = vmatprep.subr.mxu0 0.0
      %305 = vmatpush1.msra.mxu0 0.0
      %306 = vmatprep.subr.mxu0 0.0
      %307 = vmatpush1.msra.mxu0 0.0
      %308 = vmatprep.subr.mxu0 0.0
      %309 = vmatpush1.msra.mxu0 0.0
      %310 = vmatprep.subr.mxu0 0.0
      %311 = vmatpush1.msra.mxu0 0.0
      %312 = vmatprep.subr.mxu0 0.0
      %313 = vmatpush1.msra.mxu0 0.0
      %314 = vmatprep.mubr.f32.mxu0 0.0
      %315 = vmatmul.mubr.f32.gmra.mrb[0].mxu0 %v203
      %v316 = vpop.f32.mrb[0].mxu0
      %v317 = vadd.f32 %v199, %v316
      %v318 = vpop.f32.mrb[0].mxu0
      %319 = vmatprep.mubr.f32.mxu0 0.0
      %320 = vmatmul.mubr.f32.gmra.mrb[0].mxu0 %v206
      %v321 = vpop.f32.mrb[0].mxu0
      %v322 = vadd.f32 %v199, %v321
      %v323 = vpop.f32.mrb[0].mxu0
      %324 = vmatprep.mubr.f32.mxu0 0.0
      %325 = vmatmul.mubr.f32.gmra.mrb[0].mxu0 %v209
      %v326 = vpop.f32.mrb[0].mxu0
      %v327 = vadd.f32 %v199, %v326
      %v328 = vpop.f32.mrb[0].mxu0
      %329 = vmatprep.mubr.f32.mxu0 0.0
      %330 = vmatmul.mubr.f32.gmra.mrb[0].mxu0 %v212
      %v331 = vpop.f32.mrb[0].mxu0
      %v332 = vadd.f32 %v199, %v331
      %v333 = vpop.f32.mrb[0].mxu0
      %334 = vmatprep.mubr.f32.mxu0 0.0
      %335 = vmatmul.mubr.f32.gmra.mrb[0].mxu0 %v215
      %v336 = vpop.f32.mrb[0].mxu0
      %v337 = vadd.f32 %v199, %v336
      %v338 = vpop.f32.mrb[0].mxu0
      %339 = vmatprep.mubr.f32.mxu0 0.0
      %340 = vmatmul.mubr.f32.gmra.mrb[0].mxu0 %v218
      %v341 = vpop.f32.mrb[0].mxu0
      %v342 = vadd.f32 %v199, %v341
      %v343 = vpop.f32.mrb[0].mxu0
      %344 = vmatprep.mubr.f32.mxu0 0.0
      %345 = vmatmul.mubr.f32.gmra.mrb[0].mxu0 %v221
      %v346 = vpop.f32.mrb[0].mxu0
      %v347 = vadd.f32 %v199, %v346
      %v348 = vpop.f32.mrb[0].mxu0
      %349 = vmatprep.mubr.f32.mxu0 0.0
      %350 = vmatmul.mubr.f32.gmra.mrb[0].mxu0 %v224
      %v351 = vpop.f32.mrb[0].mxu0
      %v352 = vadd.f32 %v199, %v351
      %v353 = vpop.f32.mrb[0].mxu0
      %354 = vmatprep.mubr.f32.mxu0 0.0
      %355 = vmatmul.mubr.f32.gmra.mrb[0].mxu0 %v227
      %v356 = vpop.f32.mrb[0].mxu0
      %v357 = vadd.f32 %v199, %v356
      %v358 = vpop.f32.mrb[0].mxu0
      %359 = vmatprep.mubr.f32.mxu0 0.0
      %360 = vmatmul.mubr.f32.gmra.mrb[0].mxu0 %v230
      %v361 = vpop.f32.mrb[0].mxu0
      %v362 = vadd.f32 %v199, %v361
      %v363 = vpop.f32.mrb[0].mxu0
      %364 = vmatprep.mubr.f32.mxu0 0.0
      %365 = vmatmul.mubr.f32.gmra.mrb[0].mxu0 %v233
      %v366 = vpop.f32.mrb[0].mxu0
      %v367 = vadd.f32 %v199, %v366
      %v368 = vpop.f32.mrb[0].mxu0
      %369 = vmatprep.mubr.f32.mxu0 0.0
      %370 = vmatmul.mubr.f32.gmra.mrb[0].mxu0 %v236
      %v371 = vpop.f32.mrb[0].mxu0
      %v372 = vadd.f32 %v199, %v371
      %v373 = vpop.f32.mrb[0].mxu0
      %374 = vmatprep.mubr.f32.mxu0 0.0
      %375 = vmatmul.mubr.f32.gmra.mrb[0].mxu0 %v239
      %v376 = vpop.f32.mrb[0].mxu0
      %v377 = vadd.f32 %v199, %v376
      %v378 = vpop.f32.mrb[0].mxu0
      %379 = vmatprep.mubr.f32.mxu0 0.0
      %380 = vmatmul.mubr.f32.gmra.mrb[0].mxu0 %v242
      %v381 = vpop.f32.mrb[0].mxu0
      %v382 = vadd.f32 %v199, %v381
      %v383 = vpop.f32.mrb[0].mxu0
      %384 = vmatprep.mubr.f32.mxu0 0.0
      %385 = vmatmul.mubr.f32.gmra.mrb[0].mxu0 %v245
      %v386 = vpop.f32.mrb[0].mxu0
      %v387 = vadd.f32 %v199, %v386
      %v388 = vpop.f32.mrb[0].mxu0
      %389 = vmatprep.mubr.f32.mxu0 0.0
      %390 = vmatmul.mubr.f32.gmra.mrb[0].mxu0 %v248
      %v391 = vpop.f32.mrb[0].mxu0
      %v392 = vadd.f32 %v199, %v391
      %v393 = vpop.f32.mrb[0].mxu0
      %394 = vdwg.mxu0
      %v395 = vmax.f32 %v317, 0.0
      %v396 = vmax.f32 %v322, 0.0
      %v397 = vmax.f32 %v327, 0.0
      %v398 = vmax.f32 %v332, 0.0
      %v399 = vmax.f32 %v337, 0.0
      %v400 = vmax.f32 %v342, 0.0
      %v401 = vmax.f32 %v347, 0.0
      %v402 = vmax.f32 %v352, 0.0
      %v403 = vmax.f32 %v357, 0.0
      %v404 = vmax.f32 %v362, 0.0
      %v405 = vmax.f32 %v367, 0.0
      %v406 = vmax.f32 %v372, 0.0
      %v407 = vmax.f32 %v377, 0.0
      %v408 = vmax.f32 %v382, 0.0
      %v409 = vmax.f32 %v387, 0.0
      %v410 = vmax.f32 %v392, 0.0
      %411 = vst.msk [vmem:[%s172] sm:$0xff] %vm201, %v395
      %412 = vst.msk [vmem:[%s172 + $0x8] sm:$0xff] %vm201, %v396
      %413 = vst.msk [vmem:[%s172 + $0x10] sm:$0xff] %vm201, %v397
      %414 = vst.msk [vmem:[%s172 + $0x18] sm:$0xff] %vm201, %v398
      %415 = vst.msk [vmem:[%s172 + $0x20] sm:$0xff] %vm201, %v399
      %416 = vst.msk [vmem:[%s172 + $0x28] sm:$0xff] %vm201, %v400
      %417 = vst.msk [vmem:[%s172 + $0x30] sm:$0xff] %vm201, %v401
      %418 = vst.msk [vmem:[%s172 + $0x38] sm:$0xff] %vm201, %v402
      %419 = vst.msk [vmem:[%s172 + $0x40] sm:$0xff] %vm201, %v403
      %420 = vst.msk [vmem:[%s172 + $0x48] sm:$0xff] %vm201, %v404
      %421 = vst.msk [vmem:[%s172 + $0x50] sm:$0xff] %vm201, %v405
      %422 = vst.msk [vmem:[%s172 + $0x58] sm:$0xff] %vm201, %v406
      %423 = vst.msk [vmem:[%s172 + $0x60] sm:$0xff] %vm201, %v407
      %424 = vst.msk [vmem:[%s172 + $0x68] sm:$0xff] %vm201, %v408
      %425 = vst.msk [vmem:[%s172 + $0x70] sm:$0xff] %vm201, %v409
      %426 = vst.msk [vmem:[%s172 + $0x78] sm:$0xff] %vm201, %v410
      %s427 = smul.u32 16, %s14
      %p428 = scmp.lt.s32.totalorder %s427, 31
      %s429 = scalar_select %p428, %s427, 31
      %s430 = smul.addr %s429, 8
      %s431 = scalar_lea.vmem %s3, %s430
      // Predicated region
      $region33: #{_lambda_.20} parent=31 // pred_check
        %p432 = pneg %p100
      $region34: #{_lambda_.20} parent=31 // pred_check_branch
        %434 = sbr.rel (%p432) target = $region36
      $region35: #{_lambda_.20} parent=31 // pred_region
        %s435 = smul.u32 16, %s14
      $region36: #{_lambda_.20} parent=31 // pred_fallthru
        _
    $region32: #{_lambda_.20} parent=5 // pred_fallthru
      _
    %p436 = scmp.le.s32.totalorder 2, %s9
    // Predicated region
    $region37: #{_lambda_.20} parent=5 // pred_check
      %p437 = pneg %p436
    $region38: #{_lambda_.20} parent=5 // pred_check_branch
      %439 = sbr.rel (%p437) target = $region40
    $region39: #{_lambda_.20} parent=5 // pred_region
      %s440 = ssub.s32 %s9, 2
      // Predicated region
      $region41: #{_lambda_.20} parent=39 // pred_check
        %p441 = pneg %p106
      $region42: #{_lambda_.20} parent=39 // pred_check_branch
        %443 = sbr.rel (%p441) target = $region44
      $region43: #{_lambda_.20} parent=39 // pred_region
        %s444 = smul.u32 16, %s15
        %p445 = scmp.lt.s32.totalorder %s444, 31
        %s446 = scalar_select %p445, %s444, 31
        %s447 = smul.addr %s446, 8
        %s448 = scalar_lea.vmem %s3, %s447
      $region44: #{_lambda_.20} parent=39 // pred_fallthru
        _
    $region40: #{_lambda_.20} parent=5 // pred_fallthru
      _
  $region6: #{_lambda_.20} parent=0 // loop_footer
    %s13 = sadd.s32 1, %s9
  $region7: #{_lambda_.20} parent=0 // loop_footer_branch
    %8 = sbr.rel target = $region3
  $region8: #{_lambda_.20} parent=0 // loop_exit
    _

// kernel: _lambda_.19
$region0: #{_lambda_.19}
  #allocation0 [shape = 'u32[]', space=smem, size = 0x4, offset = 0x4, fixed_abs, tag = 'smem constant byte address 0x4 - core index']
  #allocation1 [shape = 'u32[144,128]{1,0:T(1,128)}', space=vmem, size = 0x12000, scoped, tag = 'internal scratch']
  %s0 = inlined_call_operand.vmem [shape: f32[256,216], index: 0, kind: input, shape index: {}]
  %s1 = inlined_call_operand.vmem [shape: f32[216,8], index: 1, kind: input, shape index: {}]
  %s2 = inlined_call_operand.vmem [shape: f32[1,8], index: 2, kind: input, shape index: {}]
  %s3 = inlined_call_operand.vmem [shape: f32[256,8], index: 3, kind: output, shape index: {}]
  %s4 = sld [smem:[#allocation0]]
  $region45: #{_lambda_.19} parent=0
    _
  %s6 = ssub.s32 1, %s4
  %s7 = scalar_select 0, %s6, %s4
  loop: start=0, step=1, limit=4
  $region2: #{_lambda_.19} parent=0 // loop_pre_header
    _
  $region3: #{_lambda_.19} parent=0 // loop_header
    %s9 = sphi 0, %s13
    %p10 = scmp.ge.s32.totalorder %s9, 4
    %s19 = sphi 0, %s21
    %s22 = sphi 0, %s19
    %s23 = sphi 0, %s22
    %s39 = sphi 0, %s23
    %s43 = sphi 0, %s43
    %s45 = sphi 0, %s43
    %s46 = sphi 0, %s45
    %s60 = sphi 0, %s46
    %s64 = sphi 0, %s64
    %s66 = sphi 0, %s64
    %s67 = sphi 0, %s66
    %s81 = sphi 0, %s67
    %s87 = sphi 0, %s89
    %s90 = sphi 0, %s87
    %s91 = sphi 0, %s90
    %s107 = sphi 0, %s91
  $region4: #{_lambda_.19} parent=0 // loop_header_branch
    %12 = sbr.rel (%p10) target = $region8
  $region5: #{_lambda_.19} parent=0 // loop_body
    %s14 = ssub.s32 %s9, 1
    %s15 = ssub.s32 %s9, 2
    %s16 = sadd.s32 %s9, 1
    %s17 = ssub.s32 %s9, %s16
    %p18 = scmp.eq.s32.totalorder %s17, 0
    %s20 = sadd.s32 %s19, 1
    %s21 = scalar_select %p18, %s19, %s20
    %p24 = pneg %p18
    %p25 = scmp.eq.s32.totalorder %s9, 1
    %p26 = por %p24, %p25
    %p27 = scmp.ne.s32.totalorder %s19, %s22
    %p28 = scmp.eq.s32.totalorder %s9, 0
    %p29 = por %p27, %p28
    %p30 = scmp.ne.s32.totalorder %s19, %s22
    %p31 = scmp.eq.s32.totalorder %s14, 1
    %p32 = por %p30, %p31
    %p33 = scmp.ne.s32.totalorder %s22, %s23
    %p34 = scmp.eq.s32.totalorder %s14, 0
    %p35 = por %p33, %p34
    %p36 = scmp.ne.s32.totalorder %s22, %s23
    %p37 = scmp.eq.s32.totalorder %s15, 1
    %p38 = por %p36, %p37
    %p40 = scmp.ne.s32.totalorder %s23, %s39
    %p41 = scmp.eq.s32.totalorder %s15, 0
    %p42 = por %p40, %p41
    %s44 = sadd.s32 %s43, 1
    %p47 = scmp.eq.s32.totalorder %s9, 1
    %p48 = scmp.ne.s32.totalorder %s43, %s45
    %p49 = scmp.eq.s32.totalorder %s9, 0
    %p50 = por %p48, %p49
    %p51 = scmp.ne.s32.totalorder %s43, %s45
    %p52 = scmp.eq.s32.totalorder %s14, 1
    %p53 = por %p51, %p52
    %p54 = scmp.ne.s32.totalorder %s45, %s46
    %p55 = scmp.eq.s32.totalorder %s14, 0
    %p56 = por %p54, %p55
    %p57 = scmp.ne.s32.totalorder %s45, %s46
    %p58 = scmp.eq.s32.totalorder %s15, 1
    %p59 = por %p57, %p58
    %p61 = scmp.ne.s32.totalorder %s46, %s60
    %p62 = scmp.eq.s32.totalorder %s15, 0
    %p63 = por %p61, %p62
    %s65 = sadd.s32 %s64, 1
    %p68 = scmp.eq.s32.totalorder %s9, 1
    %p69 = scmp.ne.s32.totalorder %s64, %s66
    %p70 = scmp.eq.s32.totalorder %s9, 0
    %p71 = por %p69, %p70
    %p72 = scmp.ne.s32.totalorder %s64, %s66
    %p73 = scmp.eq.s32.totalorder %s14, 1
    %p74 = por %p72, %p73
    %p75 = scmp.ne.s32.totalorder %s66, %s67
    %p76 = scmp.eq.s32.totalorder %s14, 0
    %p77 = por %p75, %p76
    %p78 = scmp.ne.s32.totalorder %s66, %s67
    %p79 = scmp.eq.s32.totalorder %s15, 1
    %p80 = por %p78, %p79
    %p82 = scmp.ne.s32.totalorder %s67, %s81
    %p83 = scmp.eq.s32.totalorder %s15, 0
    %p84 = por %p82, %p83
    %s85 = ssub.s32 %s9, %s16
    %p86 = scmp.eq.s32.totalorder %s85, 0
    %s88 = sadd.s32 %s87, 1
    %s89 = scalar_select %p86, %s87, %s88
    %p92 = pneg %p86
    %p93 = scmp.eq.s32.totalorder %s9, 1
    %p94 = por %p92, %p93
    %p95 = scmp.ne.s32.totalorder %s87, %s90
    %p96 = scmp.eq.s32.totalorder %s9, 0
    %p97 = por %p95, %p96
    %p98 = scmp.ne.s32.totalorder %s87, %s90
    %p99 = scmp.eq.s32.totalorder %s14, 1
    %p100 = por %p98, %p99
    %p101 = scmp.ne.s32.totalorder %s90, %s91
    %p102 = scmp.eq.s32.totalorder %s14, 0
    %p103 = por %p101, %p102
    %p104 = scmp.ne.s32.totalorder %s90, %s91
    %p105 = scmp.eq.s32.totalorder %s15, 1
    %p106 = por %p104, %p105
    %p108 = scmp.ne.s32.totalorder %s91, %s107
    %p109 = scmp.eq.s32.totalorder %s15, 0
    %p110 = por %p108, %p109
    %p111 = scmp.le.s32.totalorder 1, %s9
    %p112 = scmp.lt.s32.totalorder %s9, 3
    %p113 = pnand %p111, %p112
    %p114 = pneg %p113
    // Predicated region
    $region9: #{_lambda_.19} parent=5 // pred_check
      _
    $region10: #{_lambda_.19} parent=5 // pred_check_branch
      %116 = sbr.rel (%p113) target = $region12
    $region11: #{_lambda_.19} parent=5 // pred_region
      %s117 = ssub.s32 %s9, 1
      // Predicated region
      $region13: #{_lambda_.19} parent=11 // pred_check
        %p118 = pneg %p56
      $region14: #{_lambda_.19} parent=11 // pred_check_branch
        %120 = sbr.rel (%p118) target = $region16
      $region15: #{_lambda_.19} parent=11 // pred_region
        _
      $region16: #{_lambda_.19} parent=11 // pred_fallthru
        _
      // Predicated region
      $region17: #{_lambda_.19} parent=11 // pred_check
        %p121 = pneg %p77
      $region18: #{_lambda_.19} parent=11 // pred_check_branch
        %123 = sbr.rel (%p121) target = $region20
      $region19: #{_lambda_.19} parent=11 // pred_region
        _
      $region20: #{_lambda_.19} parent=11 // pred_fallthru
        _
    $region12: #{_lambda_.19} parent=5 // pred_fallthru
      _
    %p124 = scmp.lt.s32.totalorder %s9, 2
    // Predicated region
    $region21: #{_lambda_.19} parent=5 // pred_check
      %p125 = pneg %p124
    $region22: #{_lambda_.19} parent=5 // pred_check_branch
      %127 = sbr.rel (%p125) target = $region24
    $region23: #{_lambda_.19} parent=5 // pred_region
      // Predicated region
      $region25: #{_lambda_.19} parent=23 // pred_check
        %p128 = pneg %p29
      $region26: #{_lambda_.19} parent=23 // pred_check_branch
        %130 = sbr.rel (%p128) target = $region28
      $region27: #{_lambda_.19} parent=23 // pred_region
        %s131 = smul.u32 16, %s9
        %p132 = scmp.lt.s32.totalorder %s131, 31
        %s133 = scalar_select %p132, %s131, 31
        %s134 = smul.addr %s133, 2
        %s135 = smul.addr %s134, 8
        %s136 = scalar_lea.vmem %s0, %s135
        %s137 = smul.u32 16, %s9
      $region28: #{_lambda_.19} parent=23 // pred_fallthru
        _
    $region24: #{_lambda_.19} parent=5 // pred_fallthru
      _
    %p138 = scmp.le.s32.totalorder 1, %s9
    %p139 = scmp.lt.s32.totalorder %s9, 3
    %p140 = pnand %p138, %p139
    %p141 = pneg %p140
    // Predicated region
    $region29: #{_lambda_.19} parent=5 // pred_check
      _
    $region30: #{_lambda_.19} parent=5 // pred_check_branch
      %143 = sbr.rel (%p140) target = $region32
    $region31: #{_lambda_.19} parent=5 // pred_region
      %s144 = ssub.s32 %s9, 1
      %s145 = smul.u32 16, %s14
      %p146 = scmp.lt.s32.totalorder %s145, 31
      %s147 = scalar_select %p146, %s145, 31
      %s148 = smul.addr %s147, 2
      %s149 = smul.addr %s148, 8
      %s150 = scalar_lea.vmem %s0, %s149
      %p151 = pneg %p35
      %p152 = pneg %p32
      %p153 = pneg %p56
      %p154 = pneg %p53
      %p155 = pneg %p77
      %p156 = pneg %p74
      %p157 = pneg %p103
      %p158 = pneg %p100
      %s159 = smul.u32 16, %s14
      %p160 = scmp.lt.s32.totalorder %s159, 31
      %s161 = scalar_select %p160, %s159, 31
      %s162 = smul.addr %s161, 8
      %s163 = scalar_lea.vmem %s3, %s162
      %s164 = smul.u32 16, %s14
      %p165 = scmp.lt.s32.totalorder %s164, 31
      %s166 = scalar_select %p165, %s164, 31
      %s167 = smul.addr %s166, 2
      %s168 = smul.addr %s167, 8
      %s169 = scalar_lea.vmem %s0, %s168
      %s170 = smul.u32 16, %s14
      %s171 = smul.u32 16, %s14
      %p172 = scmp.lt.s32.totalorder %s171, 31
      %s173 = scalar_select %p172, %s171, 31
      %s174 = smul.addr %s173, 8
      %s175 = scalar_lea.vmem %s3, %s174
      %s176 = smul.u32 16, %s14
      %v177 = vld [vmem:[%s169] sm:$0xff]
      %v178 = vld [vmem:[%s169 + $0x8] sm:$0xff]
      %v179 = vld [vmem:[%s169 + $0x10] sm:$0xff]
      %v180 = vld [vmem:[%s169 + $0x18] sm:$0xff]
      %v181 = vld [vmem:[%s169 + $0x20] sm:$0xff]
      %v182 = vld [vmem:[%s169 + $0x28] sm:$0xff]
      %v183 = vld [vmem:[%s169 + $0x30] sm:$0xff]
      %v184 = vld [vmem:[%s169 + $0x38] sm:$0xff]
      %v185 = vld [vmem:[%s169 + $0x40] sm:$0xff]
      %v186 = vld [vmem:[%s169 + $0x48] sm:$0xff]
      %v187 = vld [vmem:[%s169 + $0x50] sm:$0xff]
      %v188 = vld [vmem:[%s169 + $0x58] sm:$0xff]
      %v189 = vld [vmem:[%s169 + $0x60] sm:$0xff]
      %v190 = vld [vmem:[%s169 + $0x68] sm:$0xff]
      %v191 = vld [vmem:[%s169 + $0x70] sm:$0xff]
      %v192 = vld [vmem:[%s169 + $0x78] sm:$0xff]
      %v193 = vld [vmem:[%s169 + $0x80] sm:$0xff]
      %v194 = vld [vmem:[%s169 + $0x88] sm:$0xff]
      %v195 = vld [vmem:[%s169 + $0x90] sm:$0xff]
      %v196 = vld [vmem:[%s169 + $0x98] sm:$0xff]
      %v197 = vld [vmem:[%s169 + $0xa0] sm:$0xff]
      %v198 = vld [vmem:[%s169 + $0xa8] sm:$0xff]
      %v199 = vld [vmem:[%s169 + $0xb0] sm:$0xff]
      %v200 = vld [vmem:[%s169 + $0xb8] sm:$0xff]
      %v201 = vld [vmem:[%s169 + $0xc0] sm:$0xff]
      %v202 = vld [vmem:[%s169 + $0xc8] sm:$0xff]
      %v203 = vld [vmem:[%s169 + $0xd0] sm:$0xff]
      %v204 = vld [vmem:[%s169 + $0xd8] sm:$0xff]
      %v205 = vld [vmem:[%s169 + $0xe0] sm:$0xff]
      %v206 = vld [vmem:[%s169 + $0xe8] sm:$0xff]
      %v207 = vld [vmem:[%s169 + $0xf0] sm:$0xff]
      %v208 = vld [vmem:[%s169 + $0xf8] sm:$0xff]
      %v209 = vld [vmem:[%s1] sm:$0xff]
      %v210 = vld [vmem:[%s1 + $0x8] sm:$0xff]
      %v211 = vld [vmem:[%s1 + $0x10] sm:$0xff]
      %v212 = vld [vmem:[%s1 + $0x18] sm:$0xff]
      %v213 = vld [vmem:[%s1 + $0x20] sm:$0xff]
      %v214 = vld [vmem:[%s1 + $0x28] sm:$0xff]
      %v215 = vld [vmem:[%s1 + $0x30] sm:$0xff]
      %v216 = vld [vmem:[%s1 + $0x38] sm:$0xff]
      %v217 = vld [vmem:[%s1 + $0x40] sm:$0xff]
      %v218 = vld [vmem:[%s1 + $0x48] sm:$0xff]
      %v219 = vld [vmem:[%s1 + $0x50] sm:$0xff]
      %v220 = vld [vmem:[%s1 + $0x58] sm:$0xff]
      %v221 = vld [vmem:[%s1 + $0x60] sm:$0xff]
      %v222 = vld [vmem:[%s1 + $0x68] sm:$0xff]
      %v223 = vld [vmem:[%s1 + $0x70] sm:$0xff]
      %v224 = vld [vmem:[%s1 + $0x78] sm:$0xff]
      %v225 = vld [vmem:[%s1 + $0x80] sm:$0xff]
      %v226 = vld [vmem:[%s1 + $0x88] sm:$0xff]
      %v227 = vld [vmem:[%s1 + $0x90] sm:$0xff]
      %v228 = vld [vmem:[%s1 + $0x98] sm:$0xff]
      %v229 = vld [vmem:[%s1 + $0xa0] sm:$0xff]
      %v230 = vld [vmem:[%s1 + $0xa8] sm:$0xff]
      %v231 = vld [vmem:[%s1 + $0xb0] sm:$0xff]
      %v232 = vld [vmem:[%s1 + $0xb8] sm:$0xff]
      %v233 = vld [vmem:[%s1 + $0xc0] sm:$0xff]
      %v234 = vld [vmem:[%s1 + $0xc8] sm:$0xff]
      %v235 = vld [vmem:[%s1 + $0xd0] sm:$0xff]
      %v236 = vld [vmem:[%s2] sm:$0x1]
      %v238 = vlaneseq
      %v239 = vshrl.u32 %v238, 7
      %v240 = vsub.s32 0, %v239
      %v241 = vrot.slane %v236, %v240
      %vm243 = vcmask 719872
      %v245 = vsel %vm243, %v178, 0
      %v248 = vsel %vm243, %v180, 0
      %v251 = vsel %vm243, %v182, 0
      %v254 = vsel %vm243, %v184, 0
      %v257 = vsel %vm243, %v186, 0
      %v260 = vsel %vm243, %v188, 0
      %v263 = vsel %vm243, %v190, 0
      %v266 = vsel %vm243, %v192, 0
      %v269 = vsel %vm243, %v194, 0
      %v272 = vsel %vm243, %v196, 0
      %v275 = vsel %vm243, %v198, 0
      %v278 = vsel %vm243, %v200, 0
      %v281 = vsel %vm243, %v202, 0
      %v284 = vsel %vm243, %v204, 0
      %v287 = vsel %vm243, %v206, 0
      %v290 = vsel %vm243, %v208, 0
      %292 = vmatprep.subr.mxu0 0.0
      %293 = vmatpush1.msra.mxu0 %v209
      %294 = vmatprep.subr.mxu0 0.0
      %295 = vmatpush1.msra.mxu0 %v210
      %296 = vmatprep.subr.mxu0 0.0
      %297 = vmatpush1.msra.mxu0 %v211
      %298 = vmatprep.subr.mxu0 0.0
      %299 = vmatpush1.msra.mxu0 %v212
      %300 = vmatprep.subr.mxu0 0.0
      %301 = vmatpush1.msra.mxu0 %v213
      %302 = vmatprep.subr.mxu0 0.0
      %303 = vmatpush1.msra.mxu0 %v214
      %304 = vmatprep.subr.mxu0 0.0
      %305 = vmatpush1.msra.mxu0 %v215
      %306 = vmatprep.subr.mxu0 0.0
      %307 = vmatpush1.msra.mxu0 %v216
      %308 = vmatprep.subr.mxu0 0.0
      %309 = vmatpush1.msra.mxu0 %v217
      %310 = vmatprep.subr.mxu0 0.0
      %311 = vmatpush1.msra.mxu0 %v218
      %312 = vmatprep.subr.mxu0 0.0
      %313 = vmatpush1.msra.mxu0 %v219
      %314 = vmatprep.subr.mxu0 0.0
      %315 = vmatpush1.msra.mxu0 %v220
      %316 = vmatprep.subr.mxu0 0.0
      %317 = vmatpush1.msra.mxu0 %v221
      %318 = vmatprep.subr.mxu0 0.0
      %319 = vmatpush1.msra.mxu0 %v222
      %320 = vmatprep.subr.mxu0 0.0
      %321 = vmatpush1.msra.mxu0 %v223
      %322 = vmatprep.subr.mxu0 0.0
      %323 = vmatpush1.msra.mxu0 %v224
      %324 = vmatprep.subr.mxu0 0.0
      %325 = vmatpush1.msra.mxu0 %v225
      %326 = vmatprep.subr.mxu0 0.0
      %327 = vmatpush1.msra.mxu0 %v226
      %328 = vmatprep.subr.mxu0 0.0
      %329 = vmatpush1.msra.mxu0 %v227
      %330 = vmatprep.subr.mxu0 0.0
      %331 = vmatpush1.msra.mxu0 %v228
      %332 = vmatprep.subr.mxu0 0.0
      %333 = vmatpush1.msra.mxu0 %v229
      %334 = vmatprep.subr.mxu0 0.0
      %335 = vmatpush1.msra.mxu0 %v230
      %336 = vmatprep.subr.mxu0 0.0
      %337 = vmatpush1.msra.mxu0 %v231
      %338 = vmatprep.subr.mxu0 0.0
      %339 = vmatpush1.msra.mxu0 %v232
      %340 = vmatprep.subr.mxu0 0.0
      %341 = vmatpush1.msra.mxu0 %v233
      %342 = vmatprep.subr.mxu0 0.0
      %343 = vmatpush1.msra.mxu0 %v234
      %344 = vmatprep.subr.mxu0 0.0
      %345 = vmatpush1.msra.mxu0 %v235
      %346 = vmatprep.subr.mxu0 0.0
      %347 = vmatpush1.msra.mxu0 0.0
      %348 = vmatprep.subr.mxu0 0.0
      %349 = vmatpush1.msra.mxu0 0.0
      %350 = vmatprep.subr.mxu0 0.0
      %351 = vmatpush1.msra.mxu0 0.0
      %352 = vmatprep.subr.mxu0 0.0
      %353 = vmatpush1.msra.mxu0 0.0
      %354 = vmatprep.subr.mxu0 0.0
      %355 = vmatpush1.msra.mxu0 0.0
      %356 = vmatprep.mubr.f32.mxu0 %v245
      %357 = vmatmul.mubr.f32.gmra.mrb[0].mxu0 %v177
      %v358 = vpop.f32.mrb[0].mxu0
      %v359 = vadd.f32 %v241, %v358
      %v360 = vpop.f32.mrb[0].mxu0
      %361 = vmatprep.mubr.f32.mxu0 %v248
      %362 = vmatmul.mubr.f32.gmra.mrb[0].mxu0 %v179
      %v363 = vpop.f32.mrb[0].mxu0
      %v364 = vadd.f32 %v241, %v363
      %v365 = vpop.f32.mrb[0].mxu0
      %366 = vmatprep.mubr.f32.mxu0 %v251
      %367 = vmatmul.mubr.f32.gmra.mrb[0].mxu0 %v181
      %v368 = vpop.f32.mrb[0].mxu0
      %v369 = vadd.f32 %v241, %v368
      %v370 = vpop.f32.mrb[0].mxu0
      %371 = vmatprep.mubr.f32.mxu0 %v254
      %372 = vmatmul.mubr.f32.gmra.mrb[0].mxu0 %v183
      %v373 = vpop.f32.mrb[0].mxu0
      %v374 = vadd.f32 %v241, %v373
      %v375 = vpop.f32.mrb[0].mxu0
      %376 = vmatprep.mubr.f32.mxu0 %v257
      %377 = vmatmul.mubr.f32.gmra.mrb[0].mxu0 %v185
      %v378 = vpop.f32.mrb[0].mxu0
      %v379 = vadd.f32 %v241, %v378
      %v380 = vpop.f32.mrb[0].mxu0
      %381 = vmatprep.mubr.f32.mxu0 %v260
      %382 = vmatmul.mubr.f32.gmra.mrb[0].mxu0 %v187
      %v383 = vpop.f32.mrb[0].mxu0
      %v384 = vadd.f32 %v241, %v383
      %v385 = vpop.f32.mrb[0].mxu0
      %386 = vmatprep.mubr.f32.mxu0 %v263
      %387 = vmatmul.mubr.f32.gmra.mrb[0].mxu0 %v189
      %v388 = vpop.f32.mrb[0].mxu0
      %v389 = vadd.f32 %v241, %v388
      %v390 = vpop.f32.mrb[0].mxu0
      %391 = vmatprep.mubr.f32.mxu0 %v266
      %392 = vmatmul.mubr.f32.gmra.mrb[0].mxu0 %v191
      %v393 = vpop.f32.mrb[0].mxu0
      %v394 = vadd.f32 %v241, %v393
      %v395 = vpop.f32.mrb[0].mxu0
      %396 = vmatprep.mubr.f32.mxu0 %v269
      %397 = vmatmul.mubr.f32.gmra.mrb[0].mxu0 %v193
      %v398 = vpop.f32.mrb[0].mxu0
      %v399 = vadd.f32 %v241, %v398
      %v400 = vpop.f32.mrb[0].mxu0
      %401 = vmatprep.mubr.f32.mxu0 %v272
      %402 = vmatmul.mubr.f32.gmra.mrb[0].mxu0 %v195
      %v403 = vpop.f32.mrb[0].mxu0
      %v404 = vadd.f32 %v241, %v403
      %v405 = vpop.f32.mrb[0].mxu0
      %406 = vmatprep.mubr.f32.mxu0 %v275
      %407 = vmatmul.mubr.f32.gmra.mrb[0].mxu0 %v197
      %v408 = vpop.f32.mrb[0].mxu0
      %v409 = vadd.f32 %v241, %v408
      %v410 = vpop.f32.mrb[0].mxu0
      %411 = vmatprep.mubr.f32.mxu0 %v278
      %412 = vmatmul.mubr.f32.gmra.mrb[0].mxu0 %v199
      %v413 = vpop.f32.mrb[0].mxu0
      %v414 = vadd.f32 %v241, %v413
      %v415 = vpop.f32.mrb[0].mxu0
      %416 = vmatprep.mubr.f32.mxu0 %v281
      %417 = vmatmul.mubr.f32.gmra.mrb[0].mxu0 %v201
      %v418 = vpop.f32.mrb[0].mxu0
      %v419 = vadd.f32 %v241, %v418
      %v420 = vpop.f32.mrb[0].mxu0
      %421 = vmatprep.mubr.f32.mxu0 %v284
      %422 = vmatmul.mubr.f32.gmra.mrb[0].mxu0 %v203
      %v423 = vpop.f32.mrb[0].mxu0
      %v424 = vadd.f32 %v241, %v423
      %v425 = vpop.f32.mrb[0].mxu0
      %426 = vmatprep.mubr.f32.mxu0 %v287
      %427 = vmatmul.mubr.f32.gmra.mrb[0].mxu0 %v205
      %v428 = vpop.f32.mrb[0].mxu0
      %v429 = vadd.f32 %v241, %v428
      %v430 = vpop.f32.mrb[0].mxu0
      %431 = vmatprep.mubr.f32.mxu0 %v290
      %432 = vmatmul.mubr.f32.gmra.mrb[0].mxu0 %v207
      %v433 = vpop.f32.mrb[0].mxu0
      %v434 = vadd.f32 %v241, %v433
      %v435 = vpop.f32.mrb[0].mxu0
      %436 = vdwg.mxu0
      %v437 = vmax.f32 %v359, 0.0
      %v438 = vmax.f32 %v364, 0.0
      %v439 = vmax.f32 %v369, 0.0
      %v440 = vmax.f32 %v374, 0.0
      %v441 = vmax.f32 %v379, 0.0
      %v442 = vmax.f32 %v384, 0.0
      %v443 = vmax.f32 %v389, 0.0
      %v444 = vmax.f32 %v394, 0.0
      %v445 = vmax.f32 %v399, 0.0
      %v446 = vmax.f32 %v404, 0.0
      %v447 = vmax.f32 %v409, 0.0
      %v448 = vmax.f32 %v414, 0.0
      %v449 = vmax.f32 %v419, 0.0
      %v450 = vmax.f32 %v424, 0.0
      %v451 = vmax.f32 %v429, 0.0
      %v452 = vmax.f32 %v434, 0.0
      %vm453 = vcmask 64512
      %454 = vst.msk [vmem:[%s175] sm:$0xff] %vm453, %v437
      %455 = vst.msk [vmem:[%s175 + $0x8] sm:$0xff] %vm453, %v438
      %456 = vst.msk [vmem:[%s175 + $0x10] sm:$0xff] %vm453, %v439
      %457 = vst.msk [vmem:[%s175 + $0x18] sm:$0xff] %vm453, %v440
      %458 = vst.msk [vmem:[%s175 + $0x20] sm:$0xff] %vm453, %v441
      %459 = vst.msk [vmem:[%s175 + $0x28] sm:$0xff] %vm453, %v442
      %460 = vst.msk [vmem:[%s175 + $0x30] sm:$0xff] %vm453, %v443
      %461 = vst.msk [vmem:[%s175 + $0x38] sm:$0xff] %vm453, %v444
      %462 = vst.msk [vmem:[%s175 + $0x40] sm:$0xff] %vm453, %v445
      %463 = vst.msk [vmem:[%s175 + $0x48] sm:$0xff] %vm453, %v446
      %464 = vst.msk [vmem:[%s175 + $0x50] sm:$0xff] %vm453, %v447
      %465 = vst.msk [vmem:[%s175 + $0x58] sm:$0xff] %vm453, %v448
      %466 = vst.msk [vmem:[%s175 + $0x60] sm:$0xff] %vm453, %v449
      %467 = vst.msk [vmem:[%s175 + $0x68] sm:$0xff] %vm453, %v450
      %468 = vst.msk [vmem:[%s175 + $0x70] sm:$0xff] %vm453, %v451
      %469 = vst.msk [vmem:[%s175 + $0x78] sm:$0xff] %vm453, %v452
      %s470 = smul.u32 16, %s14
      %p471 = scmp.lt.s32.totalorder %s470, 31
      %s472 = scalar_select %p471, %s470, 31
      %s473 = smul.addr %s472, 8
      %s474 = scalar_lea.vmem %s3, %s473
      // Predicated region
      $region33: #{_lambda_.19} parent=31 // pred_check
        %p475 = pneg %p100
      $region34: #{_lambda_.19} parent=31 // pred_check_branch
        %477 = sbr.rel (%p475) target = $region36
      $region35: #{_lambda_.19} parent=31 // pred_region
        %s478 = smul.u32 16, %s14
      $region36: #{_lambda_.19} parent=31 // pred_fallthru
        _
    $region32: #{_lambda_.19} parent=5 // pred_fallthru
      _
    %p479 = scmp.le.s32.totalorder 2, %s9
    // Predicated region
    $region37: #{_lambda_.19} parent=5 // pred_check
      %p480 = pneg %p479
    $region38: #{_lambda_.19} parent=5 // pred_check_branch
      %482 = sbr.rel (%p480) target = $region40
    $region39: #{_lambda_.19} parent=5 // pred_region
      %s483 = ssub.s32 %s9, 2
      // Predicated region
      $region41: #{_lambda_.19} parent=39 // pred_check
        %p484 = pneg %p106
      $region42: #{_lambda_.19} parent=39 // pred_check_branch
        %486 = sbr.rel (%p484) target = $region44
      $region43: #{_lambda_.19} parent=39 // pred_region
        %s487 = smul.u32 16, %s15
        %p488 = scmp.lt.s32.totalorder %s487, 31
        %s489 = scalar_select %p488, %s487, 31
        %s490 = smul.addr %s489, 8
        %s491 = scalar_lea.vmem %s3, %s490
      $region44: #{_lambda_.19} parent=39 // pred_fallthru
        _
    $region40: #{_lambda_.19} parent=5 // pred_fallthru
      _
  $region6: #{_lambda_.19} parent=0 // loop_footer
    %s13 = sadd.s32 1, %s9
  $region7: #{_lambda_.19} parent=0 // loop_footer_branch
    %8 = sbr.rel target = $region3
  $region8: #{_lambda_.19} parent=0 // loop_exit
    _

// kernel: _lambda_.21
$region0: #{_lambda_.21}
  #allocation0 [shape = 'u32[]', space=smem, size = 0x4, offset = 0x4, fixed_abs, tag = 'smem constant byte address 0x4 - core index']
  #allocation1 [shape = 'u32[144,128]{1,0:T(1,128)}', space=vmem, size = 0x12000, scoped, tag = 'internal scratch']
  %s0 = inlined_call_operand.vmem [shape: f32[64,288], index: 0, kind: input, shape index: {}]
  %s1 = inlined_call_operand.vmem [shape: f32[288,32], index: 1, kind: input, shape index: {}]
  %s2 = inlined_call_operand.vmem [shape: f32[1,32], index: 2, kind: input, shape index: {}]
  %s3 = inlined_call_operand.vmem [shape: f32[64,32], index: 3, kind: output, shape index: {}]
  %s4 = sld [smem:[#allocation0]]
  $region22: #{_lambda_.21} parent=0
    _
  %s6 = ssub.s32 1, %s4
  %s7 = scalar_select 0, %s6, %s4
  // Predicated region
  $region2: #{_lambda_.21} parent=0 // pred_check
    _
  $region3: #{_lambda_.21} parent=0 // pred_check_branch
    %9 = sbr.rel (0) target = $region5
  $region4: #{_lambda_.21} parent=0 // pred_region
    _
  $region5: #{_lambda_.21} parent=0 // pred_fallthru
    _
  // Predicated region
  $region6: #{_lambda_.21} parent=0 // pred_check
    _
  $region7: #{_lambda_.21} parent=0 // pred_check_branch
    %11 = sbr.rel (0) target = $region9
  $region8: #{_lambda_.21} parent=0 // pred_region
    _
  $region9: #{_lambda_.21} parent=0 // pred_fallthru
    _
  // Predicated region
  $region10: #{_lambda_.21} parent=0 // pred_check
    _
  $region11: #{_lambda_.21} parent=0 // pred_check_branch
    %13 = sbr.rel (0) target = $region13
  $region12: #{_lambda_.21} parent=0 // pred_region
    _
  $region13: #{_lambda_.21} parent=0 // pred_fallthru
    _
  %v14 = vld [vmem:[%s0] sm:$0xff]
  %v15 = vld [vmem:[%s0 + $0x8] sm:$0xff]
  %v16 = vld [vmem:[%s0 + $0x10] sm:$0xff]
  %v17 = vld [vmem:[%s0 + $0x18] sm:$0xff]
  %v18 = vld [vmem:[%s0 + $0x20] sm:$0xff]
  %v19 = vld [vmem:[%s0 + $0x28] sm:$0xff]
  %v20 = vld [vmem:[%s0 + $0x30] sm:$0xff]
  %v21 = vld [vmem:[%s0 + $0x38] sm:$0xff]
  %v22 = vld [vmem:[%s0 + $0x40] sm:$0xff]
  %v23 = vld [vmem:[%s0 + $0x48] sm:$0xff]
  %v24 = vld [vmem:[%s0 + $0x50] sm:$0xff]
  %v25 = vld [vmem:[%s0 + $0x58] sm:$0xff]
  %v26 = vld [vmem:[%s0 + $0x60] sm:$0xff]
  %v27 = vld [vmem:[%s0 + $0x68] sm:$0xff]
  %v28 = vld [vmem:[%s0 + $0x70] sm:$0xff]
  %v29 = vld [vmem:[%s0 + $0x78] sm:$0xff]
  %v30 = vld [vmem:[%s0 + $0x80] sm:$0xff]
  %v31 = vld [vmem:[%s0 + $0x88] sm:$0xff]
  %v32 = vld [vmem:[%s0 + $0x90] sm:$0xff]
  %v33 = vld [vmem:[%s0 + $0x98] sm:$0xff]
  %v34 = vld [vmem:[%s0 + $0xa0] sm:$0xff]
  %v35 = vld [vmem:[%s0 + $0xa8] sm:$0xff]
  %v36 = vld [vmem:[%s0 + $0xb0] sm:$0xff]
  %v37 = vld [vmem:[%s0 + $0xb8] sm:$0xff]
  %v38 = vld [vmem:[%s1] sm:$0xff]
  %v39 = vld [vmem:[%s1 + $0x8] sm:$0xff]
  %v40 = vld [vmem:[%s1 + $0x10] sm:$0xff]
  %v41 = vld [vmem:[%s1 + $0x18] sm:$0xff]
  %v42 = vld [vmem:[%s1 + $0x20] sm:$0xff]
  %v43 = vld [vmem:[%s1 + $0x28] sm:$0xff]
  %v44 = vld [vmem:[%s1 + $0x30] sm:$0xff]
  %v45 = vld [vmem:[%s1 + $0x38] sm:$0xff]
  %v46 = vld [vmem:[%s1 + $0x40] sm:$0xff]
  %v47 = vld [vmem:[%s1 + $0x48] sm:$0xff]
  %v48 = vld [vmem:[%s1 + $0x50] sm:$0xff]
  %v49 = vld [vmem:[%s1 + $0x58] sm:$0xff]
  %v50 = vld [vmem:[%s1 + $0x60] sm:$0xff]
  %v51 = vld [vmem:[%s1 + $0x68] sm:$0xff]
  %v52 = vld [vmem:[%s1 + $0x70] sm:$0xff]
  %v53 = vld [vmem:[%s1 + $0x78] sm:$0xff]
  %v54 = vld [vmem:[%s1 + $0x80] sm:$0xff]
  %v55 = vld [vmem:[%s1 + $0x88] sm:$0xff]
  %v56 = vld [vmem:[%s1 + $0x90] sm:$0xff]
  %v57 = vld [vmem:[%s1 + $0x98] sm:$0xff]
  %v58 = vld [vmem:[%s1 + $0xa0] sm:$0xff]
  %v59 = vld [vmem:[%s1 + $0xa8] sm:$0xff]
  %v60 = vld [vmem:[%s1 + $0xb0] sm:$0xff]
  %v61 = vld [vmem:[%s1 + $0xb8] sm:$0xff]
  %v62 = vld [vmem:[%s1 + $0xc0] sm:$0xff]
  %v63 = vld [vmem:[%s1 + $0xc8] sm:$0xff]
  %v64 = vld [vmem:[%s1 + $0xd0] sm:$0xff]
  %v65 = vld [vmem:[%s1 + $0xd8] sm:$0xff]
  %v66 = vld [vmem:[%s1 + $0xe0] sm:$0xff]
  %v67 = vld [vmem:[%s1 + $0xe8] sm:$0xff]
  %v68 = vld [vmem:[%s1 + $0xf0] sm:$0xff]
  %v69 = vld [vmem:[%s1 + $0xf8] sm:$0xff]
  %v70 = vld [vmem:[%s1 + $0x100] sm:$0xff]
  %v71 = vld [vmem:[%s1 + $0x108] sm:$0xff]
  %v72 = vld [vmem:[%s1 + $0x110] sm:$0xff]
  %v73 = vld [vmem:[%s1 + $0x118] sm:$0xff]
  %v74 = vld [vmem:[%s2] sm:$0x1]
  %v76 = vlaneseq
  %v77 = vshrl.u32 %v76, 7
  %v78 = vsub.s32 0, %v77
  %v79 = vrot.slane %v74, %v78
  %vm81 = vcmask 261120
  %v83 = vsel %vm81, %v16, 0
  %v86 = vsel %vm81, %v19, 0
  %v89 = vsel %vm81, %v22, 0
  %v92 = vsel %vm81, %v25, 0
  %v95 = vsel %vm81, %v28, 0
  %v98 = vsel %vm81, %v31, 0
  %v101 = vsel %vm81, %v34, 0
  %v104 = vsel %vm81, %v37, 0
  %106 = vmatprep.subr.mxu0 0.0
  %107 = vmatpush1.msra.mxu0 %v38
  %108 = vmatprep.subr.mxu0 0.0
  %109 = vmatpush1.msra.mxu0 %v39
  %110 = vmatprep.subr.mxu0 0.0
  %111 = vmatpush1.msra.mxu0 %v40
  %112 = vmatprep.subr.mxu0 0.0
  %113 = vmatpush1.msra.mxu0 %v41
  %114 = vmatprep.subr.mxu0 0.0
  %115 = vmatpush1.msra.mxu0 %v42
  %116 = vmatprep.subr.mxu0 0.0
  %117 = vmatpush1.msra.mxu0 %v43
  %118 = vmatprep.subr.mxu0 0.0
  %119 = vmatpush1.msra.mxu0 %v44
  %120 = vmatprep.subr.mxu0 0.0
  %121 = vmatpush1.msra.mxu0 %v45
  %122 = vmatprep.subr.mxu0 0.0
  %123 = vmatpush1.msra.mxu0 %v46
  %124 = vmatprep.subr.mxu0 0.0
  %125 = vmatpush1.msra.mxu0 %v47
  %126 = vmatprep.subr.mxu0 0.0
  %127 = vmatpush1.msra.mxu0 %v48
  %128 = vmatprep.subr.mxu0 0.0
  %129 = vmatpush1.msra.mxu0 %v49
  %130 = vmatprep.subr.mxu0 0.0
  %131 = vmatpush1.msra.mxu0 %v50
  %132 = vmatprep.subr.mxu0 0.0
  %133 = vmatpush1.msra.mxu0 %v51
  %134 = vmatprep.subr.mxu0 0.0
  %135 = vmatpush1.msra.mxu0 %v52
  %136 = vmatprep.subr.mxu0 0.0
  %137 = vmatpush1.msra.mxu0 %v53
  %138 = vmatprep.subr.mxu0 0.0
  %139 = vmatpush1.msra.mxu0 %v54
  %140 = vmatprep.subr.mxu0 0.0
  %141 = vmatpush1.msra.mxu0 %v55
  %142 = vmatprep.subr.mxu0 0.0
  %143 = vmatpush1.msra.mxu0 %v56
  %144 = vmatprep.subr.mxu0 0.0
  %145 = vmatpush1.msra.mxu0 %v57
  %146 = vmatprep.subr.mxu0 0.0
  %147 = vmatpush1.msra.mxu0 %v58
  %148 = vmatprep.subr.mxu0 0.0
  %149 = vmatpush1.msra.mxu0 %v59
  %150 = vmatprep.subr.mxu0 0.0
  %151 = vmatpush1.msra.mxu0 %v60
  %152 = vmatprep.subr.mxu0 0.0
  %153 = vmatpush1.msra.mxu0 %v61
  %154 = vmatprep.subr.mxu0 0.0
  %155 = vmatpush1.msra.mxu0 %v62
  %156 = vmatprep.subr.mxu0 0.0
  %157 = vmatpush1.msra.mxu0 %v63
  %158 = vmatprep.subr.mxu0 0.0
  %159 = vmatpush1.msra.mxu0 %v64
  %160 = vmatprep.subr.mxu0 0.0
  %161 = vmatpush1.msra.mxu0 %v65
  %162 = vmatprep.subr.mxu0 0.0
  %163 = vmatpush1.msra.mxu0 %v66
  %164 = vmatprep.subr.mxu0 0.0
  %165 = vmatpush1.msra.mxu0 %v67
  %166 = vmatprep.subr.mxu0 0.0
  %167 = vmatpush1.msra.mxu0 %v68
  %168 = vmatprep.subr.mxu0 0.0
  %169 = vmatpush1.msra.mxu0 %v69
  %170 = vmatprep.mubr.f32.mxu0 %v15
  %171 = vmatmul.mubr.f32.gmra.mrb[0].mxu0 %v14
  %v172 = vpop.f32.mrb[0].mxu0
  %v173 = vadd.f32 %v79, %v172
  %v174 = vpop.f32.mrb[0].mxu0
  %175 = vmatprep.mubr.f32.mxu0 %v18
  %176 = vmatmul.mubr.f32.gmra.mrb[0].mxu0 %v17
  %v177 = vpop.f32.mrb[0].mxu0
  %v178 = vadd.f32 %v79, %v177
  %v179 = vpop.f32.mrb[0].mxu0
  %180 = vmatprep.mubr.f32.mxu0 %v21
  %181 = vmatmul.mubr.f32.gmra.mrb[0].mxu0 %v20
  %v182 = vpop.f32.mrb[0].mxu0
  %v183 = vadd.f32 %v79, %v182
  %v184 = vpop.f32.mrb[0].mxu0
  %185 = vmatprep.mubr.f32.mxu0 %v24
  %186 = vmatmul.mubr.f32.gmra.mrb[0].mxu0 %v23
  %v187 = vpop.f32.mrb[0].mxu0
  %v188 = vadd.f32 %v79, %v187
  %v189 = vpop.f32.mrb[0].mxu0
  %190 = vmatprep.mubr.f32.mxu0 %v27
  %191 = vmatmul.mubr.f32.gmra.mrb[0].mxu0 %v26
  %v192 = vpop.f32.mrb[0].mxu0
  %v193 = vadd.f32 %v79, %v192
  %v194 = vpop.f32.mrb[0].mxu0
  %195 = vmatprep.mubr.f32.mxu0 %v30
  %196 = vmatmul.mubr.f32.gmra.mrb[0].mxu0 %v29
  %v197 = vpop.f32.mrb[0].mxu0
  %v198 = vadd.f32 %v79, %v197
  %v199 = vpop.f32.mrb[0].mxu0
  %200 = vmatprep.mubr.f32.mxu0 %v33
  %201 = vmatmul.mubr.f32.gmra.mrb[0].mxu0 %v32
  %v202 = vpop.f32.mrb[0].mxu0
  %v203 = vadd.f32 %v79, %v202
  %v204 = vpop.f32.mrb[0].mxu0
  %205 = vmatprep.mubr.f32.mxu0 %v36
  %206 = vmatmul.mubr.f32.gmra.mrb[0].mxu0 %v35
  %v207 = vpop.f32.mrb[0].mxu0
  %v208 = vadd.f32 %v79, %v207
  %v209 = vpop.f32.mrb[0].mxu0
  %210 = vdwg.mxu0
  %211 = vmatprep.subr.mxu0 0.0
  %212 = vmatpush1.msra.mxu0 %v70
  %213 = vmatprep.subr.mxu0 0.0
  %214 = vmatpush1.msra.mxu0 %v71
  %215 = vmatprep.subr.mxu0 0.0
  %216 = vmatpush1.msra.mxu0 %v72
  %217 = vmatprep.subr.mxu0 0.0
  %218 = vmatpush1.msra.mxu0 %v73
  %219 = vmatprep.subr.mxu0 0.0
  %220 = vmatpush1.msra.mxu0 0.0
  %221 = vmatprep.subr.mxu0 0.0
  %222 = vmatpush1.msra.mxu0 0.0
  %223 = vmatprep.subr.mxu0 0.0
  %224 = vmatpush1.msra.mxu0 0.0
  %225 = vmatprep.subr.mxu0 0.0
  %226 = vmatpush1.msra.mxu0 0.0
  %227 = vmatprep.subr.mxu0 0.0
  %228 = vmatpush1.msra.mxu0 0.0
  %229 = vmatprep.subr.mxu0 0.0
  %230 = vmatpush1.msra.mxu0 0.0
  %231 = vmatprep.subr.mxu0 0.0
  %232 = vmatpush1.msra.mxu0 0.0
  %233 = vmatprep.subr.mxu0 0.0
  %234 = vmatpush1.msra.mxu0 0.0
  %235 = vmatprep.subr.mxu0 0.0
  %236 = vmatpush1.msra.mxu0 0.0
  %237 = vmatprep.subr.mxu0 0.0
  %238 = vmatpush1.msra.mxu0 0.0
  %239 = vmatprep.subr.mxu0 0.0
  %240 = vmatpush1.msra.mxu0 0.0
  %241 = vmatprep.subr.mxu0 0.0
  %242 = vmatpush1.msra.mxu0 0.0
  %243 = vmatprep.subr.mxu0 0.0
  %244 = vmatpush1.msra.mxu0 0.0
  %245 = vmatprep.subr.mxu0 0.0
  %246 = vmatpush1.msra.mxu0 0.0
  %247 = vmatprep.subr.mxu0 0.0
  %248 = vmatpush1.msra.mxu0 0.0
  %249 = vmatprep.subr.mxu0 0.0
  %250 = vmatpush1.msra.mxu0 0.0
  %251 = vmatprep.subr.mxu0 0.0
  %252 = vmatpush1.msra.mxu0 0.0
  %253 = vmatprep.subr.mxu0 0.0
  %254 = vmatpush1.msra.mxu0 0.0
  %255 = vmatprep.subr.mxu0 0.0
  %256 = vmatpush1.msra.mxu0 0.0
  %257 = vmatprep.subr.mxu0 0.0
  %258 = vmatpush1.msra.mxu0 0.0
  %259 = vmatprep.subr.mxu0 0.0
  %260 = vmatpush1.msra.mxu0 0.0
  %261 = vmatprep.subr.mxu0 0.0
  %262 = vmatpush1.msra.mxu0 0.0
  %263 = vmatprep.subr.mxu0 0.0
  %264 = vmatpush1.msra.mxu0 0.0
  %265 = vmatprep.subr.mxu0 0.0
  %266 = vmatpush1.msra.mxu0 0.0
  %267 = vmatprep.subr.mxu0 0.0
  %268 = vmatpush1.msra.mxu0 0.0
  %269 = vmatprep.subr.mxu0 0.0
  %270 = vmatpush1.msra.mxu0 0.0
  %271 = vmatprep.subr.mxu0 0.0
  %272 = vmatpush1.msra.mxu0 0.0
  %273 = vmatprep.subr.mxu0 0.0
  %274 = vmatpush1.msra.mxu0 0.0
  %275 = vmatprep.mubr.f32.mxu0 0.0
  %276 = vmatmul.mubr.f32.gmra.mrb[0].mxu0 %v83
  %v277 = vpop.f32.mrb[0].mxu0
  %v278 = vadd.f32 %v173, %v277
  %v279 = vpop.f32.mrb[0].mxu0
  %280 = vmatprep.mubr.f32.mxu0 0.0
  %281 = vmatmul.mubr.f32.gmra.mrb[0].mxu0 %v86
  %v282 = vpop.f32.mrb[0].mxu0
  %v283 = vadd.f32 %v178, %v282
  %v284 = vpop.f32.mrb[0].mxu0
  %285 = vmatprep.mubr.f32.mxu0 0.0
  %286 = vmatmul.mubr.f32.gmra.mrb[0].mxu0 %v89
  %v287 = vpop.f32.mrb[0].mxu0
  %v288 = vadd.f32 %v183, %v287
  %v289 = vpop.f32.mrb[0].mxu0
  %290 = vmatprep.mubr.f32.mxu0 0.0
  %291 = vmatmul.mubr.f32.gmra.mrb[0].mxu0 %v92
  %v292 = vpop.f32.mrb[0].mxu0
  %v293 = vadd.f32 %v188, %v292
  %v294 = vpop.f32.mrb[0].mxu0
  %295 = vmatprep.mubr.f32.mxu0 0.0
  %296 = vmatmul.mubr.f32.gmra.mrb[0].mxu0 %v95
  %v297 = vpop.f32.mrb[0].mxu0
  %v298 = vadd.f32 %v193, %v297
  %v299 = vpop.f32.mrb[0].mxu0
  %300 = vmatprep.mubr.f32.mxu0 0.0
  %301 = vmatmul.mubr.f32.gmra.mrb[0].mxu0 %v98
  %v302 = vpop.f32.mrb[0].mxu0
  %v303 = vadd.f32 %v198, %v302
  %v304 = vpop.f32.mrb[0].mxu0
  %305 = vmatprep.mubr.f32.mxu0 0.0
  %306 = vmatmul.mubr.f32.gmra.mrb[0].mxu0 %v101
  %v307 = vpop.f32.mrb[0].mxu0
  %v308 = vadd.f32 %v203, %v307
  %v309 = vpop.f32.mrb[0].mxu0
  %310 = vmatprep.mubr.f32.mxu0 0.0
  %311 = vmatmul.mubr.f32.gmra.mrb[0].mxu0 %v104
  %v312 = vpop.f32.mrb[0].mxu0
  %v313 = vadd.f32 %v208, %v312
  %v314 = vpop.f32.mrb[0].mxu0
  %315 = vdwg.mxu0
  %v316 = vmax.f32 %v278, 0.0
  %v317 = vmax.f32 %v283, 0.0
  %v318 = vmax.f32 %v288, 0.0
  %v319 = vmax.f32 %v293, 0.0
  %v320 = vmax.f32 %v298, 0.0
  %v321 = vmax.f32 %v303, 0.0
  %v322 = vmax.f32 %v308, 0.0
  %v323 = vmax.f32 %v313, 0.0
  %324 = vst.msk [vmem:[%s3] sm:$0xff] %vm81, %v316
  %325 = vst.msk [vmem:[%s3 + $0x8] sm:$0xff] %vm81, %v317
  %326 = vst.msk [vmem:[%s3 + $0x10] sm:$0xff] %vm81, %v318
  %327 = vst.msk [vmem:[%s3 + $0x18] sm:$0xff] %vm81, %v319
  %328 = vst.msk [vmem:[%s3 + $0x20] sm:$0xff] %vm81, %v320
  %329 = vst.msk [vmem:[%s3 + $0x28] sm:$0xff] %vm81, %v321
  %330 = vst.msk [vmem:[%s3 + $0x30] sm:$0xff] %vm81, %v322
  %331 = vst.msk [vmem:[%s3 + $0x38] sm:$0xff] %vm81, %v323
  // Predicated region
  $region14: #{_lambda_.21} parent=0 // pred_check
    _
  $region15: #{_lambda_.21} parent=0 // pred_check_branch
    %333 = sbr.rel (0) target = $region17
  $region16: #{_lambda_.21} parent=0 // pred_region
    _
  $region17: #{_lambda_.21} parent=0 // pred_fallthru
    _
  // Predicated region
  $region18: #{_lambda_.21} parent=0 // pred_check
    _
  $region19: #{_lambda_.21} parent=0 // pred_check_branch
    %335 = sbr.rel (0) target = $region21
  $region20: #{_lambda_.21} parent=0 // pred_region
    _
  $region21: #{_lambda_.21} parent=0 // pred_fallthru
    _

// kernel: _lambda_.22
$region0: #{_lambda_.22}
  #allocation0 [shape = 'u32[]', space=smem, size = 0x4, offset = 0x4, fixed_abs, tag = 'smem constant byte address 0x4 - core index']
  #allocation1 [shape = 'u32[144,128]{1,0:T(1,128)}', space=vmem, size = 0x12000, scoped, tag = 'internal scratch']
  %s0 = inlined_call_operand.vmem [shape: f32[16,64], index: 0, kind: input, shape index: {}]
  %s1 = inlined_call_operand.vmem [shape: f32[64,256], index: 1, kind: input, shape index: {}]
  %s2 = inlined_call_operand.vmem [shape: f32[1,256], index: 2, kind: input, shape index: {}]
  %s3 = inlined_call_operand.vmem [shape: f32[16,256], index: 3, kind: output, shape index: {}]
  %s4 = sld [smem:[#allocation0]]
  $region22: #{_lambda_.22} parent=0
    _
  %s6 = ssub.s32 1, %s4
  %s7 = scalar_select 0, %s6, %s4
  // Predicated region
  $region2: #{_lambda_.22} parent=0 // pred_check
    _
  $region3: #{_lambda_.22} parent=0 // pred_check_branch
    %9 = sbr.rel (0) target = $region5
  $region4: #{_lambda_.22} parent=0 // pred_region
    _
  $region5: #{_lambda_.22} parent=0 // pred_fallthru
    _
  // Predicated region
  $region6: #{_lambda_.22} parent=0 // pred_check
    _
  $region7: #{_lambda_.22} parent=0 // pred_check_branch
    %11 = sbr.rel (0) target = $region9
  $region8: #{_lambda_.22} parent=0 // pred_region
    _
  $region9: #{_lambda_.22} parent=0 // pred_fallthru
    _
  // Predicated region
  $region10: #{_lambda_.22} parent=0 // pred_check
    _
  $region11: #{_lambda_.22} parent=0 // pred_check_branch
    %13 = sbr.rel (0) target = $region13
  $region12: #{_lambda_.22} parent=0 // pred_region
    _
  $region13: #{_lambda_.22} parent=0 // pred_fallthru
    _
  %v14 = vld [vmem:[%s0] sm:$0xff]
  %v15 = vld [vmem:[%s0 + $0x8] sm:$0xff]
  %v16 = vld [vmem:[%s1] sm:$0xff]
  %v17 = vld [vmem:[%s1 + $0x8] sm:$0xff]
  %v18 = vld [vmem:[%s1 + $0x10] sm:$0xff]
  %v19 = vld [vmem:[%s1 + $0x18] sm:$0xff]
  %v20 = vld [vmem:[%s1 + $0x20] sm:$0xff]
  %v21 = vld [vmem:[%s1 + $0x28] sm:$0xff]
  %v22 = vld [vmem:[%s1 + $0x30] sm:$0xff]
  %v23 = vld [vmem:[%s1 + $0x38] sm:$0xff]
  %v24 = vld [vmem:[%s1 + $0x40] sm:$0xff]
  %v25 = vld [vmem:[%s1 + $0x48] sm:$0xff]
  %v26 = vld [vmem:[%s1 + $0x50] sm:$0xff]
  %v27 = vld [vmem:[%s1 + $0x58] sm:$0xff]
  %v28 = vld [vmem:[%s1 + $0x60] sm:$0xff]
  %v29 = vld [vmem:[%s1 + $0x68] sm:$0xff]
  %v30 = vld [vmem:[%s1 + $0x70] sm:$0xff]
  %v31 = vld [vmem:[%s1 + $0x78] sm:$0xff]
  %v32 = vld [vmem:[%s2] sm:$0x3]
  %v34 = vlaneseq
  %v35 = vshrl.u32 %v34, 7
  %v36 = vsub.s32 0, %v35
  %v37 = vrot.slane %v32, %v36
  %v38 = vlaneseq
  %v39 = vshrl.u32 %v38, 7
  %v40 = vsub.s32 1, %v39
  %v41 = vrot.slane %v32, %v40
  %vm44 = vcmask 523264
  %v46 = vsel %vm44, %v14, 0
  %v49 = vsel %vm44, %v15, 0
  %51 = vmatprep.subr.mxu0 %v17
  %52 = vmatpush1.msra.mxu0 %v16
  %53 = vmatprep.subr.mxu0 %v19
  %54 = vmatpush1.msra.mxu0 %v18
  %55 = vmatprep.subr.mxu0 %v21
  %56 = vmatpush1.msra.mxu0 %v20
  %57 = vmatprep.subr.mxu0 %v23
  %58 = vmatpush1.msra.mxu0 %v22
  %59 = vmatprep.subr.mxu0 %v25
  %60 = vmatpush1.msra.mxu0 %v24
  %61 = vmatprep.subr.mxu0 %v27
  %62 = vmatpush1.msra.mxu0 %v26
  %63 = vmatprep.subr.mxu0 %v29
  %64 = vmatpush1.msra.mxu0 %v28
  %65 = vmatprep.subr.mxu0 %v31
  %66 = vmatpush1.msra.mxu0 %v30
  %67 = vmatprep.subr.mxu0 0.0
  %68 = vmatpush1.msra.mxu0 0.0
  %69 = vmatprep.subr.mxu0 0.0
  %70 = vmatpush1.msra.mxu0 0.0
  %71 = vmatprep.subr.mxu0 0.0
  %72 = vmatpush1.msra.mxu0 0.0
  %73 = vmatprep.subr.mxu0 0.0
  %74 = vmatpush1.msra.mxu0 0.0
  %75 = vmatprep.subr.mxu0 0.0
  %76 = vmatpush1.msra.mxu0 0.0
  %77 = vmatprep.subr.mxu0 0.0
  %78 = vmatpush1.msra.mxu0 0.0
  %79 = vmatprep.subr.mxu0 0.0
  %80 = vmatpush1.msra.mxu0 0.0
  %81 = vmatprep.subr.mxu0 0.0
  %82 = vmatpush1.msra.mxu0 0.0
  %83 = vmatprep.subr.mxu0 0.0
  %84 = vmatpush1.msra.mxu0 0.0
  %85 = vmatprep.subr.mxu0 0.0
  %86 = vmatpush1.msra.mxu0 0.0
  %87 = vmatprep.subr.mxu0 0.0
  %88 = vmatpush1.msra.mxu0 0.0
  %89 = vmatprep.subr.mxu0 0.0
  %90 = vmatpush1.msra.mxu0 0.0
  %91 = vmatprep.subr.mxu0 0.0
  %92 = vmatpush1.msra.mxu0 0.0
  %93 = vmatprep.subr.mxu0 0.0
  %94 = vmatpush1.msra.mxu0 0.0
  %95 = vmatprep.subr.mxu0 0.0
  %96 = vmatpush1.msra.mxu0 0.0
  %97 = vmatprep.subr.mxu0 0.0
  %98 = vmatpush1.msra.mxu0 0.0
  %99 = vmatprep.subr.mxu0 0.0
  %100 = vmatpush1.msra.mxu0 0.0
  %101 = vmatprep.subr.mxu0 0.0
  %102 = vmatpush1.msra.mxu0 0.0
  %103 = vmatprep.subr.mxu0 0.0
  %104 = vmatpush1.msra.mxu0 0.0
  %105 = vmatprep.subr.mxu0 0.0
  %106 = vmatpush1.msra.mxu0 0.0
  %107 = vmatprep.subr.mxu0 0.0
  %108 = vmatpush1.msra.mxu0 0.0
  %109 = vmatprep.subr.mxu0 0.0
  %110 = vmatpush1.msra.mxu0 0.0
  %111 = vmatprep.subr.mxu0 0.0
  %112 = vmatpush1.msra.mxu0 0.0
  %113 = vmatprep.subr.mxu0 0.0
  %114 = vmatpush1.msra.mxu0 0.0
  %115 = vmatprep.mubr.f32.mxu0 0.0
  %116 = vmatmul.mubr.f32.gmra.mrb[0].mxu0 %v46
  %v117 = vpop.f32.mrb[0].mxu0
  %v118 = vadd.f32 %v37, %v117
  %v119 = vpop.f32.mrb[0].mxu0
  %v120 = vadd.f32 %v41, %v119
  %121 = vmatprep.mubr.f32.mxu0 0.0
  %122 = vmatmul.mubr.f32.gmra.mrb[0].mxu0 %v49
  %v123 = vpop.f32.mrb[0].mxu0
  %v124 = vadd.f32 %v37, %v123
  %v125 = vpop.f32.mrb[0].mxu0
  %v126 = vadd.f32 %v41, %v125
  %127 = vdwg.mxu0
  %128 = vst [vmem:[%s3] sm:$0xff] %v118
  %129 = vst [vmem:[%s3 + $0x8] sm:$0xff] %v120
  %130 = vst [vmem:[%s3 + $0x10] sm:$0xff] %v124
  %131 = vst [vmem:[%s3 + $0x18] sm:$0xff] %v126
  // Predicated region
  $region14: #{_lambda_.22} parent=0 // pred_check
    _
  $region15: #{_lambda_.22} parent=0 // pred_check_branch
    %133 = sbr.rel (0) target = $region17
  $region16: #{_lambda_.22} parent=0 // pred_region
    _
  $region17: #{_lambda_.22} parent=0 // pred_fallthru
    _
  // Predicated region
  $region18: #{_lambda_.22} parent=0 // pred_check
    _
  $region19: #{_lambda_.22} parent=0 // pred_check_branch
    %135 = sbr.rel (0) target = $region21
  $region20: #{_lambda_.22} parent=0 // pred_region
    _
  $region21: #{_lambda_.22} parent=0 // pred_fallthru
    _

// kernel: _lambda_.24
$region0: #{_lambda_.24}
  #allocation0 [shape = 'u32[]', space=smem, size = 0x4, offset = 0x4, fixed_abs, tag = 'smem constant byte address 0x4 - core index']
  #allocation1 [shape = 'u32[144,128]{1,0:T(1,128)}', space=vmem, size = 0x12000, scoped, tag = 'internal scratch']
  %s0 = inlined_call_operand.vmem [shape: f32[16,64], index: 0, kind: input, shape index: {}]
  %s1 = inlined_call_operand.vmem [shape: f32[64,32], index: 1, kind: input, shape index: {}]
  %s2 = inlined_call_operand.vmem [shape: f32[1,32], index: 2, kind: input, shape index: {}]
  %s3 = inlined_call_operand.vmem [shape: f32[16,32], index: 3, kind: output, shape index: {}]
  %s4 = sld [smem:[#allocation0]]
  $region22: #{_lambda_.24} parent=0
    _
  %s6 = ssub.s32 1, %s4
  %s7 = scalar_select 0, %s6, %s4
  // Predicated region
  $region2: #{_lambda_.24} parent=0 // pred_check
    _
  $region3: #{_lambda_.24} parent=0 // pred_check_branch
    %9 = sbr.rel (0) target = $region5
  $region4: #{_lambda_.24} parent=0 // pred_region
    _
  $region5: #{_lambda_.24} parent=0 // pred_fallthru
    _
  // Predicated region
  $region6: #{_lambda_.24} parent=0 // pred_check
    _
  $region7: #{_lambda_.24} parent=0 // pred_check_branch
    %11 = sbr.rel (0) target = $region9
  $region8: #{_lambda_.24} parent=0 // pred_region
    _
  $region9: #{_lambda_.24} parent=0 // pred_fallthru
    _
  // Predicated region
  $region10: #{_lambda_.24} parent=0 // pred_check
    _
  $region11: #{_lambda_.24} parent=0 // pred_check_branch
    %13 = sbr.rel (0) target = $region13
  $region12: #{_lambda_.24} parent=0 // pred_region
    _
  $region13: #{_lambda_.24} parent=0 // pred_fallthru
    _
  %v14 = vld [vmem:[%s0] sm:$0xff]
  %v15 = vld [vmem:[%s0 + $0x8] sm:$0xff]
  %v16 = vld [vmem:[%s1] sm:$0xff]
  %v17 = vld [vmem:[%s1 + $0x8] sm:$0xff]
  %v18 = vld [vmem:[%s1 + $0x10] sm:$0xff]
  %v19 = vld [vmem:[%s1 + $0x18] sm:$0xff]
  %v20 = vld [vmem:[%s1 + $0x20] sm:$0xff]
  %v21 = vld [vmem:[%s1 + $0x28] sm:$0xff]
  %v22 = vld [vmem:[%s1 + $0x30] sm:$0xff]
  %v23 = vld [vmem:[%s1 + $0x38] sm:$0xff]
  %v24 = vld [vmem:[%s2] sm:$0x1]
  %v26 = vlaneseq
  %v27 = vshrl.u32 %v26, 7
  %v28 = vsub.s32 0, %v27
  %v29 = vrot.slane %v24, %v28
  %vm31 = vcmask 523264
  %v33 = vsel %vm31, %v14, 0
  %v36 = vsel %vm31, %v15, 0
  %38 = vmatprep.subr.mxu0 0.0
  %39 = vmatpush1.msra.mxu0 %v16
  %40 = vmatprep.subr.mxu0 0.0
  %41 = vmatpush1.msra.mxu0 %v17
  %42 = vmatprep.subr.mxu0 0.0
  %43 = vmatpush1.msra.mxu0 %v18
  %44 = vmatprep.subr.mxu0 0.0
  %45 = vmatpush1.msra.mxu0 %v19
  %46 = vmatprep.subr.mxu0 0.0
  %47 = vmatpush1.msra.mxu0 %v20
  %48 = vmatprep.subr.mxu0 0.0
  %49 = vmatpush1.msra.mxu0 %v21
  %50 = vmatprep.subr.mxu0 0.0
  %51 = vmatpush1.msra.mxu0 %v22
  %52 = vmatprep.subr.mxu0 0.0
  %53 = vmatpush1.msra.mxu0 %v23
  %54 = vmatprep.subr.mxu0 0.0
  %55 = vmatpush1.msra.mxu0 0.0
  %56 = vmatprep.subr.mxu0 0.0
  %57 = vmatpush1.msra.mxu0 0.0
  %58 = vmatprep.subr.mxu0 0.0
  %59 = vmatpush1.msra.mxu0 0.0
  %60 = vmatprep.subr.mxu0 0.0
  %61 = vmatpush1.msra.mxu0 0.0
  %62 = vmatprep.subr.mxu0 0.0
  %63 = vmatpush1.msra.mxu0 0.0
  %64 = vmatprep.subr.mxu0 0.0
  %65 = vmatpush1.msra.mxu0 0.0
  %66 = vmatprep.subr.mxu0 0.0
  %67 = vmatpush1.msra.mxu0 0.0
  %68 = vmatprep.subr.mxu0 0.0
  %69 = vmatpush1.msra.mxu0 0.0
  %70 = vmatprep.subr.mxu0 0.0
  %71 = vmatpush1.msra.mxu0 0.0
  %72 = vmatprep.subr.mxu0 0.0
  %73 = vmatpush1.msra.mxu0 0.0
  %74 = vmatprep.subr.mxu0 0.0
  %75 = vmatpush1.msra.mxu0 0.0
  %76 = vmatprep.subr.mxu0 0.0
  %77 = vmatpush1.msra.mxu0 0.0
  %78 = vmatprep.subr.mxu0 0.0
  %79 = vmatpush1.msra.mxu0 0.0
  %80 = vmatprep.subr.mxu0 0.0
  %81 = vmatpush1.msra.mxu0 0.0
  %82 = vmatprep.subr.mxu0 0.0
  %83 = vmatpush1.msra.mxu0 0.0
  %84 = vmatprep.subr.mxu0 0.0
  %85 = vmatpush1.msra.mxu0 0.0
  %86 = vmatprep.subr.mxu0 0.0
  %87 = vmatpush1.msra.mxu0 0.0
  %88 = vmatprep.subr.mxu0 0.0
  %89 = vmatpush1.msra.mxu0 0.0
  %90 = vmatprep.subr.mxu0 0.0
  %91 = vmatpush1.msra.mxu0 0.0
  %92 = vmatprep.subr.mxu0 0.0
  %93 = vmatpush1.msra.mxu0 0.0
  %94 = vmatprep.subr.mxu0 0.0
  %95 = vmatpush1.msra.mxu0 0.0
  %96 = vmatprep.subr.mxu0 0.0
  %97 = vmatpush1.msra.mxu0 0.0
  %98 = vmatprep.subr.mxu0 0.0
  %99 = vmatpush1.msra.mxu0 0.0
  %100 = vmatprep.subr.mxu0 0.0
  %101 = vmatpush1.msra.mxu0 0.0
  %102 = vmatprep.mubr.f32.mxu0 0.0
  %103 = vmatmul.mubr.f32.gmra.mrb[0].mxu0 %v33
  %v104 = vpop.f32.mrb[0].mxu0
  %v105 = vadd.f32 %v29, %v104
  %v106 = vpop.f32.mrb[0].mxu0
  %107 = vmatprep.mubr.f32.mxu0 0.0
  %108 = vmatmul.mubr.f32.gmra.mrb[0].mxu0 %v36
  %v109 = vpop.f32.mrb[0].mxu0
  %v110 = vadd.f32 %v29, %v109
  %v111 = vpop.f32.mrb[0].mxu0
  %112 = vdwg.mxu0
  %vm113 = vcmask 261120
  %114 = vst.msk [vmem:[%s3] sm:$0xff] %vm113, %v105
  %115 = vst.msk [vmem:[%s3 + $0x8] sm:$0xff] %vm113, %v110
  // Predicated region
  $region14: #{_lambda_.24} parent=0 // pred_check
    _
  $region15: #{_lambda_.24} parent=0 // pred_check_branch
    %117 = sbr.rel (0) target = $region17
  $region16: #{_lambda_.24} parent=0 // pred_region
    _
  $region17: #{_lambda_.24} parent=0 // pred_fallthru
    _
  // Predicated region
  $region18: #{_lambda_.24} parent=0 // pred_check
    _
  $region19: #{_lambda_.24} parent=0 // pred_check_branch
    %119 = sbr.rel (0) target = $region21
  $region20: #{_lambda_.24} parent=0 // pred_region
    _
  $region21: #{_lambda_.24} parent=0 // pred_fallthru
    _

// kernel: _lambda_.25
$region0: #{_lambda_.25}
  #allocation0 [shape = 'u32[]', space=smem, size = 0x4, offset = 0x4, fixed_abs, tag = 'smem constant byte address 0x4 - core index']
  #allocation1 [shape = 'u32[144,128]{1,0:T(1,128)}', space=vmem, size = 0x12000, scoped, tag = 'internal scratch']
  %s0 = inlined_call_operand.vmem [shape: f32[16,32], index: 0, kind: input, shape index: {}]
  %s1 = inlined_call_operand.vmem [shape: f32[32,256], index: 1, kind: input, shape index: {}]
  %s2 = inlined_call_operand.vmem [shape: f32[1,256], index: 2, kind: input, shape index: {}]
  %s3 = inlined_call_operand.vmem [shape: f32[16,256], index: 3, kind: output, shape index: {}]
  %s4 = sld [smem:[#allocation0]]
  $region22: #{_lambda_.25} parent=0
    _
  %s6 = ssub.s32 1, %s4
  %s7 = scalar_select 0, %s6, %s4
  // Predicated region
  $region2: #{_lambda_.25} parent=0 // pred_check
    _
  $region3: #{_lambda_.25} parent=0 // pred_check_branch
    %9 = sbr.rel (0) target = $region5
  $region4: #{_lambda_.25} parent=0 // pred_region
    _
  $region5: #{_lambda_.25} parent=0 // pred_fallthru
    _
  // Predicated region
  $region6: #{_lambda_.25} parent=0 // pred_check
    _
  $region7: #{_lambda_.25} parent=0 // pred_check_branch
    %11 = sbr.rel (0) target = $region9
  $region8: #{_lambda_.25} parent=0 // pred_region
    _
  $region9: #{_lambda_.25} parent=0 // pred_fallthru
    _
  // Predicated region
  $region10: #{_lambda_.25} parent=0 // pred_check
    _
  $region11: #{_lambda_.25} parent=0 // pred_check_branch
    %13 = sbr.rel (0) target = $region13
  $region12: #{_lambda_.25} parent=0 // pred_region
    _
  $region13: #{_lambda_.25} parent=0 // pred_fallthru
    _
  %v14 = vld [vmem:[%s0] sm:$0xff]
  %v15 = vld [vmem:[%s0 + $0x8] sm:$0xff]
  %v16 = vld [vmem:[%s1] sm:$0xff]
  %v17 = vld [vmem:[%s1 + $0x8] sm:$0xff]
  %v18 = vld [vmem:[%s1 + $0x10] sm:$0xff]
  %v19 = vld [vmem:[%s1 + $0x18] sm:$0xff]
  %v20 = vld [vmem:[%s1 + $0x20] sm:$0xff]
  %v21 = vld [vmem:[%s1 + $0x28] sm:$0xff]
  %v22 = vld [vmem:[%s1 + $0x30] sm:$0xff]
  %v23 = vld [vmem:[%s1 + $0x38] sm:$0xff]
  %v24 = vld [vmem:[%s2] sm:$0x3]
  %v26 = vlaneseq
  %v27 = vshrl.u32 %v26, 7
  %v28 = vsub.s32 0, %v27
  %v29 = vrot.slane %v24, %v28
  %v30 = vlaneseq
  %v31 = vshrl.u32 %v30, 7
  %v32 = vsub.s32 1, %v31
  %v33 = vrot.slane %v24, %v32
  %vm36 = vcmask 261120
  %v38 = vsel %vm36, %v14, 0
  %v41 = vsel %vm36, %v15, 0
  %43 = vmatprep.subr.mxu0 %v17
  %44 = vmatpush1.msra.mxu0 %v16
  %45 = vmatprep.subr.mxu0 %v19
  %46 = vmatpush1.msra.mxu0 %v18
  %47 = vmatprep.subr.mxu0 %v21
  %48 = vmatpush1.msra.mxu0 %v20
  %49 = vmatprep.subr.mxu0 %v23
  %50 = vmatpush1.msra.mxu0 %v22
  %51 = vmatprep.subr.mxu0 0.0
  %52 = vmatpush1.msra.mxu0 0.0
  %53 = vmatprep.subr.mxu0 0.0
  %54 = vmatpush1.msra.mxu0 0.0
  %55 = vmatprep.subr.mxu0 0.0
  %56 = vmatpush1.msra.mxu0 0.0
  %57 = vmatprep.subr.mxu0 0.0
  %58 = vmatpush1.msra.mxu0 0.0
  %59 = vmatprep.subr.mxu0 0.0
  %60 = vmatpush1.msra.mxu0 0.0
  %61 = vmatprep.subr.mxu0 0.0
  %62 = vmatpush1.msra.mxu0 0.0
  %63 = vmatprep.subr.mxu0 0.0
  %64 = vmatpush1.msra.mxu0 0.0
  %65 = vmatprep.subr.mxu0 0.0
  %66 = vmatpush1.msra.mxu0 0.0
  %67 = vmatprep.subr.mxu0 0.0
  %68 = vmatpush1.msra.mxu0 0.0
  %69 = vmatprep.subr.mxu0 0.0
  %70 = vmatpush1.msra.mxu0 0.0
  %71 = vmatprep.subr.mxu0 0.0
  %72 = vmatpush1.msra.mxu0 0.0
  %73 = vmatprep.subr.mxu0 0.0
  %74 = vmatpush1.msra.mxu0 0.0
  %75 = vmatprep.subr.mxu0 0.0
  %76 = vmatpush1.msra.mxu0 0.0
  %77 = vmatprep.subr.mxu0 0.0
  %78 = vmatpush1.msra.mxu0 0.0
  %79 = vmatprep.subr.mxu0 0.0
  %80 = vmatpush1.msra.mxu0 0.0
  %81 = vmatprep.subr.mxu0 0.0
  %82 = vmatpush1.msra.mxu0 0.0
  %83 = vmatprep.subr.mxu0 0.0
  %84 = vmatpush1.msra.mxu0 0.0
  %85 = vmatprep.subr.mxu0 0.0
  %86 = vmatpush1.msra.mxu0 0.0
  %87 = vmatprep.subr.mxu0 0.0
  %88 = vmatpush1.msra.mxu0 0.0
  %89 = vmatprep.subr.mxu0 0.0
  %90 = vmatpush1.msra.mxu0 0.0
  %91 = vmatprep.subr.mxu0 0.0
  %92 = vmatpush1.msra.mxu0 0.0
  %93 = vmatprep.subr.mxu0 0.0
  %94 = vmatpush1.msra.mxu0 0.0
  %95 = vmatprep.subr.mxu0 0.0
  %96 = vmatpush1.msra.mxu0 0.0
  %97 = vmatprep.subr.mxu0 0.0
  %98 = vmatpush1.msra.mxu0 0.0
  %99 = vmatprep.subr.mxu0 0.0
  %100 = vmatpush1.msra.mxu0 0.0
  %101 = vmatprep.subr.mxu0 0.0
  %102 = vmatpush1.msra.mxu0 0.0
  %103 = vmatprep.subr.mxu0 0.0
  %104 = vmatpush1.msra.mxu0 0.0
  %105 = vmatprep.subr.mxu0 0.0
  %106 = vmatpush1.msra.mxu0 0.0
  %107 = vmatprep.mubr.f32.mxu0 0.0
  %108 = vmatmul.mubr.f32.gmra.mrb[0].mxu0 %v38
  %v109 = vpop.f32.mrb[0].mxu0
  %v110 = vadd.f32 %v29, %v109
  %v111 = vpop.f32.mrb[0].mxu0
  %v112 = vadd.f32 %v33, %v111
  %113 = vmatprep.mubr.f32.mxu0 0.0
  %114 = vmatmul.mubr.f32.gmra.mrb[0].mxu0 %v41
  %v115 = vpop.f32.mrb[0].mxu0
  %v116 = vadd.f32 %v29, %v115
  %v117 = vpop.f32.mrb[0].mxu0
  %v118 = vadd.f32 %v33, %v117
  %119 = vdwg.mxu0
  %120 = vst [vmem:[%s3] sm:$0xff] %v110
  %121 = vst [vmem:[%s3 + $0x8] sm:$0xff] %v112
  %122 = vst [vmem:[%s3 + $0x10] sm:$0xff] %v116
  %123 = vst [vmem:[%s3 + $0x18] sm:$0xff] %v118
  // Predicated region
  $region14: #{_lambda_.25} parent=0 // pred_check
    _
  $region15: #{_lambda_.25} parent=0 // pred_check_branch
    %125 = sbr.rel (0) target = $region17
  $region16: #{_lambda_.25} parent=0 // pred_region
    _
  $region17: #{_lambda_.25} parent=0 // pred_fallthru
    _
  // Predicated region
  $region18: #{_lambda_.25} parent=0 // pred_check
    _
  $region19: #{_lambda_.25} parent=0 // pred_check_branch
    %127 = sbr.rel (0) target = $region21
  $region20: #{_lambda_.25} parent=0 // pred_region
    _
  $region21: #{_lambda_.25} parent=0 // pred_fallthru
    _

// kernel: _lambda_.23
$region0: #{_lambda_.23}
  #allocation0 [shape = 'u32[]', space=smem, size = 0x4, offset = 0x4, fixed_abs, tag = 'smem constant byte address 0x4 - core index']
  #allocation1 [shape = 'u32[144,128]{1,0:T(1,128)}', space=vmem, size = 0x12000, scoped, tag = 'internal scratch']
  #allocation2 [shape = 'f32[2,2,32]{2,1,0:T(2,128)}', space=vmem, size = 0x800, scoped, tag = 'scratch operand']
  #allocation3 [shape = 'f32[2,2,32]{2,1,0:T(2,128)}', space=vmem, size = 0x800, scoped, tag = 'scratch operand']
  %s0 = inlined_call_operand.vmem [shape: f32[8,2,256], index: 0, kind: input, shape index: {}, may-alias: {0,1}]
  %s1 = inlined_call_operand.vmem [shape: f32[8,2,256], index: 1, kind: input, shape index: {}, may-alias: {0,1}]
  %s2 = inlined_call_operand.vmem [shape: f32[2,32,128], index: 2, kind: input, shape index: {}]
  %s3 = inlined_call_operand.vmem [shape: f32[8,2,32], index: 3, kind: output, shape index: {0}]
  %s4 = inlined_call_operand.vmem [shape: f32[8,2,32], index: 4, kind: output, shape index: {1}]
  %5 = xla_tuple %s3, %s4
  %s6 = sld [smem:[#allocation0]]
  $region57: #{_lambda_.23} parent=0
    _
  %s8 = ssub.s32 1, %s6
  %s9 = scalar_select 0, %s8, %s6
  loop: start=0, step=1, limit=10
  $region2: #{_lambda_.23} parent=0 // loop_pre_header
    _
  $region3: #{_lambda_.23} parent=0 // loop_header
    %s11 = sphi 0, %s15
    %p12 = scmp.ge.s32.totalorder %s11, 10
    %s21 = sphi 0, %s23
    %s24 = sphi 0, %s21
    %s25 = sphi 0, %s24
    %s41 = sphi 0, %s25
    %s49 = sphi 0, %s51
    %s52 = sphi 0, %s49
    %s53 = sphi 0, %s52
    %s69 = sphi 0, %s53
    %s73 = sphi 0, %s73
    %s75 = sphi 0, %s73
    %s76 = sphi 0, %s75
    %s90 = sphi 0, %s76
    %s96 = sphi 0, %s98
    %s99 = sphi 0, %s96
    %s100 = sphi 0, %s99
    %s116 = sphi 0, %s100
    %s124 = sphi 0, %s126
    %s127 = sphi 0, %s124
    %s128 = sphi 0, %s127
    %s144 = sphi 0, %s128
  $region4: #{_lambda_.23} parent=0 // loop_header_branch
    %14 = sbr.rel (%p12) target = $region8
  $region5: #{_lambda_.23} parent=0 // loop_body
    %s16 = ssub.s32 %s11, 1
    %s17 = ssub.s32 %s11, 2
    %s18 = sadd.s32 %s11, 1
    %s19 = ssub.s32 %s11, %s18
    %p20 = scmp.eq.s32.totalorder %s19, 0
    %s22 = sadd.s32 %s21, 1
    %s23 = scalar_select %p20, %s21, %s22
    %p26 = pneg %p20
    %p27 = scmp.eq.s32.totalorder %s11, 7
    %p28 = por %p26, %p27
    %p29 = scmp.ne.s32.totalorder %s21, %s24
    %p30 = scmp.eq.s32.totalorder %s11, 0
    %p31 = por %p29, %p30
    %p32 = scmp.ne.s32.totalorder %s21, %s24
    %p33 = scmp.eq.s32.totalorder %s16, 7
    %p34 = por %p32, %p33
    %p35 = scmp.ne.s32.totalorder %s24, %s25
    %p36 = scmp.eq.s32.totalorder %s16, 0
    %p37 = por %p35, %p36
    %p38 = scmp.ne.s32.totalorder %s24, %s25
    %p39 = scmp.eq.s32.totalorder %s17, 7
    %p40 = por %p38, %p39
    %p42 = scmp.ne.s32.totalorder %s25, %s41
    %p43 = scmp.eq.s32.totalorder %s17, 0
    %p44 = por %p42, %p43
    %s45 = ssub.s32 7, %s11
    %s46 = ssub.s32 7, %s18
    %s47 = ssub.s32 %s45, %s46
    %p48 = scmp.eq.s32.totalorder %s47, 0
    %s50 = sadd.s32 %s49, 1
    %s51 = scalar_select %p48, %s49, %s50
    %p54 = pneg %p48
    %p55 = scmp.eq.s32.totalorder %s11, 7
    %p56 = por %p54, %p55
    %p57 = scmp.ne.s32.totalorder %s49, %s52
    %p58 = scmp.eq.s32.totalorder %s11, 0
    %p59 = por %p57, %p58
    %p60 = scmp.ne.s32.totalorder %s49, %s52
    %p61 = scmp.eq.s32.totalorder %s16, 7
    %p62 = por %p60, %p61
    %p63 = scmp.ne.s32.totalorder %s52, %s53
    %p64 = scmp.eq.s32.totalorder %s16, 0
    %p65 = por %p63, %p64
    %p66 = scmp.ne.s32.totalorder %s52, %s53
    %p67 = scmp.eq.s32.totalorder %s17, 7
    %p68 = por %p66, %p67
    %p70 = scmp.ne.s32.totalorder %s53, %s69
    %p71 = scmp.eq.s32.totalorder %s17, 0
    %p72 = por %p70, %p71
    %s74 = sadd.s32 %s73, 1
    %p77 = scmp.eq.s32.totalorder %s11, 7
    %p78 = scmp.ne.s32.totalorder %s73, %s75
    %p79 = scmp.eq.s32.totalorder %s11, 0
    %p80 = por %p78, %p79
    %p81 = scmp.ne.s32.totalorder %s73, %s75
    %p82 = scmp.eq.s32.totalorder %s16, 7
    %p83 = por %p81, %p82
    %p84 = scmp.ne.s32.totalorder %s75, %s76
    %p85 = scmp.eq.s32.totalorder %s16, 0
    %p86 = por %p84, %p85
    %p87 = scmp.ne.s32.totalorder %s75, %s76
    %p88 = scmp.eq.s32.totalorder %s17, 7
    %p89 = por %p87, %p88
    %p91 = scmp.ne.s32.totalorder %s76, %s90
    %p92 = scmp.eq.s32.totalorder %s17, 0
    %p93 = por %p91, %p92
    %s94 = ssub.s32 %s11, %s18
    %p95 = scmp.eq.s32.totalorder %s94, 0
    %s97 = sadd.s32 %s96, 1
    %s98 = scalar_select %p95, %s96, %s97
    %p101 = pneg %p95
    %p102 = scmp.eq.s32.totalorder %s11, 7
    %p103 = por %p101, %p102
    %p104 = scmp.ne.s32.totalorder %s96, %s99
    %p105 = scmp.eq.s32.totalorder %s11, 0
    %p106 = por %p104, %p105
    %p107 = scmp.ne.s32.totalorder %s96, %s99
    %p108 = scmp.eq.s32.totalorder %s16, 7
    %p109 = por %p107, %p108
    %p110 = scmp.ne.s32.totalorder %s99, %s100
    %p111 = scmp.eq.s32.totalorder %s16, 0
    %p112 = por %p110, %p111
    %p113 = scmp.ne.s32.totalorder %s99, %s100
    %p114 = scmp.eq.s32.totalorder %s17, 7
    %p115 = por %p113, %p114
    %p117 = scmp.ne.s32.totalorder %s100, %s116
    %p118 = scmp.eq.s32.totalorder %s17, 0
    %p119 = por %p117, %p118
    %s120 = ssub.s32 7, %s11
    %s121 = ssub.s32 7, %s18
    %s122 = ssub.s32 %s120, %s121
    %p123 = scmp.eq.s32.totalorder %s122, 0
    %s125 = sadd.s32 %s124, 1
    %s126 = scalar_select %p123, %s124, %s125
    %p129 = pneg %p123
    %p130 = scmp.eq.s32.totalorder %s11, 7
    %p131 = por %p129, %p130
    %p132 = scmp.ne.s32.totalorder %s124, %s127
    %p133 = scmp.eq.s32.totalorder %s11, 0
    %p134 = por %p132, %p133
    %p135 = scmp.ne.s32.totalorder %s124, %s127
    %p136 = scmp.eq.s32.totalorder %s16, 7
    %p137 = por %p135, %p136
    %p138 = scmp.ne.s32.totalorder %s127, %s128
    %p139 = scmp.eq.s32.totalorder %s16, 0
    %p140 = por %p138, %p139
    %p141 = scmp.ne.s32.totalorder %s127, %s128
    %p142 = scmp.eq.s32.totalorder %s17, 7
    %p143 = por %p141, %p142
    %p145 = scmp.ne.s32.totalorder %s128, %s144
    %p146 = scmp.eq.s32.totalorder %s17, 0
    %p147 = por %p145, %p146
    %p148 = scmp.le.s32.totalorder 1, %s11
    %p149 = scmp.lt.s32.totalorder %s11, 9
    %p150 = pnand %p148, %p149
    %p151 = pneg %p150
    // Predicated region
    $region9: #{_lambda_.23} parent=5 // pred_check
      _
    $region10: #{_lambda_.23} parent=5 // pred_check_branch
      %153 = sbr.rel (%p150) target = $region12
    $region11: #{_lambda_.23} parent=5 // pred_region
      %s154 = ssub.s32 %s11, 1
      // Predicated region
      $region13: #{_lambda_.23} parent=11 // pred_check
        %p155 = pneg %p86
      $region14: #{_lambda_.23} parent=11 // pred_check_branch
        %157 = sbr.rel (%p155) target = $region16
      $region15: #{_lambda_.23} parent=11 // pred_region
        _
      $region16: #{_lambda_.23} parent=11 // pred_fallthru
        _
    $region12: #{_lambda_.23} parent=5 // pred_fallthru
      _
    %p158 = scmp.lt.s32.totalorder %s11, 8
    // Predicated region
    $region17: #{_lambda_.23} parent=5 // pred_check
      %p159 = pneg %p158
    $region18: #{_lambda_.23} parent=5 // pred_check_branch
      %161 = sbr.rel (%p159) target = $region20
    $region19: #{_lambda_.23} parent=5 // pred_region
      // Predicated region
      $region21: #{_lambda_.23} parent=19 // pred_check
        %p162 = pneg %p31
      $region22: #{_lambda_.23} parent=19 // pred_check_branch
        %164 = sbr.rel (%p162) target = $region24
      $region23: #{_lambda_.23} parent=19 // pred_region
        %p165 = scmp.lt.s32.totalorder %s11, 7
        %s166 = scalar_select %p165, %s11, 7
        %s167 = smul.addr %s166, 2
        %s168 = smul.addr %s167, 2
        %s169 = scalar_lea.vmem %s0, %s168
      $region24: #{_lambda_.23} parent=19 // pred_fallthru
        _
      // Predicated region
      $region25: #{_lambda_.23} parent=19 // pred_check
        %p170 = pneg %p59
      $region26: #{_lambda_.23} parent=19 // pred_check_branch
        %172 = sbr.rel (%p170) target = $region28
      $region27: #{_lambda_.23} parent=19 // pred_region
        %s173 = ssub.s32 7, %s11
        %p174 = scmp.lt.s32.totalorder %s173, 7
        %s175 = scalar_select %p174, %s173, 7
        %s176 = smul.addr %s175, 2
        %s177 = smul.addr %s176, 2
        %s178 = scalar_lea.vmem %s1, %s177
        %s179 = ssub.s32 7, %s11
      $region28: #{_lambda_.23} parent=19 // pred_fallthru
        _
    $region20: #{_lambda_.23} parent=5 // pred_fallthru
      _
    %p180 = scmp.le.s32.totalorder 1, %s11
    %p181 = scmp.lt.s32.totalorder %s11, 9
    %p182 = pnand %p180, %p181
    %p183 = pneg %p182
    // Predicated region
    $region29: #{_lambda_.23} parent=5 // pred_check
      _
    $region30: #{_lambda_.23} parent=5 // pred_check_branch
      %185 = sbr.rel (%p182) target = $region32
    $region31: #{_lambda_.23} parent=5 // pred_region
      %s186 = ssub.s32 %s11, 1
      %p187 = scmp.lt.s32.totalorder %s16, 7
      %s188 = scalar_select %p187, %s16, 7
      %s189 = smul.addr %s188, 2
      %s190 = smul.addr %s189, 2
      %s191 = scalar_lea.vmem %s0, %s190
      %p192 = pneg %p37
      %p193 = pneg %p34
      %s194 = ssub.s32 7, %s16
      %p195 = scmp.lt.s32.totalorder %s194, 7
      %s196 = scalar_select %p195, %s194, 7
      %s197 = smul.addr %s196, 2
      %s198 = smul.addr %s197, 2
      %s199 = scalar_lea.vmem %s1, %s198
      %p200 = pneg %p65
      %p201 = pneg %p62
      %p202 = pneg %p86
      %p203 = pneg %p83
      %p204 = pneg %p112
      %p205 = pneg %p109
      %p206 = scmp.lt.s32.totalorder %s16, 7
      %s207 = scalar_select %p206, %s16, 7
      %s208 = smul.addr %s207, 2
      %s209 = scalar_lea.vmem %s3, %s208
      %p210 = pneg %p140
      %p211 = pneg %p137
      %s212 = ssub.s32 7, %s16
      %p213 = scmp.lt.s32.totalorder %s212, 7
      %s214 = scalar_select %p213, %s212, 7
      %s215 = smul.addr %s214, 2
      %s216 = scalar_lea.vmem %s4, %s215
      %p217 = scmp.lt.s32.totalorder %s16, 7
      %s218 = scalar_select %p217, %s16, 7
      %s219 = smul.addr %s218, 2
      %s220 = smul.addr %s219, 2
      %s221 = scalar_lea.vmem %s0, %s220
      %s222 = ssub.s32 7, %s16
      %p223 = scmp.lt.s32.totalorder %s222, 7
      %s224 = scalar_select %p223, %s222, 7
      %s225 = smul.addr %s224, 2
      %s226 = smul.addr %s225, 2
      %s227 = scalar_lea.vmem %s1, %s226
      %s228 = ssub.s32 7, %s16
      %p229 = scmp.lt.s32.totalorder %s16, 7
      %s230 = scalar_select %p229, %s16, 7
      %s231 = smul.addr %s230, 2
      %s232 = scalar_lea.vmem %s3, %s231
      %s233 = ssub.s32 7, %s16
      %p234 = scmp.lt.s32.totalorder %s233, 7
      %s235 = scalar_select %p234, %s233, 7
      %s236 = smul.addr %s235, 2
      %s237 = scalar_lea.vmem %s4, %s236
      %s238 = ssub.s32 7, %s16
      %p239 = scmp.eq.s32.totalorder %s16, 0
      // Predicated region
      $region33: #{_lambda_.23} parent=31 // pred_check
        %p240 = pneg %p239
      $region34: #{_lambda_.23} parent=31 // pred_check_branch
        %242 = sbr.rel (%p240) target = $region36
      $region35: #{_lambda_.23} parent=31 // pred_region
        %vm243 = vcmask 254976
        %244 = vst.msk [vmem:[#allocation2] sm:$0x3] %vm243, 0.0
        %245 = vst.msk [vmem:[#allocation2 + $0x2] sm:$0x3] %vm243, 0.0
        %246 = vst.msk [vmem:[#allocation3] sm:$0x3] %vm243, 0.0
        %247 = vst.msk [vmem:[#allocation3 + $0x2] sm:$0x3] %vm243, 0.0
      $region36: #{_lambda_.23} parent=31 // pred_fallthru
        _
      %v248 = vld [vmem:[#allocation2] sm:$0x3]
      %v249 = vld [vmem:[#allocation3] sm:$0x3]
      %v250 = vld [vmem:[%s221] sm:$0xf]
      %v251 = vld [vmem:[%s2] sm:$0xff]
      %v252 = vld [vmem:[%s2 + $0x8] sm:$0xff]
      %v253 = vld [vmem:[%s2 + $0x10] sm:$0xff]
      %v254 = vld [vmem:[%s2 + $0x18] sm:$0xff]
      %vm255 = vcmask 261120
      %v257 = vsel %vm255, %v248, 0
      %259 = vmatprep.subr.mxu0 0.0
      %260 = vmatpush1.msra.mxu0 %v251
      %261 = vmatprep.subr.mxu0 0.0
      %262 = vmatpush1.msra.mxu0 %v252
      %263 = vmatprep.subr.mxu0 0.0
      %264 = vmatpush1.msra.mxu0 %v253
      %265 = vmatprep.subr.mxu0 0.0
      %266 = vmatpush1.msra.mxu0 %v254
      %267 = vmatprep.subr.mxu0 0.0
      %268 = vmatpush1.msra.mxu0 0.0
      %269 = vmatprep.subr.mxu0 0.0
      %270 = vmatpush1.msra.mxu0 0.0
      %271 = vmatprep.subr.mxu0 0.0
      %272 = vmatpush1.msra.mxu0 0.0
      %273 = vmatprep.subr.mxu0 0.0
      %274 = vmatpush1.msra.mxu0 0.0
      %275 = vmatprep.subr.mxu0 0.0
      %276 = vmatpush1.msra.mxu0 0.0
      %277 = vmatprep.subr.mxu0 0.0
      %278 = vmatpush1.msra.mxu0 0.0
      %279 = vmatprep.subr.mxu0 0.0
      %280 = vmatpush1.msra.mxu0 0.0
      %281 = vmatprep.subr.mxu0 0.0
      %282 = vmatpush1.msra.mxu0 0.0
      %283 = vmatprep.subr.mxu0 0.0
      %284 = vmatpush1.msra.mxu0 0.0
      %285 = vmatprep.subr.mxu0 0.0
      %286 = vmatpush1.msra.mxu0 0.0
      %287 = vmatprep.subr.mxu0 0.0
      %288 = vmatpush1.msra.mxu0 0.0
      %289 = vmatprep.subr.mxu0 0.0
      %290 = vmatpush1.msra.mxu0 0.0
      %291 = vmatprep.subr.mxu0 0.0
      %292 = vmatpush1.msra.mxu0 0.0
      %293 = vmatprep.subr.mxu0 0.0
      %294 = vmatpush1.msra.mxu0 0.0
      %295 = vmatprep.subr.mxu0 0.0
      %296 = vmatpush1.msra.mxu0 0.0
      %297 = vmatprep.subr.mxu0 0.0
      %298 = vmatpush1.msra.mxu0 0.0
      %299 = vmatprep.subr.mxu0 0.0
      %300 = vmatpush1.msra.mxu0 0.0
      %301 = vmatprep.subr.mxu0 0.0
      %302 = vmatpush1.msra.mxu0 0.0
      %303 = vmatprep.subr.mxu0 0.0
      %304 = vmatpush1.msra.mxu0 0.0
      %305 = vmatprep.subr.mxu0 0.0
      %306 = vmatpush1.msra.mxu0 0.0
      %307 = vmatprep.subr.mxu0 0.0
      %308 = vmatpush1.msra.mxu0 0.0
      %309 = vmatprep.subr.mxu0 0.0
      %310 = vmatpush1.msra.mxu0 0.0
      %311 = vmatprep.subr.mxu0 0.0
      %312 = vmatpush1.msra.mxu0 0.0
      %313 = vmatprep.subr.mxu0 0.0
      %314 = vmatpush1.msra.mxu0 0.0
      %315 = vmatprep.subr.mxu0 0.0
      %316 = vmatpush1.msra.mxu0 0.0
      %317 = vmatprep.subr.mxu0 0.0
      %318 = vmatpush1.msra.mxu0 0.0
      %319 = vmatprep.subr.mxu0 0.0
      %320 = vmatpush1.msra.mxu0 0.0
      %321 = vmatprep.subr.mxu0 0.0
      %322 = vmatpush1.msra.mxu0 0.0
      %323 = vmatprep.mubr.f32.mxu0 0.0
      %324 = vmatmul.mubr.f32.gmra.mrb[0].mxu0 %v257
      %v325 = vpop.f32.mrb[0].mxu0
      %v326 = vadd.f32 0.0, %v325
      %v327 = vpop.f32.mrb[0].mxu0
      %328 = vdwg.mxu0
      %v329 = vadd.f32 %v250, %v326
      %v330 = vxor.u32 %v329, 2147483648
      %v331 = vmul.f32 %v330, 1.442695
      %v332 = vpow.pop %v331
      %v333 = vadd.f32 %v332, 1.0
      %v334 = vrcp.pop %v333
      %v335 = vmul.f32 1.0, %v334
      %v336 = vtanh.pop %v329
      %v339 = vunpack.c.l.s4 1983009808
      %v340 = vunpack.c.0.s8 %v339
      %v341 = vlaneseq
      %v342 = vshrl.u32 %v341, 7
      %v343 = vsub.s32 %v340, %v342
      %v344 = vrot.slane %v249, %v343
      %345 = vrot.lane.b32.xlu0 %v344, 32
      %v346 = vpop.permute.xlu0 %345
      %v348 = vmul.f32 %v335, %v346
      %350 = vrot.lane.b32.xlu0 %v336, 64
      %v351 = vpop.permute.xlu0 %350
      %v353 = vmul.f32 %v335, %v351
      %355 = vrot.lane.b32.xlu0 %v353, 32
      %v356 = vpop.permute.xlu0 %355
      %v358 = vadd.f32 %v348, %v356
      %v359 = vtanh.pop %v358
      %361 = vrot.lane.b32.xlu0 %v359, 64
      %v362 = vpop.permute.xlu0 %361
      %v364 = vmul.f32 %v335, %v362
      %v367 = vunpack.c.l.s4 1983009808
      %v368 = vunpack.c.0.s8 %v367
      %v369 = vlaneseq
      %v370 = vshrl.u32 %v369, 7
      %v371 = vsub.s32 %v368, %v370
      %v372 = vrot.slane %v364, %v371
      %373 = vrot.lane.b32.xlu0 %v372, 32
      %v374 = vpop.permute.xlu0 %373
      %vm376 = vcmask 254976
      %377 = vst.msk [vmem:[#allocation2] sm:$0x3] %vm376, %v374
      %v380 = vunpack.c.l.s4 1983009808
      %v381 = vunpack.c.0.s8 %v380
      %v382 = vlaneseq
      %v383 = vshrl.u32 %v382, 7
      %v384 = vsub.s32 %v381, %v383
      %v385 = vrot.slane %v358, %v384
      %386 = vrot.lane.b32.xlu0 %v385, 96
      %v387 = vpop.permute.xlu0 %386
      %389 = vst.msk [vmem:[#allocation3] sm:$0x3] %vm376, %v387
      %390 = vst.msk [vmem:[%s232] sm:$0x3] %vm376, %v374
      %s391 = scalar_lea.vmem [#allocation2], 2
      %v392 = vld [vmem:[%s391] sm:$0x3]
      %s393 = scalar_lea.vmem [#allocation3], 2
      %v394 = vld [vmem:[%s393] sm:$0x3]
      %v395 = vld [vmem:[%s227] sm:$0xf]
      %s396 = scalar_lea.vmem %s2, 32
      %v397 = vld [vmem:[%s396] sm:$0xff]
      %v398 = vld [vmem:[%s396 + $0x8] sm:$0xff]
      %v399 = vld [vmem:[%s396 + $0x10] sm:$0xff]
      %v400 = vld [vmem:[%s396 + $0x18] sm:$0xff]
      %v402 = vsel %vm255, %v392, 0
      %404 = vmatprep.subr.mxu0 0.0
      %405 = vmatpush1.msra.mxu0 %v397
      %406 = vmatprep.subr.mxu0 0.0
      %407 = vmatpush1.msra.mxu0 %v398
      %408 = vmatprep.subr.mxu0 0.0
      %409 = vmatpush1.msra.mxu0 %v399
      %410 = vmatprep.subr.mxu0 0.0
      %411 = vmatpush1.msra.mxu0 %v400
      %412 = vmatprep.subr.mxu0 0.0
      %413 = vmatpush1.msra.mxu0 0.0
      %414 = vmatprep.subr.mxu0 0.0
      %415 = vmatpush1.msra.mxu0 0.0
      %416 = vmatprep.subr.mxu0 0.0
      %417 = vmatpush1.msra.mxu0 0.0
      %418 = vmatprep.subr.mxu0 0.0
      %419 = vmatpush1.msra.mxu0 0.0
      %420 = vmatprep.subr.mxu0 0.0
      %421 = vmatpush1.msra.mxu0 0.0
      %422 = vmatprep.subr.mxu0 0.0
      %423 = vmatpush1.msra.mxu0 0.0
      %424 = vmatprep.subr.mxu0 0.0
      %425 = vmatpush1.msra.mxu0 0.0
      %426 = vmatprep.subr.mxu0 0.0
      %427 = vmatpush1.msra.mxu0 0.0
      %428 = vmatprep.subr.mxu0 0.0
      %429 = vmatpush1.msra.mxu0 0.0
      %430 = vmatprep.subr.mxu0 0.0
      %431 = vmatpush1.msra.mxu0 0.0
      %432 = vmatprep.subr.mxu0 0.0
      %433 = vmatpush1.msra.mxu0 0.0
      %434 = vmatprep.subr.mxu0 0.0
      %435 = vmatpush1.msra.mxu0 0.0
      %436 = vmatprep.subr.mxu0 0.0
      %437 = vmatpush1.msra.mxu0 0.0
      %438 = vmatprep.subr.mxu0 0.0
      %439 = vmatpush1.msra.mxu0 0.0
      %440 = vmatprep.subr.mxu0 0.0
      %441 = vmatpush1.msra.mxu0 0.0
      %442 = vmatprep.subr.mxu0 0.0
      %443 = vmatpush1.msra.mxu0 0.0
      %444 = vmatprep.subr.mxu0 0.0
      %445 = vmatpush1.msra.mxu0 0.0
      %446 = vmatprep.subr.mxu0 0.0
      %447 = vmatpush1.msra.mxu0 0.0
      %448 = vmatprep.subr.mxu0 0.0
      %449 = vmatpush1.msra.mxu0 0.0
      %450 = vmatprep.subr.mxu0 0.0
      %451 = vmatpush1.msra.mxu0 0.0
      %452 = vmatprep.subr.mxu0 0.0
      %453 = vmatpush1.msra.mxu0 0.0
      %454 = vmatprep.subr.mxu0 0.0
      %455 = vmatpush1.msra.mxu0 0.0
      %456 = vmatprep.subr.mxu0 0.0
      %457 = vmatpush1.msra.mxu0 0.0
      %458 = vmatprep.subr.mxu0 0.0
      %459 = vmatpush1.msra.mxu0 0.0
      %460 = vmatprep.subr.mxu0 0.0
      %461 = vmatpush1.msra.mxu0 0.0
      %462 = vmatprep.subr.mxu0 0.0
      %463 = vmatpush1.msra.mxu0 0.0
      %464 = vmatprep.subr.mxu0 0.0
      %465 = vmatpush1.msra.mxu0 0.0
      %466 = vmatprep.subr.mxu0 0.0
      %467 = vmatpush1.msra.mxu0 0.0
      %468 = vmatprep.mubr.f32.mxu0 0.0
      %469 = vmatmul.mubr.f32.gmra.mrb[0].mxu0 %v402
      %v470 = vpop.f32.mrb[0].mxu0
      %v471 = vadd.f32 0.0, %v470
      %v472 = vpop.f32.mrb[0].mxu0
      %473 = vdwg.mxu0
      %v475 = vrot.slane %v395, 2
      %v477 = vadd.f32 %v475, %v471
      %v478 = vxor.u32 %v477, 2147483648
      %v479 = vmul.f32 %v478, 1.442695
      %v480 = vpow.pop %v479
      %v481 = vadd.f32 %v480, 1.0
      %v482 = vrcp.pop %v481
      %v483 = vmul.f32 1.0, %v482
      %v484 = vtanh.pop %v477
      %v487 = vunpack.c.l.s4 1983009808
      %v488 = vunpack.c.0.s8 %v487
      %v489 = vlaneseq
      %v490 = vshrl.u32 %v489, 7
      %v491 = vsub.s32 %v488, %v490
      %v492 = vrot.slane %v394, %v491
      %493 = vrot.lane.b32.xlu0 %v492, 32
      %v494 = vpop.permute.xlu0 %493
      %v496 = vmul.f32 %v483, %v494
      %498 = vrot.lane.b32.xlu0 %v484, 64
      %v499 = vpop.permute.xlu0 %498
      %v501 = vmul.f32 %v483, %v499
      %503 = vrot.lane.b32.xlu0 %v501, 32
      %v504 = vpop.permute.xlu0 %503
      %v506 = vadd.f32 %v496, %v504
      %v507 = vtanh.pop %v506
      %509 = vrot.lane.b32.xlu0 %v507, 64
      %v510 = vpop.permute.xlu0 %509
      %v512 = vmul.f32 %v483, %v510
      %v515 = vunpack.c.l.s4 1983009808
      %v516 = vunpack.c.0.s8 %v515
      %v517 = vlaneseq
      %v518 = vshrl.u32 %v517, 7
      %v519 = vsub.s32 %v516, %v518
      %v520 = vrot.slane %v512, %v519
      %521 = vrot.lane.b32.xlu0 %v520, 32
      %v522 = vpop.permute.xlu0 %521
      %524 = vst.msk [vmem:[%s391] sm:$0x3] %vm376, %v522
      %v527 = vunpack.c.l.s4 1983009808
      %v528 = vunpack.c.0.s8 %v527
      %v529 = vlaneseq
      %v530 = vshrl.u32 %v529, 7
      %v531 = vsub.s32 %v528, %v530
      %v532 = vrot.slane %v506, %v531
      %533 = vrot.lane.b32.xlu0 %v532, 96
      %v534 = vpop.permute.xlu0 %533
      %536 = vst.msk [vmem:[%s393] sm:$0x3] %vm376, %v534
      %537 = vst.msk [vmem:[%s237] sm:$0x3] %vm376, %v522
      %p538 = scmp.lt.s32.totalorder %s16, 7
      %s539 = scalar_select %p538, %s16, 7
      %s540 = smul.addr %s539, 2
      %s541 = scalar_lea.vmem %s3, %s540
      %s542 = ssub.s32 7, %s16
      %p543 = scmp.lt.s32.totalorder %s542, 7
      %s544 = scalar_select %p543, %s542, 7
      %s545 = smul.addr %s544, 2
      %s546 = scalar_lea.vmem %s4, %s545
      // Predicated region
      $region37: #{_lambda_.23} parent=31 // pred_check
        %p547 = pneg %p109
      $region38: #{_lambda_.23} parent=31 // pred_check_branch
        %549 = sbr.rel (%p547) target = $region40
      $region39: #{_lambda_.23} parent=31 // pred_region
        _
      $region40: #{_lambda_.23} parent=31 // pred_fallthru
        _
      // Predicated region
      $region41: #{_lambda_.23} parent=31 // pred_check
        %p550 = pneg %p137
      $region42: #{_lambda_.23} parent=31 // pred_check_branch
        %552 = sbr.rel (%p550) target = $region44
      $region43: #{_lambda_.23} parent=31 // pred_region
        %s553 = ssub.s32 7, %s16
      $region44: #{_lambda_.23} parent=31 // pred_fallthru
        _
    $region32: #{_lambda_.23} parent=5 // pred_fallthru
      _
    %p554 = scmp.le.s32.totalorder 2, %s11
    // Predicated region
    $region45: #{_lambda_.23} parent=5 // pred_check
      %p555 = pneg %p554
    $region46: #{_lambda_.23} parent=5 // pred_check_branch
      %557 = sbr.rel (%p555) target = $region48
    $region47: #{_lambda_.23} parent=5 // pred_region
      %s558 = ssub.s32 %s11, 2
      // Predicated region
      $region49: #{_lambda_.23} parent=47 // pred_check
        %p559 = pneg %p115
      $region50: #{_lambda_.23} parent=47 // pred_check_branch
        %561 = sbr.rel (%p559) target = $region52
      $region51: #{_lambda_.23} parent=47 // pred_region
        %p562 = scmp.lt.s32.totalorder %s17, 7
        %s563 = scalar_select %p562, %s17, 7
        %s564 = smul.addr %s563, 2
        %s565 = scalar_lea.vmem %s3, %s564
      $region52: #{_lambda_.23} parent=47 // pred_fallthru
        _
      // Predicated region
      $region53: #{_lambda_.23} parent=47 // pred_check
        %p566 = pneg %p143
      $region54: #{_lambda_.23} parent=47 // pred_check_branch
        %568 = sbr.rel (%p566) target = $region56
      $region55: #{_lambda_.23} parent=47 // pred_region
        %s569 = ssub.s32 7, %s17
        %p570 = scmp.lt.s32.totalorder %s569, 7
        %s571 = scalar_select %p570, %s569, 7
        %s572 = smul.addr %s571, 2
        %s573 = scalar_lea.vmem %s4, %s572
      $region56: #{_lambda_.23} parent=47 // pred_fallthru
        _
    $region48: #{_lambda_.23} parent=5 // pred_fallthru
      _
  $region6: #{_lambda_.23} parent=0 // loop_footer
    %s15 = sadd.s32 1, %s11
  $region7: #{_lambda_.23} parent=0 // loop_footer_branch
    %10 = sbr.rel target = $region3
  $region8: #{_lambda_.23} parent=0 // loop_exit
    _

// kernel: _lambda_.28
$region0: #{_lambda_.28}
  #allocation0 [shape = 'u32[]', space=smem, size = 0x4, offset = 0x4, fixed_abs, tag = 'smem constant byte address 0x4 - core index']
  #allocation1 [shape = 'u32[144,128]{1,0:T(1,128)}', space=vmem, size = 0x12000, scoped, tag = 'internal scratch']
  %s0 = inlined_call_operand.vmem [shape: f32[16,32], index: 0, kind: input, shape index: {}]
  %s1 = inlined_call_operand.vmem [shape: f32[32,32], index: 1, kind: input, shape index: {}]
  %s2 = inlined_call_operand.vmem [shape: f32[1,32], index: 2, kind: input, shape index: {}]
  %s3 = inlined_call_operand.vmem [shape: f32[16,32], index: 3, kind: output, shape index: {}]
  %s4 = sld [smem:[#allocation0]]
  $region22: #{_lambda_.28} parent=0
    _
  %s6 = ssub.s32 1, %s4
  %s7 = scalar_select 0, %s6, %s4
  // Predicated region
  $region2: #{_lambda_.28} parent=0 // pred_check
    _
  $region3: #{_lambda_.28} parent=0 // pred_check_branch
    %9 = sbr.rel (0) target = $region5
  $region4: #{_lambda_.28} parent=0 // pred_region
    _
  $region5: #{_lambda_.28} parent=0 // pred_fallthru
    _
  // Predicated region
  $region6: #{_lambda_.28} parent=0 // pred_check
    _
  $region7: #{_lambda_.28} parent=0 // pred_check_branch
    %11 = sbr.rel (0) target = $region9
  $region8: #{_lambda_.28} parent=0 // pred_region
    _
  $region9: #{_lambda_.28} parent=0 // pred_fallthru
    _
  // Predicated region
  $region10: #{_lambda_.28} parent=0 // pred_check
    _
  $region11: #{_lambda_.28} parent=0 // pred_check_branch
    %13 = sbr.rel (0) target = $region13
  $region12: #{_lambda_.28} parent=0 // pred_region
    _
  $region13: #{_lambda_.28} parent=0 // pred_fallthru
    _
  %v14 = vld [vmem:[%s0] sm:$0xff]
  %v15 = vld [vmem:[%s0 + $0x8] sm:$0xff]
  %v16 = vld [vmem:[%s1] sm:$0xff]
  %v17 = vld [vmem:[%s1 + $0x8] sm:$0xff]
  %v18 = vld [vmem:[%s1 + $0x10] sm:$0xff]
  %v19 = vld [vmem:[%s1 + $0x18] sm:$0xff]
  %v20 = vld [vmem:[%s2] sm:$0x1]
  %v22 = vlaneseq
  %v23 = vshrl.u32 %v22, 7
  %v24 = vsub.s32 0, %v23
  %v25 = vrot.slane %v20, %v24
  %vm27 = vcmask 261120
  %v29 = vsel %vm27, %v14, 0
  %v32 = vsel %vm27, %v15, 0
  %34 = vmatprep.subr.mxu0 0.0
  %35 = vmatpush1.msra.mxu0 %v16
  %36 = vmatprep.subr.mxu0 0.0
  %37 = vmatpush1.msra.mxu0 %v17
  %38 = vmatprep.subr.mxu0 0.0
  %39 = vmatpush1.msra.mxu0 %v18
  %40 = vmatprep.subr.mxu0 0.0
  %41 = vmatpush1.msra.mxu0 %v19
  %42 = vmatprep.subr.mxu0 0.0
  %43 = vmatpush1.msra.mxu0 0.0
  %44 = vmatprep.subr.mxu0 0.0
  %45 = vmatpush1.msra.mxu0 0.0
  %46 = vmatprep.subr.mxu0 0.0
  %47 = vmatpush1.msra.mxu0 0.0
  %48 = vmatprep.subr.mxu0 0.0
  %49 = vmatpush1.msra.mxu0 0.0
  %50 = vmatprep.subr.mxu0 0.0
  %51 = vmatpush1.msra.mxu0 0.0
  %52 = vmatprep.subr.mxu0 0.0
  %53 = vmatpush1.msra.mxu0 0.0
  %54 = vmatprep.subr.mxu0 0.0
  %55 = vmatpush1.msra.mxu0 0.0
  %56 = vmatprep.subr.mxu0 0.0
  %57 = vmatpush1.msra.mxu0 0.0
  %58 = vmatprep.subr.mxu0 0.0
  %59 = vmatpush1.msra.mxu0 0.0
  %60 = vmatprep.subr.mxu0 0.0
  %61 = vmatpush1.msra.mxu0 0.0
  %62 = vmatprep.subr.mxu0 0.0
  %63 = vmatpush1.msra.mxu0 0.0
  %64 = vmatprep.subr.mxu0 0.0
  %65 = vmatpush1.msra.mxu0 0.0
  %66 = vmatprep.subr.mxu0 0.0
  %67 = vmatpush1.msra.mxu0 0.0
  %68 = vmatprep.subr.mxu0 0.0
  %69 = vmatpush1.msra.mxu0 0.0
  %70 = vmatprep.subr.mxu0 0.0
  %71 = vmatpush1.msra.mxu0 0.0
  %72 = vmatprep.subr.mxu0 0.0
  %73 = vmatpush1.msra.mxu0 0.0
  %74 = vmatprep.subr.mxu0 0.0
  %75 = vmatpush1.msra.mxu0 0.0
  %76 = vmatprep.subr.mxu0 0.0
  %77 = vmatpush1.msra.mxu0 0.0
  %78 = vmatprep.subr.mxu0 0.0
  %79 = vmatpush1.msra.mxu0 0.0
  %80 = vmatprep.subr.mxu0 0.0
  %81 = vmatpush1.msra.mxu0 0.0
  %82 = vmatprep.subr.mxu0 0.0
  %83 = vmatpush1.msra.mxu0 0.0
  %84 = vmatprep.subr.mxu0 0.0
  %85 = vmatpush1.msra.mxu0 0.0
  %86 = vmatprep.subr.mxu0 0.0
  %87 = vmatpush1.msra.mxu0 0.0
  %88 = vmatprep.subr.mxu0 0.0
  %89 = vmatpush1.msra.mxu0 0.0
  %90 = vmatprep.subr.mxu0 0.0
  %91 = vmatpush1.msra.mxu0 0.0
  %92 = vmatprep.subr.mxu0 0.0
  %93 = vmatpush1.msra.mxu0 0.0
  %94 = vmatprep.subr.mxu0 0.0
  %95 = vmatpush1.msra.mxu0 0.0
  %96 = vmatprep.subr.mxu0 0.0
  %97 = vmatpush1.msra.mxu0 0.0
  %98 = vmatprep.mubr.f32.mxu0 0.0
  %99 = vmatmul.mubr.f32.gmra.mrb[0].mxu0 %v29
  %v100 = vpop.f32.mrb[0].mxu0
  %v101 = vadd.f32 %v25, %v100
  %v102 = vpop.f32.mrb[0].mxu0
  %103 = vmatprep.mubr.f32.mxu0 0.0
  %104 = vmatmul.mubr.f32.gmra.mrb[0].mxu0 %v32
  %v105 = vpop.f32.mrb[0].mxu0
  %v106 = vadd.f32 %v25, %v105
  %v107 = vpop.f32.mrb[0].mxu0
  %108 = vdwg.mxu0
  %109 = vst.msk [vmem:[%s3] sm:$0xff] %vm27, %v101
  %110 = vst.msk [vmem:[%s3 + $0x8] sm:$0xff] %vm27, %v106
  // Predicated region
  $region14: #{_lambda_.28} parent=0 // pred_check
    _
  $region15: #{_lambda_.28} parent=0 // pred_check_branch
    %112 = sbr.rel (0) target = $region17
  $region16: #{_lambda_.28} parent=0 // pred_region
    _
  $region17: #{_lambda_.28} parent=0 // pred_fallthru
    _
  // Predicated region
  $region18: #{_lambda_.28} parent=0 // pred_check
    _
  $region19: #{_lambda_.28} parent=0 // pred_check_branch
    %114 = sbr.rel (0) target = $region21
  $region20: #{_lambda_.28} parent=0 // pred_region
    _
  $region21: #{_lambda_.28} parent=0 // pred_fallthru
    _

// kernel: _lambda_.29
$region0: #{_lambda_.29}
  #allocation0 [shape = 'u32[]', space=smem, size = 0x4, offset = 0x4, fixed_abs, tag = 'smem constant byte address 0x4 - core index']
  #allocation1 [shape = 'u32[144,128]{1,0:T(1,128)}', space=vmem, size = 0x12000, scoped, tag = 'internal scratch']
  #allocation2 [shape = 'f32[2,32]{1,0:T(2,128)}', space=vmem, size = 0x400, scoped, tag = 'scratch operand']
  #allocation3 [shape = 'f32[2,32]{1,0:T(2,128)}', space=vmem, size = 0x400, scoped, tag = 'scratch operand']
  #allocation4 [shape = 'f32[2,128]{1,0:T(2,128)}', space=vmem, size = 0x400, scoped, tag = 'scratch operand']
  %s0 = inlined_call_operand.vmem [shape: f32[2,8,32], index: 0, kind: input, shape index: {}]
  %s1 = inlined_call_operand.vmem [shape: f32[2,8,32], index: 1, kind: input, shape index: {}]
  %s2 = inlined_call_operand.vmem [shape: f32[32,32], index: 2, kind: input, shape index: {}]
  %s3 = inlined_call_operand.vmem [shape: f32[1,32], index: 3, kind: input, shape index: {}]
  %s4 = inlined_call_operand.vmem [shape: f32[1,32], index: 4, kind: input, shape index: {}]
  %s5 = inlined_call_operand.vmem [shape: f32[192,128], index: 5, kind: input, shape index: {}]
  %s6 = inlined_call_operand.vmem [shape: f32[1,128], index: 6, kind: input, shape index: {}]
  %s7 = inlined_call_operand.vmem [shape: f32[32,128], index: 7, kind: input, shape index: {}]
  %s8 = inlined_call_operand.vmem [shape: f32[1,128], index: 8, kind: input, shape index: {}]
  %s9 = inlined_call_operand.vmem [shape: f32[9,2,128], index: 9, kind: output, shape index: {}]
  %s10 = sld [smem:[#allocation0]]
  $region73: #{_lambda_.29} parent=0
    _
  %s12 = ssub.s32 1, %s10
  %s13 = scalar_select 0, %s12, %s10
  loop: start=0, step=1, limit=11
  $region2: #{_lambda_.29} parent=0 // loop_pre_header
    _
  $region3: #{_lambda_.29} parent=0 // loop_header
    %s15 = sphi 0, %s19
    %p16 = scmp.ge.s32.totalorder %s15, 11
    %s23 = sphi 0, %s23
    %s25 = sphi 0, %s23
    %s26 = sphi 0, %s25
    %s40 = sphi 0, %s26
    %s44 = sphi 0, %s44
    %s46 = sphi 0, %s44
    %s47 = sphi 0, %s46
    %s61 = sphi 0, %s47
    %s65 = sphi 0, %s65
    %s67 = sphi 0, %s65
    %s68 = sphi 0, %s67
    %s82 = sphi 0, %s68
    %s86 = sphi 0, %s86
    %s88 = sphi 0, %s86
    %s89 = sphi 0, %s88
    %s103 = sphi 0, %s89
    %s107 = sphi 0, %s107
    %s109 = sphi 0, %s107
    %s110 = sphi 0, %s109
    %s124 = sphi 0, %s110
    %s128 = sphi 0, %s128
    %s130 = sphi 0, %s128
    %s131 = sphi 0, %s130
    %s145 = sphi 0, %s131
    %s149 = sphi 0, %s149
    %s151 = sphi 0, %s149
    %s152 = sphi 0, %s151
    %s166 = sphi 0, %s152
    %s170 = sphi 0, %s170
    %s172 = sphi 0, %s170
    %s173 = sphi 0, %s172
    %s187 = sphi 0, %s173
    %s191 = sphi 0, %s191
    %s193 = sphi 0, %s191
    %s194 = sphi 0, %s193
    %s208 = sphi 0, %s194
    %s214 = sphi 0, %s216
    %s217 = sphi 0, %s214
    %s218 = sphi 0, %s217
    %s234 = sphi 0, %s218
  $region4: #{_lambda_.29} parent=0 // loop_header_branch
    %18 = sbr.rel (%p16) target = $region8
  $region5: #{_lambda_.29} parent=0 // loop_body
    %s20 = ssub.s32 %s15, 1
    %s21 = ssub.s32 %s15, 2
    %s22 = sadd.s32 %s15, 1
    %s24 = sadd.s32 %s23, 1
    %p27 = scmp.eq.s32.totalorder %s15, 8
    %p28 = scmp.ne.s32.totalorder %s23, %s25
    %p29 = scmp.eq.s32.totalorder %s15, 0
    %p30 = por %p28, %p29
    %p31 = scmp.ne.s32.totalorder %s23, %s25
    %p32 = scmp.eq.s32.totalorder %s20, 8
    %p33 = por %p31, %p32
    %p34 = scmp.ne.s32.totalorder %s25, %s26
    %p35 = scmp.eq.s32.totalorder %s20, 0
    %p36 = por %p34, %p35
    %p37 = scmp.ne.s32.totalorder %s25, %s26
    %p38 = scmp.eq.s32.totalorder %s21, 8
    %p39 = por %p37, %p38
    %p41 = scmp.ne.s32.totalorder %s26, %s40
    %p42 = scmp.eq.s32.totalorder %s21, 0
    %p43 = por %p41, %p42
    %s45 = sadd.s32 %s44, 1
    %p48 = scmp.eq.s32.totalorder %s15, 8
    %p49 = scmp.ne.s32.totalorder %s44, %s46
    %p50 = scmp.eq.s32.totalorder %s15, 0
    %p51 = por %p49, %p50
    %p52 = scmp.ne.s32.totalorder %s44, %s46
    %p53 = scmp.eq.s32.totalorder %s20, 8
    %p54 = por %p52, %p53
    %p55 = scmp.ne.s32.totalorder %s46, %s47
    %p56 = scmp.eq.s32.totalorder %s20, 0
    %p57 = por %p55, %p56
    %p58 = scmp.ne.s32.totalorder %s46, %s47
    %p59 = scmp.eq.s32.totalorder %s21, 8
    %p60 = por %p58, %p59
    %p62 = scmp.ne.s32.totalorder %s47, %s61
    %p63 = scmp.eq.s32.totalorder %s21, 0
    %p64 = por %p62, %p63
    %s66 = sadd.s32 %s65, 1
    %p69 = scmp.eq.s32.totalorder %s15, 8
    %p70 = scmp.ne.s32.totalorder %s65, %s67
    %p71 = scmp.eq.s32.totalorder %s15, 0
    %p72 = por %p70, %p71
    %p73 = scmp.ne.s32.totalorder %s65, %s67
    %p74 = scmp.eq.s32.totalorder %s20, 8
    %p75 = por %p73, %p74
    %p76 = scmp.ne.s32.totalorder %s67, %s68
    %p77 = scmp.eq.s32.totalorder %s20, 0
    %p78 = por %p76, %p77
    %p79 = scmp.ne.s32.totalorder %s67, %s68
    %p80 = scmp.eq.s32.totalorder %s21, 8
    %p81 = por %p79, %p80
    %p83 = scmp.ne.s32.totalorder %s68, %s82
    %p84 = scmp.eq.s32.totalorder %s21, 0
    %p85 = por %p83, %p84
    %s87 = sadd.s32 %s86, 1
    %p90 = scmp.eq.s32.totalorder %s15, 8
    %p91 = scmp.ne.s32.totalorder %s86, %s88
    %p92 = scmp.eq.s32.totalorder %s15, 0
    %p93 = por %p91, %p92
    %p94 = scmp.ne.s32.totalorder %s86, %s88
    %p95 = scmp.eq.s32.totalorder %s20, 8
    %p96 = por %p94, %p95
    %p97 = scmp.ne.s32.totalorder %s88, %s89
    %p98 = scmp.eq.s32.totalorder %s20, 0
    %p99 = por %p97, %p98
    %p100 = scmp.ne.s32.totalorder %s88, %s89
    %p101 = scmp.eq.s32.totalorder %s21, 8
    %p102 = por %p100, %p101
    %p104 = scmp.ne.s32.totalorder %s89, %s103
    %p105 = scmp.eq.s32.totalorder %s21, 0
    %p106 = por %p104, %p105
    %s108 = sadd.s32 %s107, 1
    %p111 = scmp.eq.s32.totalorder %s15, 8
    %p112 = scmp.ne.s32.totalorder %s107, %s109
    %p113 = scmp.eq.s32.totalorder %s15, 0
    %p114 = por %p112, %p113
    %p115 = scmp.ne.s32.totalorder %s107, %s109
    %p116 = scmp.eq.s32.totalorder %s20, 8
    %p117 = por %p115, %p116
    %p118 = scmp.ne.s32.totalorder %s109, %s110
    %p119 = scmp.eq.s32.totalorder %s20, 0
    %p120 = por %p118, %p119
    %p121 = scmp.ne.s32.totalorder %s109, %s110
    %p122 = scmp.eq.s32.totalorder %s21, 8
    %p123 = por %p121, %p122
    %p125 = scmp.ne.s32.totalorder %s110, %s124
    %p126 = scmp.eq.s32.totalorder %s21, 0
    %p127 = por %p125, %p126
    %s129 = sadd.s32 %s128, 1
    %p132 = scmp.eq.s32.totalorder %s15, 8
    %p133 = scmp.ne.s32.totalorder %s128, %s130
    %p134 = scmp.eq.s32.totalorder %s15, 0
    %p135 = por %p133, %p134
    %p136 = scmp.ne.s32.totalorder %s128, %s130
    %p137 = scmp.eq.s32.totalorder %s20, 8
    %p138 = por %p136, %p137
    %p139 = scmp.ne.s32.totalorder %s130, %s131
    %p140 = scmp.eq.s32.totalorder %s20, 0
    %p141 = por %p139, %p140
    %p142 = scmp.ne.s32.totalorder %s130, %s131
    %p143 = scmp.eq.s32.totalorder %s21, 8
    %p144 = por %p142, %p143
    %p146 = scmp.ne.s32.totalorder %s131, %s145
    %p147 = scmp.eq.s32.totalorder %s21, 0
    %p148 = por %p146, %p147
    %s150 = sadd.s32 %s149, 1
    %p153 = scmp.eq.s32.totalorder %s15, 8
    %p154 = scmp.ne.s32.totalorder %s149, %s151
    %p155 = scmp.eq.s32.totalorder %s15, 0
    %p156 = por %p154, %p155
    %p157 = scmp.ne.s32.totalorder %s149, %s151
    %p158 = scmp.eq.s32.totalorder %s20, 8
    %p159 = por %p157, %p158
    %p160 = scmp.ne.s32.totalorder %s151, %s152
    %p161 = scmp.eq.s32.totalorder %s20, 0
    %p162 = por %p160, %p161
    %p163 = scmp.ne.s32.totalorder %s151, %s152
    %p164 = scmp.eq.s32.totalorder %s21, 8
    %p165 = por %p163, %p164
    %p167 = scmp.ne.s32.totalorder %s152, %s166
    %p168 = scmp.eq.s32.totalorder %s21, 0
    %p169 = por %p167, %p168
    %s171 = sadd.s32 %s170, 1
    %p174 = scmp.eq.s32.totalorder %s15, 8
    %p175 = scmp.ne.s32.totalorder %s170, %s172
    %p176 = scmp.eq.s32.totalorder %s15, 0
    %p177 = por %p175, %p176
    %p178 = scmp.ne.s32.totalorder %s170, %s172
    %p179 = scmp.eq.s32.totalorder %s20, 8
    %p180 = por %p178, %p179
    %p181 = scmp.ne.s32.totalorder %s172, %s173
    %p182 = scmp.eq.s32.totalorder %s20, 0
    %p183 = por %p181, %p182
    %p184 = scmp.ne.s32.totalorder %s172, %s173
    %p185 = scmp.eq.s32.totalorder %s21, 8
    %p186 = por %p184, %p185
    %p188 = scmp.ne.s32.totalorder %s173, %s187
    %p189 = scmp.eq.s32.totalorder %s21, 0
    %p190 = por %p188, %p189
    %s192 = sadd.s32 %s191, 1
    %p195 = scmp.eq.s32.totalorder %s15, 8
    %p196 = scmp.ne.s32.totalorder %s191, %s193
    %p197 = scmp.eq.s32.totalorder %s15, 0
    %p198 = por %p196, %p197
    %p199 = scmp.ne.s32.totalorder %s191, %s193
    %p200 = scmp.eq.s32.totalorder %s20, 8
    %p201 = por %p199, %p200
    %p202 = scmp.ne.s32.totalorder %s193, %s194
    %p203 = scmp.eq.s32.totalorder %s20, 0
    %p204 = por %p202, %p203
    %p205 = scmp.ne.s32.totalorder %s193, %s194
    %p206 = scmp.eq.s32.totalorder %s21, 8
    %p207 = por %p205, %p206
    %p209 = scmp.ne.s32.totalorder %s194, %s208
    %p210 = scmp.eq.s32.totalorder %s21, 0
    %p211 = por %p209, %p210
    %s212 = ssub.s32 %s15, %s22
    %p213 = scmp.eq.s32.totalorder %s212, 0
    %s215 = sadd.s32 %s214, 1
    %s216 = scalar_select %p213, %s214, %s215
    %p219 = pneg %p213
    %p220 = scmp.eq.s32.totalorder %s15, 8
    %p221 = por %p219, %p220
    %p222 = scmp.ne.s32.totalorder %s214, %s217
    %p223 = scmp.eq.s32.totalorder %s15, 0
    %p224 = por %p222, %p223
    %p225 = scmp.ne.s32.totalorder %s214, %s217
    %p226 = scmp.eq.s32.totalorder %s20, 8
    %p227 = por %p225, %p226
    %p228 = scmp.ne.s32.totalorder %s217, %s218
    %p229 = scmp.eq.s32.totalorder %s20, 0
    %p230 = por %p228, %p229
    %p231 = scmp.ne.s32.totalorder %s217, %s218
    %p232 = scmp.eq.s32.totalorder %s21, 8
    %p233 = por %p231, %p232
    %p235 = scmp.ne.s32.totalorder %s218, %s234
    %p236 = scmp.eq.s32.totalorder %s21, 0
    %p237 = por %p235, %p236
    %p238 = scmp.le.s32.totalorder 1, %s15
    %p239 = scmp.lt.s32.totalorder %s15, 10
    %p240 = pnand %p238, %p239
    %p241 = pneg %p240
    // Predicated region
    $region9: #{_lambda_.29} parent=5 // pred_check
      _
    $region10: #{_lambda_.29} parent=5 // pred_check_branch
      %243 = sbr.rel (%p240) target = $region12
    $region11: #{_lambda_.29} parent=5 // pred_region
      %s244 = ssub.s32 %s15, 1
      // Predicated region
      $region13: #{_lambda_.29} parent=11 // pred_check
        %p245 = pneg %p36
      $region14: #{_lambda_.29} parent=11 // pred_check_branch
        %247 = sbr.rel (%p245) target = $region16
      $region15: #{_lambda_.29} parent=11 // pred_region
        _
      $region16: #{_lambda_.29} parent=11 // pred_fallthru
        _
      // Predicated region
      $region17: #{_lambda_.29} parent=11 // pred_check
        %p248 = pneg %p57
      $region18: #{_lambda_.29} parent=11 // pred_check_branch
        %250 = sbr.rel (%p248) target = $region20
      $region19: #{_lambda_.29} parent=11 // pred_region
        _
      $region20: #{_lambda_.29} parent=11 // pred_fallthru
        _
      // Predicated region
      $region21: #{_lambda_.29} parent=11 // pred_check
        %p251 = pneg %p78
      $region22: #{_lambda_.29} parent=11 // pred_check_branch
        %253 = sbr.rel (%p251) target = $region24
      $region23: #{_lambda_.29} parent=11 // pred_region
        _
      $region24: #{_lambda_.29} parent=11 // pred_fallthru
        _
      // Predicated region
      $region25: #{_lambda_.29} parent=11 // pred_check
        %p254 = pneg %p99
      $region26: #{_lambda_.29} parent=11 // pred_check_branch
        %256 = sbr.rel (%p254) target = $region28
      $region27: #{_lambda_.29} parent=11 // pred_region
        _
      $region28: #{_lambda_.29} parent=11 // pred_fallthru
        _
      // Predicated region
      $region29: #{_lambda_.29} parent=11 // pred_check
        %p257 = pneg %p120
      $region30: #{_lambda_.29} parent=11 // pred_check_branch
        %259 = sbr.rel (%p257) target = $region32
      $region31: #{_lambda_.29} parent=11 // pred_region
        _
      $region32: #{_lambda_.29} parent=11 // pred_fallthru
        _
      // Predicated region
      $region33: #{_lambda_.29} parent=11 // pred_check
        %p260 = pneg %p141
      $region34: #{_lambda_.29} parent=11 // pred_check_branch
        %262 = sbr.rel (%p260) target = $region36
      $region35: #{_lambda_.29} parent=11 // pred_region
        _
      $region36: #{_lambda_.29} parent=11 // pred_fallthru
        _
      // Predicated region
      $region37: #{_lambda_.29} parent=11 // pred_check
        %p263 = pneg %p162
      $region38: #{_lambda_.29} parent=11 // pred_check_branch
        %265 = sbr.rel (%p263) target = $region40
      $region39: #{_lambda_.29} parent=11 // pred_region
        _
      $region40: #{_lambda_.29} parent=11 // pred_fallthru
        _
      // Predicated region
      $region41: #{_lambda_.29} parent=11 // pred_check
        %p266 = pneg %p183
      $region42: #{_lambda_.29} parent=11 // pred_check_branch
        %268 = sbr.rel (%p266) target = $region44
      $region43: #{_lambda_.29} parent=11 // pred_region
        _
      $region44: #{_lambda_.29} parent=11 // pred_fallthru
        _
      // Predicated region
      $region45: #{_lambda_.29} parent=11 // pred_check
        %p269 = pneg %p204
      $region46: #{_lambda_.29} parent=11 // pred_check_branch
        %271 = sbr.rel (%p269) target = $region48
      $region47: #{_lambda_.29} parent=11 // pred_region
        _
      $region48: #{_lambda_.29} parent=11 // pred_fallthru
        _
    $region12: #{_lambda_.29} parent=5 // pred_fallthru
      _
    %p272 = scmp.lt.s32.totalorder %s15, 9
    // Predicated region
    $region49: #{_lambda_.29} parent=5 // pred_check
      %p273 = pneg %p272
    $region50: #{_lambda_.29} parent=5 // pred_check_branch
      %275 = sbr.rel (%p273) target = $region52
    $region51: #{_lambda_.29} parent=5 // pred_region
      _
    $region52: #{_lambda_.29} parent=5 // pred_fallthru
      _
    %p276 = scmp.le.s32.totalorder 1, %s15
    %p277 = scmp.lt.s32.totalorder %s15, 10
    %p278 = pnand %p276, %p277
    %p279 = pneg %p278
    // Predicated region
    $region53: #{_lambda_.29} parent=5 // pred_check
      _
    $region54: #{_lambda_.29} parent=5 // pred_check_branch
      %281 = sbr.rel (%p278) target = $region56
    $region55: #{_lambda_.29} parent=5 // pred_region
      %s282 = ssub.s32 %s15, 1
      %p283 = pneg %p36
      %p284 = pneg %p33
      %p285 = pneg %p57
      %p286 = pneg %p54
      %p287 = pneg %p78
      %p288 = pneg %p75
      %p289 = pneg %p99
      %p290 = pneg %p96
      %p291 = pneg %p120
      %p292 = pneg %p117
      %p293 = pneg %p141
      %p294 = pneg %p138
      %p295 = pneg %p162
      %p296 = pneg %p159
      %p297 = pneg %p183
      %p298 = pneg %p180
      %p299 = pneg %p204
      %p300 = pneg %p201
      %p301 = pneg %p230
      %p302 = pneg %p227
      %p303 = scmp.lt.s32.totalorder %s20, 8
      %s304 = scalar_select %p303, %s20, 8
      %s305 = smul.addr %s304, 2
      %s306 = scalar_lea.vmem %s9, %s305
      %p307 = scmp.lt.s32.totalorder %s20, 8
      %s308 = scalar_select %p307, %s20, 8
      %s309 = smul.addr %s308, 2
      %s310 = scalar_lea.vmem %s9, %s309
      %p311 = scmp.eq.s32.totalorder %s20, 0
      // Predicated region
      $region57: #{_lambda_.29} parent=55 // pred_check
        %p312 = pneg %p311
      $region58: #{_lambda_.29} parent=55 // pred_check_branch
        %314 = sbr.rel (%p312) target = $region60
      $region59: #{_lambda_.29} parent=55 // pred_region
        %vm315 = vcmask 254976
        %316 = vst.msk [vmem:[#allocation2] sm:$0x3] %vm315, 0.0
        %317 = vst.msk [vmem:[#allocation3] sm:$0x3] %vm315, 0.0
        %v318 = vlaneseq
        %v319 = vand.u32 %v318, 127
        %vm320 = vcmp.eq.s32.totalorder %v319, 0
        %v321 = vsel %vm320, 1, 0
        %v322 = vcvt.s32.f32 %v321
        %323 = vst [vmem:[#allocation4] sm:$0x3] %v322
      $region60: #{_lambda_.29} parent=55 // pred_fallthru
        _
      %v324 = vld [vmem:[#allocation2] sm:$0x3]
      %v325 = vld [vmem:[#allocation3] sm:$0x3]
      %v326 = vld [vmem:[%s0] sm:$0xff]
      %v327 = vld [vmem:[%s0 + $0x8] sm:$0xff]
      %v328 = vld [vmem:[%s1] sm:$0xff]
      %v329 = vld [vmem:[%s1 + $0x8] sm:$0xff]
      %v330 = vld [vmem:[%s2] sm:$0xff]
      %v331 = vld [vmem:[%s2 + $0x8] sm:$0xff]
      %v332 = vld [vmem:[%s2 + $0x10] sm:$0xff]
      %v333 = vld [vmem:[%s2 + $0x18] sm:$0xff]
      %v334 = vld [vmem:[%s3] sm:$0x1]
      %v336 = vlaneseq
      %v337 = vshrl.u32 %v336, 7
      %v338 = vsub.s32 0, %v337
      %v339 = vrot.slane %v334, %v338
      %vm341 = vcmask 261120
      %v343 = vsel %vm341, %v324, 0
      %345 = vmatprep.subr.mxu0 0.0
      %346 = vmatpush1.msra.mxu0 %v330
      %347 = vmatprep.subr.mxu0 0.0
      %348 = vmatpush1.msra.mxu0 %v331
      %349 = vmatprep.subr.mxu0 0.0
      %350 = vmatpush1.msra.mxu0 %v332
      %351 = vmatprep.subr.mxu0 0.0
      %352 = vmatpush1.msra.mxu0 %v333
      %353 = vmatprep.subr.mxu0 0.0
      %354 = vmatpush1.msra.mxu0 0.0
      %355 = vmatprep.subr.mxu0 0.0
      %356 = vmatpush1.msra.mxu0 0.0
      %357 = vmatprep.subr.mxu0 0.0
      %358 = vmatpush1.msra.mxu0 0.0
      %359 = vmatprep.subr.mxu0 0.0
      %360 = vmatpush1.msra.mxu0 0.0
      %361 = vmatprep.subr.mxu0 0.0
      %362 = vmatpush1.msra.mxu0 0.0
      %363 = vmatprep.subr.mxu0 0.0
      %364 = vmatpush1.msra.mxu0 0.0
      %365 = vmatprep.subr.mxu0 0.0
      %366 = vmatpush1.msra.mxu0 0.0
      %367 = vmatprep.subr.mxu0 0.0
      %368 = vmatpush1.msra.mxu0 0.0
      %369 = vmatprep.subr.mxu0 0.0
      %370 = vmatpush1.msra.mxu0 0.0
      %371 = vmatprep.subr.mxu0 0.0
      %372 = vmatpush1.msra.mxu0 0.0
      %373 = vmatprep.subr.mxu0 0.0
      %374 = vmatpush1.msra.mxu0 0.0
      %375 = vmatprep.subr.mxu0 0.0
      %376 = vmatpush1.msra.mxu0 0.0
      %377 = vmatprep.subr.mxu0 0.0
      %378 = vmatpush1.msra.mxu0 0.0
      %379 = vmatprep.subr.mxu0 0.0
      %380 = vmatpush1.msra.mxu0 0.0
      %381 = vmatprep.subr.mxu0 0.0
      %382 = vmatpush1.msra.mxu0 0.0
      %383 = vmatprep.subr.mxu0 0.0
      %384 = vmatpush1.msra.mxu0 0.0
      %385 = vmatprep.subr.mxu0 0.0
      %386 = vmatpush1.msra.mxu0 0.0
      %387 = vmatprep.subr.mxu0 0.0
      %388 = vmatpush1.msra.mxu0 0.0
      %389 = vmatprep.subr.mxu0 0.0
      %390 = vmatpush1.msra.mxu0 0.0
      %391 = vmatprep.subr.mxu0 0.0
      %392 = vmatpush1.msra.mxu0 0.0
      %393 = vmatprep.subr.mxu0 0.0
      %394 = vmatpush1.msra.mxu0 0.0
      %395 = vmatprep.subr.mxu0 0.0
      %396 = vmatpush1.msra.mxu0 0.0
      %397 = vmatprep.subr.mxu0 0.0
      %398 = vmatpush1.msra.mxu0 0.0
      %399 = vmatprep.subr.mxu0 0.0
      %400 = vmatpush1.msra.mxu0 0.0
      %401 = vmatprep.subr.mxu0 0.0
      %402 = vmatpush1.msra.mxu0 0.0
      %403 = vmatprep.subr.mxu0 0.0
      %404 = vmatpush1.msra.mxu0 0.0
      %405 = vmatprep.subr.mxu0 0.0
      %406 = vmatpush1.msra.mxu0 0.0
      %407 = vmatprep.subr.mxu0 0.0
      %408 = vmatpush1.msra.mxu0 0.0
      %409 = vmatprep.mubr.f32.mxu0 0.0
      %410 = vmatmul.mubr.f32.gmra.mrb[0].mxu0 %v343
      %v411 = vpop.f32.mrb[0].mxu0
      %v412 = vadd.f32 %v339, %v411
      %v413 = vpop.f32.mrb[0].mxu0
      %414 = vdwg.mxu0
      %v417 = vunpack.c.l.s4 1966171168
      %v418 = vunpack.c.0.s8 %v417
      %v419 = vlaneseq
      %v420 = vshrl.u32 %v419, 7
      %v421 = vsub.s32 %v418, %v420
      %v422 = vrot.slane %v412, %v421
      %v423 = vcombine.high %v422, %v422
      %v425 = vunpack.c.l.s4 1966171168
      %v426 = vunpack.c.0.s8 %v425
      %v427 = vlaneseq
      %v428 = vshrl.u32 %v427, 7
      %v429 = vsub.s32 %v426, %v428
      %v430 = vrot.slane %v422, %v429
      %v432 = vunpack.c.l.s4 1966171168
      %v433 = vunpack.c.0.s8 %v432
      %v434 = vlaneseq
      %v435 = vshrl.u32 %v434, 7
      %v436 = vsub.s32 %v433, %v435
      %v437 = vrot.slane %v423, %v436
      %v438 = vlaneseq
      %v439 = vshrl.u32 %v438, 7
      %v440 = vsub.s32 0, %v439
      %v441 = vrot.slane %v430, %v440
      %v442 = vlaneseq
      %v443 = vshrl.u32 %v442, 7
      %v444 = vsub.s32 0, %v443
      %v445 = vrot.slane %v437, %v444
      %v448 = vadd.f32 %v328, %v441
      %v449 = vadd.f32 %v329, %v445
      %v450 = vtanh.pop %v448
      %v451 = vtanh.pop %v449
      %v452 = vld [vmem:[%s4] sm:$0x1]
      %v454 = vlaneseq
      %v455 = vshrl.u32 %v454, 7
      %v456 = vsub.s32 0, %v455
      %v457 = vrot.slane %v452, %v456
      %v459 = vmul.f32 %v450, %v457
      %v460 = vmul.f32 %v451, %v457
      %v461 = vsel %vm341, %v459, 0.0
      %462 = vadd.xlane.f32.xlu0 %v461
      %v463 = vpop.xlane.xlu0 %462
      %v464 = vsel %vm341, %v460, 0.0
      %465 = vadd.xlane.f32.xlu0 %v464
      %v466 = vpop.xlane.xlu0 %465
      %v469 = vlaneseq
      %v470 = vand.u32 %v469, 127
      %v471 = vlaneseq
      %v472 = vshrl.u32 %v471, 7
      %v473 = vsub.s32 %v470, %v472
      %v474 = vrot.slane %v463, %v473
      %v475 = vlaneseq
      %v476 = vshrl.u32 %v475, 7
      %v477 = vsub.s32 %v470, %v476
      %v478 = vrot.slane %v466, %v477
      %vm479 = vcmask 1041409
      %v480 = vsel %vm479, %v478, %v474
      %vm482 = vcmask 58368
      %v483 = vsel %vm482, %v480, -inf
      %484 = vmax.xlane.f32.xlu0 %v483
      %v485 = vpop.xlane.xlu0 %484
      %v487 = vlaneseq
      %v488 = vshrl.u32 %v487, 7
      %v489 = vsub.s32 0, %v488
      %v490 = vrot.slane %v485, %v489
      %v491 = vlaneseq
      %v492 = vshrl.u32 %v491, 7
      %v493 = vsub.s32 1, %v492
      %v494 = vrot.slane %v485, %v493
      %v497 = vsub.f32 %v463, %v490
      %v498 = vsub.f32 %v466, %v494
      %v499 = vmul.f32 %v497, 1.442695
      %v500 = vpow.pop %v499
      %v501 = vmul.f32 %v498, 1.442695
      %v502 = vpow.pop %v501
      %505 = vset.pattern.permute.xlu0 0
      %506 = vperm.xlu0 %505, %v500
      %v507 = vpop.permute.xlu0 %506
      %508 = vset.pattern.permute.xlu0 0
      %509 = vperm.xlu0 %508, %v502
      %v510 = vpop.permute.xlu0 %509
      %v511 = vlaneseq
      %v512 = vshrl.u32 %v511, 7
      %v513 = vsub.s32 %v470, %v512
      %v514 = vrot.slane %v507, %v513
      %v515 = vlaneseq
      %v516 = vshrl.u32 %v515, 7
      %v517 = vsub.s32 %v470, %v516
      %v518 = vrot.slane %v510, %v517
      %v519 = vsel %vm479, %v518, %v514
      %v521 = vsel %vm482, %v519, 0.0
      %522 = vadd.xlane.f32.xlu0 %v521
      %v523 = vpop.xlane.xlu0 %522
      %v525 = vlaneseq
      %v526 = vshrl.u32 %v525, 7
      %v527 = vsub.s32 0, %v526
      %v528 = vrot.slane %v523, %v527
      %v529 = vlaneseq
      %v530 = vshrl.u32 %v529, 7
      %v531 = vsub.s32 1, %v530
      %v532 = vrot.slane %v523, %v531
      %v535 = vrcp.pop %v528
      %v536 = vmul.f32 %v500, %v535
      %v537 = vrcp.pop %v532
      %v538 = vmul.f32 %v502, %v537
      %540 = vset.pattern.permute.xlu0 0
      %541 = vperm.xlu0 %540, %v536
      %v542 = vpop.permute.xlu0 %541
      %545 = vset.pattern.permute.xlu0 0
      %546 = vperm.xlu0 %545, %v538
      %v547 = vpop.permute.xlu0 %546
      %v549 = vmul.f32 %v542, %v326
      %v550 = vmul.f32 %v547, %v327
      %v551 = vsel %vm341, %v549, 0.0
      %v552 = vrot.slane %v551, 4
      %v553 = vadd.f32 %v551, %v552
      %v554 = vrot.slane %v553, 2
      %v555 = vadd.f32 %v553, %v554
      %v556 = vrot.slane %v555, 1
      %v557 = vadd.f32 %v555, %v556
      %v558 = vsel %vm341, %v550, 0.0
      %v559 = vrot.slane %v558, 4
      %v560 = vadd.f32 %v558, %v559
      %v561 = vrot.slane %v560, 2
      %v562 = vadd.f32 %v560, %v561
      %v563 = vrot.slane %v562, 1
      %v564 = vadd.f32 %v562, %v563
      %v565 = vld [vmem:[#allocation4] sm:$0x3]
      %v568 = vsel %vm479, %v564, %v557
      %571 = vrot.lane.b32.xlu0 %v565, 32
      %v572 = vpop.permute.xlu0 %571
      %574 = vrot.lane.b32.xlu0 %v324, 32
      %v575 = vpop.permute.xlu0 %574
      %v577 = vsel %vm341, %v568, %v572
      %v578 = vsel %vm341, %v572, %v575
      %v579 = vld [vmem:[%s5] sm:$0xff]
      %v580 = vld [vmem:[%s5 + $0x8] sm:$0xff]
      %v581 = vld [vmem:[%s5 + $0x10] sm:$0xff]
      %v582 = vld [vmem:[%s5 + $0x18] sm:$0xff]
      %v583 = vld [vmem:[%s5 + $0x20] sm:$0xff]
      %v584 = vld [vmem:[%s5 + $0x28] sm:$0xff]
      %v585 = vld [vmem:[%s5 + $0x30] sm:$0xff]
      %v586 = vld [vmem:[%s5 + $0x38] sm:$0xff]
      %v587 = vld [vmem:[%s5 + $0x40] sm:$0xff]
      %v588 = vld [vmem:[%s5 + $0x48] sm:$0xff]
      %v589 = vld [vmem:[%s5 + $0x50] sm:$0xff]
      %v590 = vld [vmem:[%s5 + $0x58] sm:$0xff]
      %v591 = vld [vmem:[%s5 + $0x60] sm:$0xff]
      %v592 = vld [vmem:[%s5 + $0x68] sm:$0xff]
      %v593 = vld [vmem:[%s5 + $0x70] sm:$0xff]
      %v594 = vld [vmem:[%s5 + $0x78] sm:$0xff]
      %v595 = vld [vmem:[%s5 + $0x80] sm:$0xff]
      %v596 = vld [vmem:[%s5 + $0x88] sm:$0xff]
      %v597 = vld [vmem:[%s5 + $0x90] sm:$0xff]
      %v598 = vld [vmem:[%s5 + $0x98] sm:$0xff]
      %v599 = vld [vmem:[%s5 + $0xa0] sm:$0xff]
      %v600 = vld [vmem:[%s5 + $0xa8] sm:$0xff]
      %v601 = vld [vmem:[%s5 + $0xb0] sm:$0xff]
      %v602 = vld [vmem:[%s5 + $0xb8] sm:$0xff]
      %v603 = vld [vmem:[%s6] sm:$0x1]
      %v605 = vlaneseq
      %v606 = vshrl.u32 %v605, 7
      %v607 = vsub.s32 0, %v606
      %v608 = vrot.slane %v603, %v607
      %vm610 = vcmask 523264
      %v612 = vsel %vm610, %v578, 0
      %614 = vmatprep.subr.mxu0 0.0
      %615 = vmatpush1.msra.mxu0 %v579
      %616 = vmatprep.subr.mxu0 0.0
      %617 = vmatpush1.msra.mxu0 %v580
      %618 = vmatprep.subr.mxu0 0.0
      %619 = vmatpush1.msra.mxu0 %v581
      %620 = vmatprep.subr.mxu0 0.0
      %621 = vmatpush1.msra.mxu0 %v582
      %622 = vmatprep.subr.mxu0 0.0
      %623 = vmatpush1.msra.mxu0 %v583
      %624 = vmatprep.subr.mxu0 0.0
      %625 = vmatpush1.msra.mxu0 %v584
      %626 = vmatprep.subr.mxu0 0.0
      %627 = vmatpush1.msra.mxu0 %v585
      %628 = vmatprep.subr.mxu0 0.0
      %629 = vmatpush1.msra.mxu0 %v586
      %630 = vmatprep.subr.mxu0 0.0
      %631 = vmatpush1.msra.mxu0 %v587
      %632 = vmatprep.subr.mxu0 0.0
      %633 = vmatpush1.msra.mxu0 %v588
      %634 = vmatprep.subr.mxu0 0.0
      %635 = vmatpush1.msra.mxu0 %v589
      %636 = vmatprep.subr.mxu0 0.0
      %637 = vmatpush1.msra.mxu0 %v590
      %638 = vmatprep.subr.mxu0 0.0
      %639 = vmatpush1.msra.mxu0 %v591
      %640 = vmatprep.subr.mxu0 0.0
      %641 = vmatpush1.msra.mxu0 %v592
      %642 = vmatprep.subr.mxu0 0.0
      %643 = vmatpush1.msra.mxu0 %v593
      %644 = vmatprep.subr.mxu0 0.0
      %645 = vmatpush1.msra.mxu0 %v594
      %646 = vmatprep.subr.mxu0 0.0
      %647 = vmatpush1.msra.mxu0 %v595
      %648 = vmatprep.subr.mxu0 0.0
      %649 = vmatpush1.msra.mxu0 %v596
      %650 = vmatprep.subr.mxu0 0.0
      %651 = vmatpush1.msra.mxu0 %v597
      %652 = vmatprep.subr.mxu0 0.0
      %653 = vmatpush1.msra.mxu0 %v598
      %654 = vmatprep.subr.mxu0 0.0
      %655 = vmatpush1.msra.mxu0 %v599
      %656 = vmatprep.subr.mxu0 0.0
      %657 = vmatpush1.msra.mxu0 %v600
      %658 = vmatprep.subr.mxu0 0.0
      %659 = vmatpush1.msra.mxu0 %v601
      %660 = vmatprep.subr.mxu0 0.0
      %661 = vmatpush1.msra.mxu0 %v602
      %662 = vmatprep.subr.mxu0 0.0
      %663 = vmatpush1.msra.mxu0 0.0
      %664 = vmatprep.subr.mxu0 0.0
      %665 = vmatpush1.msra.mxu0 0.0
      %666 = vmatprep.subr.mxu0 0.0
      %667 = vmatpush1.msra.mxu0 0.0
      %668 = vmatprep.subr.mxu0 0.0
      %669 = vmatpush1.msra.mxu0 0.0
      %670 = vmatprep.subr.mxu0 0.0
      %671 = vmatpush1.msra.mxu0 0.0
      %672 = vmatprep.subr.mxu0 0.0
      %673 = vmatpush1.msra.mxu0 0.0
      %674 = vmatprep.subr.mxu0 0.0
      %675 = vmatpush1.msra.mxu0 0.0
      %676 = vmatprep.subr.mxu0 0.0
      %677 = vmatpush1.msra.mxu0 0.0
      %678 = vmatprep.mubr.f32.mxu0 %v612
      %679 = vmatmul.mubr.f32.gmra.mrb[0].mxu0 %v577
      %v680 = vpop.f32.mrb[0].mxu0
      %v681 = vadd.f32 %v608, %v680
      %v682 = vpop.f32.mrb[0].mxu0
      %683 = vdwg.mxu0
      %v684 = vxor.u32 %v681, 2147483648
      %v685 = vmul.f32 %v684, 1.442695
      %v686 = vpow.pop %v685
      %v687 = vadd.f32 %v686, 1.0
      %v688 = vrcp.pop %v687
      %v689 = vmul.f32 1.0, %v688
      %v690 = vtanh.pop %v681
      %692 = vrot.lane.b32.xlu0 %v325, 32
      %v693 = vpop.permute.xlu0 %692
      %v695 = vmul.f32 %v689, %v693
      %697 = vrot.lane.b32.xlu0 %v690, 64
      %v698 = vpop.permute.xlu0 %697
      %v700 = vmul.f32 %v689, %v698
      %702 = vrot.lane.b32.xlu0 %v700, 32
      %v703 = vpop.permute.xlu0 %702
      %v705 = vadd.f32 %v695, %v703
      %v706 = vtanh.pop %v705
      %708 = vrot.lane.b32.xlu0 %v706, 64
      %v709 = vpop.permute.xlu0 %708
      %v711 = vmul.f32 %v689, %v709
      %v712 = vld [vmem:[%s7] sm:$0xff]
      %v713 = vld [vmem:[%s7 + $0x8] sm:$0xff]
      %v714 = vld [vmem:[%s7 + $0x10] sm:$0xff]
      %v715 = vld [vmem:[%s7 + $0x18] sm:$0xff]
      %v716 = vld [vmem:[%s8] sm:$0x1]
      %v718 = vlaneseq
      %v719 = vshrl.u32 %v718, 7
      %v720 = vsub.s32 0, %v719
      %v721 = vrot.slane %v716, %v720
      %724 = vrot.lane.b32.xlu0 %v711, 32
      %v725 = vpop.permute.xlu0 %724
      %v726 = vsel %vm341, %v725, 0
      %728 = vmatprep.subr.mxu0 0.0
      %729 = vmatpush1.msra.mxu0 %v712
      %730 = vmatprep.subr.mxu0 0.0
      %731 = vmatpush1.msra.mxu0 %v713
      %732 = vmatprep.subr.mxu0 0.0
      %733 = vmatpush1.msra.mxu0 %v714
      %734 = vmatprep.subr.mxu0 0.0
      %735 = vmatpush1.msra.mxu0 %v715
      %736 = vmatprep.subr.mxu0 0.0
      %737 = vmatpush1.msra.mxu0 0.0
      %738 = vmatprep.subr.mxu0 0.0
      %739 = vmatpush1.msra.mxu0 0.0
      %740 = vmatprep.subr.mxu0 0.0
      %741 = vmatpush1.msra.mxu0 0.0
      %742 = vmatprep.subr.mxu0 0.0
      %743 = vmatpush1.msra.mxu0 0.0
      %744 = vmatprep.subr.mxu0 0.0
      %745 = vmatpush1.msra.mxu0 0.0
      %746 = vmatprep.subr.mxu0 0.0
      %747 = vmatpush1.msra.mxu0 0.0
      %748 = vmatprep.subr.mxu0 0.0
      %749 = vmatpush1.msra.mxu0 0.0
      %750 = vmatprep.subr.mxu0 0.0
      %751 = vmatpush1.msra.mxu0 0.0
      %752 = vmatprep.subr.mxu0 0.0
      %753 = vmatpush1.msra.mxu0 0.0
      %754 = vmatprep.subr.mxu0 0.0
      %755 = vmatpush1.msra.mxu0 0.0
      %756 = vmatprep.subr.mxu0 0.0
      %757 = vmatpush1.msra.mxu0 0.0
      %758 = vmatprep.subr.mxu0 0.0
      %759 = vmatpush1.msra.mxu0 0.0
      %760 = vmatprep.subr.mxu0 0.0
      %761 = vmatpush1.msra.mxu0 0.0
      %762 = vmatprep.subr.mxu0 0.0
      %763 = vmatpush1.msra.mxu0 0.0
      %764 = vmatprep.subr.mxu0 0.0
      %765 = vmatpush1.msra.mxu0 0.0
      %766 = vmatprep.subr.mxu0 0.0
      %767 = vmatpush1.msra.mxu0 0.0
      %768 = vmatprep.subr.mxu0 0.0
      %769 = vmatpush1.msra.mxu0 0.0
      %770 = vmatprep.subr.mxu0 0.0
      %771 = vmatpush1.msra.mxu0 0.0
      %772 = vmatprep.subr.mxu0 0.0
      %773 = vmatpush1.msra.mxu0 0.0
      %774 = vmatprep.subr.mxu0 0.0
      %775 = vmatpush1.msra.mxu0 0.0
      %776 = vmatprep.subr.mxu0 0.0
      %777 = vmatpush1.msra.mxu0 0.0
      %778 = vmatprep.subr.mxu0 0.0
      %779 = vmatpush1.msra.mxu0 0.0
      %780 = vmatprep.subr.mxu0 0.0
      %781 = vmatpush1.msra.mxu0 0.0
      %782 = vmatprep.subr.mxu0 0.0
      %783 = vmatpush1.msra.mxu0 0.0
      %784 = vmatprep.subr.mxu0 0.0
      %785 = vmatpush1.msra.mxu0 0.0
      %786 = vmatprep.subr.mxu0 0.0
      %787 = vmatpush1.msra.mxu0 0.0
      %788 = vmatprep.subr.mxu0 0.0
      %789 = vmatpush1.msra.mxu0 0.0
      %790 = vmatprep.subr.mxu0 0.0
      %791 = vmatpush1.msra.mxu0 0.0
      %792 = vmatprep.mubr.f32.mxu0 0.0
      %793 = vmatmul.mubr.f32.gmra.mrb[0].mxu0 %v726
      %v794 = vpop.f32.mrb[0].mxu0
      %v795 = vadd.f32 %v721, %v794
      %v796 = vpop.f32.mrb[0].mxu0
      %797 = vdwg.mxu0
      %798 = vst [vmem:[%s310] sm:$0x3] %v795
      %vm799 = vcmask 1041408
      %v800 = vsel %vm799, %v795, -inf
      %801 = vmax.xlane.f32.xlu0 %v800
      %v802 = vpop.xlane.xlu0 %801
      %vm803 = vcmp.eq.f32.partialorder %v795, %v802
      %v804 = vsel %vm803, %v470, 128
      %v805 = vsel %vm799, %v804, 2147483647
      %v806 = vand.u32 %v805, 65535
      %v807 = vshra.s32 %v805, 16
      %v808 = vcvt.s32.f32 %v806
      %v809 = vcvt.s32.f32 %v807
      %810 = vmin.xlane.f32.xlu0 %v809
      %v811 = vpop.xlane.xlu0 %810
      %vm812 = vcmp.eq.f32.partialorder %v809, %v811
      %v813 = vsel %vm812, %v808, inf
      %814 = vmin.xlane.f32.xlu0 %v813
      %v815 = vpop.xlane.xlu0 %814
      %v816 = vcvt.f32.s32 %v815
      %v817 = vcvt.f32.s32 %v811
      %v818 = vshll.u32 %v817, 16
      %v819 = vadd.s32 %v818, %v816
      %vm820 = vcmp.eq.s32.totalorder %v470, %v819
      %v821 = vsel %vm820, 1, 0
      %v822 = vcvt.s32.f32 %v821
      %823 = vst [vmem:[#allocation4] sm:$0x3] %v822
      %vm825 = vcmask 254976
      %826 = vst.msk [vmem:[#allocation2] sm:$0x3] %vm825, %v725
      %828 = vrot.lane.b32.xlu0 %v705, 96
      %v829 = vpop.permute.xlu0 %828
      %831 = vst.msk [vmem:[#allocation3] sm:$0x3] %vm825, %v829
      %p832 = scmp.lt.s32.totalorder %s20, 8
      %s833 = scalar_select %p832, %s20, 8
      %s834 = smul.addr %s833, 2
      %s835 = scalar_lea.vmem %s9, %s834
      // Predicated region
      $region61: #{_lambda_.29} parent=55 // pred_check
        %p836 = pneg %p227
      $region62: #{_lambda_.29} parent=55 // pred_check_branch
        %838 = sbr.rel (%p836) target = $region64
      $region63: #{_lambda_.29} parent=55 // pred_region
        _
      $region64: #{_lambda_.29} parent=55 // pred_fallthru
        _
    $region56: #{_lambda_.29} parent=5 // pred_fallthru
      _
    %p839 = scmp.le.s32.totalorder 2, %s15
    // Predicated region
    $region65: #{_lambda_.29} parent=5 // pred_check
      %p840 = pneg %p839
    $region66: #{_lambda_.29} parent=5 // pred_check_branch
      %842 = sbr.rel (%p840) target = $region68
    $region67: #{_lambda_.29} parent=5 // pred_region
      %s843 = ssub.s32 %s15, 2
      // Predicated region
      $region69: #{_lambda_.29} parent=67 // pred_check
        %p844 = pneg %p233
      $region70: #{_lambda_.29} parent=67 // pred_check_branch
        %846 = sbr.rel (%p844) target = $region72
      $region71: #{_lambda_.29} parent=67 // pred_region
        %p847 = scmp.lt.s32.totalorder %s21, 8
        %s848 = scalar_select %p847, %s21, 8
        %s849 = smul.addr %s848, 2
        %s850 = scalar_lea.vmem %s9, %s849
      $region72: #{_lambda_.29} parent=67 // pred_fallthru
        _
    $region68: #{_lambda_.29} parent=5 // pred_fallthru
      _
  $region6: #{_lambda_.29} parent=0 // loop_footer
    %s19 = sadd.s32 1, %s15
  $region7: #{_lambda_.29} parent=0 // loop_footer_branch
    %14 = sbr.rel target = $region3
  $region8: #{_lambda_.29} parent=0 // loop_exit
    _

</llo_original>
